<compile_context>
chip_gen: v6e
topology: v6e:2x2x1
jax: 0.10.0
libtpu: 0.0.40
codegen_flags: <defaults>
</compile_context>

<pallas_src>
import math

import jax
import jax.numpy as jnp
from jax.experimental import pallas as pl
from jax.experimental.pallas import tpu as pltpu


# ----------------------------------------------------------------------------
# Pallas kernel: one grid step == one block of `block_b` batch elements.
# x block: (block_b, dim, N) channel-major.  Outputs: transformed points
# (block_b, dim, N) and the per-sample transform, stored transposed (Y^T).
# ----------------------------------------------------------------------------
def tnet_kernel(x_ref,
                w1_ref, t1_ref, w2_ref, t2_ref, w3_ref, t3_ref,
                d1_ref, dt1_ref, d2_ref, dt2_ref, wo_ref, bo_ref,
                out_ref, yt_ref, gt_ref):
    bt = x_ref.shape[0]
    dim = x_ref.shape[1]
    f32 = jnp.float32
    bf16 = jnp.bfloat16

    w1 = w1_ref[...]           # (C1, dim) f32, BN scale already folded in
    t1 = t1_ref[...]           # (C1, 1)   f32, BN shift (+conv bias)

    # ---------------- encoder (channels on sublanes, points on lanes) ----------
    for b in range(bt):
        xb = x_ref[b]                                          # (dim, N) f32
        # Conv1d #1: K = dim (3) -> VPU broadcast-MACs (MXU would be ~97% padding).
        h = w1[:, 0:1] * xb[0:1, :]
        for i in range(1, dim):
            h = h + w1[:, i:i + 1] * xb[i:i + 1, :]
        h = jnp.maximum(h + t1, 0.0)                           # (C1, N)
        # Conv1d #2 / #3: MXU matmuls, bf16 operands, f32 accumulation.
        h = jnp.dot(w2_ref[...], h.astype(bf16), preferred_element_type=f32)
        h = jnp.maximum(h + t2_ref[...], 0.0)                  # (C2, N)
        h = jnp.dot(w3_ref[...], h.astype(bf16), preferred_element_type=f32)
        h = jnp.maximum(h + t3_ref[...], 0.0)                  # (C3, N)
        # Global max-pool over the points (lane reduction) -> one column / sample.
        gt_ref[:, b:b + 1] = jnp.max(h, axis=1, keepdims=True)

    # ---------------- decoder, batched over the block_b samples ----------------
    gt = gt_ref[...]                                           # (C3, block_b)
    z = jnp.dot(d1_ref[...], gt.astype(bf16), preferred_element_type=f32)
    z = jnp.maximum(z + dt1_ref[...], 0.0)                     # (D1, block_b)
    z = jnp.dot(d2_ref[...], z.astype(bf16), preferred_element_type=f32)
    z = jnp.maximum(z + dt2_ref[...], 0.0)                     # (D2, block_b)
    # TODO(synk): Dropout is identity (inference mode); training RNG not reproduced.
    y9 = jnp.dot(wo_ref[...], z.astype(bf16), preferred_element_type=f32) + bo_ref[...]
    # y9[i*dim + j, b] == Y[b, i, j]                            # (dim*dim, block_b)

    # -------- apply per-sample transform: out[b, j, n] = sum_i Y[b,i,j] * x[b,i,n]
    for b in range(bt):
        xb = x_ref[b]                                          # (dim, N)
        cols = [y9[i * dim:(i + 1) * dim, b:b + 1] for i in range(dim)]  # (dim,1) each
        o = cols[0] * xb[0:1, :]                               # VPU MACs, K = dim
        for i in range(1, dim):
            o = o + cols[i] * xb[i:i + 1, :]
        out_ref[b] = o                                         # (dim, N): lane-dense store
        for i in range(dim):
            yt_ref[b, :, i:i + 1] = cols[i]                    # stores Y^T; wrapper transposes


# ----------------------------------------------------------------------------
# Wrapper
# ----------------------------------------------------------------------------
def _pick_block_b(batch, n_points, c3=1024):
    # Budget the (C3, N) f32 activations per in-flight sample; cap for v7x (64 MiB VMEM).
    per_sample = 3 * c3 * max(n_points, 128) * 4
    budget = 24 * 1024 * 1024
    bt = max(1, min(batch, budget // per_sample, 8))
    while batch % bt:
        bt -= 1
    return bt


def tnet_forward(x, params, *, block_b=None):
    """x: (B, dim, N) float32 (PyTorch NCW).  Returns (out (B, dim, N), y, penalty)."""
    B, dim, N = x.shape
    x = x.astype(jnp.float32)
    if block_b is None:
        block_b = _pick_block_b(B, N)
    assert B % block_b == 0, "batch must be divisible by block_b"
    grid = (B // block_b,)

    w1, _, w2, _, w3, _, d1, _, d2, _, wo, _ = params
    c3 = w3.shape[0]

    in_specs = [pl.BlockSpec((block_b, dim, N), lambda b: (b, 0, 0))]
    in_specs += [pl.BlockSpec(p.shape, lambda b: (0, 0)) for p in params]
    out_specs = (pl.BlockSpec((block_b, dim, N), lambda b: (b, 0, 0)),
                 pl.BlockSpec((block_b, dim, dim), lambda b: (b, 0, 0)))
    out_shape = (jax.ShapeDtypeStruct((B, dim, N), jnp.float32),
                 jax.ShapeDtypeStruct((B, dim, dim), jnp.float32))

    # Advisory cost estimate so XLA can overlap the surrounding ops.
    flops = 2 * B * N * (w1.shape[0] * w1.shape[1] + w2.shape[0] * w2.shape[1]
                         + w3.shape[0] * w3.shape[1] + dim * dim)
    flops += 2 * B * (d1.shape[0] * d1.shape[1] + d2.shape[0] * d2.shape[1]
                      + wo.shape[0] * wo.shape[1])
    param_bytes = sum(int(p.nbytes) for p in params)
    bytes_accessed = 2 * B * dim * N * 4 + B * dim * dim * 4 + param_bytes

    # VMEM budget: double-buffered weights + x/out blocks + widest f32 activations.
    est = (2 * param_bytes
           + 4 * block_b * dim * N * 4
           + 3 * c3 * N * 4
           + c3 * block_b * 4)
    vmem_limit = int(min(64 * 1024 * 1024, max(32 * 1024 * 1024, 2 * est)))

    out, yt = pl.pallas_call(
        tnet_kernel,
        out_shape=out_shape,
        grid_spec=pltpu.PrefetchScalarGridSpec(
            num_scalar_prefetch=0,
            grid=grid,
            in_specs=in_specs,
            out_specs=out_specs,
            scratch_shapes=[pltpu.VMEM((c3, block_b), jnp.float32)]),
        compiler_params=pltpu.CompilerParams(
            dimension_semantics=("parallel",),        # shard blocks over v7x's 2 TCs
            vmem_limit_bytes=vmem_limit),
        cost_estimate=pl.CostEstimate(flops=int(flops), transcendentals=0,
                                      bytes_accessed=int(bytes_accessed)),
    )(x, *params)

    y = jnp.swapaxes(yt, 1, 2)                         # kernel emits Y^T per sample
    eye = jnp.eye(dim, dtype=jnp.float32)
    penalty = jnp.sqrt(jnp.sum((eye[None] - y) ** 2))  # torch.norm(eye - y)
    return out, y, penalty


# ----------------------------------------------------------------------------
# Deterministic parameter construction (eval-mode BN folded; kernel layout)
# ----------------------------------------------------------------------------
def build_params(key, dim=3, encoder=(64, 128, 1024), decoder=(512, 256), eps=1e-5):
    f32, bf16 = jnp.float32, jnp.bfloat16
    n_layers = len(encoder) + len(decoder) + 1
    keys = jax.random.split(key, 3 * n_layers)
    kit = iter(keys)

    def rand_w(k, fan_in, shape):
        return jax.random.normal(k, shape, f32) * (1.0 / math.sqrt(fan_in))

    def rand_bn(k, c):
        k1, k2, k3, k4 = jax.random.split(k, 4)
        gamma = 1.0 + 0.1 * jax.random.normal(k1, (c,), f32)
        beta = 0.1 * jax.random.normal(k2, (c,), f32)
        mean = 0.1 * jax.random.normal(k3, (c,), f32)
        var = 0.5 + 0.1 * jnp.abs(jax.random.normal(k4, (c,), f32))
        return gamma, beta, mean, var

    flat = []
    # Encoder Conv1d(k=1) weights in channel-major (Cout, Cin), BN scale folded in.
    cins = (dim,) + tuple(encoder[:-1])
    for li, (cin, cout) in enumerate(zip(cins, encoder)):
        w = rand_w(next(kit), cin, (cout, cin))
        b = 0.1 * jax.random.normal(next(kit), (cout,), f32)
        gamma, beta, mean, var = rand_bn(next(kit), cout)
        s = gamma / jnp.sqrt(var + eps)
        wf = w * s[:, None]                                    # fold BN scale
        tf_ = (beta + s * (b - mean)).reshape(cout, 1)         # fold bias + BN shift
        flat += [wf.astype(f32 if li == 0 else bf16), tf_.astype(f32)]
    # Decoder Linear weights, also (Cout, Cin) (feature-major decoder), BN folded in.
    dins = (encoder[-1],) + tuple(decoder[:-1])
    for cin, cout in zip(dins, decoder):
        w = rand_w(next(kit), cin, (cout, cin))
        b = 0.1 * jax.random.normal(next(kit), (cout,), f32)
        gamma, beta, mean, var = rand_bn(next(kit), cout)
        s = gamma / jnp.sqrt(var + eps)
        flat += [(w * s[:, None]).astype(bf16),
                 (beta + s * (b - mean)).reshape(cout, 1).astype(f32)]
    # Final Linear: (dim*dim, decoder[-1]); plain bias (no BN).  The PyTorch spec
    # does NOT add an identity to the transform, so neither do we.
    w = rand_w(next(kit), decoder[-1], (dim * dim, decoder[-1]))
    b = 0.1 * jax.random.normal(next(kit), (dim * dim,), f32)
    flat += [w.astype(bf16), b.reshape(dim * dim, 1).astype(f32)]
    return tuple(flat)


# ----------------------------------------------------------------------------
# Pure-JAX reference (mirrors the kernel's bf16 rounding points exactly)
# ----------------------------------------------------------------------------
def tnet_reference(x, params):
    (w1, t1, w2, t2, w3, t3, d1, dt1, d2, dt2, wo, bo) = params
    f32, bf16 = jnp.float32, jnp.bfloat16
    x = x.astype(f32)
    B, dim, N = x.shape

    def as_bf16(a):            # mirror the kernel's MXU input rounding (exact upcast)
        return a.astype(bf16).astype(f32)

    # encoder
    h = w1[None, :, 0:1] * x[:, 0:1, :]
    for i in range(1, dim):
        h = h + w1[None, :, i:i + 1] * x[:, i:i + 1, :]
    h = jnp.maximum(h + t1[None], 0.0)
    h = jnp.maximum(jnp.einsum('oc,bcn->bon', as_bf16(w2), as_bf16(h)) + t2[None], 0.0)
    h = jnp.maximum(jnp.einsum('oc,bcn->bon', as_bf16(w3), as_bf16(h)) + t3[None], 0.0)
    g = jnp.max(h, axis=2)                                     # (B, C3)
    # decoder
    g = jnp.maximum(jnp.einsum('oc,bc->bo', as_bf16(d1), as_bf16(g)) + dt1[:, 0][None], 0.0)
    g = jnp.maximum(jnp.einsum('oc,bc->bo', as_bf16(d2), as_bf16(g)) + dt2[:, 0][None], 0.0)
    y = (jnp.einsum('oc,bc->bo', as_bf16(wo), as_bf16(g)) + bo[:, 0][None]).reshape(B, dim, dim)
    # transform: out[b, j, n] = sum_i y[b, i, j] * x[b, i, n]
    out = y[:, 0, :, None] * x[:, 0, None, :]
    for i in range(1, dim):
        out = out + y[:, i, :, None] * x[:, i, None, :]
    penalty = jnp.sqrt(jnp.sum((jnp.eye(dim, dtype=f32)[None] - y) ** 2))
    return out, y, penalty


if __name__ == "__main__":
    dim = 3
    encoder = (64, 128, 1024)
    decoder = (512, 256)
    B, N = 4, 256                 # small demo shapes; N multiple of 128 keeps lanes dense

    key = jax.random.PRNGKey(0)
    kx, kp = jax.random.split(key)
    x = jax.random.normal(kx, (B, dim, N), jnp.float32)   # PyTorch NCW input (B, dim, n_points)
    params = build_params(kp, dim=dim, encoder=encoder, decoder=decoder)

    out, y, penalty = tnet_forward(x, params, block_b=2)  # 2 samples / grid step -> grid=(2,)
    out, y, penalty = jax.block_until_ready((out, y, penalty))

    out_r, y_r, pen_r = tnet_reference(x, params)
    assert out.shape == (B, dim, N) and y.shape == (B, dim, dim)
    assert jnp.allclose(out, out_r, rtol=1e-3, atol=1e-3), "transformed points mismatch"
    assert jnp.allclose(y, y_r, rtol=1e-3, atol=1e-3), "transform matrix mismatch"
    assert jnp.allclose(penalty, pen_r, rtol=1e-3, atol=1e-3), "penalty mismatch"

    print("KERNEL_OK")
</pallas_src>

<mosaic_0001>
module attributes {stable_mosaic.version = 11 : i64} {
  func.func @tnet_kernel(%arg0: i32, %arg1: memref<2x3x256xf32, #tpu.memory_space<vmem>>, %arg2: memref<64x3xf32, #tpu.memory_space<vmem>>, %arg3: memref<64x1xf32, #tpu.memory_space<vmem>>, %arg4: memref<128x64xbf16, #tpu.memory_space<vmem>>, %arg5: memref<128x1xf32, #tpu.memory_space<vmem>>, %arg6: memref<1024x128xbf16, #tpu.memory_space<vmem>>, %arg7: memref<1024x1xf32, #tpu.memory_space<vmem>>, %arg8: memref<512x1024xbf16, #tpu.memory_space<vmem>>, %arg9: memref<512x1xf32, #tpu.memory_space<vmem>>, %arg10: memref<256x512xbf16, #tpu.memory_space<vmem>>, %arg11: memref<256x1xf32, #tpu.memory_space<vmem>>, %arg12: memref<9x256xbf16, #tpu.memory_space<vmem>>, %arg13: memref<9x1xf32, #tpu.memory_space<vmem>>, %arg14: memref<2x3x256xf32, #tpu.memory_space<vmem>>, %arg15: memref<2x3x3xf32, #tpu.memory_space<vmem>>, %arg16: memref<1024x2xf32, #tpu.memory_space<vmem>>) attributes {dimension_semantics = [#tpu.dimension_semantics<parallel>], iteration_bounds = array<i64: 2>, scalar_prefetch = 0 : i64, scratch_operands = 1 : i64, tpu.core_type = #tpu.core_type<tc>, window_params = [{transform_indices = @transform_0, window_bounds = array<i64: 2, 3, 256>}, {pipeline_mode = #tpu.pipeline_mode<synchronous>, transform_indices = @transform_1, window_bounds = array<i64: 64, 3>}, {pipeline_mode = #tpu.pipeline_mode<synchronous>, transform_indices = @transform_2, window_bounds = array<i64: 64, 1>}, {pipeline_mode = #tpu.pipeline_mode<synchronous>, transform_indices = @transform_3, window_bounds = array<i64: 128, 64>}, {pipeline_mode = #tpu.pipeline_mode<synchronous>, transform_indices = @transform_4, window_bounds = array<i64: 128, 1>}, {pipeline_mode = #tpu.pipeline_mode<synchronous>, transform_indices = @transform_5, window_bounds = array<i64: 1024, 128>}, {pipeline_mode = #tpu.pipeline_mode<synchronous>, transform_indices = @transform_6, window_bounds = array<i64: 1024, 1>}, {pipeline_mode = #tpu.pipeline_mode<synchronous>, transform_indices = @transform_7, window_bounds = array<i64: 512, 1024>}, {pipeline_mode = #tpu.pipeline_mode<synchronous>, transform_indices = @transform_8, window_bounds = array<i64: 512, 1>}, {pipeline_mode = #tpu.pipeline_mode<synchronous>, transform_indices = @transform_9, window_bounds = array<i64: 256, 512>}, {pipeline_mode = #tpu.pipeline_mode<synchronous>, transform_indices = @transform_10, window_bounds = array<i64: 256, 1>}, {pipeline_mode = #tpu.pipeline_mode<synchronous>, transform_indices = @transform_11, window_bounds = array<i64: 9, 256>}, {pipeline_mode = #tpu.pipeline_mode<synchronous>, transform_indices = @transform_12, window_bounds = array<i64: 9, 1>}, {transform_indices = @transform_13, window_bounds = array<i64: 2, 3, 256>}, {transform_indices = @transform_14, window_bounds = array<i64: 2, 3, 3>}]} {
    %c0 = arith.constant 0 : index
    %c0_0 = arith.constant 0 : index
    %0 = vector.load %arg2[%c0, %c0_0] : memref<64x3xf32, #tpu.memory_space<vmem>>, vector<64x3xf32>
    %c0_1 = arith.constant 0 : index
    %c0_2 = arith.constant 0 : index
    %1 = vector.load %arg3[%c0_1, %c0_2] : memref<64x1xf32, #tpu.memory_space<vmem>>, vector<64x1xf32>
    %c0_3 = arith.constant 0 : index
    %c0_4 = arith.constant 0 : index
    %c0_5 = arith.constant 0 : index
    %2 = vector.load %arg1[%c0_3, %c0_4, %c0_5] : memref<2x3x256xf32, #tpu.memory_space<vmem>>, vector<1x3x256xf32>
    %3 = vector.shape_cast %2 : vector<1x3x256xf32> to vector<3x256xf32>
    %4 = vector.extract_strided_slice %0 {offsets = [0, 0], sizes = [64, 1], strides = [1, 1]} : vector<64x3xf32> to vector<64x1xf32>
    %5 = vector.extract_strided_slice %3 {offsets = [0, 0], sizes = [1, 256], strides = [1, 1]} : vector<3x256xf32> to vector<1x256xf32>
    %6 = vector.broadcast %4 : vector<64x1xf32> to vector<64x256xf32>
    %7 = vector.broadcast %5 : vector<1x256xf32> to vector<64x256xf32>
    %8 = arith.mulf %6, %7 : vector<64x256xf32>
    %9 = vector.extract_strided_slice %0 {offsets = [0, 1], sizes = [64, 1], strides = [1, 1]} : vector<64x3xf32> to vector<64x1xf32>
    %10 = vector.extract_strided_slice %3 {offsets = [1, 0], sizes = [1, 256], strides = [1, 1]} : vector<3x256xf32> to vector<1x256xf32>
    %11 = vector.broadcast %9 : vector<64x1xf32> to vector<64x256xf32>
    %12 = vector.broadcast %10 : vector<1x256xf32> to vector<64x256xf32>
    %13 = arith.mulf %11, %12 : vector<64x256xf32>
    %14 = arith.addf %8, %13 : vector<64x256xf32>
    %15 = vector.extract_strided_slice %0 {offsets = [0, 2], sizes = [64, 1], strides = [1, 1]} : vector<64x3xf32> to vector<64x1xf32>
    %16 = vector.extract_strided_slice %3 {offsets = [2, 0], sizes = [1, 256], strides = [1, 1]} : vector<3x256xf32> to vector<1x256xf32>
    %17 = vector.broadcast %15 : vector<64x1xf32> to vector<64x256xf32>
    %18 = vector.broadcast %16 : vector<1x256xf32> to vector<64x256xf32>
    %19 = arith.mulf %17, %18 : vector<64x256xf32>
    %20 = arith.addf %14, %19 : vector<64x256xf32>
    %21 = vector.broadcast %1 : vector<64x1xf32> to vector<64x256xf32>
    %22 = arith.addf %20, %21 : vector<64x256xf32>
    %cst = arith.constant 0.000000e+00 : f32
    %23 = vector.broadcast %cst : f32 to vector<64x256xf32>
    %24 = arith.maximumf %22, %23 : vector<64x256xf32>
    %c0_6 = arith.constant 0 : index
    %c0_7 = arith.constant 0 : index
    %25 = vector.load %arg4[%c0_6, %c0_7] : memref<128x64xbf16, #tpu.memory_space<vmem>>, vector<128x64xbf16>
    %26 = arith.truncf %24 : vector<64x256xf32> to vector<64x256xbf16>
    %cst_8 = arith.constant dense<0.000000e+00> : vector<128x256xf32>
    %27 = tpu.matmul %25, %26, %cst_8 {dimension_numbers = #tpu.dot_dimension_numbers<[1], [0], [0], [1], [0, 0, 1, 1], [], []>} : vector<128x64xbf16>, vector<64x256xbf16>, vector<128x256xf32> -> vector<128x256xf32>
    %c0_9 = arith.constant 0 : index
    %c0_10 = arith.constant 0 : index
    %28 = vector.load %arg5[%c0_9, %c0_10] : memref<128x1xf32, #tpu.memory_space<vmem>>, vector<128x1xf32>
    %29 = vector.broadcast %28 : vector<128x1xf32> to vector<128x256xf32>
    %30 = arith.addf %27, %29 : vector<128x256xf32>
    %cst_11 = arith.constant 0.000000e+00 : f32
    %31 = vector.broadcast %cst_11 : f32 to vector<128x256xf32>
    %32 = arith.maximumf %30, %31 : vector<128x256xf32>
    %c0_12 = arith.constant 0 : index
    %c0_13 = arith.constant 0 : index
    %33 = vector.load %arg6[%c0_12, %c0_13] : memref<1024x128xbf16, #tpu.memory_space<vmem>>, vector<1024x128xbf16>
    %34 = arith.truncf %32 : vector<128x256xf32> to vector<128x256xbf16>
    %cst_14 = arith.constant dense<0.000000e+00> : vector<1024x256xf32>
    %35 = tpu.matmul %33, %34, %cst_14 {dimension_numbers = #tpu.dot_dimension_numbers<[1], [0], [0], [1], [0, 0, 1, 1], [], []>} : vector<1024x128xbf16>, vector<128x256xbf16>, vector<1024x256xf32> -> vector<1024x256xf32>
    %c0_15 = arith.constant 0 : index
    %c0_16 = arith.constant 0 : index
    %36 = vector.load %arg7[%c0_15, %c0_16] : memref<1024x1xf32, #tpu.memory_space<vmem>>, vector<1024x1xf32>
    %37 = vector.broadcast %36 : vector<1024x1xf32> to vector<1024x256xf32>
    %38 = arith.addf %35, %37 : vector<1024x256xf32>
    %cst_17 = arith.constant 0.000000e+00 : f32
    %39 = vector.broadcast %cst_17 : f32 to vector<1024x256xf32>
    %40 = arith.maximumf %38, %39 : vector<1024x256xf32>
    %cst_18 = arith.constant dense<0xFF800000> : vector<1024xf32>
    %41 = vector.multi_reduction <maximumf>, %40, %cst_18 [1] : vector<1024x256xf32> to vector<1024xf32>
    %42 = vector.shape_cast %41 : vector<1024xf32> to vector<1024x1xf32>
    %c0_19 = arith.constant 0 : index
    %c0_20 = arith.constant 0 : index
    %43 = vector.load %arg16[%c0_19, %c0_20] : memref<1024x2xf32, #tpu.memory_space<vmem>>, vector<1024x1xf32>
    tpu.vector_store %arg16[%c0_19, %c0_20], %42 {strides = array<i32>} : memref<1024x2xf32, #tpu.memory_space<vmem>>, vector<1024x1xf32>,
    %c1 = arith.constant 1 : index
    %c0_21 = arith.constant 0 : index
    %c0_22 = arith.constant 0 : index
    %44 = vector.load %arg1[%c1, %c0_21, %c0_22] : memref<2x3x256xf32, #tpu.memory_space<vmem>>, vector<1x3x256xf32>
    %45 = vector.shape_cast %44 : vector<1x3x256xf32> to vector<3x256xf32>
    %46 = vector.extract_strided_slice %0 {offsets = [0, 0], sizes = [64, 1], strides = [1, 1]} : vector<64x3xf32> to vector<64x1xf32>
    %47 = vector.extract_strided_slice %45 {offsets = [0, 0], sizes = [1, 256], strides = [1, 1]} : vector<3x256xf32> to vector<1x256xf32>
    %48 = vector.broadcast %46 : vector<64x1xf32> to vector<64x256xf32>
    %49 = vector.broadcast %47 : vector<1x256xf32> to vector<64x256xf32>
    %50 = arith.mulf %48, %49 : vector<64x256xf32>
    %51 = vector.extract_strided_slice %0 {offsets = [0, 1], sizes = [64, 1], strides = [1, 1]} : vector<64x3xf32> to vector<64x1xf32>
    %52 = vector.extract_strided_slice %45 {offsets = [1, 0], sizes = [1, 256], strides = [1, 1]} : vector<3x256xf32> to vector<1x256xf32>
    %53 = vector.broadcast %51 : vector<64x1xf32> to vector<64x256xf32>
    %54 = vector.broadcast %52 : vector<1x256xf32> to vector<64x256xf32>
    %55 = arith.mulf %53, %54 : vector<64x256xf32>
    %56 = arith.addf %50, %55 : vector<64x256xf32>
    %57 = vector.extract_strided_slice %0 {offsets = [0, 2], sizes = [64, 1], strides = [1, 1]} : vector<64x3xf32> to vector<64x1xf32>
    %58 = vector.extract_strided_slice %45 {offsets = [2, 0], sizes = [1, 256], strides = [1, 1]} : vector<3x256xf32> to vector<1x256xf32>
    %59 = vector.broadcast %57 : vector<64x1xf32> to vector<64x256xf32>
    %60 = vector.broadcast %58 : vector<1x256xf32> to vector<64x256xf32>
    %61 = arith.mulf %59, %60 : vector<64x256xf32>
    %62 = arith.addf %56, %61 : vector<64x256xf32>
    %63 = vector.broadcast %1 : vector<64x1xf32> to vector<64x256xf32>
    %64 = arith.addf %62, %63 : vector<64x256xf32>
    %cst_23 = arith.constant 0.000000e+00 : f32
    %65 = vector.broadcast %cst_23 : f32 to vector<64x256xf32>
    %66 = arith.maximumf %64, %65 : vector<64x256xf32>
    %c0_24 = arith.constant 0 : index
    %c0_25 = arith.constant 0 : index
    %67 = vector.load %arg4[%c0_24, %c0_25] : memref<128x64xbf16, #tpu.memory_space<vmem>>, vector<128x64xbf16>
    %68 = arith.truncf %66 : vector<64x256xf32> to vector<64x256xbf16>
    %cst_26 = arith.constant dense<0.000000e+00> : vector<128x256xf32>
    %69 = tpu.matmul %67, %68, %cst_26 {dimension_numbers = #tpu.dot_dimension_numbers<[1], [0], [0], [1], [0, 0, 1, 1], [], []>} : vector<128x64xbf16>, vector<64x256xbf16>, vector<128x256xf32> -> vector<128x256xf32>
    %c0_27 = arith.constant 0 : index
    %c0_28 = arith.constant 0 : index
    %70 = vector.load %arg5[%c0_27, %c0_28] : memref<128x1xf32, #tpu.memory_space<vmem>>, vector<128x1xf32>
    %71 = vector.broadcast %70 : vector<128x1xf32> to vector<128x256xf32>
    %72 = arith.addf %69, %71 : vector<128x256xf32>
    %cst_29 = arith.constant 0.000000e+00 : f32
    %73 = vector.broadcast %cst_29 : f32 to vector<128x256xf32>
    %74 = arith.maximumf %72, %73 : vector<128x256xf32>
    %c0_30 = arith.constant 0 : index
    %c0_31 = arith.constant 0 : index
    %75 = vector.load %arg6[%c0_30, %c0_31] : memref<1024x128xbf16, #tpu.memory_space<vmem>>, vector<1024x128xbf16>
    %76 = arith.truncf %74 : vector<128x256xf32> to vector<128x256xbf16>
    %cst_32 = arith.constant dense<0.000000e+00> : vector<1024x256xf32>
    %77 = tpu.matmul %75, %76, %cst_32 {dimension_numbers = #tpu.dot_dimension_numbers<[1], [0], [0], [1], [0, 0, 1, 1], [], []>} : vector<1024x128xbf16>, vector<128x256xbf16>, vector<1024x256xf32> -> vector<1024x256xf32>
    %c0_33 = arith.constant 0 : index
    %c0_34 = arith.constant 0 : index
    %78 = vector.load %arg7[%c0_33, %c0_34] : memref<1024x1xf32, #tpu.memory_space<vmem>>, vector<1024x1xf32>
    %79 = vector.broadcast %78 : vector<1024x1xf32> to vector<1024x256xf32>
    %80 = arith.addf %77, %79 : vector<1024x256xf32>
    %cst_35 = arith.constant 0.000000e+00 : f32
    %81 = vector.broadcast %cst_35 : f32 to vector<1024x256xf32>
    %82 = arith.maximumf %80, %81 : vector<1024x256xf32>
    %cst_36 = arith.constant dense<0xFF800000> : vector<1024xf32>
    %83 = vector.multi_reduction <maximumf>, %82, %cst_36 [1] : vector<1024x256xf32> to vector<1024xf32>
    %84 = vector.shape_cast %83 : vector<1024xf32> to vector<1024x1xf32>
    %c0_37 = arith.constant 0 : index
    %c1_38 = arith.constant 1 : index
    %85 = vector.load %arg16[%c0_37, %c1_38] : memref<1024x2xf32, #tpu.memory_space<vmem>>, vector<1024x1xf32>
    tpu.vector_store %arg16[%c0_37, %c1_38], %84 {strides = array<i32>} : memref<1024x2xf32, #tpu.memory_space<vmem>>, vector<1024x1xf32>,
    %c0_39 = arith.constant 0 : index
    %c0_40 = arith.constant 0 : index
    %86 = vector.load %arg16[%c0_39, %c0_40] : memref<1024x2xf32, #tpu.memory_space<vmem>>, vector<1024x2xf32>
    %c0_41 = arith.constant 0 : index
    %c0_42 = arith.constant 0 : index
    %87 = vector.load %arg8[%c0_41, %c0_42] : memref<512x1024xbf16, #tpu.memory_space<vmem>>, vector<512x1024xbf16>
    %88 = arith.truncf %86 : vector<1024x2xf32> to vector<1024x2xbf16>
    %cst_43 = arith.constant dense<0.000000e+00> : vector<512x2xf32>
    %89 = tpu.matmul %87, %88, %cst_43 {dimension_numbers = #tpu.dot_dimension_numbers<[1], [0], [0], [1], [0, 0, 1, 1], [], []>} : vector<512x1024xbf16>, vector<1024x2xbf16>, vector<512x2xf32> -> vector<512x2xf32>
    %c0_44 = arith.constant 0 : index
    %c0_45 = arith.constant 0 : index
    %90 = vector.load %arg9[%c0_44, %c0_45] : memref<512x1xf32, #tpu.memory_space<vmem>>, vector<512x1xf32>
    %91 = vector.broadcast %90 : vector<512x1xf32> to vector<512x2xf32>
    %92 = arith.addf %89, %91 : vector<512x2xf32>
    %cst_46 = arith.constant 0.000000e+00 : f32
    %93 = vector.broadcast %cst_46 : f32 to vector<512x2xf32>
    %94 = arith.maximumf %92, %93 : vector<512x2xf32>
    %c0_47 = arith.constant 0 : index
    %c0_48 = arith.constant 0 : index
    %95 = vector.load %arg10[%c0_47, %c0_48] : memref<256x512xbf16, #tpu.memory_space<vmem>>, vector<256x512xbf16>
    %96 = arith.truncf %94 : vector<512x2xf32> to vector<512x2xbf16>
    %cst_49 = arith.constant dense<0.000000e+00> : vector<256x2xf32>
    %97 = tpu.matmul %95, %96, %cst_49 {dimension_numbers = #tpu.dot_dimension_numbers<[1], [0], [0], [1], [0, 0, 1, 1], [], []>} : vector<256x512xbf16>, vector<512x2xbf16>, vector<256x2xf32> -> vector<256x2xf32>
    %c0_50 = arith.constant 0 : index
    %c0_51 = arith.constant 0 : index
    %98 = vector.load %arg11[%c0_50, %c0_51] : memref<256x1xf32, #tpu.memory_space<vmem>>, vector<256x1xf32>
    %99 = vector.broadcast %98 : vector<256x1xf32> to vector<256x2xf32>
    %100 = arith.addf %97, %99 : vector<256x2xf32>
    %cst_52 = arith.constant 0.000000e+00 : f32
    %101 = vector.broadcast %cst_52 : f32 to vector<256x2xf32>
    %102 = arith.maximumf %100, %101 : vector<256x2xf32>
    %c0_53 = arith.constant 0 : index
    %c0_54 = arith.constant 0 : index
    %103 = vector.load %arg12[%c0_53, %c0_54] : memref<9x256xbf16, #tpu.memory_space<vmem>>, vector<9x256xbf16>
    %104 = arith.truncf %102 : vector<256x2xf32> to vector<256x2xbf16>
    %cst_55 = arith.constant dense<0.000000e+00> : vector<9x2xf32>
    %105 = tpu.matmul %103, %104, %cst_55 {dimension_numbers = #tpu.dot_dimension_numbers<[1], [0], [0], [1], [0, 0, 1, 1], [], []>} : vector<9x256xbf16>, vector<256x2xbf16>, vector<9x2xf32> -> vector<9x2xf32>
    %c0_56 = arith.constant 0 : index
    %c0_57 = arith.constant 0 : index
    %106 = vector.load %arg13[%c0_56, %c0_57] : memref<9x1xf32, #tpu.memory_space<vmem>>, vector<9x1xf32>
    %107 = vector.broadcast %106 : vector<9x1xf32> to vector<9x2xf32>
    %108 = arith.addf %105, %107 : vector<9x2xf32>
    %c0_58 = arith.constant 0 : index
    %c0_59 = arith.constant 0 : index
    %c0_60 = arith.constant 0 : index
    %109 = vector.load %arg1[%c0_58, %c0_59, %c0_60] : memref<2x3x256xf32, #tpu.memory_space<vmem>>, vector<1x3x256xf32>
    %110 = vector.shape_cast %109 : vector<1x3x256xf32> to vector<3x256xf32>
    %111 = vector.extract_strided_slice %108 {offsets = [0, 0], sizes = [3, 1], strides = [1, 1]} : vector<9x2xf32> to vector<3x1xf32>
    %112 = vector.extract_strided_slice %108 {offsets = [3, 0], sizes = [3, 1], strides = [1, 1]} : vector<9x2xf32> to vector<3x1xf32>
    %113 = vector.extract_strided_slice %108 {offsets = [6, 0], sizes = [3, 1], strides = [1, 1]} : vector<9x2xf32> to vector<3x1xf32>
    %114 = vector.extract_strided_slice %110 {offsets = [0, 0], sizes = [1, 256], strides = [1, 1]} : vector<3x256xf32> to vector<1x256xf32>
    %115 = vector.broadcast %111 : vector<3x1xf32> to vector<3x256xf32>
    %116 = vector.broadcast %114 : vector<1x256xf32> to vector<3x256xf32>
    %117 = arith.mulf %115, %116 : vector<3x256xf32>
    %118 = vector.extract_strided_slice %110 {offsets = [1, 0], sizes = [1, 256], strides = [1, 1]} : vector<3x256xf32> to vector<1x256xf32>
    %119 = vector.broadcast %112 : vector<3x1xf32> to vector<3x256xf32>
    %120 = vector.broadcast %118 : vector<1x256xf32> to vector<3x256xf32>
    %121 = arith.mulf %119, %120 : vector<3x256xf32>
    %122 = arith.addf %117, %121 : vector<3x256xf32>
    %123 = vector.extract_strided_slice %110 {offsets = [2, 0], sizes = [1, 256], strides = [1, 1]} : vector<3x256xf32> to vector<1x256xf32>
    %124 = vector.broadcast %113 : vector<3x1xf32> to vector<3x256xf32>
    %125 = vector.broadcast %123 : vector<1x256xf32> to vector<3x256xf32>
    %126 = arith.mulf %124, %125 : vector<3x256xf32>
    %127 = arith.addf %122, %126 : vector<3x256xf32>
    %c0_61 = arith.constant 0 : index
    %c0_62 = arith.constant 0 : index
    %c0_63 = arith.constant 0 : index
    %128 = vector.load %arg14[%c0_61, %c0_62, %c0_63] : memref<2x3x256xf32, #tpu.memory_space<vmem>>, vector<1x3x256xf32>
    %129 = vector.shape_cast %128 : vector<1x3x256xf32> to vector<3x256xf32>
    %130 = vector.shape_cast %127 : vector<3x256xf32> to vector<1x3x256xf32>
    tpu.vector_store %arg14[%c0_61, %c0_62, %c0_63], %130 {strides = array<i32>} : memref<2x3x256xf32, #tpu.memory_space<vmem>>, vector<1x3x256xf32>,
    %c0_64 = arith.constant 0 : index
    %c0_65 = arith.constant 0 : index
    %c0_66 = arith.constant 0 : index
    %131 = vector.load %arg15[%c0_64, %c0_65, %c0_66] : memref<2x3x3xf32, #tpu.memory_space<vmem>>, vector<1x3x1xf32>
    %132 = vector.shape_cast %131 : vector<1x3x1xf32> to vector<3x1xf32>
    %133 = vector.shape_cast %111 : vector<3x1xf32> to vector<1x3x1xf32>
    tpu.vector_store %arg15[%c0_64, %c0_65, %c0_66], %133 {strides = array<i32>} : memref<2x3x3xf32, #tpu.memory_space<vmem>>, vector<1x3x1xf32>,
    %c0_67 = arith.constant 0 : index
    %c0_68 = arith.constant 0 : index
    %c1_69 = arith.constant 1 : index
    %134 = vector.load %arg15[%c0_67, %c0_68, %c1_69] : memref<2x3x3xf32, #tpu.memory_space<vmem>>, vector<1x3x1xf32>
    %135 = vector.shape_cast %134 : vector<1x3x1xf32> to vector<3x1xf32>
    %136 = vector.shape_cast %112 : vector<3x1xf32> to vector<1x3x1xf32>
    tpu.vector_store %arg15[%c0_67, %c0_68, %c1_69], %136 {strides = array<i32>} : memref<2x3x3xf32, #tpu.memory_space<vmem>>, vector<1x3x1xf32>,
    %c0_70 = arith.constant 0 : index
    %c0_71 = arith.constant 0 : index
    %c2 = arith.constant 2 : index
    %137 = vector.load %arg15[%c0_70, %c0_71, %c2] : memref<2x3x3xf32, #tpu.memory_space<vmem>>, vector<1x3x1xf32>
    %138 = vector.shape_cast %137 : vector<1x3x1xf32> to vector<3x1xf32>
    %139 = vector.shape_cast %113 : vector<3x1xf32> to vector<1x3x1xf32>
    tpu.vector_store %arg15[%c0_70, %c0_71, %c2], %139 {strides = array<i32>} : memref<2x3x3xf32, #tpu.memory_space<vmem>>, vector<1x3x1xf32>,
    %c1_72 = arith.constant 1 : index
    %c0_73 = arith.constant 0 : index
    %c0_74 = arith.constant 0 : index
    %140 = vector.load %arg1[%c1_72, %c0_73, %c0_74] : memref<2x3x256xf32, #tpu.memory_space<vmem>>, vector<1x3x256xf32>
    %141 = vector.shape_cast %140 : vector<1x3x256xf32> to vector<3x256xf32>
    %142 = vector.extract_strided_slice %108 {offsets = [0, 1], sizes = [3, 1], strides = [1, 1]} : vector<9x2xf32> to vector<3x1xf32>
    %143 = vector.extract_strided_slice %108 {offsets = [3, 1], sizes = [3, 1], strides = [1, 1]} : vector<9x2xf32> to vector<3x1xf32>
    %144 = vector.extract_strided_slice %108 {offsets = [6, 1], sizes = [3, 1], strides = [1, 1]} : vector<9x2xf32> to vector<3x1xf32>
    %145 = vector.extract_strided_slice %141 {offsets = [0, 0], sizes = [1, 256], strides = [1, 1]} : vector<3x256xf32> to vector<1x256xf32>
    %146 = vector.broadcast %142 : vector<3x1xf32> to vector<3x256xf32>
    %147 = vector.broadcast %145 : vector<1x256xf32> to vector<3x256xf32>
    %148 = arith.mulf %146, %147 : vector<3x256xf32>
    %149 = vector.extract_strided_slice %141 {offsets = [1, 0], sizes = [1, 256], strides = [1, 1]} : vector<3x256xf32> to vector<1x256xf32>
    %150 = vector.broadcast %143 : vector<3x1xf32> to vector<3x256xf32>
    %151 = vector.broadcast %149 : vector<1x256xf32> to vector<3x256xf32>
    %152 = arith.mulf %150, %151 : vector<3x256xf32>
    %153 = arith.addf %148, %152 : vector<3x256xf32>
    %154 = vector.extract_strided_slice %141 {offsets = [2, 0], sizes = [1, 256], strides = [1, 1]} : vector<3x256xf32> to vector<1x256xf32>
    %155 = vector.broadcast %144 : vector<3x1xf32> to vector<3x256xf32>
    %156 = vector.broadcast %154 : vector<1x256xf32> to vector<3x256xf32>
    %157 = arith.mulf %155, %156 : vector<3x256xf32>
    %158 = arith.addf %153, %157 : vector<3x256xf32>
    %c1_75 = arith.constant 1 : index
    %c0_76 = arith.constant 0 : index
    %c0_77 = arith.constant 0 : index
    %159 = vector.load %arg14[%c1_75, %c0_76, %c0_77] : memref<2x3x256xf32, #tpu.memory_space<vmem>>, vector<1x3x256xf32>
    %160 = vector.shape_cast %159 : vector<1x3x256xf32> to vector<3x256xf32>
    %161 = vector.shape_cast %158 : vector<3x256xf32> to vector<1x3x256xf32>
    tpu.vector_store %arg14[%c1_75, %c0_76, %c0_77], %161 {strides = array<i32>} : memref<2x3x256xf32, #tpu.memory_space<vmem>>, vector<1x3x256xf32>,
    %c1_78 = arith.constant 1 : index
    %c0_79 = arith.constant 0 : index
    %c0_80 = arith.constant 0 : index
    %162 = vector.load %arg15[%c1_78, %c0_79, %c0_80] : memref<2x3x3xf32, #tpu.memory_space<vmem>>, vector<1x3x1xf32>
    %163 = vector.shape_cast %162 : vector<1x3x1xf32> to vector<3x1xf32>
    %164 = vector.shape_cast %142 : vector<3x1xf32> to vector<1x3x1xf32>
    tpu.vector_store %arg15[%c1_78, %c0_79, %c0_80], %164 {strides = array<i32>} : memref<2x3x3xf32, #tpu.memory_space<vmem>>, vector<1x3x1xf32>,
    %c1_81 = arith.constant 1 : index
    %c0_82 = arith.constant 0 : index
    %c1_83 = arith.constant 1 : index
    %165 = vector.load %arg15[%c1_81, %c0_82, %c1_83] : memref<2x3x3xf32, #tpu.memory_space<vmem>>, vector<1x3x1xf32>
    %166 = vector.shape_cast %165 : vector<1x3x1xf32> to vector<3x1xf32>
    %167 = vector.shape_cast %143 : vector<3x1xf32> to vector<1x3x1xf32>
    tpu.vector_store %arg15[%c1_81, %c0_82, %c1_83], %167 {strides = array<i32>} : memref<2x3x3xf32, #tpu.memory_space<vmem>>, vector<1x3x1xf32>,
    %c1_84 = arith.constant 1 : index
    %c0_85 = arith.constant 0 : index
    %c2_86 = arith.constant 2 : index
    %168 = vector.load %arg15[%c1_84, %c0_85, %c2_86] : memref<2x3x3xf32, #tpu.memory_space<vmem>>, vector<1x3x1xf32>
    %169 = vector.shape_cast %168 : vector<1x3x1xf32> to vector<3x1xf32>
    %170 = vector.shape_cast %144 : vector<3x1xf32> to vector<1x3x1xf32>
    tpu.vector_store %arg15[%c1_84, %c0_85, %c2_86], %170 {strides = array<i32>} : memref<2x3x3xf32, #tpu.memory_space<vmem>>, vector<1x3x1xf32>,
    return
  }
  func.func @transform_0(%arg0: i32) -> (i32, i32, i32) {
    %c0_i32 = arith.constant 0 : i32
    %c0_i32_0 = arith.constant 0 : i32
    %c0_i32_1 = arith.constant 0 : i32
    return %arg0, %c0_i32, %c0_i32_0 : i32, i32, i32
  }
  func.func @transform_1(%arg0: i32) -> (i32, i32) {
    %c0_i32 = arith.constant 0 : i32
    %c0_i32_0 = arith.constant 0 : i32
    %c0_i32_1 = arith.constant 0 : i32
    return %c0_i32, %c0_i32_0 : i32, i32
  }
  func.func @transform_2(%arg0: i32) -> (i32, i32) {
    %c0_i32 = arith.constant 0 : i32
    %c0_i32_0 = arith.constant 0 : i32
    %c0_i32_1 = arith.constant 0 : i32
    return %c0_i32, %c0_i32_0 : i32, i32
  }
  func.func @transform_3(%arg0: i32) -> (i32, i32) {
    %c0_i32 = arith.constant 0 : i32
    %c0_i32_0 = arith.constant 0 : i32
    %c0_i32_1 = arith.constant 0 : i32
    return %c0_i32, %c0_i32_0 : i32, i32
  }
  func.func @transform_4(%arg0: i32) -> (i32, i32) {
    %c0_i32 = arith.constant 0 : i32
    %c0_i32_0 = arith.constant 0 : i32
    %c0_i32_1 = arith.constant 0 : i32
    return %c0_i32, %c0_i32_0 : i32, i32
  }
  func.func @transform_5(%arg0: i32) -> (i32, i32) {
    %c0_i32 = arith.constant 0 : i32
    %c0_i32_0 = arith.constant 0 : i32
    %c0_i32_1 = arith.constant 0 : i32
    return %c0_i32, %c0_i32_0 : i32, i32
  }
  func.func @transform_6(%arg0: i32) -> (i32, i32) {
    %c0_i32 = arith.constant 0 : i32
    %c0_i32_0 = arith.constant 0 : i32
    %c0_i32_1 = arith.constant 0 : i32
    return %c0_i32, %c0_i32_0 : i32, i32
  }
  func.func @transform_7(%arg0: i32) -> (i32, i32) {
    %c0_i32 = arith.constant 0 : i32
    %c0_i32_0 = arith.constant 0 : i32
    %c0_i32_1 = arith.constant 0 : i32
    return %c0_i32, %c0_i32_0 : i32, i32
  }
  func.func @transform_8(%arg0: i32) -> (i32, i32) {
    %c0_i32 = arith.constant 0 : i32
    %c0_i32_0 = arith.constant 0 : i32
    %c0_i32_1 = arith.constant 0 : i32
    return %c0_i32, %c0_i32_0 : i32, i32
  }
  func.func @transform_9(%arg0: i32) -> (i32, i32) {
    %c0_i32 = arith.constant 0 : i32
    %c0_i32_0 = arith.constant 0 : i32
    %c0_i32_1 = arith.constant 0 : i32
    return %c0_i32, %c0_i32_0 : i32, i32
  }
  func.func @transform_10(%arg0: i32) -> (i32, i32) {
    %c0_i32 = arith.constant 0 : i32
    %c0_i32_0 = arith.constant 0 : i32
    %c0_i32_1 = arith.constant 0 : i32
    return %c0_i32, %c0_i32_0 : i32, i32
  }
  func.func @transform_11(%arg0: i32) -> (i32, i32) {
    %c0_i32 = arith.constant 0 : i32
    %c0_i32_0 = arith.constant 0 : i32
    %c0_i32_1 = arith.constant 0 : i32
    return %c0_i32, %c0_i32_0 : i32, i32
  }
  func.func @transform_12(%arg0: i32) -> (i32, i32) {
    %c0_i32 = arith.constant 0 : i32
    %c0_i32_0 = arith.constant 0 : i32
    %c0_i32_1 = arith.constant 0 : i32
    return %c0_i32, %c0_i32_0 : i32, i32
  }
  func.func @transform_13(%arg0: i32) -> (i32, i32, i32) {
    %c0_i32 = arith.constant 0 : i32
    %c0_i32_0 = arith.constant 0 : i32
    %c0_i32_1 = arith.constant 0 : i32
    return %arg0, %c0_i32, %c0_i32_0 : i32, i32, i32
  }
  func.func @transform_14(%arg0: i32) -> (i32, i32, i32) {
    %c0_i32 = arith.constant 0 : i32
    %c0_i32_0 = arith.constant 0 : i32
    %c0_i32_1 = arith.constant 0 : i32
    return %arg0, %c0_i32, %c0_i32_0 : i32, i32, i32
  }
}

</mosaic_0001>

<llo_original>
// kernel: tpu_custom_call.1
$region0: #{tpu_custom_call.1}
  #allocation0 [shape = 'u32[]', space=smem, size = 0x4, offset = 0x4, fixed_abs, tag = 'smem constant byte address 0x4 - core index']
  #allocation1 [shape = 'u32[144,128]{1,0:T(1,128)}', space=vmem, size = 0x12000, scoped, tag = 'internal scratch']
  #allocation2 [shape = 'f32[1024,2]{1,0:T(8,128)}', space=vmem, size = 0x80000, scoped, tag = 'scratch operand']
  %s0 = inlined_call_operand.vmem [shape: f32[4,3,256], index: 0, kind: input, shape index: {}]
  %s1 = inlined_call_operand.vmem [shape: f32[64,3], index: 1, kind: input, shape index: {}]
  %s2 = inlined_call_operand.vmem [shape: f32[64,1], index: 2, kind: input, shape index: {}]
  %s3 = inlined_call_operand.vmem [shape: bf16[128,64], index: 3, kind: input, shape index: {}]
  %s4 = inlined_call_operand.vmem [shape: f32[128,1], index: 4, kind: input, shape index: {}]
  %s5 = inlined_call_operand.hbm [shape: bf16[1024,128], index: 5, kind: input, shape index: {}]
  %s6 = inlined_call_operand.vmem [shape: f32[1024,1], index: 6, kind: input, shape index: {}]
  %s7 = inlined_call_operand.vmem [shape: bf16[512,1024], index: 7, kind: input, shape index: {}]
  %s8 = inlined_call_operand.vmem [shape: f32[512,1], index: 8, kind: input, shape index: {}]
  %s9 = inlined_call_operand.hbm [shape: bf16[256,512], index: 9, kind: input, shape index: {}]
  %s10 = inlined_call_operand.vmem [shape: f32[256,1], index: 10, kind: input, shape index: {}]
  %s11 = inlined_call_operand.vmem [shape: bf16[9,256], index: 11, kind: input, shape index: {}]
  %s12 = inlined_call_operand.vmem [shape: f32[9,1], index: 12, kind: input, shape index: {}]
  %s13 = inlined_call_operand.vmem [shape: f32[4,3,256], index: 13, kind: output, shape index: {0}]
  %s14 = inlined_call_operand.vmem [shape: f32[4,3,3], index: 14, kind: output, shape index: {1}]
  %15 = xla_tuple %s13, %s14
  %s16 = sld [smem:[#allocation0]]
  $region101: #{tpu_custom_call.1} parent=0
    _
  %s18 = ssub.s32 1, %s16
  %s19 = scalar_select 0, %s18, %s16
  $region1: #{tpu_custom_call.1} parent=0
    #allocation3 [shape = 'u8[262144]{0}', space=vmem, size = 0x40000, scoped, tag = 'input window, operand 5, single buffered']
    #allocation4 [shape = 's32[2]{0}', space=sflag, size = 0x8, scoped, tag = 'scoped memory for tpu_custom_call.1']
    #allocation5 [shape = 'u8[262144]{0}', space=vmem, size = 0x40000, scoped, tag = 'input window, operand 9, single buffered']
    #allocation6 [shape = 's32[1]{0}', space=sflag, size = 0x4, scoped, tag = 'scoped memory for tpu_custom_call.1']
    %20 = vsyncpa [#allocation4], 0
    %21 = vsyncpa [#allocation6], 0
    loop: start=0, step=1, limit=4
    $region2: #{tpu_custom_call.1} parent=1 // loop_pre_header
      _
    $region3: #{tpu_custom_call.1} parent=1 // loop_header
      %s23 = sphi 0, %s27
      %p24 = scmp.ge.s32.totalorder %s23, 4
      %s33 = sphi 0, %s35
      %s36 = sphi 0, %s33
      %s37 = sphi 0, %s36
      %s53 = sphi 0, %s37
      %s57 = sphi 0, %s57
      %s59 = sphi 0, %s57
      %s60 = sphi 0, %s59
      %s74 = sphi 0, %s60
      %s78 = sphi 0, %s78
      %s80 = sphi 0, %s78
      %s81 = sphi 0, %s80
      %s95 = sphi 0, %s81
      %s99 = sphi 0, %s99
      %s101 = sphi 0, %s99
      %s102 = sphi 0, %s101
      %s116 = sphi 0, %s102
      %s120 = sphi 0, %s120
      %s122 = sphi 0, %s120
      %s123 = sphi 0, %s122
      %s137 = sphi 0, %s123
      %s141 = sphi 0, %s141
      %s143 = sphi 0, %s141
      %s144 = sphi 0, %s143
      %s158 = sphi 0, %s144
      %s162 = sphi 0, %s162
      %s164 = sphi 0, %s162
      %s165 = sphi 0, %s164
      %s179 = sphi 0, %s165
      %s183 = sphi 0, %s183
      %s185 = sphi 0, %s183
      %s186 = sphi 0, %s185
      %s200 = sphi 0, %s186
      %s204 = sphi 0, %s204
      %s206 = sphi 0, %s204
      %s207 = sphi 0, %s206
      %s221 = sphi 0, %s207
      %s225 = sphi 0, %s225
      %s227 = sphi 0, %s225
      %s228 = sphi 0, %s227
      %s242 = sphi 0, %s228
      %s246 = sphi 0, %s246
      %s248 = sphi 0, %s246
      %s249 = sphi 0, %s248
      %s263 = sphi 0, %s249
      %s267 = sphi 0, %s267
      %s269 = sphi 0, %s267
      %s270 = sphi 0, %s269
      %s284 = sphi 0, %s270
      %s288 = sphi 0, %s288
      %s290 = sphi 0, %s288
      %s291 = sphi 0, %s290
      %s305 = sphi 0, %s291
      %s311 = sphi 0, %s313
      %s314 = sphi 0, %s311
      %s315 = sphi 0, %s314
      %s331 = sphi 0, %s315
      %s337 = sphi 0, %s339
      %s340 = sphi 0, %s337
      %s341 = sphi 0, %s340
      %s357 = sphi 0, %s341
    $region4: #{tpu_custom_call.1} parent=1 // loop_header_branch
      %26 = sbr.rel (%p24) target = $region8
    $region5: #{tpu_custom_call.1} parent=1 // loop_body
      %s28 = ssub.s32 %s23, 1
      %s29 = ssub.s32 %s23, 2
      %s30 = sadd.s32 %s23, 1
      %s31 = ssub.s32 %s23, %s30
      %p32 = scmp.eq.s32.totalorder %s31, 0
      %s34 = sadd.s32 %s33, 1
      %s35 = scalar_select %p32, %s33, %s34
      %p38 = pneg %p32
      %p39 = scmp.eq.s32.totalorder %s23, 1
      %p40 = por %p38, %p39
      %p41 = scmp.ne.s32.totalorder %s33, %s36
      %p42 = scmp.eq.s32.totalorder %s23, 0
      %p43 = por %p41, %p42
      %p44 = scmp.ne.s32.totalorder %s33, %s36
      %p45 = scmp.eq.s32.totalorder %s28, 1
      %p46 = por %p44, %p45
      %p47 = scmp.ne.s32.totalorder %s36, %s37
      %p48 = scmp.eq.s32.totalorder %s28, 0
      %p49 = por %p47, %p48
      %p50 = scmp.ne.s32.totalorder %s36, %s37
      %p51 = scmp.eq.s32.totalorder %s29, 1
      %p52 = por %p50, %p51
      %p54 = scmp.ne.s32.totalorder %s37, %s53
      %p55 = scmp.eq.s32.totalorder %s29, 0
      %p56 = por %p54, %p55
      %s58 = sadd.s32 %s57, 1
      %p61 = scmp.eq.s32.totalorder %s23, 1
      %p62 = scmp.ne.s32.totalorder %s57, %s59
      %p63 = scmp.eq.s32.totalorder %s23, 0
      %p64 = por %p62, %p63
      %p65 = scmp.ne.s32.totalorder %s57, %s59
      %p66 = scmp.eq.s32.totalorder %s28, 1
      %p67 = por %p65, %p66
      %p68 = scmp.ne.s32.totalorder %s59, %s60
      %p69 = scmp.eq.s32.totalorder %s28, 0
      %p70 = por %p68, %p69
      %p71 = scmp.ne.s32.totalorder %s59, %s60
      %p72 = scmp.eq.s32.totalorder %s29, 1
      %p73 = por %p71, %p72
      %p75 = scmp.ne.s32.totalorder %s60, %s74
      %p76 = scmp.eq.s32.totalorder %s29, 0
      %p77 = por %p75, %p76
      %s79 = sadd.s32 %s78, 1
      %p82 = scmp.eq.s32.totalorder %s23, 1
      %p83 = scmp.ne.s32.totalorder %s78, %s80
      %p84 = scmp.eq.s32.totalorder %s23, 0
      %p85 = por %p83, %p84
      %p86 = scmp.ne.s32.totalorder %s78, %s80
      %p87 = scmp.eq.s32.totalorder %s28, 1
      %p88 = por %p86, %p87
      %p89 = scmp.ne.s32.totalorder %s80, %s81
      %p90 = scmp.eq.s32.totalorder %s28, 0
      %p91 = por %p89, %p90
      %p92 = scmp.ne.s32.totalorder %s80, %s81
      %p93 = scmp.eq.s32.totalorder %s29, 1
      %p94 = por %p92, %p93
      %p96 = scmp.ne.s32.totalorder %s81, %s95
      %p97 = scmp.eq.s32.totalorder %s29, 0
      %p98 = por %p96, %p97
      %s100 = sadd.s32 %s99, 1
      %p103 = scmp.eq.s32.totalorder %s23, 1
      %p104 = scmp.ne.s32.totalorder %s99, %s101
      %p105 = scmp.eq.s32.totalorder %s23, 0
      %p106 = por %p104, %p105
      %p107 = scmp.ne.s32.totalorder %s99, %s101
      %p108 = scmp.eq.s32.totalorder %s28, 1
      %p109 = por %p107, %p108
      %p110 = scmp.ne.s32.totalorder %s101, %s102
      %p111 = scmp.eq.s32.totalorder %s28, 0
      %p112 = por %p110, %p111
      %p113 = scmp.ne.s32.totalorder %s101, %s102
      %p114 = scmp.eq.s32.totalorder %s29, 1
      %p115 = por %p113, %p114
      %p117 = scmp.ne.s32.totalorder %s102, %s116
      %p118 = scmp.eq.s32.totalorder %s29, 0
      %p119 = por %p117, %p118
      %s121 = sadd.s32 %s120, 1
      %p124 = scmp.eq.s32.totalorder %s23, 1
      %p125 = scmp.ne.s32.totalorder %s120, %s122
      %p126 = scmp.eq.s32.totalorder %s23, 0
      %p127 = por %p125, %p126
      %p128 = scmp.ne.s32.totalorder %s120, %s122
      %p129 = scmp.eq.s32.totalorder %s28, 1
      %p130 = por %p128, %p129
      %p131 = scmp.ne.s32.totalorder %s122, %s123
      %p132 = scmp.eq.s32.totalorder %s28, 0
      %p133 = por %p131, %p132
      %p134 = scmp.ne.s32.totalorder %s122, %s123
      %p135 = scmp.eq.s32.totalorder %s29, 1
      %p136 = por %p134, %p135
      %p138 = scmp.ne.s32.totalorder %s123, %s137
      %p139 = scmp.eq.s32.totalorder %s29, 0
      %p140 = por %p138, %p139
      %s142 = sadd.s32 %s141, 1
      %p145 = scmp.eq.s32.totalorder %s23, 1
      %p146 = scmp.ne.s32.totalorder %s141, %s143
      %p147 = scmp.eq.s32.totalorder %s23, 0
      %p148 = por %p146, %p147
      %p149 = scmp.ne.s32.totalorder %s141, %s143
      %p150 = scmp.eq.s32.totalorder %s28, 1
      %p151 = por %p149, %p150
      %p152 = scmp.ne.s32.totalorder %s143, %s144
      %p153 = scmp.eq.s32.totalorder %s28, 0
      %p154 = por %p152, %p153
      %p155 = scmp.ne.s32.totalorder %s143, %s144
      %p156 = scmp.eq.s32.totalorder %s29, 1
      %p157 = por %p155, %p156
      %p159 = scmp.ne.s32.totalorder %s144, %s158
      %p160 = scmp.eq.s32.totalorder %s29, 0
      %p161 = por %p159, %p160
      %s163 = sadd.s32 %s162, 1
      %p166 = scmp.eq.s32.totalorder %s23, 1
      %p167 = scmp.ne.s32.totalorder %s162, %s164
      %p168 = scmp.eq.s32.totalorder %s23, 0
      %p169 = por %p167, %p168
      %p170 = scmp.ne.s32.totalorder %s162, %s164
      %p171 = scmp.eq.s32.totalorder %s28, 1
      %p172 = por %p170, %p171
      %p173 = scmp.ne.s32.totalorder %s164, %s165
      %p174 = scmp.eq.s32.totalorder %s28, 0
      %p175 = por %p173, %p174
      %p176 = scmp.ne.s32.totalorder %s164, %s165
      %p177 = scmp.eq.s32.totalorder %s29, 1
      %p178 = por %p176, %p177
      %p180 = scmp.ne.s32.totalorder %s165, %s179
      %p181 = scmp.eq.s32.totalorder %s29, 0
      %p182 = por %p180, %p181
      %s184 = sadd.s32 %s183, 1
      %p187 = scmp.eq.s32.totalorder %s23, 1
      %p188 = scmp.ne.s32.totalorder %s183, %s185
      %p189 = scmp.eq.s32.totalorder %s23, 0
      %p190 = por %p188, %p189
      %p191 = scmp.ne.s32.totalorder %s183, %s185
      %p192 = scmp.eq.s32.totalorder %s28, 1
      %p193 = por %p191, %p192
      %p194 = scmp.ne.s32.totalorder %s185, %s186
      %p195 = scmp.eq.s32.totalorder %s28, 0
      %p196 = por %p194, %p195
      %p197 = scmp.ne.s32.totalorder %s185, %s186
      %p198 = scmp.eq.s32.totalorder %s29, 1
      %p199 = por %p197, %p198
      %p201 = scmp.ne.s32.totalorder %s186, %s200
      %p202 = scmp.eq.s32.totalorder %s29, 0
      %p203 = por %p201, %p202
      %s205 = sadd.s32 %s204, 1
      %p208 = scmp.eq.s32.totalorder %s23, 1
      %p209 = scmp.ne.s32.totalorder %s204, %s206
      %p210 = scmp.eq.s32.totalorder %s23, 0
      %p211 = por %p209, %p210
      %p212 = scmp.ne.s32.totalorder %s204, %s206
      %p213 = scmp.eq.s32.totalorder %s28, 1
      %p214 = por %p212, %p213
      %p215 = scmp.ne.s32.totalorder %s206, %s207
      %p216 = scmp.eq.s32.totalorder %s28, 0
      %p217 = por %p215, %p216
      %p218 = scmp.ne.s32.totalorder %s206, %s207
      %p219 = scmp.eq.s32.totalorder %s29, 1
      %p220 = por %p218, %p219
      %p222 = scmp.ne.s32.totalorder %s207, %s221
      %p223 = scmp.eq.s32.totalorder %s29, 0
      %p224 = por %p222, %p223
      %s226 = sadd.s32 %s225, 1
      %p229 = scmp.eq.s32.totalorder %s23, 1
      %p230 = scmp.ne.s32.totalorder %s225, %s227
      %p231 = scmp.eq.s32.totalorder %s23, 0
      %p232 = por %p230, %p231
      %p233 = scmp.ne.s32.totalorder %s225, %s227
      %p234 = scmp.eq.s32.totalorder %s28, 1
      %p235 = por %p233, %p234
      %p236 = scmp.ne.s32.totalorder %s227, %s228
      %p237 = scmp.eq.s32.totalorder %s28, 0
      %p238 = por %p236, %p237
      %p239 = scmp.ne.s32.totalorder %s227, %s228
      %p240 = scmp.eq.s32.totalorder %s29, 1
      %p241 = por %p239, %p240
      %p243 = scmp.ne.s32.totalorder %s228, %s242
      %p244 = scmp.eq.s32.totalorder %s29, 0
      %p245 = por %p243, %p244
      %s247 = sadd.s32 %s246, 1
      %p250 = scmp.eq.s32.totalorder %s23, 1
      %p251 = scmp.ne.s32.totalorder %s246, %s248
      %p252 = scmp.eq.s32.totalorder %s23, 0
      %p253 = por %p251, %p252
      %p254 = scmp.ne.s32.totalorder %s246, %s248
      %p255 = scmp.eq.s32.totalorder %s28, 1
      %p256 = por %p254, %p255
      %p257 = scmp.ne.s32.totalorder %s248, %s249
      %p258 = scmp.eq.s32.totalorder %s28, 0
      %p259 = por %p257, %p258
      %p260 = scmp.ne.s32.totalorder %s248, %s249
      %p261 = scmp.eq.s32.totalorder %s29, 1
      %p262 = por %p260, %p261
      %p264 = scmp.ne.s32.totalorder %s249, %s263
      %p265 = scmp.eq.s32.totalorder %s29, 0
      %p266 = por %p264, %p265
      %s268 = sadd.s32 %s267, 1
      %p271 = scmp.eq.s32.totalorder %s23, 1
      %p272 = scmp.ne.s32.totalorder %s267, %s269
      %p273 = scmp.eq.s32.totalorder %s23, 0
      %p274 = por %p272, %p273
      %p275 = scmp.ne.s32.totalorder %s267, %s269
      %p276 = scmp.eq.s32.totalorder %s28, 1
      %p277 = por %p275, %p276
      %p278 = scmp.ne.s32.totalorder %s269, %s270
      %p279 = scmp.eq.s32.totalorder %s28, 0
      %p280 = por %p278, %p279
      %p281 = scmp.ne.s32.totalorder %s269, %s270
      %p282 = scmp.eq.s32.totalorder %s29, 1
      %p283 = por %p281, %p282
      %p285 = scmp.ne.s32.totalorder %s270, %s284
      %p286 = scmp.eq.s32.totalorder %s29, 0
      %p287 = por %p285, %p286
      %s289 = sadd.s32 %s288, 1
      %p292 = scmp.eq.s32.totalorder %s23, 1
      %p293 = scmp.ne.s32.totalorder %s288, %s290
      %p294 = scmp.eq.s32.totalorder %s23, 0
      %p295 = por %p293, %p294
      %p296 = scmp.ne.s32.totalorder %s288, %s290
      %p297 = scmp.eq.s32.totalorder %s28, 1
      %p298 = por %p296, %p297
      %p299 = scmp.ne.s32.totalorder %s290, %s291
      %p300 = scmp.eq.s32.totalorder %s28, 0
      %p301 = por %p299, %p300
      %p302 = scmp.ne.s32.totalorder %s290, %s291
      %p303 = scmp.eq.s32.totalorder %s29, 1
      %p304 = por %p302, %p303
      %p306 = scmp.ne.s32.totalorder %s291, %s305
      %p307 = scmp.eq.s32.totalorder %s29, 0
      %p308 = por %p306, %p307
      %s309 = ssub.s32 %s23, %s30
      %p310 = scmp.eq.s32.totalorder %s309, 0
      %s312 = sadd.s32 %s311, 1
      %s313 = scalar_select %p310, %s311, %s312
      %p316 = pneg %p310
      %p317 = scmp.eq.s32.totalorder %s23, 1
      %p318 = por %p316, %p317
      %p319 = scmp.ne.s32.totalorder %s311, %s314
      %p320 = scmp.eq.s32.totalorder %s23, 0
      %p321 = por %p319, %p320
      %p322 = scmp.ne.s32.totalorder %s311, %s314
      %p323 = scmp.eq.s32.totalorder %s28, 1
      %p324 = por %p322, %p323
      %p325 = scmp.ne.s32.totalorder %s314, %s315
      %p326 = scmp.eq.s32.totalorder %s28, 0
      %p327 = por %p325, %p326
      %p328 = scmp.ne.s32.totalorder %s314, %s315
      %p329 = scmp.eq.s32.totalorder %s29, 1
      %p330 = por %p328, %p329
      %p332 = scmp.ne.s32.totalorder %s315, %s331
      %p333 = scmp.eq.s32.totalorder %s29, 0
      %p334 = por %p332, %p333
      %s335 = ssub.s32 %s23, %s30
      %p336 = scmp.eq.s32.totalorder %s335, 0
      %s338 = sadd.s32 %s337, 1
      %s339 = scalar_select %p336, %s337, %s338
      %p342 = pneg %p336
      %p343 = scmp.eq.s32.totalorder %s23, 1
      %p344 = por %p342, %p343
      %p345 = scmp.ne.s32.totalorder %s337, %s340
      %p346 = scmp.eq.s32.totalorder %s23, 0
      %p347 = por %p345, %p346
      %p348 = scmp.ne.s32.totalorder %s337, %s340
      %p349 = scmp.eq.s32.totalorder %s28, 1
      %p350 = por %p348, %p349
      %p351 = scmp.ne.s32.totalorder %s340, %s341
      %p352 = scmp.eq.s32.totalorder %s28, 0
      %p353 = por %p351, %p352
      %p354 = scmp.ne.s32.totalorder %s340, %s341
      %p355 = scmp.eq.s32.totalorder %s29, 1
      %p356 = por %p354, %p355
      %p358 = scmp.ne.s32.totalorder %s341, %s357
      %p359 = scmp.eq.s32.totalorder %s29, 0
      %p360 = por %p358, %p359
      %p361 = scmp.le.s32.totalorder 1, %s23
      %p362 = scmp.lt.s32.totalorder %s23, 3
      %p363 = pnand %p361, %p362
      %p364 = pneg %p363
      // Predicated region
      $region9: #{tpu_custom_call.1} parent=5 // pred_check
        _
      $region10: #{tpu_custom_call.1} parent=5 // pred_check_branch
        %366 = sbr.rel (%p363) target = $region12
      $region11: #{tpu_custom_call.1} parent=5 // pred_region
        %s367 = ssub.s32 %s23, 1
        // Predicated region
        $region13: #{tpu_custom_call.1} parent=11 // pred_check
          %p368 = pneg %p70
        $region14: #{tpu_custom_call.1} parent=11 // pred_check_branch
          %370 = sbr.rel (%p368) target = $region16
        $region15: #{tpu_custom_call.1} parent=11 // pred_region
          _
        $region16: #{tpu_custom_call.1} parent=11 // pred_fallthru
          _
        // Predicated region
        $region17: #{tpu_custom_call.1} parent=11 // pred_check
          %p371 = pneg %p91
        $region18: #{tpu_custom_call.1} parent=11 // pred_check_branch
          %373 = sbr.rel (%p371) target = $region20
        $region19: #{tpu_custom_call.1} parent=11 // pred_region
          _
        $region20: #{tpu_custom_call.1} parent=11 // pred_fallthru
          _
        // Predicated region
        $region21: #{tpu_custom_call.1} parent=11 // pred_check
          %p374 = pneg %p112
        $region22: #{tpu_custom_call.1} parent=11 // pred_check_branch
          %376 = sbr.rel (%p374) target = $region24
        $region23: #{tpu_custom_call.1} parent=11 // pred_region
          _
        $region24: #{tpu_custom_call.1} parent=11 // pred_fallthru
          _
        // Predicated region
        $region25: #{tpu_custom_call.1} parent=11 // pred_check
          %p377 = pneg %p133
        $region26: #{tpu_custom_call.1} parent=11 // pred_check_branch
          %379 = sbr.rel (%p377) target = $region28
        $region27: #{tpu_custom_call.1} parent=11 // pred_region
          _
        $region28: #{tpu_custom_call.1} parent=11 // pred_fallthru
          _
        // Predicated region
        $region29: #{tpu_custom_call.1} parent=11 // pred_check
          %p380 = pneg %p154
        $region30: #{tpu_custom_call.1} parent=11 // pred_check_branch
          %382 = sbr.rel (%p380) target = $region32
        $region31: #{tpu_custom_call.1} parent=11 // pred_region
          %s384 = ssub.s32 8192, 8192
          %385 = vsyncadd [#allocation4], %s384
          %s386 = sshll.u32 [#allocation3], 4
          %s387 = int_to_ptr.vmem [resolvable:$true] %s386
          %392 = dma.hbm_to_vmem [thread:$0]  %s5, 8192, %s387, [#allocation4], 64, 64, 4
        $region32: #{tpu_custom_call.1} parent=11 // pred_fallthru
          _
        // Predicated region
        $region33: #{tpu_custom_call.1} parent=11 // pred_check
          %p393 = pneg %p175
        $region34: #{tpu_custom_call.1} parent=11 // pred_check_branch
          %395 = sbr.rel (%p393) target = $region36
        $region35: #{tpu_custom_call.1} parent=11 // pred_region
          _
        $region36: #{tpu_custom_call.1} parent=11 // pred_fallthru
          _
        // Predicated region
        $region37: #{tpu_custom_call.1} parent=11 // pred_check
          %p396 = pneg %p196
        $region38: #{tpu_custom_call.1} parent=11 // pred_check_branch
          %398 = sbr.rel (%p396) target = $region40
        $region39: #{tpu_custom_call.1} parent=11 // pred_region
          _
        $region40: #{tpu_custom_call.1} parent=11 // pred_fallthru
          _
        // Predicated region
        $region41: #{tpu_custom_call.1} parent=11 // pred_check
          %p399 = pneg %p217
        $region42: #{tpu_custom_call.1} parent=11 // pred_check_branch
          %401 = sbr.rel (%p399) target = $region44
        $region43: #{tpu_custom_call.1} parent=11 // pred_region
          _
        $region44: #{tpu_custom_call.1} parent=11 // pred_fallthru
          _
        // Predicated region
        $region45: #{tpu_custom_call.1} parent=11 // pred_check
          %p402 = pneg %p238
        $region46: #{tpu_custom_call.1} parent=11 // pred_check_branch
          %404 = sbr.rel (%p402) target = $region48
        $region47: #{tpu_custom_call.1} parent=11 // pred_region
          %s406 = ssub.s32 8192, 8192
          %407 = vsyncadd [#allocation6], %s406
          %s408 = sshll.u32 [#allocation5], 4
          %s409 = int_to_ptr.vmem [resolvable:$true] %s408
          %414 = dma.hbm_to_vmem [thread:$0]  %s9, 8192, %s409, [#allocation6], 256, 256, 16
        $region48: #{tpu_custom_call.1} parent=11 // pred_fallthru
          _
        // Predicated region
        $region49: #{tpu_custom_call.1} parent=11 // pred_check
          %p415 = pneg %p259
        $region50: #{tpu_custom_call.1} parent=11 // pred_check_branch
          %417 = sbr.rel (%p415) target = $region52
        $region51: #{tpu_custom_call.1} parent=11 // pred_region
          _
        $region52: #{tpu_custom_call.1} parent=11 // pred_fallthru
          _
        // Predicated region
        $region53: #{tpu_custom_call.1} parent=11 // pred_check
          %p418 = pneg %p280
        $region54: #{tpu_custom_call.1} parent=11 // pred_check_branch
          %420 = sbr.rel (%p418) target = $region56
        $region55: #{tpu_custom_call.1} parent=11 // pred_region
          _
        $region56: #{tpu_custom_call.1} parent=11 // pred_fallthru
          _
        // Predicated region
        $region57: #{tpu_custom_call.1} parent=11 // pred_check
          %p421 = pneg %p301
        $region58: #{tpu_custom_call.1} parent=11 // pred_check_branch
          %423 = sbr.rel (%p421) target = $region60
        $region59: #{tpu_custom_call.1} parent=11 // pred_region
          _
        $region60: #{tpu_custom_call.1} parent=11 // pred_fallthru
          _
      $region12: #{tpu_custom_call.1} parent=5 // pred_fallthru
        _
      %p424 = scmp.lt.s32.totalorder %s23, 2
      // Predicated region
      $region61: #{tpu_custom_call.1} parent=5 // pred_check
        %p425 = pneg %p424
      $region62: #{tpu_custom_call.1} parent=5 // pred_check_branch
        %427 = sbr.rel (%p425) target = $region64
      $region63: #{tpu_custom_call.1} parent=5 // pred_region
        // Predicated region
        $region65: #{tpu_custom_call.1} parent=63 // pred_check
          %p428 = pneg %p43
        $region66: #{tpu_custom_call.1} parent=63 // pred_check_branch
          %430 = sbr.rel (%p428) target = $region68
        $region67: #{tpu_custom_call.1} parent=63 // pred_region
          %s431 = smul.u32 2, %s23
          %p432 = scmp.lt.s32.totalorder %s431, 3
          %s433 = scalar_select %p432, %s431, 3
          %s434 = smul.addr %s433, 2
          %s435 = smul.addr %s434, 4
          %s436 = scalar_lea.vmem %s0, %s435
          %s437 = smul.u32 2, %s23
        $region68: #{tpu_custom_call.1} parent=63 // pred_fallthru
          _
      $region64: #{tpu_custom_call.1} parent=5 // pred_fallthru
        _
      %p438 = scmp.le.s32.totalorder 1, %s23
      %p439 = scmp.lt.s32.totalorder %s23, 3
      %p440 = pnand %p438, %p439
      %p441 = pneg %p440
      // Predicated region
      $region69: #{tpu_custom_call.1} parent=5 // pred_check
        _
      $region70: #{tpu_custom_call.1} parent=5 // pred_check_branch
        %443 = sbr.rel (%p440) target = $region72
      $region71: #{tpu_custom_call.1} parent=5 // pred_region
        %s444 = ssub.s32 %s23, 1
        // Predicated region
        $region73: #{tpu_custom_call.1} parent=71 // pred_check
          %p445 = pneg %p154
        $region74: #{tpu_custom_call.1} parent=71 // pred_check_branch
          %447 = sbr.rel (%p445) target = $region76
        $region75: #{tpu_custom_call.1} parent=71 // pred_region
          %448 = dma.done [#allocation4], 8192
        $region76: #{tpu_custom_call.1} parent=71 // pred_fallthru
          _
        // Predicated region
        $region77: #{tpu_custom_call.1} parent=71 // pred_check
          %p449 = pneg %p238
        $region78: #{tpu_custom_call.1} parent=71 // pred_check_branch
          %451 = sbr.rel (%p449) target = $region80
        $region79: #{tpu_custom_call.1} parent=71 // pred_region
          %452 = dma.done [#allocation6], 8192
        $region80: #{tpu_custom_call.1} parent=71 // pred_fallthru
          _
        %s453 = smul.u32 2, %s28
        %p454 = scmp.lt.s32.totalorder %s453, 3
        %s455 = scalar_select %p454, %s453, 3
        %s456 = smul.addr %s455, 2
        %s457 = smul.addr %s456, 4
        %s458 = scalar_lea.vmem %s0, %s457
        %p459 = pneg %p49
        %p460 = pneg %p46
        %p461 = pneg %p70
        %p462 = pneg %p67
        %p463 = pneg %p91
        %p464 = pneg %p88
        %p465 = pneg %p112
        %p466 = pneg %p109
        %p467 = pneg %p133
        %p468 = pneg %p130
        %p469 = pneg %p154
        %p470 = pneg %p151
        %p471 = pneg %p175
        %p472 = pneg %p172
        %p473 = pneg %p196
        %p474 = pneg %p193
        %p475 = pneg %p217
        %p476 = pneg %p214
        %p477 = pneg %p238
        %p478 = pneg %p235
        %p479 = pneg %p259
        %p480 = pneg %p256
        %p481 = pneg %p280
        %p482 = pneg %p277
        %p483 = pneg %p301
        %p484 = pneg %p298
        %p485 = pneg %p327
        %p486 = pneg %p324
        %s487 = smul.u32 2, %s28
        %p488 = scmp.lt.s32.totalorder %s487, 3
        %s489 = scalar_select %p488, %s487, 3
        %s490 = smul.addr %s489, 2
        %s491 = smul.addr %s490, 4
        %s492 = scalar_lea.vmem %s13, %s491
        %p493 = pneg %p353
        %p494 = pneg %p350
        %s495 = smul.u32 2, %s28
        %p496 = scmp.lt.s32.totalorder %s495, 3
        %s497 = scalar_select %p496, %s495, 3
        %s498 = smul.addr %s497, 4
        %s499 = scalar_lea.vmem %s14, %s498
        %s500 = smul.u32 2, %s28
        %p501 = scmp.lt.s32.totalorder %s500, 3
        %s502 = scalar_select %p501, %s500, 3
        %s503 = smul.addr %s502, 2
        %s504 = smul.addr %s503, 4
        %s505 = scalar_lea.vmem %s0, %s504
        %s506 = smul.u32 2, %s28
        %s507 = smul.u32 2, %s28
        %p508 = scmp.lt.s32.totalorder %s507, 3
        %s509 = scalar_select %p508, %s507, 3
        %s510 = smul.addr %s509, 2
        %s511 = smul.addr %s510, 4
        %s512 = scalar_lea.vmem %s13, %s511
        %s513 = smul.u32 2, %s28
        %s514 = smul.u32 2, %s28
        %p515 = scmp.lt.s32.totalorder %s514, 3
        %s516 = scalar_select %p515, %s514, 3
        %s517 = smul.addr %s516, 4
        %s518 = scalar_lea.vmem %s14, %s517
        %s519 = smul.u32 2, %s28
        %v521 = vld [vmem:[%s1] sm:$0xff]
        %v522 = vld [vmem:[%s1 + $0x8] sm:$0xff]
        %v523 = vld [vmem:[%s1 + $0x10] sm:$0xff]
        %v524 = vld [vmem:[%s1 + $0x18] sm:$0xff]
        %v525 = vld [vmem:[%s1 + $0x20] sm:$0xff]
        %v526 = vld [vmem:[%s1 + $0x28] sm:$0xff]
        %v527 = vld [vmem:[%s1 + $0x30] sm:$0xff]
        %v528 = vld [vmem:[%s1 + $0x38] sm:$0xff]
        %v529 = vld [vmem:[%s2] sm:$0xff]
        %v530 = vld [vmem:[%s2 + $0x8] sm:$0xff]
        %v531 = vld [vmem:[%s2 + $0x10] sm:$0xff]
        %v532 = vld [vmem:[%s2 + $0x18] sm:$0xff]
        %v533 = vld [vmem:[%s2 + $0x20] sm:$0xff]
        %v534 = vld [vmem:[%s2 + $0x28] sm:$0xff]
        %v535 = vld [vmem:[%s2 + $0x30] sm:$0xff]
        %v536 = vld [vmem:[%s2 + $0x38] sm:$0xff]
        %v537 = vld [vmem:[%s505] sm:$0x77]
        %539 = vset.pattern.permute.xlu0 0
        %540 = vperm.xlu0 %539, %v521
        %v541 = vpop.permute.xlu0 %540
        %544 = vset.pattern.permute.xlu0 0
        %545 = vperm.xlu0 %544, %v522
        %v546 = vpop.permute.xlu0 %545
        %549 = vset.pattern.permute.xlu0 0
        %550 = vperm.xlu0 %549, %v523
        %v551 = vpop.permute.xlu0 %550
        %554 = vset.pattern.permute.xlu0 0
        %555 = vperm.xlu0 %554, %v524
        %v556 = vpop.permute.xlu0 %555
        %559 = vset.pattern.permute.xlu0 0
        %560 = vperm.xlu0 %559, %v525
        %v561 = vpop.permute.xlu0 %560
        %564 = vset.pattern.permute.xlu0 0
        %565 = vperm.xlu0 %564, %v526
        %v566 = vpop.permute.xlu0 %565
        %569 = vset.pattern.permute.xlu0 0
        %570 = vperm.xlu0 %569, %v527
        %v571 = vpop.permute.xlu0 %570
        %574 = vset.pattern.permute.xlu0 0
        %575 = vperm.xlu0 %574, %v528
        %v576 = vpop.permute.xlu0 %575
        %v579 = vlaneseq
        %v580 = vshrl.u32 %v579, 7
        %v581 = vsub.s32 0, %v580
        %v582 = vrot.slane %v537, %v581
        %v583 = vlaneseq
        %v584 = vshrl.u32 %v583, 7
        %v585 = vsub.s32 4, %v584
        %v586 = vrot.slane %v537, %v585
        %v589 = vlaneseq
        %v590 = vshrl.u32 %v589, 7
        %v591 = vsub.s32 0, %v590
        %v592 = vrot.slane %v582, %v591
        %v593 = vlaneseq
        %v594 = vshrl.u32 %v593, 7
        %v595 = vsub.s32 0, %v594
        %v596 = vrot.slane %v586, %v595
        %v597 = vmul.f32 %v541, %v592
        %v598 = vmul.f32 %v541, %v596
        %v599 = vmul.f32 %v546, %v592
        %v600 = vmul.f32 %v546, %v596
        %v601 = vmul.f32 %v551, %v592
        %v602 = vmul.f32 %v551, %v596
        %v603 = vmul.f32 %v556, %v592
        %v604 = vmul.f32 %v556, %v596
        %v605 = vmul.f32 %v561, %v592
        %v606 = vmul.f32 %v561, %v596
        %v607 = vmul.f32 %v566, %v592
        %v608 = vmul.f32 %v566, %v596
        %v609 = vmul.f32 %v571, %v592
        %v610 = vmul.f32 %v571, %v596
        %v611 = vmul.f32 %v576, %v592
        %v612 = vmul.f32 %v576, %v596
        %613 = vset.pattern.permute.xlu0 1
        %614 = vperm.xlu0 %613, %v521
        %v615 = vpop.permute.xlu0 %614
        %617 = vset.pattern.permute.xlu0 1
        %618 = vperm.xlu0 %617, %v522
        %v619 = vpop.permute.xlu0 %618
        %621 = vset.pattern.permute.xlu0 1
        %622 = vperm.xlu0 %621, %v523
        %v623 = vpop.permute.xlu0 %622
        %625 = vset.pattern.permute.xlu0 1
        %626 = vperm.xlu0 %625, %v524
        %v627 = vpop.permute.xlu0 %626
        %629 = vset.pattern.permute.xlu0 1
        %630 = vperm.xlu0 %629, %v525
        %v631 = vpop.permute.xlu0 %630
        %633 = vset.pattern.permute.xlu0 1
        %634 = vperm.xlu0 %633, %v526
        %v635 = vpop.permute.xlu0 %634
        %637 = vset.pattern.permute.xlu0 1
        %638 = vperm.xlu0 %637, %v527
        %v639 = vpop.permute.xlu0 %638
        %641 = vset.pattern.permute.xlu0 1
        %642 = vperm.xlu0 %641, %v528
        %v643 = vpop.permute.xlu0 %642
        %v645 = vlaneseq
        %v646 = vshrl.u32 %v645, 7
        %v647 = vsub.s32 1, %v646
        %v648 = vrot.slane %v537, %v647
        %v649 = vlaneseq
        %v650 = vshrl.u32 %v649, 7
        %v651 = vsub.s32 5, %v650
        %v652 = vrot.slane %v537, %v651
        %v655 = vlaneseq
        %v656 = vshrl.u32 %v655, 7
        %v657 = vsub.s32 1, %v656
        %v658 = vrot.slane %v648, %v657
        %v659 = vlaneseq
        %v660 = vshrl.u32 %v659, 7
        %v661 = vsub.s32 1, %v660
        %v662 = vrot.slane %v652, %v661
        %v663 = vmul.f32 %v615, %v658
        %v664 = vmul.f32 %v615, %v662
        %v665 = vmul.f32 %v619, %v658
        %v666 = vmul.f32 %v619, %v662
        %v667 = vmul.f32 %v623, %v658
        %v668 = vmul.f32 %v623, %v662
        %v669 = vmul.f32 %v627, %v658
        %v670 = vmul.f32 %v627, %v662
        %v671 = vmul.f32 %v631, %v658
        %v672 = vmul.f32 %v631, %v662
        %v673 = vmul.f32 %v635, %v658
        %v674 = vmul.f32 %v635, %v662
        %v675 = vmul.f32 %v639, %v658
        %v676 = vmul.f32 %v639, %v662
        %v677 = vmul.f32 %v643, %v658
        %v678 = vmul.f32 %v643, %v662
        %v679 = vadd.f32 %v597, %v663
        %v680 = vadd.f32 %v598, %v664
        %v681 = vadd.f32 %v599, %v665
        %v682 = vadd.f32 %v600, %v666
        %v683 = vadd.f32 %v601, %v667
        %v684 = vadd.f32 %v602, %v668
        %v685 = vadd.f32 %v603, %v669
        %v686 = vadd.f32 %v604, %v670
        %v687 = vadd.f32 %v605, %v671
        %v688 = vadd.f32 %v606, %v672
        %v689 = vadd.f32 %v607, %v673
        %v690 = vadd.f32 %v608, %v674
        %v691 = vadd.f32 %v609, %v675
        %v692 = vadd.f32 %v610, %v676
        %v693 = vadd.f32 %v611, %v677
        %v694 = vadd.f32 %v612, %v678
        %695 = vset.pattern.permute.xlu0 2
        %696 = vperm.xlu0 %695, %v521
        %v697 = vpop.permute.xlu0 %696
        %699 = vset.pattern.permute.xlu0 2
        %700 = vperm.xlu0 %699, %v522
        %v701 = vpop.permute.xlu0 %700
        %703 = vset.pattern.permute.xlu0 2
        %704 = vperm.xlu0 %703, %v523
        %v705 = vpop.permute.xlu0 %704
        %707 = vset.pattern.permute.xlu0 2
        %708 = vperm.xlu0 %707, %v524
        %v709 = vpop.permute.xlu0 %708
        %711 = vset.pattern.permute.xlu0 2
        %712 = vperm.xlu0 %711, %v525
        %v713 = vpop.permute.xlu0 %712
        %715 = vset.pattern.permute.xlu0 2
        %716 = vperm.xlu0 %715, %v526
        %v717 = vpop.permute.xlu0 %716
        %719 = vset.pattern.permute.xlu0 2
        %720 = vperm.xlu0 %719, %v527
        %v721 = vpop.permute.xlu0 %720
        %723 = vset.pattern.permute.xlu0 2
        %724 = vperm.xlu0 %723, %v528
        %v725 = vpop.permute.xlu0 %724
        %v727 = vlaneseq
        %v728 = vshrl.u32 %v727, 7
        %v729 = vsub.s32 2, %v728
        %v730 = vrot.slane %v537, %v729
        %v731 = vlaneseq
        %v732 = vshrl.u32 %v731, 7
        %v733 = vsub.s32 6, %v732
        %v734 = vrot.slane %v537, %v733
        %v737 = vlaneseq
        %v738 = vshrl.u32 %v737, 7
        %v739 = vsub.s32 2, %v738
        %v740 = vrot.slane %v730, %v739
        %v741 = vlaneseq
        %v742 = vshrl.u32 %v741, 7
        %v743 = vsub.s32 2, %v742
        %v744 = vrot.slane %v734, %v743
        %v745 = vmul.f32 %v697, %v740
        %v746 = vmul.f32 %v697, %v744
        %v747 = vmul.f32 %v701, %v740
        %v748 = vmul.f32 %v701, %v744
        %v749 = vmul.f32 %v705, %v740
        %v750 = vmul.f32 %v705, %v744
        %v751 = vmul.f32 %v709, %v740
        %v752 = vmul.f32 %v709, %v744
        %v753 = vmul.f32 %v713, %v740
        %v754 = vmul.f32 %v713, %v744
        %v755 = vmul.f32 %v717, %v740
        %v756 = vmul.f32 %v717, %v744
        %v757 = vmul.f32 %v721, %v740
        %v758 = vmul.f32 %v721, %v744
        %v759 = vmul.f32 %v725, %v740
        %v760 = vmul.f32 %v725, %v744
        %v761 = vadd.f32 %v679, %v745
        %v762 = vadd.f32 %v680, %v746
        %v763 = vadd.f32 %v681, %v747
        %v764 = vadd.f32 %v682, %v748
        %v765 = vadd.f32 %v683, %v749
        %v766 = vadd.f32 %v684, %v750
        %v767 = vadd.f32 %v685, %v751
        %v768 = vadd.f32 %v686, %v752
        %v769 = vadd.f32 %v687, %v753
        %v770 = vadd.f32 %v688, %v754
        %v771 = vadd.f32 %v689, %v755
        %v772 = vadd.f32 %v690, %v756
        %v773 = vadd.f32 %v691, %v757
        %v774 = vadd.f32 %v692, %v758
        %v775 = vadd.f32 %v693, %v759
        %v776 = vadd.f32 %v694, %v760
        %778 = vset.pattern.permute.xlu0 0
        %779 = vperm.xlu0 %778, %v529
        %v780 = vpop.permute.xlu0 %779
        %783 = vset.pattern.permute.xlu0 0
        %784 = vperm.xlu0 %783, %v530
        %v785 = vpop.permute.xlu0 %784
        %788 = vset.pattern.permute.xlu0 0
        %789 = vperm.xlu0 %788, %v531
        %v790 = vpop.permute.xlu0 %789
        %793 = vset.pattern.permute.xlu0 0
        %794 = vperm.xlu0 %793, %v532
        %v795 = vpop.permute.xlu0 %794
        %798 = vset.pattern.permute.xlu0 0
        %799 = vperm.xlu0 %798, %v533
        %v800 = vpop.permute.xlu0 %799
        %803 = vset.pattern.permute.xlu0 0
        %804 = vperm.xlu0 %803, %v534
        %v805 = vpop.permute.xlu0 %804
        %808 = vset.pattern.permute.xlu0 0
        %809 = vperm.xlu0 %808, %v535
        %v810 = vpop.permute.xlu0 %809
        %813 = vset.pattern.permute.xlu0 0
        %814 = vperm.xlu0 %813, %v536
        %v815 = vpop.permute.xlu0 %814
        %v817 = vadd.f32 %v761, %v780
        %v818 = vadd.f32 %v762, %v780
        %v819 = vadd.f32 %v763, %v785
        %v820 = vadd.f32 %v764, %v785
        %v821 = vadd.f32 %v765, %v790
        %v822 = vadd.f32 %v766, %v790
        %v823 = vadd.f32 %v767, %v795
        %v824 = vadd.f32 %v768, %v795
        %v825 = vadd.f32 %v769, %v800
        %v826 = vadd.f32 %v770, %v800
        %v827 = vadd.f32 %v771, %v805
        %v828 = vadd.f32 %v772, %v805
        %v829 = vadd.f32 %v773, %v810
        %v830 = vadd.f32 %v774, %v810
        %v831 = vadd.f32 %v775, %v815
        %v832 = vadd.f32 %v776, %v815
        %v833 = vmax.f32 %v817, 0.0
        %v834 = vmax.f32 %v818, 0.0
        %v835 = vmax.f32 %v819, 0.0
        %v836 = vmax.f32 %v820, 0.0
        %v837 = vmax.f32 %v821, 0.0
        %v838 = vmax.f32 %v822, 0.0
        %v839 = vmax.f32 %v823, 0.0
        %v840 = vmax.f32 %v824, 0.0
        %v841 = vmax.f32 %v825, 0.0
        %v842 = vmax.f32 %v826, 0.0
        %v843 = vmax.f32 %v827, 0.0
        %v844 = vmax.f32 %v828, 0.0
        %v845 = vmax.f32 %v829, 0.0
        %v846 = vmax.f32 %v830, 0.0
        %v847 = vmax.f32 %v831, 0.0
        %v848 = vmax.f32 %v832, 0.0
        %v849 = vld [vmem:[%s3] sm:$0xf]
        %v850 = vld [vmem:[%s3 + $0x4] sm:$0xf]
        %v851 = vld [vmem:[%s3 + $0x8] sm:$0xf]
        %v852 = vld [vmem:[%s3 + $0xc] sm:$0xf]
        %v853 = vld [vmem:[%s3 + $0x10] sm:$0xf]
        %v854 = vld [vmem:[%s3 + $0x14] sm:$0xf]
        %v855 = vld [vmem:[%s3 + $0x18] sm:$0xf]
        %v856 = vld [vmem:[%s3 + $0x1c] sm:$0xf]
        %v857 = vld [vmem:[%s3 + $0x20] sm:$0xf]
        %v858 = vld [vmem:[%s3 + $0x24] sm:$0xf]
        %v859 = vld [vmem:[%s3 + $0x28] sm:$0xf]
        %v860 = vld [vmem:[%s3 + $0x2c] sm:$0xf]
        %v861 = vld [vmem:[%s3 + $0x30] sm:$0xf]
        %v862 = vld [vmem:[%s3 + $0x34] sm:$0xf]
        %v863 = vld [vmem:[%s3 + $0x38] sm:$0xf]
        %v864 = vld [vmem:[%s3 + $0x3c] sm:$0xf]
        %v865 = vpack.c.bf16 %v835, %v833
        %v866 = vpack.c.bf16 %v836, %v834
        %v867 = vpack.c.bf16 %v839, %v837
        %v868 = vpack.c.bf16 %v840, %v838
        %v869 = vpack.c.bf16 %v843, %v841
        %v870 = vpack.c.bf16 %v844, %v842
        %v871 = vpack.c.bf16 %v847, %v845
        %v872 = vpack.c.bf16 %v848, %v846
        %v873 = vld [vmem:[%s4] sm:$0xff]
        %v874 = vld [vmem:[%s4 + $0x8] sm:$0xff]
        %v875 = vld [vmem:[%s4 + $0x10] sm:$0xff]
        %v876 = vld [vmem:[%s4 + $0x18] sm:$0xff]
        %v877 = vld [vmem:[%s4 + $0x20] sm:$0xff]
        %v878 = vld [vmem:[%s4 + $0x28] sm:$0xff]
        %v879 = vld [vmem:[%s4 + $0x30] sm:$0xff]
        %v880 = vld [vmem:[%s4 + $0x38] sm:$0xff]
        %v881 = vld [vmem:[%s4 + $0x40] sm:$0xff]
        %v882 = vld [vmem:[%s4 + $0x48] sm:$0xff]
        %v883 = vld [vmem:[%s4 + $0x50] sm:$0xff]
        %v884 = vld [vmem:[%s4 + $0x58] sm:$0xff]
        %v885 = vld [vmem:[%s4 + $0x60] sm:$0xff]
        %v886 = vld [vmem:[%s4 + $0x68] sm:$0xff]
        %v887 = vld [vmem:[%s4 + $0x70] sm:$0xff]
        %v888 = vld [vmem:[%s4 + $0x78] sm:$0xff]
        %890 = vset.pattern.permute.xlu0 0
        %891 = vperm.xlu0 %890, %v873
        %v892 = vpop.permute.xlu0 %891
        %895 = vset.pattern.permute.xlu0 0
        %896 = vperm.xlu0 %895, %v874
        %v897 = vpop.permute.xlu0 %896
        %900 = vset.pattern.permute.xlu0 0
        %901 = vperm.xlu0 %900, %v875
        %v902 = vpop.permute.xlu0 %901
        %905 = vset.pattern.permute.xlu0 0
        %906 = vperm.xlu0 %905, %v876
        %v907 = vpop.permute.xlu0 %906
        %910 = vset.pattern.permute.xlu0 0
        %911 = vperm.xlu0 %910, %v877
        %v912 = vpop.permute.xlu0 %911
        %915 = vset.pattern.permute.xlu0 0
        %916 = vperm.xlu0 %915, %v878
        %v917 = vpop.permute.xlu0 %916
        %920 = vset.pattern.permute.xlu0 0
        %921 = vperm.xlu0 %920, %v879
        %v922 = vpop.permute.xlu0 %921
        %925 = vset.pattern.permute.xlu0 0
        %926 = vperm.xlu0 %925, %v880
        %v927 = vpop.permute.xlu0 %926
        %930 = vset.pattern.permute.xlu0 0
        %931 = vperm.xlu0 %930, %v881
        %v932 = vpop.permute.xlu0 %931
        %935 = vset.pattern.permute.xlu0 0
        %936 = vperm.xlu0 %935, %v882
        %v937 = vpop.permute.xlu0 %936
        %940 = vset.pattern.permute.xlu0 0
        %941 = vperm.xlu0 %940, %v883
        %v942 = vpop.permute.xlu0 %941
        %945 = vset.pattern.permute.xlu0 0
        %946 = vperm.xlu0 %945, %v884
        %v947 = vpop.permute.xlu0 %946
        %950 = vset.pattern.permute.xlu0 0
        %951 = vperm.xlu0 %950, %v885
        %v952 = vpop.permute.xlu0 %951
        %955 = vset.pattern.permute.xlu0 0
        %956 = vperm.xlu0 %955, %v886
        %v957 = vpop.permute.xlu0 %956
        %960 = vset.pattern.permute.xlu0 0
        %961 = vperm.xlu0 %960, %v887
        %v962 = vpop.permute.xlu0 %961
        %965 = vset.pattern.permute.xlu0 0
        %966 = vperm.xlu0 %965, %v888
        %v967 = vpop.permute.xlu0 %966
        %v985 = vunpack.c.l.b16 %v849
        %v986 = vunpack.c.l.b16 %v850
        %v987 = vunpack.c.l.b16 %v851
        %v988 = vunpack.c.l.b16 %v852
        %v989 = vunpack.c.l.b16 %v853
        %v990 = vunpack.c.l.b16 %v854
        %v991 = vunpack.c.l.b16 %v855
        %v992 = vunpack.c.l.b16 %v856
        %v993 = vunpack.c.l.b16 %v857
        %v994 = vunpack.c.l.b16 %v858
        %v995 = vunpack.c.l.b16 %v859
        %v996 = vunpack.c.l.b16 %v860
        %v997 = vunpack.c.l.b16 %v861
        %v998 = vunpack.c.l.b16 %v862
        %v999 = vunpack.c.l.b16 %v863
        %v1000 = vunpack.c.l.b16 %v864
        %v1001 = vpack.c.b16 %v986, %v985
        %v1002 = vpack.c.b16 %v988, %v987
        %v1003 = vpack.c.b16 %v990, %v989
        %v1004 = vpack.c.b16 %v992, %v991
        %v1005 = vpack.c.b16 %v994, %v993
        %v1006 = vpack.c.b16 %v996, %v995
        %v1007 = vpack.c.b16 %v998, %v997
        %v1008 = vpack.c.b16 %v1000, %v999
        %vm1009 = vcmask 523264
        %v1011 = vsel %vm1009, %v1001, 0
        %v1014 = vsel %vm1009, %v1002, 0
        %v1017 = vsel %vm1009, %v1003, 0
        %v1020 = vsel %vm1009, %v1004, 0
        %v1023 = vsel %vm1009, %v1005, 0
        %v1026 = vsel %vm1009, %v1006, 0
        %v1029 = vsel %vm1009, %v1007, 0
        %v1032 = vsel %vm1009, %v1008, 0
        %1034 = vmatprep.subr.bf16.mxu0 0
        %1035 = vmatpush1.bf16.msra.mxu0 0
        %1036 = vmatprep.subr.bf16.mxu0 0
        %1037 = vmatpush1.bf16.msra.mxu0 0
        %1038 = vmatprep.subr.bf16.mxu0 0
        %1039 = vmatpush1.bf16.msra.mxu0 0
        %1040 = vmatprep.subr.bf16.mxu0 0
        %1041 = vmatpush1.bf16.msra.mxu0 0
        %1042 = vmatprep.subr.bf16.mxu0 %v872
        %1043 = vmatpush1.bf16.msra.mxu0 %v871
        %1044 = vmatprep.subr.bf16.mxu0 %v870
        %1045 = vmatpush1.bf16.msra.mxu0 %v869
        %1046 = vmatprep.subr.bf16.mxu0 %v868
        %1047 = vmatpush1.bf16.msra.mxu0 %v867
        %1048 = vmatprep.subr.bf16.mxu0 %v866
        %1049 = vmatpush1.bf16.msra.mxu0 %v865
        %1050 = vmatprep.subr.bf16.mxu0 0
        %1051 = vmatpush2.bf16.msra.mxu0 0
        %1052 = vmatprep.subr.bf16.mxu0 0
        %1053 = vmatpush2.bf16.msra.mxu0 0
        %1054 = vmatprep.subr.bf16.mxu0 0
        %1055 = vmatpush2.bf16.msra.mxu0 0
        %1056 = vmatprep.subr.bf16.mxu0 0
        %1057 = vmatpush2.bf16.msra.mxu0 0
        %1058 = vmatprep.subr.bf16.mxu0 0
        %1059 = vmatpush2.bf16.msra.mxu0 0
        %1060 = vmatprep.subr.bf16.mxu0 0
        %1061 = vmatpush2.bf16.msra.mxu0 0
        %1062 = vmatprep.subr.bf16.mxu0 0
        %1063 = vmatpush2.bf16.msra.mxu0 0
        %1064 = vmatprep.subr.bf16.mxu0 0
        %1065 = vmatpush2.bf16.msra.mxu0 0
        %1066 = vmatprep.mubr.bf16.mxu0 0
        %1067 = vmatmul.mubr.bf16.gmra.mxu0 %v1011
        %v1068 = vpop.f32.mrf.mxu0
        %v1069 = vadd.f32 %v892, %v1068
        %v1070 = vpop.f32.mrf.mxu0
        %v1071 = vadd.f32 %v892, %v1070
        %v1072 = vpop.f32.mrf.mxu0
        %v1073 = vadd.f32 %v897, %v1072
        %v1074 = vpop.f32.mrf.mxu0
        %v1075 = vadd.f32 %v897, %v1074
        %1076 = vmatprep.mubr.bf16.mxu0 0
        %1077 = vmatmul.mubr.bf16.gmra.mxu0 %v1014
        %v1078 = vpop.f32.mrf.mxu0
        %v1079 = vadd.f32 %v902, %v1078
        %v1080 = vpop.f32.mrf.mxu0
        %v1081 = vadd.f32 %v902, %v1080
        %v1082 = vpop.f32.mrf.mxu0
        %v1083 = vadd.f32 %v907, %v1082
        %v1084 = vpop.f32.mrf.mxu0
        %v1085 = vadd.f32 %v907, %v1084
        %1086 = vmatprep.mubr.bf16.mxu0 0
        %1087 = vmatmul.mubr.bf16.gmra.mxu0 %v1017
        %v1088 = vpop.f32.mrf.mxu0
        %v1089 = vadd.f32 %v912, %v1088
        %v1090 = vpop.f32.mrf.mxu0
        %v1091 = vadd.f32 %v912, %v1090
        %v1092 = vpop.f32.mrf.mxu0
        %v1093 = vadd.f32 %v917, %v1092
        %v1094 = vpop.f32.mrf.mxu0
        %v1095 = vadd.f32 %v917, %v1094
        %1096 = vmatprep.mubr.bf16.mxu0 0
        %1097 = vmatmul.mubr.bf16.gmra.mxu0 %v1020
        %v1098 = vpop.f32.mrf.mxu0
        %v1099 = vadd.f32 %v922, %v1098
        %v1100 = vpop.f32.mrf.mxu0
        %v1101 = vadd.f32 %v922, %v1100
        %v1102 = vpop.f32.mrf.mxu0
        %v1103 = vadd.f32 %v927, %v1102
        %v1104 = vpop.f32.mrf.mxu0
        %v1105 = vadd.f32 %v927, %v1104
        %1106 = vmatprep.mubr.bf16.mxu0 0
        %1107 = vmatmul.mubr.bf16.gmra.mxu0 %v1023
        %v1108 = vpop.f32.mrf.mxu0
        %v1109 = vadd.f32 %v932, %v1108
        %v1110 = vpop.f32.mrf.mxu0
        %v1111 = vadd.f32 %v932, %v1110
        %v1112 = vpop.f32.mrf.mxu0
        %v1113 = vadd.f32 %v937, %v1112
        %v1114 = vpop.f32.mrf.mxu0
        %v1115 = vadd.f32 %v937, %v1114
        %1116 = vmatprep.mubr.bf16.mxu0 0
        %1117 = vmatmul.mubr.bf16.gmra.mxu0 %v1026
        %v1118 = vpop.f32.mrf.mxu0
        %v1119 = vadd.f32 %v942, %v1118
        %v1120 = vpop.f32.mrf.mxu0
        %v1121 = vadd.f32 %v942, %v1120
        %v1122 = vpop.f32.mrf.mxu0
        %v1123 = vadd.f32 %v947, %v1122
        %v1124 = vpop.f32.mrf.mxu0
        %v1125 = vadd.f32 %v947, %v1124
        %1126 = vmatprep.mubr.bf16.mxu0 0
        %1127 = vmatmul.mubr.bf16.gmra.mxu0 %v1029
        %v1128 = vpop.f32.mrf.mxu0
        %v1129 = vadd.f32 %v952, %v1128
        %v1130 = vpop.f32.mrf.mxu0
        %v1131 = vadd.f32 %v952, %v1130
        %v1132 = vpop.f32.mrf.mxu0
        %v1133 = vadd.f32 %v957, %v1132
        %v1134 = vpop.f32.mrf.mxu0
        %v1135 = vadd.f32 %v957, %v1134
        %1136 = vmatprep.mubr.bf16.mxu0 0
        %1137 = vmatmul.mubr.bf16.gmra.mxu0 %v1032
        %v1138 = vpop.f32.mrf.mxu0
        %v1139 = vadd.f32 %v962, %v1138
        %v1140 = vpop.f32.mrf.mxu0
        %v1141 = vadd.f32 %v962, %v1140
        %v1142 = vpop.f32.mrf.mxu0
        %v1143 = vadd.f32 %v967, %v1142
        %v1144 = vpop.f32.mrf.mxu0
        %v1145 = vadd.f32 %v967, %v1144
        %1146 = vdwg.mxu0
        %v1147 = vmax.f32 %v1069, 0.0
        %v1148 = vmax.f32 %v1071, 0.0
        %v1149 = vmax.f32 %v1073, 0.0
        %v1150 = vmax.f32 %v1075, 0.0
        %v1151 = vmax.f32 %v1079, 0.0
        %v1152 = vmax.f32 %v1081, 0.0
        %v1153 = vmax.f32 %v1083, 0.0
        %v1154 = vmax.f32 %v1085, 0.0
        %v1155 = vmax.f32 %v1089, 0.0
        %v1156 = vmax.f32 %v1091, 0.0
        %v1157 = vmax.f32 %v1093, 0.0
        %v1158 = vmax.f32 %v1095, 0.0
        %v1159 = vmax.f32 %v1099, 0.0
        %v1160 = vmax.f32 %v1101, 0.0
        %v1161 = vmax.f32 %v1103, 0.0
        %v1162 = vmax.f32 %v1105, 0.0
        %v1163 = vmax.f32 %v1109, 0.0
        %v1164 = vmax.f32 %v1111, 0.0
        %v1165 = vmax.f32 %v1113, 0.0
        %v1166 = vmax.f32 %v1115, 0.0
        %v1167 = vmax.f32 %v1119, 0.0
        %v1168 = vmax.f32 %v1121, 0.0
        %v1169 = vmax.f32 %v1123, 0.0
        %v1170 = vmax.f32 %v1125, 0.0
        %v1171 = vmax.f32 %v1129, 0.0
        %v1172 = vmax.f32 %v1131, 0.0
        %v1173 = vmax.f32 %v1133, 0.0
        %v1174 = vmax.f32 %v1135, 0.0
        %v1175 = vmax.f32 %v1139, 0.0
        %v1176 = vmax.f32 %v1141, 0.0
        %v1177 = vmax.f32 %v1143, 0.0
        %v1178 = vmax.f32 %v1145, 0.0
        %v1179 = vld [vmem:[#allocation3] sm:$0xf]
        %v1180 = vld [vmem:[#allocation3 + $0x4] sm:$0xf]
        %v1181 = vld [vmem:[#allocation3 + $0x8] sm:$0xf]
        %v1182 = vld [vmem:[#allocation3 + $0xc] sm:$0xf]
        %v1183 = vld [vmem:[#allocation3 + $0x10] sm:$0xf]
        %v1184 = vld [vmem:[#allocation3 + $0x14] sm:$0xf]
        %v1185 = vld [vmem:[#allocation3 + $0x18] sm:$0xf]
        %v1186 = vld [vmem:[#allocation3 + $0x1c] sm:$0xf]
        %v1187 = vld [vmem:[#allocation3 + $0x20] sm:$0xf]
        %v1188 = vld [vmem:[#allocation3 + $0x24] sm:$0xf]
        %v1189 = vld [vmem:[#allocation3 + $0x28] sm:$0xf]
        %v1190 = vld [vmem:[#allocation3 + $0x2c] sm:$0xf]
        %v1191 = vld [vmem:[#allocation3 + $0x30] sm:$0xf]
        %v1192 = vld [vmem:[#allocation3 + $0x34] sm:$0xf]
        %v1193 = vld [vmem:[#allocation3 + $0x38] sm:$0xf]
        %v1194 = vld [vmem:[#allocation3 + $0x3c] sm:$0xf]
        %v1195 = vld [vmem:[#allocation3 + $0x40] sm:$0xf]
        %v1196 = vld [vmem:[#allocation3 + $0x44] sm:$0xf]
        %v1197 = vld [vmem:[#allocation3 + $0x48] sm:$0xf]
        %v1198 = vld [vmem:[#allocation3 + $0x4c] sm:$0xf]
        %v1199 = vld [vmem:[#allocation3 + $0x50] sm:$0xf]
        %v1200 = vld [vmem:[#allocation3 + $0x54] sm:$0xf]
        %v1201 = vld [vmem:[#allocation3 + $0x58] sm:$0xf]
        %v1202 = vld [vmem:[#allocation3 + $0x5c] sm:$0xf]
        %v1203 = vld [vmem:[#allocation3 + $0x60] sm:$0xf]
        %v1204 = vld [vmem:[#allocation3 + $0x64] sm:$0xf]
        %v1205 = vld [vmem:[#allocation3 + $0x68] sm:$0xf]
        %v1206 = vld [vmem:[#allocation3 + $0x6c] sm:$0xf]
        %v1207 = vld [vmem:[#allocation3 + $0x70] sm:$0xf]
        %v1208 = vld [vmem:[#allocation3 + $0x74] sm:$0xf]
        %v1209 = vld [vmem:[#allocation3 + $0x78] sm:$0xf]
        %v1210 = vld [vmem:[#allocation3 + $0x7c] sm:$0xf]
        %v1211 = vld [vmem:[#allocation3 + $0x80] sm:$0xf]
        %v1212 = vld [vmem:[#allocation3 + $0x84] sm:$0xf]
        %v1213 = vld [vmem:[#allocation3 + $0x88] sm:$0xf]
        %v1214 = vld [vmem:[#allocation3 + $0x8c] sm:$0xf]
        %v1215 = vld [vmem:[#allocation3 + $0x90] sm:$0xf]
        %v1216 = vld [vmem:[#allocation3 + $0x94] sm:$0xf]
        %v1217 = vld [vmem:[#allocation3 + $0x98] sm:$0xf]
        %v1218 = vld [vmem:[#allocation3 + $0x9c] sm:$0xf]
        %v1219 = vld [vmem:[#allocation3 + $0xa0] sm:$0xf]
        %v1220 = vld [vmem:[#allocation3 + $0xa4] sm:$0xf]
        %v1221 = vld [vmem:[#allocation3 + $0xa8] sm:$0xf]
        %v1222 = vld [vmem:[#allocation3 + $0xac] sm:$0xf]
        %v1223 = vld [vmem:[#allocation3 + $0xb0] sm:$0xf]
        %v1224 = vld [vmem:[#allocation3 + $0xb4] sm:$0xf]
        %v1225 = vld [vmem:[#allocation3 + $0xb8] sm:$0xf]
        %v1226 = vld [vmem:[#allocation3 + $0xbc] sm:$0xf]
        %v1227 = vld [vmem:[#allocation3 + $0xc0] sm:$0xf]
        %v1228 = vld [vmem:[#allocation3 + $0xc4] sm:$0xf]
        %v1229 = vld [vmem:[#allocation3 + $0xc8] sm:$0xf]
        %v1230 = vld [vmem:[#allocation3 + $0xcc] sm:$0xf]
        %v1231 = vld [vmem:[#allocation3 + $0xd0] sm:$0xf]
        %v1232 = vld [vmem:[#allocation3 + $0xd4] sm:$0xf]
        %v1233 = vld [vmem:[#allocation3 + $0xd8] sm:$0xf]
        %v1234 = vld [vmem:[#allocation3 + $0xdc] sm:$0xf]
        %v1235 = vld [vmem:[#allocation3 + $0xe0] sm:$0xf]
        %v1236 = vld [vmem:[#allocation3 + $0xe4] sm:$0xf]
        %v1237 = vld [vmem:[#allocation3 + $0xe8] sm:$0xf]
        %v1238 = vld [vmem:[#allocation3 + $0xec] sm:$0xf]
        %v1239 = vld [vmem:[#allocation3 + $0xf0] sm:$0xf]
        %v1240 = vld [vmem:[#allocation3 + $0xf4] sm:$0xf]
        %v1241 = vld [vmem:[#allocation3 + $0xf8] sm:$0xf]
        %v1242 = vld [vmem:[#allocation3 + $0xfc] sm:$0xf]
        %v1243 = vld [vmem:[#allocation3 + $0x100] sm:$0xf]
        %v1244 = vld [vmem:[#allocation3 + $0x104] sm:$0xf]
        %v1245 = vld [vmem:[#allocation3 + $0x108] sm:$0xf]
        %v1246 = vld [vmem:[#allocation3 + $0x10c] sm:$0xf]
        %v1247 = vld [vmem:[#allocation3 + $0x110] sm:$0xf]
        %v1248 = vld [vmem:[#allocation3 + $0x114] sm:$0xf]
        %v1249 = vld [vmem:[#allocation3 + $0x118] sm:$0xf]
        %v1250 = vld [vmem:[#allocation3 + $0x11c] sm:$0xf]
        %v1251 = vld [vmem:[#allocation3 + $0x120] sm:$0xf]
        %v1252 = vld [vmem:[#allocation3 + $0x124] sm:$0xf]
        %v1253 = vld [vmem:[#allocation3 + $0x128] sm:$0xf]
        %v1254 = vld [vmem:[#allocation3 + $0x12c] sm:$0xf]
        %v1255 = vld [vmem:[#allocation3 + $0x130] sm:$0xf]
        %v1256 = vld [vmem:[#allocation3 + $0x134] sm:$0xf]
        %v1257 = vld [vmem:[#allocation3 + $0x138] sm:$0xf]
        %v1258 = vld [vmem:[#allocation3 + $0x13c] sm:$0xf]
        %v1259 = vld [vmem:[#allocation3 + $0x140] sm:$0xf]
        %v1260 = vld [vmem:[#allocation3 + $0x144] sm:$0xf]
        %v1261 = vld [vmem:[#allocation3 + $0x148] sm:$0xf]
        %v1262 = vld [vmem:[#allocation3 + $0x14c] sm:$0xf]
        %v1263 = vld [vmem:[#allocation3 + $0x150] sm:$0xf]
        %v1264 = vld [vmem:[#allocation3 + $0x154] sm:$0xf]
        %v1265 = vld [vmem:[#allocation3 + $0x158] sm:$0xf]
        %v1266 = vld [vmem:[#allocation3 + $0x15c] sm:$0xf]
        %v1267 = vld [vmem:[#allocation3 + $0x160] sm:$0xf]
        %v1268 = vld [vmem:[#allocation3 + $0x164] sm:$0xf]
        %v1269 = vld [vmem:[#allocation3 + $0x168] sm:$0xf]
        %v1270 = vld [vmem:[#allocation3 + $0x16c] sm:$0xf]
        %v1271 = vld [vmem:[#allocation3 + $0x170] sm:$0xf]
        %v1272 = vld [vmem:[#allocation3 + $0x174] sm:$0xf]
        %v1273 = vld [vmem:[#allocation3 + $0x178] sm:$0xf]
        %v1274 = vld [vmem:[#allocation3 + $0x17c] sm:$0xf]
        %v1275 = vld [vmem:[#allocation3 + $0x180] sm:$0xf]
        %v1276 = vld [vmem:[#allocation3 + $0x184] sm:$0xf]
        %v1277 = vld [vmem:[#allocation3 + $0x188] sm:$0xf]
        %v1278 = vld [vmem:[#allocation3 + $0x18c] sm:$0xf]
        %v1279 = vld [vmem:[#allocation3 + $0x190] sm:$0xf]
        %v1280 = vld [vmem:[#allocation3 + $0x194] sm:$0xf]
        %v1281 = vld [vmem:[#allocation3 + $0x198] sm:$0xf]
        %v1282 = vld [vmem:[#allocation3 + $0x19c] sm:$0xf]
        %v1283 = vld [vmem:[#allocation3 + $0x1a0] sm:$0xf]
        %v1284 = vld [vmem:[#allocation3 + $0x1a4] sm:$0xf]
        %v1285 = vld [vmem:[#allocation3 + $0x1a8] sm:$0xf]
        %v1286 = vld [vmem:[#allocation3 + $0x1ac] sm:$0xf]
        %v1287 = vld [vmem:[#allocation3 + $0x1b0] sm:$0xf]
        %v1288 = vld [vmem:[#allocation3 + $0x1b4] sm:$0xf]
        %v1289 = vld [vmem:[#allocation3 + $0x1b8] sm:$0xf]
        %v1290 = vld [vmem:[#allocation3 + $0x1bc] sm:$0xf]
        %v1291 = vld [vmem:[#allocation3 + $0x1c0] sm:$0xf]
        %v1292 = vld [vmem:[#allocation3 + $0x1c4] sm:$0xf]
        %v1293 = vld [vmem:[#allocation3 + $0x1c8] sm:$0xf]
        %v1294 = vld [vmem:[#allocation3 + $0x1cc] sm:$0xf]
        %v1295 = vld [vmem:[#allocation3 + $0x1d0] sm:$0xf]
        %v1296 = vld [vmem:[#allocation3 + $0x1d4] sm:$0xf]
        %v1297 = vld [vmem:[#allocation3 + $0x1d8] sm:$0xf]
        %v1298 = vld [vmem:[#allocation3 + $0x1dc] sm:$0xf]
        %v1299 = vld [vmem:[#allocation3 + $0x1e0] sm:$0xf]
        %v1300 = vld [vmem:[#allocation3 + $0x1e4] sm:$0xf]
        %v1301 = vld [vmem:[#allocation3 + $0x1e8] sm:$0xf]
        %v1302 = vld [vmem:[#allocation3 + $0x1ec] sm:$0xf]
        %v1303 = vld [vmem:[#allocation3 + $0x1f0] sm:$0xf]
        %v1304 = vld [vmem:[#allocation3 + $0x1f4] sm:$0xf]
        %v1305 = vld [vmem:[#allocation3 + $0x1f8] sm:$0xf]
        %v1306 = vld [vmem:[#allocation3 + $0x1fc] sm:$0xf]
        %v1307 = vpack.c.bf16 %v1149, %v1147
        %v1308 = vpack.c.bf16 %v1150, %v1148
        %v1309 = vpack.c.bf16 %v1153, %v1151
        %v1310 = vpack.c.bf16 %v1154, %v1152
        %v1311 = vpack.c.bf16 %v1157, %v1155
        %v1312 = vpack.c.bf16 %v1158, %v1156
        %v1313 = vpack.c.bf16 %v1161, %v1159
        %v1314 = vpack.c.bf16 %v1162, %v1160
        %v1315 = vpack.c.bf16 %v1165, %v1163
        %v1316 = vpack.c.bf16 %v1166, %v1164
        %v1317 = vpack.c.bf16 %v1169, %v1167
        %v1318 = vpack.c.bf16 %v1170, %v1168
        %v1319 = vpack.c.bf16 %v1173, %v1171
        %v1320 = vpack.c.bf16 %v1174, %v1172
        %v1321 = vpack.c.bf16 %v1177, %v1175
        %v1322 = vpack.c.bf16 %v1178, %v1176
        %v1323 = vld [vmem:[%s6] sm:$0xff]
        %v1324 = vld [vmem:[%s6 + $0x8] sm:$0xff]
        %v1325 = vld [vmem:[%s6 + $0x10] sm:$0xff]
        %v1326 = vld [vmem:[%s6 + $0x18] sm:$0xff]
        %v1327 = vld [vmem:[%s6 + $0x20] sm:$0xff]
        %v1328 = vld [vmem:[%s6 + $0x28] sm:$0xff]
        %v1329 = vld [vmem:[%s6 + $0x30] sm:$0xff]
        %v1330 = vld [vmem:[%s6 + $0x38] sm:$0xff]
        %v1331 = vld [vmem:[%s6 + $0x40] sm:$0xff]
        %v1332 = vld [vmem:[%s6 + $0x48] sm:$0xff]
        %v1333 = vld [vmem:[%s6 + $0x50] sm:$0xff]
        %v1334 = vld [vmem:[%s6 + $0x58] sm:$0xff]
        %v1335 = vld [vmem:[%s6 + $0x60] sm:$0xff]
        %v1336 = vld [vmem:[%s6 + $0x68] sm:$0xff]
        %v1337 = vld [vmem:[%s6 + $0x70] sm:$0xff]
        %v1338 = vld [vmem:[%s6 + $0x78] sm:$0xff]
        %v1339 = vld [vmem:[%s6 + $0x80] sm:$0xff]
        %v1340 = vld [vmem:[%s6 + $0x88] sm:$0xff]
        %v1341 = vld [vmem:[%s6 + $0x90] sm:$0xff]
        %v1342 = vld [vmem:[%s6 + $0x98] sm:$0xff]
        %v1343 = vld [vmem:[%s6 + $0xa0] sm:$0xff]
        %v1344 = vld [vmem:[%s6 + $0xa8] sm:$0xff]
        %v1345 = vld [vmem:[%s6 + $0xb0] sm:$0xff]
        %v1346 = vld [vmem:[%s6 + $0xb8] sm:$0xff]
        %v1347 = vld [vmem:[%s6 + $0xc0] sm:$0xff]
        %v1348 = vld [vmem:[%s6 + $0xc8] sm:$0xff]
        %v1349 = vld [vmem:[%s6 + $0xd0] sm:$0xff]
        %v1350 = vld [vmem:[%s6 + $0xd8] sm:$0xff]
        %v1351 = vld [vmem:[%s6 + $0xe0] sm:$0xff]
        %v1352 = vld [vmem:[%s6 + $0xe8] sm:$0xff]
        %v1353 = vld [vmem:[%s6 + $0xf0] sm:$0xff]
        %v1354 = vld [vmem:[%s6 + $0xf8] sm:$0xff]
        %v1355 = vld [vmem:[%s6 + $0x100] sm:$0xff]
        %v1356 = vld [vmem:[%s6 + $0x108] sm:$0xff]
        %v1357 = vld [vmem:[%s6 + $0x110] sm:$0xff]
        %v1358 = vld [vmem:[%s6 + $0x118] sm:$0xff]
        %v1359 = vld [vmem:[%s6 + $0x120] sm:$0xff]
        %v1360 = vld [vmem:[%s6 + $0x128] sm:$0xff]
        %v1361 = vld [vmem:[%s6 + $0x130] sm:$0xff]
        %v1362 = vld [vmem:[%s6 + $0x138] sm:$0xff]
        %v1363 = vld [vmem:[%s6 + $0x140] sm:$0xff]
        %v1364 = vld [vmem:[%s6 + $0x148] sm:$0xff]
        %v1365 = vld [vmem:[%s6 + $0x150] sm:$0xff]
        %v1366 = vld [vmem:[%s6 + $0x158] sm:$0xff]
        %v1367 = vld [vmem:[%s6 + $0x160] sm:$0xff]
        %v1368 = vld [vmem:[%s6 + $0x168] sm:$0xff]
        %v1369 = vld [vmem:[%s6 + $0x170] sm:$0xff]
        %v1370 = vld [vmem:[%s6 + $0x178] sm:$0xff]
        %v1371 = vld [vmem:[%s6 + $0x180] sm:$0xff]
        %v1372 = vld [vmem:[%s6 + $0x188] sm:$0xff]
        %v1373 = vld [vmem:[%s6 + $0x190] sm:$0xff]
        %v1374 = vld [vmem:[%s6 + $0x198] sm:$0xff]
        %v1375 = vld [vmem:[%s6 + $0x1a0] sm:$0xff]
        %v1376 = vld [vmem:[%s6 + $0x1a8] sm:$0xff]
        %v1377 = vld [vmem:[%s6 + $0x1b0] sm:$0xff]
        %v1378 = vld [vmem:[%s6 + $0x1b8] sm:$0xff]
        %v1379 = vld [vmem:[%s6 + $0x1c0] sm:$0xff]
        %v1380 = vld [vmem:[%s6 + $0x1c8] sm:$0xff]
        %v1381 = vld [vmem:[%s6 + $0x1d0] sm:$0xff]
        %v1382 = vld [vmem:[%s6 + $0x1d8] sm:$0xff]
        %v1383 = vld [vmem:[%s6 + $0x1e0] sm:$0xff]
        %v1384 = vld [vmem:[%s6 + $0x1e8] sm:$0xff]
        %v1385 = vld [vmem:[%s6 + $0x1f0] sm:$0xff]
        %v1386 = vld [vmem:[%s6 + $0x1f8] sm:$0xff]
        %v1387 = vld [vmem:[%s6 + $0x200] sm:$0xff]
        %v1388 = vld [vmem:[%s6 + $0x208] sm:$0xff]
        %v1389 = vld [vmem:[%s6 + $0x210] sm:$0xff]
        %v1390 = vld [vmem:[%s6 + $0x218] sm:$0xff]
        %v1391 = vld [vmem:[%s6 + $0x220] sm:$0xff]
        %v1392 = vld [vmem:[%s6 + $0x228] sm:$0xff]
        %v1393 = vld [vmem:[%s6 + $0x230] sm:$0xff]
        %v1394 = vld [vmem:[%s6 + $0x238] sm:$0xff]
        %v1395 = vld [vmem:[%s6 + $0x240] sm:$0xff]
        %v1396 = vld [vmem:[%s6 + $0x248] sm:$0xff]
        %v1397 = vld [vmem:[%s6 + $0x250] sm:$0xff]
        %v1398 = vld [vmem:[%s6 + $0x258] sm:$0xff]
        %v1399 = vld [vmem:[%s6 + $0x260] sm:$0xff]
        %v1400 = vld [vmem:[%s6 + $0x268] sm:$0xff]
        %v1401 = vld [vmem:[%s6 + $0x270] sm:$0xff]
        %v1402 = vld [vmem:[%s6 + $0x278] sm:$0xff]
        %v1403 = vld [vmem:[%s6 + $0x280] sm:$0xff]
        %v1404 = vld [vmem:[%s6 + $0x288] sm:$0xff]
        %v1405 = vld [vmem:[%s6 + $0x290] sm:$0xff]
        %v1406 = vld [vmem:[%s6 + $0x298] sm:$0xff]
        %v1407 = vld [vmem:[%s6 + $0x2a0] sm:$0xff]
        %v1408 = vld [vmem:[%s6 + $0x2a8] sm:$0xff]
        %v1409 = vld [vmem:[%s6 + $0x2b0] sm:$0xff]
        %v1410 = vld [vmem:[%s6 + $0x2b8] sm:$0xff]
        %v1411 = vld [vmem:[%s6 + $0x2c0] sm:$0xff]
        %v1412 = vld [vmem:[%s6 + $0x2c8] sm:$0xff]
        %v1413 = vld [vmem:[%s6 + $0x2d0] sm:$0xff]
        %v1414 = vld [vmem:[%s6 + $0x2d8] sm:$0xff]
        %v1415 = vld [vmem:[%s6 + $0x2e0] sm:$0xff]
        %v1416 = vld [vmem:[%s6 + $0x2e8] sm:$0xff]
        %v1417 = vld [vmem:[%s6 + $0x2f0] sm:$0xff]
        %v1418 = vld [vmem:[%s6 + $0x2f8] sm:$0xff]
        %v1419 = vld [vmem:[%s6 + $0x300] sm:$0xff]
        %v1420 = vld [vmem:[%s6 + $0x308] sm:$0xff]
        %v1421 = vld [vmem:[%s6 + $0x310] sm:$0xff]
        %v1422 = vld [vmem:[%s6 + $0x318] sm:$0xff]
        %v1423 = vld [vmem:[%s6 + $0x320] sm:$0xff]
        %v1424 = vld [vmem:[%s6 + $0x328] sm:$0xff]
        %v1425 = vld [vmem:[%s6 + $0x330] sm:$0xff]
        %v1426 = vld [vmem:[%s6 + $0x338] sm:$0xff]
        %v1427 = vld [vmem:[%s6 + $0x340] sm:$0xff]
        %v1428 = vld [vmem:[%s6 + $0x348] sm:$0xff]
        %v1429 = vld [vmem:[%s6 + $0x350] sm:$0xff]
        %v1430 = vld [vmem:[%s6 + $0x358] sm:$0xff]
        %v1431 = vld [vmem:[%s6 + $0x360] sm:$0xff]
        %v1432 = vld [vmem:[%s6 + $0x368] sm:$0xff]
        %v1433 = vld [vmem:[%s6 + $0x370] sm:$0xff]
        %v1434 = vld [vmem:[%s6 + $0x378] sm:$0xff]
        %v1435 = vld [vmem:[%s6 + $0x380] sm:$0xff]
        %v1436 = vld [vmem:[%s6 + $0x388] sm:$0xff]
        %v1437 = vld [vmem:[%s6 + $0x390] sm:$0xff]
        %v1438 = vld [vmem:[%s6 + $0x398] sm:$0xff]
        %v1439 = vld [vmem:[%s6 + $0x3a0] sm:$0xff]
        %v1440 = vld [vmem:[%s6 + $0x3a8] sm:$0xff]
        %v1441 = vld [vmem:[%s6 + $0x3b0] sm:$0xff]
        %v1442 = vld [vmem:[%s6 + $0x3b8] sm:$0xff]
        %v1443 = vld [vmem:[%s6 + $0x3c0] sm:$0xff]
        %v1444 = vld [vmem:[%s6 + $0x3c8] sm:$0xff]
        %v1445 = vld [vmem:[%s6 + $0x3d0] sm:$0xff]
        %v1446 = vld [vmem:[%s6 + $0x3d8] sm:$0xff]
        %v1447 = vld [vmem:[%s6 + $0x3e0] sm:$0xff]
        %v1448 = vld [vmem:[%s6 + $0x3e8] sm:$0xff]
        %v1449 = vld [vmem:[%s6 + $0x3f0] sm:$0xff]
        %v1450 = vld [vmem:[%s6 + $0x3f8] sm:$0xff]
        %1452 = vset.pattern.permute.xlu0 0
        %1453 = vperm.xlu0 %1452, %v1323
        %v1454 = vpop.permute.xlu0 %1453
        %1457 = vset.pattern.permute.xlu0 0
        %1458 = vperm.xlu0 %1457, %v1324
        %v1459 = vpop.permute.xlu0 %1458
        %1462 = vset.pattern.permute.xlu0 0
        %1463 = vperm.xlu0 %1462, %v1325
        %v1464 = vpop.permute.xlu0 %1463
        %1467 = vset.pattern.permute.xlu0 0
        %1468 = vperm.xlu0 %1467, %v1326
        %v1469 = vpop.permute.xlu0 %1468
        %1472 = vset.pattern.permute.xlu0 0
        %1473 = vperm.xlu0 %1472, %v1327
        %v1474 = vpop.permute.xlu0 %1473
        %1477 = vset.pattern.permute.xlu0 0
        %1478 = vperm.xlu0 %1477, %v1328
        %v1479 = vpop.permute.xlu0 %1478
        %1482 = vset.pattern.permute.xlu0 0
        %1483 = vperm.xlu0 %1482, %v1329
        %v1484 = vpop.permute.xlu0 %1483
        %1487 = vset.pattern.permute.xlu0 0
        %1488 = vperm.xlu0 %1487, %v1330
        %v1489 = vpop.permute.xlu0 %1488
        %1492 = vset.pattern.permute.xlu0 0
        %1493 = vperm.xlu0 %1492, %v1331
        %v1494 = vpop.permute.xlu0 %1493
        %1497 = vset.pattern.permute.xlu0 0
        %1498 = vperm.xlu0 %1497, %v1332
        %v1499 = vpop.permute.xlu0 %1498
        %1502 = vset.pattern.permute.xlu0 0
        %1503 = vperm.xlu0 %1502, %v1333
        %v1504 = vpop.permute.xlu0 %1503
        %1507 = vset.pattern.permute.xlu0 0
        %1508 = vperm.xlu0 %1507, %v1334
        %v1509 = vpop.permute.xlu0 %1508
        %1512 = vset.pattern.permute.xlu0 0
        %1513 = vperm.xlu0 %1512, %v1335
        %v1514 = vpop.permute.xlu0 %1513
        %1517 = vset.pattern.permute.xlu0 0
        %1518 = vperm.xlu0 %1517, %v1336
        %v1519 = vpop.permute.xlu0 %1518
        %1522 = vset.pattern.permute.xlu0 0
        %1523 = vperm.xlu0 %1522, %v1337
        %v1524 = vpop.permute.xlu0 %1523
        %1527 = vset.pattern.permute.xlu0 0
        %1528 = vperm.xlu0 %1527, %v1338
        %v1529 = vpop.permute.xlu0 %1528
        %1532 = vset.pattern.permute.xlu0 0
        %1533 = vperm.xlu0 %1532, %v1339
        %v1534 = vpop.permute.xlu0 %1533
        %1537 = vset.pattern.permute.xlu0 0
        %1538 = vperm.xlu0 %1537, %v1340
        %v1539 = vpop.permute.xlu0 %1538
        %1542 = vset.pattern.permute.xlu0 0
        %1543 = vperm.xlu0 %1542, %v1341
        %v1544 = vpop.permute.xlu0 %1543
        %1547 = vset.pattern.permute.xlu0 0
        %1548 = vperm.xlu0 %1547, %v1342
        %v1549 = vpop.permute.xlu0 %1548
        %1552 = vset.pattern.permute.xlu0 0
        %1553 = vperm.xlu0 %1552, %v1343
        %v1554 = vpop.permute.xlu0 %1553
        %1557 = vset.pattern.permute.xlu0 0
        %1558 = vperm.xlu0 %1557, %v1344
        %v1559 = vpop.permute.xlu0 %1558
        %1562 = vset.pattern.permute.xlu0 0
        %1563 = vperm.xlu0 %1562, %v1345
        %v1564 = vpop.permute.xlu0 %1563
        %1567 = vset.pattern.permute.xlu0 0
        %1568 = vperm.xlu0 %1567, %v1346
        %v1569 = vpop.permute.xlu0 %1568
        %1572 = vset.pattern.permute.xlu0 0
        %1573 = vperm.xlu0 %1572, %v1347
        %v1574 = vpop.permute.xlu0 %1573
        %1577 = vset.pattern.permute.xlu0 0
        %1578 = vperm.xlu0 %1577, %v1348
        %v1579 = vpop.permute.xlu0 %1578
        %1582 = vset.pattern.permute.xlu0 0
        %1583 = vperm.xlu0 %1582, %v1349
        %v1584 = vpop.permute.xlu0 %1583
        %1587 = vset.pattern.permute.xlu0 0
        %1588 = vperm.xlu0 %1587, %v1350
        %v1589 = vpop.permute.xlu0 %1588
        %1592 = vset.pattern.permute.xlu0 0
        %1593 = vperm.xlu0 %1592, %v1351
        %v1594 = vpop.permute.xlu0 %1593
        %1597 = vset.pattern.permute.xlu0 0
        %1598 = vperm.xlu0 %1597, %v1352
        %v1599 = vpop.permute.xlu0 %1598
        %1602 = vset.pattern.permute.xlu0 0
        %1603 = vperm.xlu0 %1602, %v1353
        %v1604 = vpop.permute.xlu0 %1603
        %1607 = vset.pattern.permute.xlu0 0
        %1608 = vperm.xlu0 %1607, %v1354
        %v1609 = vpop.permute.xlu0 %1608
        %1612 = vset.pattern.permute.xlu0 0
        %1613 = vperm.xlu0 %1612, %v1355
        %v1614 = vpop.permute.xlu0 %1613
        %1617 = vset.pattern.permute.xlu0 0
        %1618 = vperm.xlu0 %1617, %v1356
        %v1619 = vpop.permute.xlu0 %1618
        %1622 = vset.pattern.permute.xlu0 0
        %1623 = vperm.xlu0 %1622, %v1357
        %v1624 = vpop.permute.xlu0 %1623
        %1627 = vset.pattern.permute.xlu0 0
        %1628 = vperm.xlu0 %1627, %v1358
        %v1629 = vpop.permute.xlu0 %1628
        %1632 = vset.pattern.permute.xlu0 0
        %1633 = vperm.xlu0 %1632, %v1359
        %v1634 = vpop.permute.xlu0 %1633
        %1637 = vset.pattern.permute.xlu0 0
        %1638 = vperm.xlu0 %1637, %v1360
        %v1639 = vpop.permute.xlu0 %1638
        %1642 = vset.pattern.permute.xlu0 0
        %1643 = vperm.xlu0 %1642, %v1361
        %v1644 = vpop.permute.xlu0 %1643
        %1647 = vset.pattern.permute.xlu0 0
        %1648 = vperm.xlu0 %1647, %v1362
        %v1649 = vpop.permute.xlu0 %1648
        %1652 = vset.pattern.permute.xlu0 0
        %1653 = vperm.xlu0 %1652, %v1363
        %v1654 = vpop.permute.xlu0 %1653
        %1657 = vset.pattern.permute.xlu0 0
        %1658 = vperm.xlu0 %1657, %v1364
        %v1659 = vpop.permute.xlu0 %1658
        %1662 = vset.pattern.permute.xlu0 0
        %1663 = vperm.xlu0 %1662, %v1365
        %v1664 = vpop.permute.xlu0 %1663
        %1667 = vset.pattern.permute.xlu0 0
        %1668 = vperm.xlu0 %1667, %v1366
        %v1669 = vpop.permute.xlu0 %1668
        %1672 = vset.pattern.permute.xlu0 0
        %1673 = vperm.xlu0 %1672, %v1367
        %v1674 = vpop.permute.xlu0 %1673
        %1677 = vset.pattern.permute.xlu0 0
        %1678 = vperm.xlu0 %1677, %v1368
        %v1679 = vpop.permute.xlu0 %1678
        %1682 = vset.pattern.permute.xlu0 0
        %1683 = vperm.xlu0 %1682, %v1369
        %v1684 = vpop.permute.xlu0 %1683
        %1687 = vset.pattern.permute.xlu0 0
        %1688 = vperm.xlu0 %1687, %v1370
        %v1689 = vpop.permute.xlu0 %1688
        %1692 = vset.pattern.permute.xlu0 0
        %1693 = vperm.xlu0 %1692, %v1371
        %v1694 = vpop.permute.xlu0 %1693
        %1697 = vset.pattern.permute.xlu0 0
        %1698 = vperm.xlu0 %1697, %v1372
        %v1699 = vpop.permute.xlu0 %1698
        %1702 = vset.pattern.permute.xlu0 0
        %1703 = vperm.xlu0 %1702, %v1373
        %v1704 = vpop.permute.xlu0 %1703
        %1707 = vset.pattern.permute.xlu0 0
        %1708 = vperm.xlu0 %1707, %v1374
        %v1709 = vpop.permute.xlu0 %1708
        %1712 = vset.pattern.permute.xlu0 0
        %1713 = vperm.xlu0 %1712, %v1375
        %v1714 = vpop.permute.xlu0 %1713
        %1717 = vset.pattern.permute.xlu0 0
        %1718 = vperm.xlu0 %1717, %v1376
        %v1719 = vpop.permute.xlu0 %1718
        %1722 = vset.pattern.permute.xlu0 0
        %1723 = vperm.xlu0 %1722, %v1377
        %v1724 = vpop.permute.xlu0 %1723
        %1727 = vset.pattern.permute.xlu0 0
        %1728 = vperm.xlu0 %1727, %v1378
        %v1729 = vpop.permute.xlu0 %1728
        %1732 = vset.pattern.permute.xlu0 0
        %1733 = vperm.xlu0 %1732, %v1379
        %v1734 = vpop.permute.xlu0 %1733
        %1737 = vset.pattern.permute.xlu0 0
        %1738 = vperm.xlu0 %1737, %v1380
        %v1739 = vpop.permute.xlu0 %1738
        %1742 = vset.pattern.permute.xlu0 0
        %1743 = vperm.xlu0 %1742, %v1381
        %v1744 = vpop.permute.xlu0 %1743
        %1747 = vset.pattern.permute.xlu0 0
        %1748 = vperm.xlu0 %1747, %v1382
        %v1749 = vpop.permute.xlu0 %1748
        %1752 = vset.pattern.permute.xlu0 0
        %1753 = vperm.xlu0 %1752, %v1383
        %v1754 = vpop.permute.xlu0 %1753
        %1757 = vset.pattern.permute.xlu0 0
        %1758 = vperm.xlu0 %1757, %v1384
        %v1759 = vpop.permute.xlu0 %1758
        %1762 = vset.pattern.permute.xlu0 0
        %1763 = vperm.xlu0 %1762, %v1385
        %v1764 = vpop.permute.xlu0 %1763
        %1767 = vset.pattern.permute.xlu0 0
        %1768 = vperm.xlu0 %1767, %v1386
        %v1769 = vpop.permute.xlu0 %1768
        %1772 = vset.pattern.permute.xlu0 0
        %1773 = vperm.xlu0 %1772, %v1387
        %v1774 = vpop.permute.xlu0 %1773
        %1777 = vset.pattern.permute.xlu0 0
        %1778 = vperm.xlu0 %1777, %v1388
        %v1779 = vpop.permute.xlu0 %1778
        %1782 = vset.pattern.permute.xlu0 0
        %1783 = vperm.xlu0 %1782, %v1389
        %v1784 = vpop.permute.xlu0 %1783
        %1787 = vset.pattern.permute.xlu0 0
        %1788 = vperm.xlu0 %1787, %v1390
        %v1789 = vpop.permute.xlu0 %1788
        %1792 = vset.pattern.permute.xlu0 0
        %1793 = vperm.xlu0 %1792, %v1391
        %v1794 = vpop.permute.xlu0 %1793
        %1797 = vset.pattern.permute.xlu0 0
        %1798 = vperm.xlu0 %1797, %v1392
        %v1799 = vpop.permute.xlu0 %1798
        %1802 = vset.pattern.permute.xlu0 0
        %1803 = vperm.xlu0 %1802, %v1393
        %v1804 = vpop.permute.xlu0 %1803
        %1807 = vset.pattern.permute.xlu0 0
        %1808 = vperm.xlu0 %1807, %v1394
        %v1809 = vpop.permute.xlu0 %1808
        %1812 = vset.pattern.permute.xlu0 0
        %1813 = vperm.xlu0 %1812, %v1395
        %v1814 = vpop.permute.xlu0 %1813
        %1817 = vset.pattern.permute.xlu0 0
        %1818 = vperm.xlu0 %1817, %v1396
        %v1819 = vpop.permute.xlu0 %1818
        %1822 = vset.pattern.permute.xlu0 0
        %1823 = vperm.xlu0 %1822, %v1397
        %v1824 = vpop.permute.xlu0 %1823
        %1827 = vset.pattern.permute.xlu0 0
        %1828 = vperm.xlu0 %1827, %v1398
        %v1829 = vpop.permute.xlu0 %1828
        %1832 = vset.pattern.permute.xlu0 0
        %1833 = vperm.xlu0 %1832, %v1399
        %v1834 = vpop.permute.xlu0 %1833
        %1837 = vset.pattern.permute.xlu0 0
        %1838 = vperm.xlu0 %1837, %v1400
        %v1839 = vpop.permute.xlu0 %1838
        %1842 = vset.pattern.permute.xlu0 0
        %1843 = vperm.xlu0 %1842, %v1401
        %v1844 = vpop.permute.xlu0 %1843
        %1847 = vset.pattern.permute.xlu0 0
        %1848 = vperm.xlu0 %1847, %v1402
        %v1849 = vpop.permute.xlu0 %1848
        %1852 = vset.pattern.permute.xlu0 0
        %1853 = vperm.xlu0 %1852, %v1403
        %v1854 = vpop.permute.xlu0 %1853
        %1857 = vset.pattern.permute.xlu0 0
        %1858 = vperm.xlu0 %1857, %v1404
        %v1859 = vpop.permute.xlu0 %1858
        %1862 = vset.pattern.permute.xlu0 0
        %1863 = vperm.xlu0 %1862, %v1405
        %v1864 = vpop.permute.xlu0 %1863
        %1867 = vset.pattern.permute.xlu0 0
        %1868 = vperm.xlu0 %1867, %v1406
        %v1869 = vpop.permute.xlu0 %1868
        %1872 = vset.pattern.permute.xlu0 0
        %1873 = vperm.xlu0 %1872, %v1407
        %v1874 = vpop.permute.xlu0 %1873
        %1877 = vset.pattern.permute.xlu0 0
        %1878 = vperm.xlu0 %1877, %v1408
        %v1879 = vpop.permute.xlu0 %1878
        %1882 = vset.pattern.permute.xlu0 0
        %1883 = vperm.xlu0 %1882, %v1409
        %v1884 = vpop.permute.xlu0 %1883
        %1887 = vset.pattern.permute.xlu0 0
        %1888 = vperm.xlu0 %1887, %v1410
        %v1889 = vpop.permute.xlu0 %1888
        %1892 = vset.pattern.permute.xlu0 0
        %1893 = vperm.xlu0 %1892, %v1411
        %v1894 = vpop.permute.xlu0 %1893
        %1897 = vset.pattern.permute.xlu0 0
        %1898 = vperm.xlu0 %1897, %v1412
        %v1899 = vpop.permute.xlu0 %1898
        %1902 = vset.pattern.permute.xlu0 0
        %1903 = vperm.xlu0 %1902, %v1413
        %v1904 = vpop.permute.xlu0 %1903
        %1907 = vset.pattern.permute.xlu0 0
        %1908 = vperm.xlu0 %1907, %v1414
        %v1909 = vpop.permute.xlu0 %1908
        %1912 = vset.pattern.permute.xlu0 0
        %1913 = vperm.xlu0 %1912, %v1415
        %v1914 = vpop.permute.xlu0 %1913
        %1917 = vset.pattern.permute.xlu0 0
        %1918 = vperm.xlu0 %1917, %v1416
        %v1919 = vpop.permute.xlu0 %1918
        %1922 = vset.pattern.permute.xlu0 0
        %1923 = vperm.xlu0 %1922, %v1417
        %v1924 = vpop.permute.xlu0 %1923
        %1927 = vset.pattern.permute.xlu0 0
        %1928 = vperm.xlu0 %1927, %v1418
        %v1929 = vpop.permute.xlu0 %1928
        %1932 = vset.pattern.permute.xlu0 0
        %1933 = vperm.xlu0 %1932, %v1419
        %v1934 = vpop.permute.xlu0 %1933
        %1937 = vset.pattern.permute.xlu0 0
        %1938 = vperm.xlu0 %1937, %v1420
        %v1939 = vpop.permute.xlu0 %1938
        %1942 = vset.pattern.permute.xlu0 0
        %1943 = vperm.xlu0 %1942, %v1421
        %v1944 = vpop.permute.xlu0 %1943
        %1947 = vset.pattern.permute.xlu0 0
        %1948 = vperm.xlu0 %1947, %v1422
        %v1949 = vpop.permute.xlu0 %1948
        %1952 = vset.pattern.permute.xlu0 0
        %1953 = vperm.xlu0 %1952, %v1423
        %v1954 = vpop.permute.xlu0 %1953
        %1957 = vset.pattern.permute.xlu0 0
        %1958 = vperm.xlu0 %1957, %v1424
        %v1959 = vpop.permute.xlu0 %1958
        %1962 = vset.pattern.permute.xlu0 0
        %1963 = vperm.xlu0 %1962, %v1425
        %v1964 = vpop.permute.xlu0 %1963
        %1967 = vset.pattern.permute.xlu0 0
        %1968 = vperm.xlu0 %1967, %v1426
        %v1969 = vpop.permute.xlu0 %1968
        %1972 = vset.pattern.permute.xlu0 0
        %1973 = vperm.xlu0 %1972, %v1427
        %v1974 = vpop.permute.xlu0 %1973
        %1977 = vset.pattern.permute.xlu0 0
        %1978 = vperm.xlu0 %1977, %v1428
        %v1979 = vpop.permute.xlu0 %1978
        %1982 = vset.pattern.permute.xlu0 0
        %1983 = vperm.xlu0 %1982, %v1429
        %v1984 = vpop.permute.xlu0 %1983
        %1987 = vset.pattern.permute.xlu0 0
        %1988 = vperm.xlu0 %1987, %v1430
        %v1989 = vpop.permute.xlu0 %1988
        %1992 = vset.pattern.permute.xlu0 0
        %1993 = vperm.xlu0 %1992, %v1431
        %v1994 = vpop.permute.xlu0 %1993
        %1997 = vset.pattern.permute.xlu0 0
        %1998 = vperm.xlu0 %1997, %v1432
        %v1999 = vpop.permute.xlu0 %1998
        %2002 = vset.pattern.permute.xlu0 0
        %2003 = vperm.xlu0 %2002, %v1433
        %v2004 = vpop.permute.xlu0 %2003
        %2007 = vset.pattern.permute.xlu0 0
        %2008 = vperm.xlu0 %2007, %v1434
        %v2009 = vpop.permute.xlu0 %2008
        %2012 = vset.pattern.permute.xlu0 0
        %2013 = vperm.xlu0 %2012, %v1435
        %v2014 = vpop.permute.xlu0 %2013
        %2017 = vset.pattern.permute.xlu0 0
        %2018 = vperm.xlu0 %2017, %v1436
        %v2019 = vpop.permute.xlu0 %2018
        %2022 = vset.pattern.permute.xlu0 0
        %2023 = vperm.xlu0 %2022, %v1437
        %v2024 = vpop.permute.xlu0 %2023
        %2027 = vset.pattern.permute.xlu0 0
        %2028 = vperm.xlu0 %2027, %v1438
        %v2029 = vpop.permute.xlu0 %2028
        %2032 = vset.pattern.permute.xlu0 0
        %2033 = vperm.xlu0 %2032, %v1439
        %v2034 = vpop.permute.xlu0 %2033
        %2037 = vset.pattern.permute.xlu0 0
        %2038 = vperm.xlu0 %2037, %v1440
        %v2039 = vpop.permute.xlu0 %2038
        %2042 = vset.pattern.permute.xlu0 0
        %2043 = vperm.xlu0 %2042, %v1441
        %v2044 = vpop.permute.xlu0 %2043
        %2047 = vset.pattern.permute.xlu0 0
        %2048 = vperm.xlu0 %2047, %v1442
        %v2049 = vpop.permute.xlu0 %2048
        %2052 = vset.pattern.permute.xlu0 0
        %2053 = vperm.xlu0 %2052, %v1443
        %v2054 = vpop.permute.xlu0 %2053
        %2057 = vset.pattern.permute.xlu0 0
        %2058 = vperm.xlu0 %2057, %v1444
        %v2059 = vpop.permute.xlu0 %2058
        %2062 = vset.pattern.permute.xlu0 0
        %2063 = vperm.xlu0 %2062, %v1445
        %v2064 = vpop.permute.xlu0 %2063
        %2067 = vset.pattern.permute.xlu0 0
        %2068 = vperm.xlu0 %2067, %v1446
        %v2069 = vpop.permute.xlu0 %2068
        %2072 = vset.pattern.permute.xlu0 0
        %2073 = vperm.xlu0 %2072, %v1447
        %v2074 = vpop.permute.xlu0 %2073
        %2077 = vset.pattern.permute.xlu0 0
        %2078 = vperm.xlu0 %2077, %v1448
        %v2079 = vpop.permute.xlu0 %2078
        %2082 = vset.pattern.permute.xlu0 0
        %2083 = vperm.xlu0 %2082, %v1449
        %v2084 = vpop.permute.xlu0 %2083
        %2087 = vset.pattern.permute.xlu0 0
        %2088 = vperm.xlu0 %2087, %v1450
        %v2089 = vpop.permute.xlu0 %2088
        %v2219 = vunpack.c.l.b16 %v1179
        %v2220 = vunpack.c.l.b16 %v1180
        %v2221 = vunpack.c.l.b16 %v1181
        %v2222 = vunpack.c.l.b16 %v1182
        %v2223 = vunpack.c.l.b16 %v1183
        %v2224 = vunpack.c.l.b16 %v1184
        %v2225 = vunpack.c.l.b16 %v1185
        %v2226 = vunpack.c.l.b16 %v1186
        %v2227 = vunpack.c.l.b16 %v1187
        %v2228 = vunpack.c.l.b16 %v1188
        %v2229 = vunpack.c.l.b16 %v1189
        %v2230 = vunpack.c.l.b16 %v1190
        %v2231 = vunpack.c.l.b16 %v1191
        %v2232 = vunpack.c.l.b16 %v1192
        %v2233 = vunpack.c.l.b16 %v1193
        %v2234 = vunpack.c.l.b16 %v1194
        %v2235 = vunpack.c.l.b16 %v1195
        %v2236 = vunpack.c.l.b16 %v1196
        %v2237 = vunpack.c.l.b16 %v1197
        %v2238 = vunpack.c.l.b16 %v1198
        %v2239 = vunpack.c.l.b16 %v1199
        %v2240 = vunpack.c.l.b16 %v1200
        %v2241 = vunpack.c.l.b16 %v1201
        %v2242 = vunpack.c.l.b16 %v1202
        %v2243 = vunpack.c.l.b16 %v1203
        %v2244 = vunpack.c.l.b16 %v1204
        %v2245 = vunpack.c.l.b16 %v1205
        %v2246 = vunpack.c.l.b16 %v1206
        %v2247 = vunpack.c.l.b16 %v1207
        %v2248 = vunpack.c.l.b16 %v1208
        %v2249 = vunpack.c.l.b16 %v1209
        %v2250 = vunpack.c.l.b16 %v1210
        %v2251 = vunpack.c.l.b16 %v1211
        %v2252 = vunpack.c.l.b16 %v1212
        %v2253 = vunpack.c.l.b16 %v1213
        %v2254 = vunpack.c.l.b16 %v1214
        %v2255 = vunpack.c.l.b16 %v1215
        %v2256 = vunpack.c.l.b16 %v1216
        %v2257 = vunpack.c.l.b16 %v1217
        %v2258 = vunpack.c.l.b16 %v1218
        %v2259 = vunpack.c.l.b16 %v1219
        %v2260 = vunpack.c.l.b16 %v1220
        %v2261 = vunpack.c.l.b16 %v1221
        %v2262 = vunpack.c.l.b16 %v1222
        %v2263 = vunpack.c.l.b16 %v1223
        %v2264 = vunpack.c.l.b16 %v1224
        %v2265 = vunpack.c.l.b16 %v1225
        %v2266 = vunpack.c.l.b16 %v1226
        %v2267 = vunpack.c.l.b16 %v1227
        %v2268 = vunpack.c.l.b16 %v1228
        %v2269 = vunpack.c.l.b16 %v1229
        %v2270 = vunpack.c.l.b16 %v1230
        %v2271 = vunpack.c.l.b16 %v1231
        %v2272 = vunpack.c.l.b16 %v1232
        %v2273 = vunpack.c.l.b16 %v1233
        %v2274 = vunpack.c.l.b16 %v1234
        %v2275 = vunpack.c.l.b16 %v1235
        %v2276 = vunpack.c.l.b16 %v1236
        %v2277 = vunpack.c.l.b16 %v1237
        %v2278 = vunpack.c.l.b16 %v1238
        %v2279 = vunpack.c.l.b16 %v1239
        %v2280 = vunpack.c.l.b16 %v1240
        %v2281 = vunpack.c.l.b16 %v1241
        %v2282 = vunpack.c.l.b16 %v1242
        %v2283 = vunpack.c.l.b16 %v1243
        %v2284 = vunpack.c.l.b16 %v1244
        %v2285 = vunpack.c.l.b16 %v1245
        %v2286 = vunpack.c.l.b16 %v1246
        %v2287 = vunpack.c.l.b16 %v1247
        %v2288 = vunpack.c.l.b16 %v1248
        %v2289 = vunpack.c.l.b16 %v1249
        %v2290 = vunpack.c.l.b16 %v1250
        %v2291 = vunpack.c.l.b16 %v1251
        %v2292 = vunpack.c.l.b16 %v1252
        %v2293 = vunpack.c.l.b16 %v1253
        %v2294 = vunpack.c.l.b16 %v1254
        %v2295 = vunpack.c.l.b16 %v1255
        %v2296 = vunpack.c.l.b16 %v1256
        %v2297 = vunpack.c.l.b16 %v1257
        %v2298 = vunpack.c.l.b16 %v1258
        %v2299 = vunpack.c.l.b16 %v1259
        %v2300 = vunpack.c.l.b16 %v1260
        %v2301 = vunpack.c.l.b16 %v1261
        %v2302 = vunpack.c.l.b16 %v1262
        %v2303 = vunpack.c.l.b16 %v1263
        %v2304 = vunpack.c.l.b16 %v1264
        %v2305 = vunpack.c.l.b16 %v1265
        %v2306 = vunpack.c.l.b16 %v1266
        %v2307 = vunpack.c.l.b16 %v1267
        %v2308 = vunpack.c.l.b16 %v1268
        %v2309 = vunpack.c.l.b16 %v1269
        %v2310 = vunpack.c.l.b16 %v1270
        %v2311 = vunpack.c.l.b16 %v1271
        %v2312 = vunpack.c.l.b16 %v1272
        %v2313 = vunpack.c.l.b16 %v1273
        %v2314 = vunpack.c.l.b16 %v1274
        %v2315 = vunpack.c.l.b16 %v1275
        %v2316 = vunpack.c.l.b16 %v1276
        %v2317 = vunpack.c.l.b16 %v1277
        %v2318 = vunpack.c.l.b16 %v1278
        %v2319 = vunpack.c.l.b16 %v1279
        %v2320 = vunpack.c.l.b16 %v1280
        %v2321 = vunpack.c.l.b16 %v1281
        %v2322 = vunpack.c.l.b16 %v1282
        %v2323 = vunpack.c.l.b16 %v1283
        %v2324 = vunpack.c.l.b16 %v1284
        %v2325 = vunpack.c.l.b16 %v1285
        %v2326 = vunpack.c.l.b16 %v1286
        %v2327 = vunpack.c.l.b16 %v1287
        %v2328 = vunpack.c.l.b16 %v1288
        %v2329 = vunpack.c.l.b16 %v1289
        %v2330 = vunpack.c.l.b16 %v1290
        %v2331 = vunpack.c.l.b16 %v1291
        %v2332 = vunpack.c.l.b16 %v1292
        %v2333 = vunpack.c.l.b16 %v1293
        %v2334 = vunpack.c.l.b16 %v1294
        %v2335 = vunpack.c.l.b16 %v1295
        %v2336 = vunpack.c.l.b16 %v1296
        %v2337 = vunpack.c.l.b16 %v1297
        %v2338 = vunpack.c.l.b16 %v1298
        %v2339 = vunpack.c.l.b16 %v1299
        %v2340 = vunpack.c.l.b16 %v1300
        %v2341 = vunpack.c.l.b16 %v1301
        %v2342 = vunpack.c.l.b16 %v1302
        %v2343 = vunpack.c.l.b16 %v1303
        %v2344 = vunpack.c.l.b16 %v1304
        %v2345 = vunpack.c.l.b16 %v1305
        %v2346 = vunpack.c.l.b16 %v1306
        %v2347 = vpack.c.b16 %v2220, %v2219
        %v2348 = vpack.c.b16 %v2222, %v2221
        %v2349 = vpack.c.b16 %v2224, %v2223
        %v2350 = vpack.c.b16 %v2226, %v2225
        %v2351 = vpack.c.b16 %v2228, %v2227
        %v2352 = vpack.c.b16 %v2230, %v2229
        %v2353 = vpack.c.b16 %v2232, %v2231
        %v2354 = vpack.c.b16 %v2234, %v2233
        %v2355 = vpack.c.b16 %v2236, %v2235
        %v2356 = vpack.c.b16 %v2238, %v2237
        %v2357 = vpack.c.b16 %v2240, %v2239
        %v2358 = vpack.c.b16 %v2242, %v2241
        %v2359 = vpack.c.b16 %v2244, %v2243
        %v2360 = vpack.c.b16 %v2246, %v2245
        %v2361 = vpack.c.b16 %v2248, %v2247
        %v2362 = vpack.c.b16 %v2250, %v2249
        %v2363 = vpack.c.b16 %v2252, %v2251
        %v2364 = vpack.c.b16 %v2254, %v2253
        %v2365 = vpack.c.b16 %v2256, %v2255
        %v2366 = vpack.c.b16 %v2258, %v2257
        %v2367 = vpack.c.b16 %v2260, %v2259
        %v2368 = vpack.c.b16 %v2262, %v2261
        %v2369 = vpack.c.b16 %v2264, %v2263
        %v2370 = vpack.c.b16 %v2266, %v2265
        %v2371 = vpack.c.b16 %v2268, %v2267
        %v2372 = vpack.c.b16 %v2270, %v2269
        %v2373 = vpack.c.b16 %v2272, %v2271
        %v2374 = vpack.c.b16 %v2274, %v2273
        %v2375 = vpack.c.b16 %v2276, %v2275
        %v2376 = vpack.c.b16 %v2278, %v2277
        %v2377 = vpack.c.b16 %v2280, %v2279
        %v2378 = vpack.c.b16 %v2282, %v2281
        %v2379 = vpack.c.b16 %v2284, %v2283
        %v2380 = vpack.c.b16 %v2286, %v2285
        %v2381 = vpack.c.b16 %v2288, %v2287
        %v2382 = vpack.c.b16 %v2290, %v2289
        %v2383 = vpack.c.b16 %v2292, %v2291
        %v2384 = vpack.c.b16 %v2294, %v2293
        %v2385 = vpack.c.b16 %v2296, %v2295
        %v2386 = vpack.c.b16 %v2298, %v2297
        %v2387 = vpack.c.b16 %v2300, %v2299
        %v2388 = vpack.c.b16 %v2302, %v2301
        %v2389 = vpack.c.b16 %v2304, %v2303
        %v2390 = vpack.c.b16 %v2306, %v2305
        %v2391 = vpack.c.b16 %v2308, %v2307
        %v2392 = vpack.c.b16 %v2310, %v2309
        %v2393 = vpack.c.b16 %v2312, %v2311
        %v2394 = vpack.c.b16 %v2314, %v2313
        %v2395 = vpack.c.b16 %v2316, %v2315
        %v2396 = vpack.c.b16 %v2318, %v2317
        %v2397 = vpack.c.b16 %v2320, %v2319
        %v2398 = vpack.c.b16 %v2322, %v2321
        %v2399 = vpack.c.b16 %v2324, %v2323
        %v2400 = vpack.c.b16 %v2326, %v2325
        %v2401 = vpack.c.b16 %v2328, %v2327
        %v2402 = vpack.c.b16 %v2330, %v2329
        %v2403 = vpack.c.b16 %v2332, %v2331
        %v2404 = vpack.c.b16 %v2334, %v2333
        %v2405 = vpack.c.b16 %v2336, %v2335
        %v2406 = vpack.c.b16 %v2338, %v2337
        %v2407 = vpack.c.b16 %v2340, %v2339
        %v2408 = vpack.c.b16 %v2342, %v2341
        %v2409 = vpack.c.b16 %v2344, %v2343
        %v2410 = vpack.c.b16 %v2346, %v2345
        %2475 = vmatprep.subr.bf16.mxu0 %v1322
        %2476 = vmatpush1.bf16.msra.mxu0 %v1321
        %2477 = vmatprep.subr.bf16.mxu0 %v1320
        %2478 = vmatpush1.bf16.msra.mxu0 %v1319
        %2479 = vmatprep.subr.bf16.mxu0 %v1318
        %2480 = vmatpush1.bf16.msra.mxu0 %v1317
        %2481 = vmatprep.subr.bf16.mxu0 %v1316
        %2482 = vmatpush1.bf16.msra.mxu0 %v1315
        %2483 = vmatprep.subr.bf16.mxu0 %v1314
        %2484 = vmatpush1.bf16.msra.mxu0 %v1313
        %2485 = vmatprep.subr.bf16.mxu0 %v1312
        %2486 = vmatpush1.bf16.msra.mxu0 %v1311
        %2487 = vmatprep.subr.bf16.mxu0 %v1310
        %2488 = vmatpush1.bf16.msra.mxu0 %v1309
        %2489 = vmatprep.subr.bf16.mxu0 %v1308
        %2490 = vmatpush1.bf16.msra.mxu0 %v1307
        %2491 = vmatprep.subr.bf16.mxu0 0
        %2492 = vmatpush2.bf16.msra.mxu0 0
        %2493 = vmatprep.subr.bf16.mxu0 0
        %2494 = vmatpush2.bf16.msra.mxu0 0
        %2495 = vmatprep.subr.bf16.mxu0 0
        %2496 = vmatpush2.bf16.msra.mxu0 0
        %2497 = vmatprep.subr.bf16.mxu0 0
        %2498 = vmatpush2.bf16.msra.mxu0 0
        %2499 = vmatprep.subr.bf16.mxu0 0
        %2500 = vmatpush2.bf16.msra.mxu0 0
        %2501 = vmatprep.subr.bf16.mxu0 0
        %2502 = vmatpush2.bf16.msra.mxu0 0
        %2503 = vmatprep.subr.bf16.mxu0 0
        %2504 = vmatpush2.bf16.msra.mxu0 0
        %2505 = vmatprep.subr.bf16.mxu0 0
        %2506 = vmatpush2.bf16.msra.mxu0 0
        %2507 = vmatprep.mubr.bf16.mxu0 0
        %2508 = vmatmul.mubr.bf16.gmra.mxu0 %v2347
        %v2509 = vpop.f32.mrf.mxu0
        %v2510 = vadd.f32 %v1454, %v2509
        %v2511 = vpop.f32.mrf.mxu0
        %v2512 = vadd.f32 %v1454, %v2511
        %v2513 = vpop.f32.mrf.mxu0
        %v2514 = vadd.f32 %v1459, %v2513
        %v2515 = vpop.f32.mrf.mxu0
        %v2516 = vadd.f32 %v1459, %v2515
        %2517 = vmatprep.mubr.bf16.mxu0 0
        %2518 = vmatmul.mubr.bf16.gmra.mxu0 %v2348
        %v2519 = vpop.f32.mrf.mxu0
        %v2520 = vadd.f32 %v1464, %v2519
        %v2521 = vpop.f32.mrf.mxu0
        %v2522 = vadd.f32 %v1464, %v2521
        %v2523 = vpop.f32.mrf.mxu0
        %v2524 = vadd.f32 %v1469, %v2523
        %v2525 = vpop.f32.mrf.mxu0
        %v2526 = vadd.f32 %v1469, %v2525
        %2527 = vmatprep.mubr.bf16.mxu0 0
        %2528 = vmatmul.mubr.bf16.gmra.mxu0 %v2349
        %v2529 = vpop.f32.mrf.mxu0
        %v2530 = vadd.f32 %v1474, %v2529
        %v2531 = vpop.f32.mrf.mxu0
        %v2532 = vadd.f32 %v1474, %v2531
        %v2533 = vpop.f32.mrf.mxu0
        %v2534 = vadd.f32 %v1479, %v2533
        %v2535 = vpop.f32.mrf.mxu0
        %v2536 = vadd.f32 %v1479, %v2535
        %2537 = vmatprep.mubr.bf16.mxu0 0
        %2538 = vmatmul.mubr.bf16.gmra.mxu0 %v2350
        %v2539 = vpop.f32.mrf.mxu0
        %v2540 = vadd.f32 %v1484, %v2539
        %v2541 = vpop.f32.mrf.mxu0
        %v2542 = vadd.f32 %v1484, %v2541
        %v2543 = vpop.f32.mrf.mxu0
        %v2544 = vadd.f32 %v1489, %v2543
        %v2545 = vpop.f32.mrf.mxu0
        %v2546 = vadd.f32 %v1489, %v2545
        %2547 = vmatprep.mubr.bf16.mxu0 0
        %2548 = vmatmul.mubr.bf16.gmra.mxu0 %v2351
        %v2549 = vpop.f32.mrf.mxu0
        %v2550 = vadd.f32 %v1494, %v2549
        %v2551 = vpop.f32.mrf.mxu0
        %v2552 = vadd.f32 %v1494, %v2551
        %v2553 = vpop.f32.mrf.mxu0
        %v2554 = vadd.f32 %v1499, %v2553
        %v2555 = vpop.f32.mrf.mxu0
        %v2556 = vadd.f32 %v1499, %v2555
        %2557 = vmatprep.mubr.bf16.mxu0 0
        %2558 = vmatmul.mubr.bf16.gmra.mxu0 %v2352
        %v2559 = vpop.f32.mrf.mxu0
        %v2560 = vadd.f32 %v1504, %v2559
        %v2561 = vpop.f32.mrf.mxu0
        %v2562 = vadd.f32 %v1504, %v2561
        %v2563 = vpop.f32.mrf.mxu0
        %v2564 = vadd.f32 %v1509, %v2563
        %v2565 = vpop.f32.mrf.mxu0
        %v2566 = vadd.f32 %v1509, %v2565
        %2567 = vmatprep.mubr.bf16.mxu0 0
        %2568 = vmatmul.mubr.bf16.gmra.mxu0 %v2353
        %v2569 = vpop.f32.mrf.mxu0
        %v2570 = vadd.f32 %v1514, %v2569
        %v2571 = vpop.f32.mrf.mxu0
        %v2572 = vadd.f32 %v1514, %v2571
        %v2573 = vpop.f32.mrf.mxu0
        %v2574 = vadd.f32 %v1519, %v2573
        %v2575 = vpop.f32.mrf.mxu0
        %v2576 = vadd.f32 %v1519, %v2575
        %2577 = vmatprep.mubr.bf16.mxu0 0
        %2578 = vmatmul.mubr.bf16.gmra.mxu0 %v2354
        %v2579 = vpop.f32.mrf.mxu0
        %v2580 = vadd.f32 %v1524, %v2579
        %v2581 = vpop.f32.mrf.mxu0
        %v2582 = vadd.f32 %v1524, %v2581
        %v2583 = vpop.f32.mrf.mxu0
        %v2584 = vadd.f32 %v1529, %v2583
        %v2585 = vpop.f32.mrf.mxu0
        %v2586 = vadd.f32 %v1529, %v2585
        %2587 = vmatprep.mubr.bf16.mxu0 0
        %2588 = vmatmul.mubr.bf16.gmra.mxu0 %v2355
        %v2589 = vpop.f32.mrf.mxu0
        %v2590 = vadd.f32 %v1534, %v2589
        %v2591 = vpop.f32.mrf.mxu0
        %v2592 = vadd.f32 %v1534, %v2591
        %v2593 = vpop.f32.mrf.mxu0
        %v2594 = vadd.f32 %v1539, %v2593
        %v2595 = vpop.f32.mrf.mxu0
        %v2596 = vadd.f32 %v1539, %v2595
        %2597 = vmatprep.mubr.bf16.mxu0 0
        %2598 = vmatmul.mubr.bf16.gmra.mxu0 %v2356
        %v2599 = vpop.f32.mrf.mxu0
        %v2600 = vadd.f32 %v1544, %v2599
        %v2601 = vpop.f32.mrf.mxu0
        %v2602 = vadd.f32 %v1544, %v2601
        %v2603 = vpop.f32.mrf.mxu0
        %v2604 = vadd.f32 %v1549, %v2603
        %v2605 = vpop.f32.mrf.mxu0
        %v2606 = vadd.f32 %v1549, %v2605
        %2607 = vmatprep.mubr.bf16.mxu0 0
        %2608 = vmatmul.mubr.bf16.gmra.mxu0 %v2357
        %v2609 = vpop.f32.mrf.mxu0
        %v2610 = vadd.f32 %v1554, %v2609
        %v2611 = vpop.f32.mrf.mxu0
        %v2612 = vadd.f32 %v1554, %v2611
        %v2613 = vpop.f32.mrf.mxu0
        %v2614 = vadd.f32 %v1559, %v2613
        %v2615 = vpop.f32.mrf.mxu0
        %v2616 = vadd.f32 %v1559, %v2615
        %2617 = vmatprep.mubr.bf16.mxu0 0
        %2618 = vmatmul.mubr.bf16.gmra.mxu0 %v2358
        %v2619 = vpop.f32.mrf.mxu0
        %v2620 = vadd.f32 %v1564, %v2619
        %v2621 = vpop.f32.mrf.mxu0
        %v2622 = vadd.f32 %v1564, %v2621
        %v2623 = vpop.f32.mrf.mxu0
        %v2624 = vadd.f32 %v1569, %v2623
        %v2625 = vpop.f32.mrf.mxu0
        %v2626 = vadd.f32 %v1569, %v2625
        %2627 = vmatprep.mubr.bf16.mxu0 0
        %2628 = vmatmul.mubr.bf16.gmra.mxu0 %v2359
        %v2629 = vpop.f32.mrf.mxu0
        %v2630 = vadd.f32 %v1574, %v2629
        %v2631 = vpop.f32.mrf.mxu0
        %v2632 = vadd.f32 %v1574, %v2631
        %v2633 = vpop.f32.mrf.mxu0
        %v2634 = vadd.f32 %v1579, %v2633
        %v2635 = vpop.f32.mrf.mxu0
        %v2636 = vadd.f32 %v1579, %v2635
        %2637 = vmatprep.mubr.bf16.mxu0 0
        %2638 = vmatmul.mubr.bf16.gmra.mxu0 %v2360
        %v2639 = vpop.f32.mrf.mxu0
        %v2640 = vadd.f32 %v1584, %v2639
        %v2641 = vpop.f32.mrf.mxu0
        %v2642 = vadd.f32 %v1584, %v2641
        %v2643 = vpop.f32.mrf.mxu0
        %v2644 = vadd.f32 %v1589, %v2643
        %v2645 = vpop.f32.mrf.mxu0
        %v2646 = vadd.f32 %v1589, %v2645
        %2647 = vmatprep.mubr.bf16.mxu0 0
        %2648 = vmatmul.mubr.bf16.gmra.mxu0 %v2361
        %v2649 = vpop.f32.mrf.mxu0
        %v2650 = vadd.f32 %v1594, %v2649
        %v2651 = vpop.f32.mrf.mxu0
        %v2652 = vadd.f32 %v1594, %v2651
        %v2653 = vpop.f32.mrf.mxu0
        %v2654 = vadd.f32 %v1599, %v2653
        %v2655 = vpop.f32.mrf.mxu0
        %v2656 = vadd.f32 %v1599, %v2655
        %2657 = vmatprep.mubr.bf16.mxu0 0
        %2658 = vmatmul.mubr.bf16.gmra.mxu0 %v2362
        %v2659 = vpop.f32.mrf.mxu0
        %v2660 = vadd.f32 %v1604, %v2659
        %v2661 = vpop.f32.mrf.mxu0
        %v2662 = vadd.f32 %v1604, %v2661
        %v2663 = vpop.f32.mrf.mxu0
        %v2664 = vadd.f32 %v1609, %v2663
        %v2665 = vpop.f32.mrf.mxu0
        %v2666 = vadd.f32 %v1609, %v2665
        %2667 = vmatprep.mubr.bf16.mxu0 0
        %2668 = vmatmul.mubr.bf16.gmra.mxu0 %v2363
        %v2669 = vpop.f32.mrf.mxu0
        %v2670 = vadd.f32 %v1614, %v2669
        %v2671 = vpop.f32.mrf.mxu0
        %v2672 = vadd.f32 %v1614, %v2671
        %v2673 = vpop.f32.mrf.mxu0
        %v2674 = vadd.f32 %v1619, %v2673
        %v2675 = vpop.f32.mrf.mxu0
        %v2676 = vadd.f32 %v1619, %v2675
        %2677 = vmatprep.mubr.bf16.mxu0 0
        %2678 = vmatmul.mubr.bf16.gmra.mxu0 %v2364
        %v2679 = vpop.f32.mrf.mxu0
        %v2680 = vadd.f32 %v1624, %v2679
        %v2681 = vpop.f32.mrf.mxu0
        %v2682 = vadd.f32 %v1624, %v2681
        %v2683 = vpop.f32.mrf.mxu0
        %v2684 = vadd.f32 %v1629, %v2683
        %v2685 = vpop.f32.mrf.mxu0
        %v2686 = vadd.f32 %v1629, %v2685
        %2687 = vmatprep.mubr.bf16.mxu0 0
        %2688 = vmatmul.mubr.bf16.gmra.mxu0 %v2365
        %v2689 = vpop.f32.mrf.mxu0
        %v2690 = vadd.f32 %v1634, %v2689
        %v2691 = vpop.f32.mrf.mxu0
        %v2692 = vadd.f32 %v1634, %v2691
        %v2693 = vpop.f32.mrf.mxu0
        %v2694 = vadd.f32 %v1639, %v2693
        %v2695 = vpop.f32.mrf.mxu0
        %v2696 = vadd.f32 %v1639, %v2695
        %2697 = vmatprep.mubr.bf16.mxu0 0
        %2698 = vmatmul.mubr.bf16.gmra.mxu0 %v2366
        %v2699 = vpop.f32.mrf.mxu0
        %v2700 = vadd.f32 %v1644, %v2699
        %v2701 = vpop.f32.mrf.mxu0
        %v2702 = vadd.f32 %v1644, %v2701
        %v2703 = vpop.f32.mrf.mxu0
        %v2704 = vadd.f32 %v1649, %v2703
        %v2705 = vpop.f32.mrf.mxu0
        %v2706 = vadd.f32 %v1649, %v2705
        %2707 = vmatprep.mubr.bf16.mxu0 0
        %2708 = vmatmul.mubr.bf16.gmra.mxu0 %v2367
        %v2709 = vpop.f32.mrf.mxu0
        %v2710 = vadd.f32 %v1654, %v2709
        %v2711 = vpop.f32.mrf.mxu0
        %v2712 = vadd.f32 %v1654, %v2711
        %v2713 = vpop.f32.mrf.mxu0
        %v2714 = vadd.f32 %v1659, %v2713
        %v2715 = vpop.f32.mrf.mxu0
        %v2716 = vadd.f32 %v1659, %v2715
        %2717 = vmatprep.mubr.bf16.mxu0 0
        %2718 = vmatmul.mubr.bf16.gmra.mxu0 %v2368
        %v2719 = vpop.f32.mrf.mxu0
        %v2720 = vadd.f32 %v1664, %v2719
        %v2721 = vpop.f32.mrf.mxu0
        %v2722 = vadd.f32 %v1664, %v2721
        %v2723 = vpop.f32.mrf.mxu0
        %v2724 = vadd.f32 %v1669, %v2723
        %v2725 = vpop.f32.mrf.mxu0
        %v2726 = vadd.f32 %v1669, %v2725
        %2727 = vmatprep.mubr.bf16.mxu0 0
        %2728 = vmatmul.mubr.bf16.gmra.mxu0 %v2369
        %v2729 = vpop.f32.mrf.mxu0
        %v2730 = vadd.f32 %v1674, %v2729
        %v2731 = vpop.f32.mrf.mxu0
        %v2732 = vadd.f32 %v1674, %v2731
        %v2733 = vpop.f32.mrf.mxu0
        %v2734 = vadd.f32 %v1679, %v2733
        %v2735 = vpop.f32.mrf.mxu0
        %v2736 = vadd.f32 %v1679, %v2735
        %2737 = vmatprep.mubr.bf16.mxu0 0
        %2738 = vmatmul.mubr.bf16.gmra.mxu0 %v2370
        %v2739 = vpop.f32.mrf.mxu0
        %v2740 = vadd.f32 %v1684, %v2739
        %v2741 = vpop.f32.mrf.mxu0
        %v2742 = vadd.f32 %v1684, %v2741
        %v2743 = vpop.f32.mrf.mxu0
        %v2744 = vadd.f32 %v1689, %v2743
        %v2745 = vpop.f32.mrf.mxu0
        %v2746 = vadd.f32 %v1689, %v2745
        %2747 = vmatprep.mubr.bf16.mxu0 0
        %2748 = vmatmul.mubr.bf16.gmra.mxu0 %v2371
        %v2749 = vpop.f32.mrf.mxu0
        %v2750 = vadd.f32 %v1694, %v2749
        %v2751 = vpop.f32.mrf.mxu0
        %v2752 = vadd.f32 %v1694, %v2751
        %v2753 = vpop.f32.mrf.mxu0
        %v2754 = vadd.f32 %v1699, %v2753
        %v2755 = vpop.f32.mrf.mxu0
        %v2756 = vadd.f32 %v1699, %v2755
        %2757 = vmatprep.mubr.bf16.mxu0 0
        %2758 = vmatmul.mubr.bf16.gmra.mxu0 %v2372
        %v2759 = vpop.f32.mrf.mxu0
        %v2760 = vadd.f32 %v1704, %v2759
        %v2761 = vpop.f32.mrf.mxu0
        %v2762 = vadd.f32 %v1704, %v2761
        %v2763 = vpop.f32.mrf.mxu0
        %v2764 = vadd.f32 %v1709, %v2763
        %v2765 = vpop.f32.mrf.mxu0
        %v2766 = vadd.f32 %v1709, %v2765
        %2767 = vmatprep.mubr.bf16.mxu0 0
        %2768 = vmatmul.mubr.bf16.gmra.mxu0 %v2373
        %v2769 = vpop.f32.mrf.mxu0
        %v2770 = vadd.f32 %v1714, %v2769
        %v2771 = vpop.f32.mrf.mxu0
        %v2772 = vadd.f32 %v1714, %v2771
        %v2773 = vpop.f32.mrf.mxu0
        %v2774 = vadd.f32 %v1719, %v2773
        %v2775 = vpop.f32.mrf.mxu0
        %v2776 = vadd.f32 %v1719, %v2775
        %2777 = vmatprep.mubr.bf16.mxu0 0
        %2778 = vmatmul.mubr.bf16.gmra.mxu0 %v2374
        %v2779 = vpop.f32.mrf.mxu0
        %v2780 = vadd.f32 %v1724, %v2779
        %v2781 = vpop.f32.mrf.mxu0
        %v2782 = vadd.f32 %v1724, %v2781
        %v2783 = vpop.f32.mrf.mxu0
        %v2784 = vadd.f32 %v1729, %v2783
        %v2785 = vpop.f32.mrf.mxu0
        %v2786 = vadd.f32 %v1729, %v2785
        %2787 = vmatprep.mubr.bf16.mxu0 0
        %2788 = vmatmul.mubr.bf16.gmra.mxu0 %v2375
        %v2789 = vpop.f32.mrf.mxu0
        %v2790 = vadd.f32 %v1734, %v2789
        %v2791 = vpop.f32.mrf.mxu0
        %v2792 = vadd.f32 %v1734, %v2791
        %v2793 = vpop.f32.mrf.mxu0
        %v2794 = vadd.f32 %v1739, %v2793
        %v2795 = vpop.f32.mrf.mxu0
        %v2796 = vadd.f32 %v1739, %v2795
        %2797 = vmatprep.mubr.bf16.mxu0 0
        %2798 = vmatmul.mubr.bf16.gmra.mxu0 %v2376
        %v2799 = vpop.f32.mrf.mxu0
        %v2800 = vadd.f32 %v1744, %v2799
        %v2801 = vpop.f32.mrf.mxu0
        %v2802 = vadd.f32 %v1744, %v2801
        %v2803 = vpop.f32.mrf.mxu0
        %v2804 = vadd.f32 %v1749, %v2803
        %v2805 = vpop.f32.mrf.mxu0
        %v2806 = vadd.f32 %v1749, %v2805
        %2807 = vmatprep.mubr.bf16.mxu0 0
        %2808 = vmatmul.mubr.bf16.gmra.mxu0 %v2377
        %v2809 = vpop.f32.mrf.mxu0
        %v2810 = vadd.f32 %v1754, %v2809
        %v2811 = vpop.f32.mrf.mxu0
        %v2812 = vadd.f32 %v1754, %v2811
        %v2813 = vpop.f32.mrf.mxu0
        %v2814 = vadd.f32 %v1759, %v2813
        %v2815 = vpop.f32.mrf.mxu0
        %v2816 = vadd.f32 %v1759, %v2815
        %2817 = vmatprep.mubr.bf16.mxu0 0
        %2818 = vmatmul.mubr.bf16.gmra.mxu0 %v2378
        %v2819 = vpop.f32.mrf.mxu0
        %v2820 = vadd.f32 %v1764, %v2819
        %v2821 = vpop.f32.mrf.mxu0
        %v2822 = vadd.f32 %v1764, %v2821
        %v2823 = vpop.f32.mrf.mxu0
        %v2824 = vadd.f32 %v1769, %v2823
        %v2825 = vpop.f32.mrf.mxu0
        %v2826 = vadd.f32 %v1769, %v2825
        %2827 = vmatprep.mubr.bf16.mxu0 0
        %2828 = vmatmul.mubr.bf16.gmra.mxu0 %v2379
        %v2829 = vpop.f32.mrf.mxu0
        %v2830 = vadd.f32 %v1774, %v2829
        %v2831 = vpop.f32.mrf.mxu0
        %v2832 = vadd.f32 %v1774, %v2831
        %v2833 = vpop.f32.mrf.mxu0
        %v2834 = vadd.f32 %v1779, %v2833
        %v2835 = vpop.f32.mrf.mxu0
        %v2836 = vadd.f32 %v1779, %v2835
        %2837 = vmatprep.mubr.bf16.mxu0 0
        %2838 = vmatmul.mubr.bf16.gmra.mxu0 %v2380
        %v2839 = vpop.f32.mrf.mxu0
        %v2840 = vadd.f32 %v1784, %v2839
        %v2841 = vpop.f32.mrf.mxu0
        %v2842 = vadd.f32 %v1784, %v2841
        %v2843 = vpop.f32.mrf.mxu0
        %v2844 = vadd.f32 %v1789, %v2843
        %v2845 = vpop.f32.mrf.mxu0
        %v2846 = vadd.f32 %v1789, %v2845
        %2847 = vmatprep.mubr.bf16.mxu0 0
        %2848 = vmatmul.mubr.bf16.gmra.mxu0 %v2381
        %v2849 = vpop.f32.mrf.mxu0
        %v2850 = vadd.f32 %v1794, %v2849
        %v2851 = vpop.f32.mrf.mxu0
        %v2852 = vadd.f32 %v1794, %v2851
        %v2853 = vpop.f32.mrf.mxu0
        %v2854 = vadd.f32 %v1799, %v2853
        %v2855 = vpop.f32.mrf.mxu0
        %v2856 = vadd.f32 %v1799, %v2855
        %2857 = vmatprep.mubr.bf16.mxu0 0
        %2858 = vmatmul.mubr.bf16.gmra.mxu0 %v2382
        %v2859 = vpop.f32.mrf.mxu0
        %v2860 = vadd.f32 %v1804, %v2859
        %v2861 = vpop.f32.mrf.mxu0
        %v2862 = vadd.f32 %v1804, %v2861
        %v2863 = vpop.f32.mrf.mxu0
        %v2864 = vadd.f32 %v1809, %v2863
        %v2865 = vpop.f32.mrf.mxu0
        %v2866 = vadd.f32 %v1809, %v2865
        %2867 = vmatprep.mubr.bf16.mxu0 0
        %2868 = vmatmul.mubr.bf16.gmra.mxu0 %v2383
        %v2869 = vpop.f32.mrf.mxu0
        %v2870 = vadd.f32 %v1814, %v2869
        %v2871 = vpop.f32.mrf.mxu0
        %v2872 = vadd.f32 %v1814, %v2871
        %v2873 = vpop.f32.mrf.mxu0
        %v2874 = vadd.f32 %v1819, %v2873
        %v2875 = vpop.f32.mrf.mxu0
        %v2876 = vadd.f32 %v1819, %v2875
        %2877 = vmatprep.mubr.bf16.mxu0 0
        %2878 = vmatmul.mubr.bf16.gmra.mxu0 %v2384
        %v2879 = vpop.f32.mrf.mxu0
        %v2880 = vadd.f32 %v1824, %v2879
        %v2881 = vpop.f32.mrf.mxu0
        %v2882 = vadd.f32 %v1824, %v2881
        %v2883 = vpop.f32.mrf.mxu0
        %v2884 = vadd.f32 %v1829, %v2883
        %v2885 = vpop.f32.mrf.mxu0
        %v2886 = vadd.f32 %v1829, %v2885
        %2887 = vmatprep.mubr.bf16.mxu0 0
        %2888 = vmatmul.mubr.bf16.gmra.mxu0 %v2385
        %v2889 = vpop.f32.mrf.mxu0
        %v2890 = vadd.f32 %v1834, %v2889
        %v2891 = vpop.f32.mrf.mxu0
        %v2892 = vadd.f32 %v1834, %v2891
        %v2893 = vpop.f32.mrf.mxu0
        %v2894 = vadd.f32 %v1839, %v2893
        %v2895 = vpop.f32.mrf.mxu0
        %v2896 = vadd.f32 %v1839, %v2895
        %2897 = vmatprep.mubr.bf16.mxu0 0
        %2898 = vmatmul.mubr.bf16.gmra.mxu0 %v2386
        %v2899 = vpop.f32.mrf.mxu0
        %v2900 = vadd.f32 %v1844, %v2899
        %v2901 = vpop.f32.mrf.mxu0
        %v2902 = vadd.f32 %v1844, %v2901
        %v2903 = vpop.f32.mrf.mxu0
        %v2904 = vadd.f32 %v1849, %v2903
        %v2905 = vpop.f32.mrf.mxu0
        %v2906 = vadd.f32 %v1849, %v2905
        %2907 = vmatprep.mubr.bf16.mxu0 0
        %2908 = vmatmul.mubr.bf16.gmra.mxu0 %v2387
        %v2909 = vpop.f32.mrf.mxu0
        %v2910 = vadd.f32 %v1854, %v2909
        %v2911 = vpop.f32.mrf.mxu0
        %v2912 = vadd.f32 %v1854, %v2911
        %v2913 = vpop.f32.mrf.mxu0
        %v2914 = vadd.f32 %v1859, %v2913
        %v2915 = vpop.f32.mrf.mxu0
        %v2916 = vadd.f32 %v1859, %v2915
        %2917 = vmatprep.mubr.bf16.mxu0 0
        %2918 = vmatmul.mubr.bf16.gmra.mxu0 %v2388
        %v2919 = vpop.f32.mrf.mxu0
        %v2920 = vadd.f32 %v1864, %v2919
        %v2921 = vpop.f32.mrf.mxu0
        %v2922 = vadd.f32 %v1864, %v2921
        %v2923 = vpop.f32.mrf.mxu0
        %v2924 = vadd.f32 %v1869, %v2923
        %v2925 = vpop.f32.mrf.mxu0
        %v2926 = vadd.f32 %v1869, %v2925
        %2927 = vmatprep.mubr.bf16.mxu0 0
        %2928 = vmatmul.mubr.bf16.gmra.mxu0 %v2389
        %v2929 = vpop.f32.mrf.mxu0
        %v2930 = vadd.f32 %v1874, %v2929
        %v2931 = vpop.f32.mrf.mxu0
        %v2932 = vadd.f32 %v1874, %v2931
        %v2933 = vpop.f32.mrf.mxu0
        %v2934 = vadd.f32 %v1879, %v2933
        %v2935 = vpop.f32.mrf.mxu0
        %v2936 = vadd.f32 %v1879, %v2935
        %2937 = vmatprep.mubr.bf16.mxu0 0
        %2938 = vmatmul.mubr.bf16.gmra.mxu0 %v2390
        %v2939 = vpop.f32.mrf.mxu0
        %v2940 = vadd.f32 %v1884, %v2939
        %v2941 = vpop.f32.mrf.mxu0
        %v2942 = vadd.f32 %v1884, %v2941
        %v2943 = vpop.f32.mrf.mxu0
        %v2944 = vadd.f32 %v1889, %v2943
        %v2945 = vpop.f32.mrf.mxu0
        %v2946 = vadd.f32 %v1889, %v2945
        %2947 = vmatprep.mubr.bf16.mxu0 0
        %2948 = vmatmul.mubr.bf16.gmra.mxu0 %v2391
        %v2949 = vpop.f32.mrf.mxu0
        %v2950 = vadd.f32 %v1894, %v2949
        %v2951 = vpop.f32.mrf.mxu0
        %v2952 = vadd.f32 %v1894, %v2951
        %v2953 = vpop.f32.mrf.mxu0
        %v2954 = vadd.f32 %v1899, %v2953
        %v2955 = vpop.f32.mrf.mxu0
        %v2956 = vadd.f32 %v1899, %v2955
        %2957 = vmatprep.mubr.bf16.mxu0 0
        %2958 = vmatmul.mubr.bf16.gmra.mxu0 %v2392
        %v2959 = vpop.f32.mrf.mxu0
        %v2960 = vadd.f32 %v1904, %v2959
        %v2961 = vpop.f32.mrf.mxu0
        %v2962 = vadd.f32 %v1904, %v2961
        %v2963 = vpop.f32.mrf.mxu0
        %v2964 = vadd.f32 %v1909, %v2963
        %v2965 = vpop.f32.mrf.mxu0
        %v2966 = vadd.f32 %v1909, %v2965
        %2967 = vmatprep.mubr.bf16.mxu0 0
        %2968 = vmatmul.mubr.bf16.gmra.mxu0 %v2393
        %v2969 = vpop.f32.mrf.mxu0
        %v2970 = vadd.f32 %v1914, %v2969
        %v2971 = vpop.f32.mrf.mxu0
        %v2972 = vadd.f32 %v1914, %v2971
        %v2973 = vpop.f32.mrf.mxu0
        %v2974 = vadd.f32 %v1919, %v2973
        %v2975 = vpop.f32.mrf.mxu0
        %v2976 = vadd.f32 %v1919, %v2975
        %2977 = vmatprep.mubr.bf16.mxu0 0
        %2978 = vmatmul.mubr.bf16.gmra.mxu0 %v2394
        %v2979 = vpop.f32.mrf.mxu0
        %v2980 = vadd.f32 %v1924, %v2979
        %v2981 = vpop.f32.mrf.mxu0
        %v2982 = vadd.f32 %v1924, %v2981
        %v2983 = vpop.f32.mrf.mxu0
        %v2984 = vadd.f32 %v1929, %v2983
        %v2985 = vpop.f32.mrf.mxu0
        %v2986 = vadd.f32 %v1929, %v2985
        %2987 = vmatprep.mubr.bf16.mxu0 0
        %2988 = vmatmul.mubr.bf16.gmra.mxu0 %v2395
        %v2989 = vpop.f32.mrf.mxu0
        %v2990 = vadd.f32 %v1934, %v2989
        %v2991 = vpop.f32.mrf.mxu0
        %v2992 = vadd.f32 %v1934, %v2991
        %v2993 = vpop.f32.mrf.mxu0
        %v2994 = vadd.f32 %v1939, %v2993
        %v2995 = vpop.f32.mrf.mxu0
        %v2996 = vadd.f32 %v1939, %v2995
        %2997 = vmatprep.mubr.bf16.mxu0 0
        %2998 = vmatmul.mubr.bf16.gmra.mxu0 %v2396
        %v2999 = vpop.f32.mrf.mxu0
        %v3000 = vadd.f32 %v1944, %v2999
        %v3001 = vpop.f32.mrf.mxu0
        %v3002 = vadd.f32 %v1944, %v3001
        %v3003 = vpop.f32.mrf.mxu0
        %v3004 = vadd.f32 %v1949, %v3003
        %v3005 = vpop.f32.mrf.mxu0
        %v3006 = vadd.f32 %v1949, %v3005
        %3007 = vmatprep.mubr.bf16.mxu0 0
        %3008 = vmatmul.mubr.bf16.gmra.mxu0 %v2397
        %v3009 = vpop.f32.mrf.mxu0
        %v3010 = vadd.f32 %v1954, %v3009
        %v3011 = vpop.f32.mrf.mxu0
        %v3012 = vadd.f32 %v1954, %v3011
        %v3013 = vpop.f32.mrf.mxu0
        %v3014 = vadd.f32 %v1959, %v3013
        %v3015 = vpop.f32.mrf.mxu0
        %v3016 = vadd.f32 %v1959, %v3015
        %3017 = vmatprep.mubr.bf16.mxu0 0
        %3018 = vmatmul.mubr.bf16.gmra.mxu0 %v2398
        %v3019 = vpop.f32.mrf.mxu0
        %v3020 = vadd.f32 %v1964, %v3019
        %v3021 = vpop.f32.mrf.mxu0
        %v3022 = vadd.f32 %v1964, %v3021
        %v3023 = vpop.f32.mrf.mxu0
        %v3024 = vadd.f32 %v1969, %v3023
        %v3025 = vpop.f32.mrf.mxu0
        %v3026 = vadd.f32 %v1969, %v3025
        %3027 = vmatprep.mubr.bf16.mxu0 0
        %3028 = vmatmul.mubr.bf16.gmra.mxu0 %v2399
        %v3029 = vpop.f32.mrf.mxu0
        %v3030 = vadd.f32 %v1974, %v3029
        %v3031 = vpop.f32.mrf.mxu0
        %v3032 = vadd.f32 %v1974, %v3031
        %v3033 = vpop.f32.mrf.mxu0
        %v3034 = vadd.f32 %v1979, %v3033
        %v3035 = vpop.f32.mrf.mxu0
        %v3036 = vadd.f32 %v1979, %v3035
        %3037 = vmatprep.mubr.bf16.mxu0 0
        %3038 = vmatmul.mubr.bf16.gmra.mxu0 %v2400
        %v3039 = vpop.f32.mrf.mxu0
        %v3040 = vadd.f32 %v1984, %v3039
        %v3041 = vpop.f32.mrf.mxu0
        %v3042 = vadd.f32 %v1984, %v3041
        %v3043 = vpop.f32.mrf.mxu0
        %v3044 = vadd.f32 %v1989, %v3043
        %v3045 = vpop.f32.mrf.mxu0
        %v3046 = vadd.f32 %v1989, %v3045
        %3047 = vmatprep.mubr.bf16.mxu0 0
        %3048 = vmatmul.mubr.bf16.gmra.mxu0 %v2401
        %v3049 = vpop.f32.mrf.mxu0
        %v3050 = vadd.f32 %v1994, %v3049
        %v3051 = vpop.f32.mrf.mxu0
        %v3052 = vadd.f32 %v1994, %v3051
        %v3053 = vpop.f32.mrf.mxu0
        %v3054 = vadd.f32 %v1999, %v3053
        %v3055 = vpop.f32.mrf.mxu0
        %v3056 = vadd.f32 %v1999, %v3055
        %3057 = vmatprep.mubr.bf16.mxu0 0
        %3058 = vmatmul.mubr.bf16.gmra.mxu0 %v2402
        %v3059 = vpop.f32.mrf.mxu0
        %v3060 = vadd.f32 %v2004, %v3059
        %v3061 = vpop.f32.mrf.mxu0
        %v3062 = vadd.f32 %v2004, %v3061
        %v3063 = vpop.f32.mrf.mxu0
        %v3064 = vadd.f32 %v2009, %v3063
        %v3065 = vpop.f32.mrf.mxu0
        %v3066 = vadd.f32 %v2009, %v3065
        %3067 = vmatprep.mubr.bf16.mxu0 0
        %3068 = vmatmul.mubr.bf16.gmra.mxu0 %v2403
        %v3069 = vpop.f32.mrf.mxu0
        %v3070 = vadd.f32 %v2014, %v3069
        %v3071 = vpop.f32.mrf.mxu0
        %v3072 = vadd.f32 %v2014, %v3071
        %v3073 = vpop.f32.mrf.mxu0
        %v3074 = vadd.f32 %v2019, %v3073
        %v3075 = vpop.f32.mrf.mxu0
        %v3076 = vadd.f32 %v2019, %v3075
        %3077 = vmatprep.mubr.bf16.mxu0 0
        %3078 = vmatmul.mubr.bf16.gmra.mxu0 %v2404
        %v3079 = vpop.f32.mrf.mxu0
        %v3080 = vadd.f32 %v2024, %v3079
        %v3081 = vpop.f32.mrf.mxu0
        %v3082 = vadd.f32 %v2024, %v3081
        %v3083 = vpop.f32.mrf.mxu0
        %v3084 = vadd.f32 %v2029, %v3083
        %v3085 = vpop.f32.mrf.mxu0
        %v3086 = vadd.f32 %v2029, %v3085
        %3087 = vmatprep.mubr.bf16.mxu0 0
        %3088 = vmatmul.mubr.bf16.gmra.mxu0 %v2405
        %v3089 = vpop.f32.mrf.mxu0
        %v3090 = vadd.f32 %v2034, %v3089
        %v3091 = vpop.f32.mrf.mxu0
        %v3092 = vadd.f32 %v2034, %v3091
        %v3093 = vpop.f32.mrf.mxu0
        %v3094 = vadd.f32 %v2039, %v3093
        %v3095 = vpop.f32.mrf.mxu0
        %v3096 = vadd.f32 %v2039, %v3095
        %3097 = vmatprep.mubr.bf16.mxu0 0
        %3098 = vmatmul.mubr.bf16.gmra.mxu0 %v2406
        %v3099 = vpop.f32.mrf.mxu0
        %v3100 = vadd.f32 %v2044, %v3099
        %v3101 = vpop.f32.mrf.mxu0
        %v3102 = vadd.f32 %v2044, %v3101
        %v3103 = vpop.f32.mrf.mxu0
        %v3104 = vadd.f32 %v2049, %v3103
        %v3105 = vpop.f32.mrf.mxu0
        %v3106 = vadd.f32 %v2049, %v3105
        %3107 = vmatprep.mubr.bf16.mxu0 0
        %3108 = vmatmul.mubr.bf16.gmra.mxu0 %v2407
        %v3109 = vpop.f32.mrf.mxu0
        %v3110 = vadd.f32 %v2054, %v3109
        %v3111 = vpop.f32.mrf.mxu0
        %v3112 = vadd.f32 %v2054, %v3111
        %v3113 = vpop.f32.mrf.mxu0
        %v3114 = vadd.f32 %v2059, %v3113
        %v3115 = vpop.f32.mrf.mxu0
        %v3116 = vadd.f32 %v2059, %v3115
        %3117 = vmatprep.mubr.bf16.mxu0 0
        %3118 = vmatmul.mubr.bf16.gmra.mxu0 %v2408
        %v3119 = vpop.f32.mrf.mxu0
        %v3120 = vadd.f32 %v2064, %v3119
        %v3121 = vpop.f32.mrf.mxu0
        %v3122 = vadd.f32 %v2064, %v3121
        %v3123 = vpop.f32.mrf.mxu0
        %v3124 = vadd.f32 %v2069, %v3123
        %v3125 = vpop.f32.mrf.mxu0
        %v3126 = vadd.f32 %v2069, %v3125
        %3127 = vmatprep.mubr.bf16.mxu0 0
        %3128 = vmatmul.mubr.bf16.gmra.mxu0 %v2409
        %v3129 = vpop.f32.mrf.mxu0
        %v3130 = vadd.f32 %v2074, %v3129
        %v3131 = vpop.f32.mrf.mxu0
        %v3132 = vadd.f32 %v2074, %v3131
        %v3133 = vpop.f32.mrf.mxu0
        %v3134 = vadd.f32 %v2079, %v3133
        %v3135 = vpop.f32.mrf.mxu0
        %v3136 = vadd.f32 %v2079, %v3135
        %3137 = vmatprep.mubr.bf16.mxu0 0
        %3138 = vmatmul.mubr.bf16.gmra.mxu0 %v2410
        %v3139 = vpop.f32.mrf.mxu0
        %v3140 = vadd.f32 %v2084, %v3139
        %v3141 = vpop.f32.mrf.mxu0
        %v3142 = vadd.f32 %v2084, %v3141
        %v3143 = vpop.f32.mrf.mxu0
        %v3144 = vadd.f32 %v2089, %v3143
        %v3145 = vpop.f32.mrf.mxu0
        %v3146 = vadd.f32 %v2089, %v3145
        %3147 = vdwg.mxu0
        %v3148 = vmax.f32 %v2510, 0.0
        %v3149 = vmax.f32 %v2512, 0.0
        %v3150 = vmax.f32 %v2514, 0.0
        %v3151 = vmax.f32 %v2516, 0.0
        %v3152 = vmax.f32 %v2520, 0.0
        %v3153 = vmax.f32 %v2522, 0.0
        %v3154 = vmax.f32 %v2524, 0.0
        %v3155 = vmax.f32 %v2526, 0.0
        %v3156 = vmax.f32 %v2530, 0.0
        %v3157 = vmax.f32 %v2532, 0.0
        %v3158 = vmax.f32 %v2534, 0.0
        %v3159 = vmax.f32 %v2536, 0.0
        %v3160 = vmax.f32 %v2540, 0.0
        %v3161 = vmax.f32 %v2542, 0.0
        %v3162 = vmax.f32 %v2544, 0.0
        %v3163 = vmax.f32 %v2546, 0.0
        %v3164 = vmax.f32 %v2550, 0.0
        %v3165 = vmax.f32 %v2552, 0.0
        %v3166 = vmax.f32 %v2554, 0.0
        %v3167 = vmax.f32 %v2556, 0.0
        %v3168 = vmax.f32 %v2560, 0.0
        %v3169 = vmax.f32 %v2562, 0.0
        %v3170 = vmax.f32 %v2564, 0.0
        %v3171 = vmax.f32 %v2566, 0.0
        %v3172 = vmax.f32 %v2570, 0.0
        %v3173 = vmax.f32 %v2572, 0.0
        %v3174 = vmax.f32 %v2574, 0.0
        %v3175 = vmax.f32 %v2576, 0.0
        %v3176 = vmax.f32 %v2580, 0.0
        %v3177 = vmax.f32 %v2582, 0.0
        %v3178 = vmax.f32 %v2584, 0.0
        %v3179 = vmax.f32 %v2586, 0.0
        %v3180 = vmax.f32 %v2590, 0.0
        %v3181 = vmax.f32 %v2592, 0.0
        %v3182 = vmax.f32 %v2594, 0.0
        %v3183 = vmax.f32 %v2596, 0.0
        %v3184 = vmax.f32 %v2600, 0.0
        %v3185 = vmax.f32 %v2602, 0.0
        %v3186 = vmax.f32 %v2604, 0.0
        %v3187 = vmax.f32 %v2606, 0.0
        %v3188 = vmax.f32 %v2610, 0.0
        %v3189 = vmax.f32 %v2612, 0.0
        %v3190 = vmax.f32 %v2614, 0.0
        %v3191 = vmax.f32 %v2616, 0.0
        %v3192 = vmax.f32 %v2620, 0.0
        %v3193 = vmax.f32 %v2622, 0.0
        %v3194 = vmax.f32 %v2624, 0.0
        %v3195 = vmax.f32 %v2626, 0.0
        %v3196 = vmax.f32 %v2630, 0.0
        %v3197 = vmax.f32 %v2632, 0.0
        %v3198 = vmax.f32 %v2634, 0.0
        %v3199 = vmax.f32 %v2636, 0.0
        %v3200 = vmax.f32 %v2640, 0.0
        %v3201 = vmax.f32 %v2642, 0.0
        %v3202 = vmax.f32 %v2644, 0.0
        %v3203 = vmax.f32 %v2646, 0.0
        %v3204 = vmax.f32 %v2650, 0.0
        %v3205 = vmax.f32 %v2652, 0.0
        %v3206 = vmax.f32 %v2654, 0.0
        %v3207 = vmax.f32 %v2656, 0.0
        %v3208 = vmax.f32 %v2660, 0.0
        %v3209 = vmax.f32 %v2662, 0.0
        %v3210 = vmax.f32 %v2664, 0.0
        %v3211 = vmax.f32 %v2666, 0.0
        %v3212 = vmax.f32 %v2670, 0.0
        %v3213 = vmax.f32 %v2672, 0.0
        %v3214 = vmax.f32 %v2674, 0.0
        %v3215 = vmax.f32 %v2676, 0.0
        %v3216 = vmax.f32 %v2680, 0.0
        %v3217 = vmax.f32 %v2682, 0.0
        %v3218 = vmax.f32 %v2684, 0.0
        %v3219 = vmax.f32 %v2686, 0.0
        %v3220 = vmax.f32 %v2690, 0.0
        %v3221 = vmax.f32 %v2692, 0.0
        %v3222 = vmax.f32 %v2694, 0.0
        %v3223 = vmax.f32 %v2696, 0.0
        %v3224 = vmax.f32 %v2700, 0.0
        %v3225 = vmax.f32 %v2702, 0.0
        %v3226 = vmax.f32 %v2704, 0.0
        %v3227 = vmax.f32 %v2706, 0.0
        %v3228 = vmax.f32 %v2710, 0.0
        %v3229 = vmax.f32 %v2712, 0.0
        %v3230 = vmax.f32 %v2714, 0.0
        %v3231 = vmax.f32 %v2716, 0.0
        %v3232 = vmax.f32 %v2720, 0.0
        %v3233 = vmax.f32 %v2722, 0.0
        %v3234 = vmax.f32 %v2724, 0.0
        %v3235 = vmax.f32 %v2726, 0.0
        %v3236 = vmax.f32 %v2730, 0.0
        %v3237 = vmax.f32 %v2732, 0.0
        %v3238 = vmax.f32 %v2734, 0.0
        %v3239 = vmax.f32 %v2736, 0.0
        %v3240 = vmax.f32 %v2740, 0.0
        %v3241 = vmax.f32 %v2742, 0.0
        %v3242 = vmax.f32 %v2744, 0.0
        %v3243 = vmax.f32 %v2746, 0.0
        %v3244 = vmax.f32 %v2750, 0.0
        %v3245 = vmax.f32 %v2752, 0.0
        %v3246 = vmax.f32 %v2754, 0.0
        %v3247 = vmax.f32 %v2756, 0.0
        %v3248 = vmax.f32 %v2760, 0.0
        %v3249 = vmax.f32 %v2762, 0.0
        %v3250 = vmax.f32 %v2764, 0.0
        %v3251 = vmax.f32 %v2766, 0.0
        %v3252 = vmax.f32 %v2770, 0.0
        %v3253 = vmax.f32 %v2772, 0.0
        %v3254 = vmax.f32 %v2774, 0.0
        %v3255 = vmax.f32 %v2776, 0.0
        %v3256 = vmax.f32 %v2780, 0.0
        %v3257 = vmax.f32 %v2782, 0.0
        %v3258 = vmax.f32 %v2784, 0.0
        %v3259 = vmax.f32 %v2786, 0.0
        %v3260 = vmax.f32 %v2790, 0.0
        %v3261 = vmax.f32 %v2792, 0.0
        %v3262 = vmax.f32 %v2794, 0.0
        %v3263 = vmax.f32 %v2796, 0.0
        %v3264 = vmax.f32 %v2800, 0.0
        %v3265 = vmax.f32 %v2802, 0.0
        %v3266 = vmax.f32 %v2804, 0.0
        %v3267 = vmax.f32 %v2806, 0.0
        %v3268 = vmax.f32 %v2810, 0.0
        %v3269 = vmax.f32 %v2812, 0.0
        %v3270 = vmax.f32 %v2814, 0.0
        %v3271 = vmax.f32 %v2816, 0.0
        %v3272 = vmax.f32 %v2820, 0.0
        %v3273 = vmax.f32 %v2822, 0.0
        %v3274 = vmax.f32 %v2824, 0.0
        %v3275 = vmax.f32 %v2826, 0.0
        %v3276 = vmax.f32 %v2830, 0.0
        %v3277 = vmax.f32 %v2832, 0.0
        %v3278 = vmax.f32 %v2834, 0.0
        %v3279 = vmax.f32 %v2836, 0.0
        %v3280 = vmax.f32 %v2840, 0.0
        %v3281 = vmax.f32 %v2842, 0.0
        %v3282 = vmax.f32 %v2844, 0.0
        %v3283 = vmax.f32 %v2846, 0.0
        %v3284 = vmax.f32 %v2850, 0.0
        %v3285 = vmax.f32 %v2852, 0.0
        %v3286 = vmax.f32 %v2854, 0.0
        %v3287 = vmax.f32 %v2856, 0.0
        %v3288 = vmax.f32 %v2860, 0.0
        %v3289 = vmax.f32 %v2862, 0.0
        %v3290 = vmax.f32 %v2864, 0.0
        %v3291 = vmax.f32 %v2866, 0.0
        %v3292 = vmax.f32 %v2870, 0.0
        %v3293 = vmax.f32 %v2872, 0.0
        %v3294 = vmax.f32 %v2874, 0.0
        %v3295 = vmax.f32 %v2876, 0.0
        %v3296 = vmax.f32 %v2880, 0.0
        %v3297 = vmax.f32 %v2882, 0.0
        %v3298 = vmax.f32 %v2884, 0.0
        %v3299 = vmax.f32 %v2886, 0.0
        %v3300 = vmax.f32 %v2890, 0.0
        %v3301 = vmax.f32 %v2892, 0.0
        %v3302 = vmax.f32 %v2894, 0.0
        %v3303 = vmax.f32 %v2896, 0.0
        %v3304 = vmax.f32 %v2900, 0.0
        %v3305 = vmax.f32 %v2902, 0.0
        %v3306 = vmax.f32 %v2904, 0.0
        %v3307 = vmax.f32 %v2906, 0.0
        %v3308 = vmax.f32 %v2910, 0.0
        %v3309 = vmax.f32 %v2912, 0.0
        %v3310 = vmax.f32 %v2914, 0.0
        %v3311 = vmax.f32 %v2916, 0.0
        %v3312 = vmax.f32 %v2920, 0.0
        %v3313 = vmax.f32 %v2922, 0.0
        %v3314 = vmax.f32 %v2924, 0.0
        %v3315 = vmax.f32 %v2926, 0.0
        %v3316 = vmax.f32 %v2930, 0.0
        %v3317 = vmax.f32 %v2932, 0.0
        %v3318 = vmax.f32 %v2934, 0.0
        %v3319 = vmax.f32 %v2936, 0.0
        %v3320 = vmax.f32 %v2940, 0.0
        %v3321 = vmax.f32 %v2942, 0.0
        %v3322 = vmax.f32 %v2944, 0.0
        %v3323 = vmax.f32 %v2946, 0.0
        %v3324 = vmax.f32 %v2950, 0.0
        %v3325 = vmax.f32 %v2952, 0.0
        %v3326 = vmax.f32 %v2954, 0.0
        %v3327 = vmax.f32 %v2956, 0.0
        %v3328 = vmax.f32 %v2960, 0.0
        %v3329 = vmax.f32 %v2962, 0.0
        %v3330 = vmax.f32 %v2964, 0.0
        %v3331 = vmax.f32 %v2966, 0.0
        %v3332 = vmax.f32 %v2970, 0.0
        %v3333 = vmax.f32 %v2972, 0.0
        %v3334 = vmax.f32 %v2974, 0.0
        %v3335 = vmax.f32 %v2976, 0.0
        %v3336 = vmax.f32 %v2980, 0.0
        %v3337 = vmax.f32 %v2982, 0.0
        %v3338 = vmax.f32 %v2984, 0.0
        %v3339 = vmax.f32 %v2986, 0.0
        %v3340 = vmax.f32 %v2990, 0.0
        %v3341 = vmax.f32 %v2992, 0.0
        %v3342 = vmax.f32 %v2994, 0.0
        %v3343 = vmax.f32 %v2996, 0.0
        %v3344 = vmax.f32 %v3000, 0.0
        %v3345 = vmax.f32 %v3002, 0.0
        %v3346 = vmax.f32 %v3004, 0.0
        %v3347 = vmax.f32 %v3006, 0.0
        %v3348 = vmax.f32 %v3010, 0.0
        %v3349 = vmax.f32 %v3012, 0.0
        %v3350 = vmax.f32 %v3014, 0.0
        %v3351 = vmax.f32 %v3016, 0.0
        %v3352 = vmax.f32 %v3020, 0.0
        %v3353 = vmax.f32 %v3022, 0.0
        %v3354 = vmax.f32 %v3024, 0.0
        %v3355 = vmax.f32 %v3026, 0.0
        %v3356 = vmax.f32 %v3030, 0.0
        %v3357 = vmax.f32 %v3032, 0.0
        %v3358 = vmax.f32 %v3034, 0.0
        %v3359 = vmax.f32 %v3036, 0.0
        %v3360 = vmax.f32 %v3040, 0.0
        %v3361 = vmax.f32 %v3042, 0.0
        %v3362 = vmax.f32 %v3044, 0.0
        %v3363 = vmax.f32 %v3046, 0.0
        %v3364 = vmax.f32 %v3050, 0.0
        %v3365 = vmax.f32 %v3052, 0.0
        %v3366 = vmax.f32 %v3054, 0.0
        %v3367 = vmax.f32 %v3056, 0.0
        %v3368 = vmax.f32 %v3060, 0.0
        %v3369 = vmax.f32 %v3062, 0.0
        %v3370 = vmax.f32 %v3064, 0.0
        %v3371 = vmax.f32 %v3066, 0.0
        %v3372 = vmax.f32 %v3070, 0.0
        %v3373 = vmax.f32 %v3072, 0.0
        %v3374 = vmax.f32 %v3074, 0.0
        %v3375 = vmax.f32 %v3076, 0.0
        %v3376 = vmax.f32 %v3080, 0.0
        %v3377 = vmax.f32 %v3082, 0.0
        %v3378 = vmax.f32 %v3084, 0.0
        %v3379 = vmax.f32 %v3086, 0.0
        %v3380 = vmax.f32 %v3090, 0.0
        %v3381 = vmax.f32 %v3092, 0.0
        %v3382 = vmax.f32 %v3094, 0.0
        %v3383 = vmax.f32 %v3096, 0.0
        %v3384 = vmax.f32 %v3100, 0.0
        %v3385 = vmax.f32 %v3102, 0.0
        %v3386 = vmax.f32 %v3104, 0.0
        %v3387 = vmax.f32 %v3106, 0.0
        %v3388 = vmax.f32 %v3110, 0.0
        %v3389 = vmax.f32 %v3112, 0.0
        %v3390 = vmax.f32 %v3114, 0.0
        %v3391 = vmax.f32 %v3116, 0.0
        %v3392 = vmax.f32 %v3120, 0.0
        %v3393 = vmax.f32 %v3122, 0.0
        %v3394 = vmax.f32 %v3124, 0.0
        %v3395 = vmax.f32 %v3126, 0.0
        %v3396 = vmax.f32 %v3130, 0.0
        %v3397 = vmax.f32 %v3132, 0.0
        %v3398 = vmax.f32 %v3134, 0.0
        %v3399 = vmax.f32 %v3136, 0.0
        %v3400 = vmax.f32 %v3140, 0.0
        %v3401 = vmax.f32 %v3142, 0.0
        %v3402 = vmax.f32 %v3144, 0.0
        %v3403 = vmax.f32 %v3146, 0.0
        %v3404 = vmax.f32 %v3148, %v3149
        %3405 = vmax.xlane.f32.xlu0 %v3404
        %v3406 = vpop.xlane.xlu0 %3405
        %v3407 = vmax.f32 %v3150, %v3151
        %3408 = vmax.xlane.f32.xlu0 %v3407
        %v3409 = vpop.xlane.xlu0 %3408
        %v3410 = vmax.f32 %v3152, %v3153
        %3411 = vmax.xlane.f32.xlu0 %v3410
        %v3412 = vpop.xlane.xlu0 %3411
        %v3413 = vmax.f32 %v3154, %v3155
        %3414 = vmax.xlane.f32.xlu0 %v3413
        %v3415 = vpop.xlane.xlu0 %3414
        %v3416 = vmax.f32 %v3156, %v3157
        %3417 = vmax.xlane.f32.xlu0 %v3416
        %v3418 = vpop.xlane.xlu0 %3417
        %v3419 = vmax.f32 %v3158, %v3159
        %3420 = vmax.xlane.f32.xlu0 %v3419
        %v3421 = vpop.xlane.xlu0 %3420
        %v3422 = vmax.f32 %v3160, %v3161
        %3423 = vmax.xlane.f32.xlu0 %v3422
        %v3424 = vpop.xlane.xlu0 %3423
        %v3425 = vmax.f32 %v3162, %v3163
        %3426 = vmax.xlane.f32.xlu0 %v3425
        %v3427 = vpop.xlane.xlu0 %3426
        %v3428 = vmax.f32 %v3164, %v3165
        %3429 = vmax.xlane.f32.xlu0 %v3428
        %v3430 = vpop.xlane.xlu0 %3429
        %v3431 = vmax.f32 %v3166, %v3167
        %3432 = vmax.xlane.f32.xlu0 %v3431
        %v3433 = vpop.xlane.xlu0 %3432
        %v3434 = vmax.f32 %v3168, %v3169
        %3435 = vmax.xlane.f32.xlu0 %v3434
        %v3436 = vpop.xlane.xlu0 %3435
        %v3437 = vmax.f32 %v3170, %v3171
        %3438 = vmax.xlane.f32.xlu0 %v3437
        %v3439 = vpop.xlane.xlu0 %3438
        %v3440 = vmax.f32 %v3172, %v3173
        %3441 = vmax.xlane.f32.xlu0 %v3440
        %v3442 = vpop.xlane.xlu0 %3441
        %v3443 = vmax.f32 %v3174, %v3175
        %3444 = vmax.xlane.f32.xlu0 %v3443
        %v3445 = vpop.xlane.xlu0 %3444
        %v3446 = vmax.f32 %v3176, %v3177
        %3447 = vmax.xlane.f32.xlu0 %v3446
        %v3448 = vpop.xlane.xlu0 %3447
        %v3449 = vmax.f32 %v3178, %v3179
        %3450 = vmax.xlane.f32.xlu0 %v3449
        %v3451 = vpop.xlane.xlu0 %3450
        %v3452 = vmax.f32 %v3180, %v3181
        %3453 = vmax.xlane.f32.xlu0 %v3452
        %v3454 = vpop.xlane.xlu0 %3453
        %v3455 = vmax.f32 %v3182, %v3183
        %3456 = vmax.xlane.f32.xlu0 %v3455
        %v3457 = vpop.xlane.xlu0 %3456
        %v3458 = vmax.f32 %v3184, %v3185
        %3459 = vmax.xlane.f32.xlu0 %v3458
        %v3460 = vpop.xlane.xlu0 %3459
        %v3461 = vmax.f32 %v3186, %v3187
        %3462 = vmax.xlane.f32.xlu0 %v3461
        %v3463 = vpop.xlane.xlu0 %3462
        %v3464 = vmax.f32 %v3188, %v3189
        %3465 = vmax.xlane.f32.xlu0 %v3464
        %v3466 = vpop.xlane.xlu0 %3465
        %v3467 = vmax.f32 %v3190, %v3191
        %3468 = vmax.xlane.f32.xlu0 %v3467
        %v3469 = vpop.xlane.xlu0 %3468
        %v3470 = vmax.f32 %v3192, %v3193
        %3471 = vmax.xlane.f32.xlu0 %v3470
        %v3472 = vpop.xlane.xlu0 %3471
        %v3473 = vmax.f32 %v3194, %v3195
        %3474 = vmax.xlane.f32.xlu0 %v3473
        %v3475 = vpop.xlane.xlu0 %3474
        %v3476 = vmax.f32 %v3196, %v3197
        %3477 = vmax.xlane.f32.xlu0 %v3476
        %v3478 = vpop.xlane.xlu0 %3477
        %v3479 = vmax.f32 %v3198, %v3199
        %3480 = vmax.xlane.f32.xlu0 %v3479
        %v3481 = vpop.xlane.xlu0 %3480
        %v3482 = vmax.f32 %v3200, %v3201
        %3483 = vmax.xlane.f32.xlu0 %v3482
        %v3484 = vpop.xlane.xlu0 %3483
        %v3485 = vmax.f32 %v3202, %v3203
        %3486 = vmax.xlane.f32.xlu0 %v3485
        %v3487 = vpop.xlane.xlu0 %3486
        %v3488 = vmax.f32 %v3204, %v3205
        %3489 = vmax.xlane.f32.xlu0 %v3488
        %v3490 = vpop.xlane.xlu0 %3489
        %v3491 = vmax.f32 %v3206, %v3207
        %3492 = vmax.xlane.f32.xlu0 %v3491
        %v3493 = vpop.xlane.xlu0 %3492
        %v3494 = vmax.f32 %v3208, %v3209
        %3495 = vmax.xlane.f32.xlu0 %v3494
        %v3496 = vpop.xlane.xlu0 %3495
        %v3497 = vmax.f32 %v3210, %v3211
        %3498 = vmax.xlane.f32.xlu0 %v3497
        %v3499 = vpop.xlane.xlu0 %3498
        %v3500 = vmax.f32 %v3212, %v3213
        %3501 = vmax.xlane.f32.xlu0 %v3500
        %v3502 = vpop.xlane.xlu0 %3501
        %v3503 = vmax.f32 %v3214, %v3215
        %3504 = vmax.xlane.f32.xlu0 %v3503
        %v3505 = vpop.xlane.xlu0 %3504
        %v3506 = vmax.f32 %v3216, %v3217
        %3507 = vmax.xlane.f32.xlu0 %v3506
        %v3508 = vpop.xlane.xlu0 %3507
        %v3509 = vmax.f32 %v3218, %v3219
        %3510 = vmax.xlane.f32.xlu0 %v3509
        %v3511 = vpop.xlane.xlu0 %3510
        %v3512 = vmax.f32 %v3220, %v3221
        %3513 = vmax.xlane.f32.xlu0 %v3512
        %v3514 = vpop.xlane.xlu0 %3513
        %v3515 = vmax.f32 %v3222, %v3223
        %3516 = vmax.xlane.f32.xlu0 %v3515
        %v3517 = vpop.xlane.xlu0 %3516
        %v3518 = vmax.f32 %v3224, %v3225
        %3519 = vmax.xlane.f32.xlu0 %v3518
        %v3520 = vpop.xlane.xlu0 %3519
        %v3521 = vmax.f32 %v3226, %v3227
        %3522 = vmax.xlane.f32.xlu0 %v3521
        %v3523 = vpop.xlane.xlu0 %3522
        %v3524 = vmax.f32 %v3228, %v3229
        %3525 = vmax.xlane.f32.xlu0 %v3524
        %v3526 = vpop.xlane.xlu0 %3525
        %v3527 = vmax.f32 %v3230, %v3231
        %3528 = vmax.xlane.f32.xlu0 %v3527
        %v3529 = vpop.xlane.xlu0 %3528
        %v3530 = vmax.f32 %v3232, %v3233
        %3531 = vmax.xlane.f32.xlu0 %v3530
        %v3532 = vpop.xlane.xlu0 %3531
        %v3533 = vmax.f32 %v3234, %v3235
        %3534 = vmax.xlane.f32.xlu0 %v3533
        %v3535 = vpop.xlane.xlu0 %3534
        %v3536 = vmax.f32 %v3236, %v3237
        %3537 = vmax.xlane.f32.xlu0 %v3536
        %v3538 = vpop.xlane.xlu0 %3537
        %v3539 = vmax.f32 %v3238, %v3239
        %3540 = vmax.xlane.f32.xlu0 %v3539
        %v3541 = vpop.xlane.xlu0 %3540
        %v3542 = vmax.f32 %v3240, %v3241
        %3543 = vmax.xlane.f32.xlu0 %v3542
        %v3544 = vpop.xlane.xlu0 %3543
        %v3545 = vmax.f32 %v3242, %v3243
        %3546 = vmax.xlane.f32.xlu0 %v3545
        %v3547 = vpop.xlane.xlu0 %3546
        %v3548 = vmax.f32 %v3244, %v3245
        %3549 = vmax.xlane.f32.xlu0 %v3548
        %v3550 = vpop.xlane.xlu0 %3549
        %v3551 = vmax.f32 %v3246, %v3247
        %3552 = vmax.xlane.f32.xlu0 %v3551
        %v3553 = vpop.xlane.xlu0 %3552
        %v3554 = vmax.f32 %v3248, %v3249
        %3555 = vmax.xlane.f32.xlu0 %v3554
        %v3556 = vpop.xlane.xlu0 %3555
        %v3557 = vmax.f32 %v3250, %v3251
        %3558 = vmax.xlane.f32.xlu0 %v3557
        %v3559 = vpop.xlane.xlu0 %3558
        %v3560 = vmax.f32 %v3252, %v3253
        %3561 = vmax.xlane.f32.xlu0 %v3560
        %v3562 = vpop.xlane.xlu0 %3561
        %v3563 = vmax.f32 %v3254, %v3255
        %3564 = vmax.xlane.f32.xlu0 %v3563
        %v3565 = vpop.xlane.xlu0 %3564
        %v3566 = vmax.f32 %v3256, %v3257
        %3567 = vmax.xlane.f32.xlu0 %v3566
        %v3568 = vpop.xlane.xlu0 %3567
        %v3569 = vmax.f32 %v3258, %v3259
        %3570 = vmax.xlane.f32.xlu0 %v3569
        %v3571 = vpop.xlane.xlu0 %3570
        %v3572 = vmax.f32 %v3260, %v3261
        %3573 = vmax.xlane.f32.xlu0 %v3572
        %v3574 = vpop.xlane.xlu0 %3573
        %v3575 = vmax.f32 %v3262, %v3263
        %3576 = vmax.xlane.f32.xlu0 %v3575
        %v3577 = vpop.xlane.xlu0 %3576
        %v3578 = vmax.f32 %v3264, %v3265
        %3579 = vmax.xlane.f32.xlu0 %v3578
        %v3580 = vpop.xlane.xlu0 %3579
        %v3581 = vmax.f32 %v3266, %v3267
        %3582 = vmax.xlane.f32.xlu0 %v3581
        %v3583 = vpop.xlane.xlu0 %3582
        %v3584 = vmax.f32 %v3268, %v3269
        %3585 = vmax.xlane.f32.xlu0 %v3584
        %v3586 = vpop.xlane.xlu0 %3585
        %v3587 = vmax.f32 %v3270, %v3271
        %3588 = vmax.xlane.f32.xlu0 %v3587
        %v3589 = vpop.xlane.xlu0 %3588
        %v3590 = vmax.f32 %v3272, %v3273
        %3591 = vmax.xlane.f32.xlu0 %v3590
        %v3592 = vpop.xlane.xlu0 %3591
        %v3593 = vmax.f32 %v3274, %v3275
        %3594 = vmax.xlane.f32.xlu0 %v3593
        %v3595 = vpop.xlane.xlu0 %3594
        %v3596 = vmax.f32 %v3276, %v3277
        %3597 = vmax.xlane.f32.xlu0 %v3596
        %v3598 = vpop.xlane.xlu0 %3597
        %v3599 = vmax.f32 %v3278, %v3279
        %3600 = vmax.xlane.f32.xlu0 %v3599
        %v3601 = vpop.xlane.xlu0 %3600
        %v3602 = vmax.f32 %v3280, %v3281
        %3603 = vmax.xlane.f32.xlu0 %v3602
        %v3604 = vpop.xlane.xlu0 %3603
        %v3605 = vmax.f32 %v3282, %v3283
        %3606 = vmax.xlane.f32.xlu0 %v3605
        %v3607 = vpop.xlane.xlu0 %3606
        %v3608 = vmax.f32 %v3284, %v3285
        %3609 = vmax.xlane.f32.xlu0 %v3608
        %v3610 = vpop.xlane.xlu0 %3609
        %v3611 = vmax.f32 %v3286, %v3287
        %3612 = vmax.xlane.f32.xlu0 %v3611
        %v3613 = vpop.xlane.xlu0 %3612
        %v3614 = vmax.f32 %v3288, %v3289
        %3615 = vmax.xlane.f32.xlu0 %v3614
        %v3616 = vpop.xlane.xlu0 %3615
        %v3617 = vmax.f32 %v3290, %v3291
        %3618 = vmax.xlane.f32.xlu0 %v3617
        %v3619 = vpop.xlane.xlu0 %3618
        %v3620 = vmax.f32 %v3292, %v3293
        %3621 = vmax.xlane.f32.xlu0 %v3620
        %v3622 = vpop.xlane.xlu0 %3621
        %v3623 = vmax.f32 %v3294, %v3295
        %3624 = vmax.xlane.f32.xlu0 %v3623
        %v3625 = vpop.xlane.xlu0 %3624
        %v3626 = vmax.f32 %v3296, %v3297
        %3627 = vmax.xlane.f32.xlu0 %v3626
        %v3628 = vpop.xlane.xlu0 %3627
        %v3629 = vmax.f32 %v3298, %v3299
        %3630 = vmax.xlane.f32.xlu0 %v3629
        %v3631 = vpop.xlane.xlu0 %3630
        %v3632 = vmax.f32 %v3300, %v3301
        %3633 = vmax.xlane.f32.xlu0 %v3632
        %v3634 = vpop.xlane.xlu0 %3633
        %v3635 = vmax.f32 %v3302, %v3303
        %3636 = vmax.xlane.f32.xlu0 %v3635
        %v3637 = vpop.xlane.xlu0 %3636
        %v3638 = vmax.f32 %v3304, %v3305
        %3639 = vmax.xlane.f32.xlu0 %v3638
        %v3640 = vpop.xlane.xlu0 %3639
        %v3641 = vmax.f32 %v3306, %v3307
        %3642 = vmax.xlane.f32.xlu0 %v3641
        %v3643 = vpop.xlane.xlu0 %3642
        %v3644 = vmax.f32 %v3308, %v3309
        %3645 = vmax.xlane.f32.xlu0 %v3644
        %v3646 = vpop.xlane.xlu0 %3645
        %v3647 = vmax.f32 %v3310, %v3311
        %3648 = vmax.xlane.f32.xlu0 %v3647
        %v3649 = vpop.xlane.xlu0 %3648
        %v3650 = vmax.f32 %v3312, %v3313
        %3651 = vmax.xlane.f32.xlu0 %v3650
        %v3652 = vpop.xlane.xlu0 %3651
        %v3653 = vmax.f32 %v3314, %v3315
        %3654 = vmax.xlane.f32.xlu0 %v3653
        %v3655 = vpop.xlane.xlu0 %3654
        %v3656 = vmax.f32 %v3316, %v3317
        %3657 = vmax.xlane.f32.xlu0 %v3656
        %v3658 = vpop.xlane.xlu0 %3657
        %v3659 = vmax.f32 %v3318, %v3319
        %3660 = vmax.xlane.f32.xlu0 %v3659
        %v3661 = vpop.xlane.xlu0 %3660
        %v3662 = vmax.f32 %v3320, %v3321
        %3663 = vmax.xlane.f32.xlu0 %v3662
        %v3664 = vpop.xlane.xlu0 %3663
        %v3665 = vmax.f32 %v3322, %v3323
        %3666 = vmax.xlane.f32.xlu0 %v3665
        %v3667 = vpop.xlane.xlu0 %3666
        %v3668 = vmax.f32 %v3324, %v3325
        %3669 = vmax.xlane.f32.xlu0 %v3668
        %v3670 = vpop.xlane.xlu0 %3669
        %v3671 = vmax.f32 %v3326, %v3327
        %3672 = vmax.xlane.f32.xlu0 %v3671
        %v3673 = vpop.xlane.xlu0 %3672
        %v3674 = vmax.f32 %v3328, %v3329
        %3675 = vmax.xlane.f32.xlu0 %v3674
        %v3676 = vpop.xlane.xlu0 %3675
        %v3677 = vmax.f32 %v3330, %v3331
        %3678 = vmax.xlane.f32.xlu0 %v3677
        %v3679 = vpop.xlane.xlu0 %3678
        %v3680 = vmax.f32 %v3332, %v3333
        %3681 = vmax.xlane.f32.xlu0 %v3680
        %v3682 = vpop.xlane.xlu0 %3681
        %v3683 = vmax.f32 %v3334, %v3335
        %3684 = vmax.xlane.f32.xlu0 %v3683
        %v3685 = vpop.xlane.xlu0 %3684
        %v3686 = vmax.f32 %v3336, %v3337
        %3687 = vmax.xlane.f32.xlu0 %v3686
        %v3688 = vpop.xlane.xlu0 %3687
        %v3689 = vmax.f32 %v3338, %v3339
        %3690 = vmax.xlane.f32.xlu0 %v3689
        %v3691 = vpop.xlane.xlu0 %3690
        %v3692 = vmax.f32 %v3340, %v3341
        %3693 = vmax.xlane.f32.xlu0 %v3692
        %v3694 = vpop.xlane.xlu0 %3693
        %v3695 = vmax.f32 %v3342, %v3343
        %3696 = vmax.xlane.f32.xlu0 %v3695
        %v3697 = vpop.xlane.xlu0 %3696
        %v3698 = vmax.f32 %v3344, %v3345
        %3699 = vmax.xlane.f32.xlu0 %v3698
        %v3700 = vpop.xlane.xlu0 %3699
        %v3701 = vmax.f32 %v3346, %v3347
        %3702 = vmax.xlane.f32.xlu0 %v3701
        %v3703 = vpop.xlane.xlu0 %3702
        %v3704 = vmax.f32 %v3348, %v3349
        %3705 = vmax.xlane.f32.xlu0 %v3704
        %v3706 = vpop.xlane.xlu0 %3705
        %v3707 = vmax.f32 %v3350, %v3351
        %3708 = vmax.xlane.f32.xlu0 %v3707
        %v3709 = vpop.xlane.xlu0 %3708
        %v3710 = vmax.f32 %v3352, %v3353
        %3711 = vmax.xlane.f32.xlu0 %v3710
        %v3712 = vpop.xlane.xlu0 %3711
        %v3713 = vmax.f32 %v3354, %v3355
        %3714 = vmax.xlane.f32.xlu0 %v3713
        %v3715 = vpop.xlane.xlu0 %3714
        %v3716 = vmax.f32 %v3356, %v3357
        %3717 = vmax.xlane.f32.xlu0 %v3716
        %v3718 = vpop.xlane.xlu0 %3717
        %v3719 = vmax.f32 %v3358, %v3359
        %3720 = vmax.xlane.f32.xlu0 %v3719
        %v3721 = vpop.xlane.xlu0 %3720
        %v3722 = vmax.f32 %v3360, %v3361
        %3723 = vmax.xlane.f32.xlu0 %v3722
        %v3724 = vpop.xlane.xlu0 %3723
        %v3725 = vmax.f32 %v3362, %v3363
        %3726 = vmax.xlane.f32.xlu0 %v3725
        %v3727 = vpop.xlane.xlu0 %3726
        %v3728 = vmax.f32 %v3364, %v3365
        %3729 = vmax.xlane.f32.xlu0 %v3728
        %v3730 = vpop.xlane.xlu0 %3729
        %v3731 = vmax.f32 %v3366, %v3367
        %3732 = vmax.xlane.f32.xlu0 %v3731
        %v3733 = vpop.xlane.xlu0 %3732
        %v3734 = vmax.f32 %v3368, %v3369
        %3735 = vmax.xlane.f32.xlu0 %v3734
        %v3736 = vpop.xlane.xlu0 %3735
        %v3737 = vmax.f32 %v3370, %v3371
        %3738 = vmax.xlane.f32.xlu0 %v3737
        %v3739 = vpop.xlane.xlu0 %3738
        %v3740 = vmax.f32 %v3372, %v3373
        %3741 = vmax.xlane.f32.xlu0 %v3740
        %v3742 = vpop.xlane.xlu0 %3741
        %v3743 = vmax.f32 %v3374, %v3375
        %3744 = vmax.xlane.f32.xlu0 %v3743
        %v3745 = vpop.xlane.xlu0 %3744
        %v3746 = vmax.f32 %v3376, %v3377
        %3747 = vmax.xlane.f32.xlu0 %v3746
        %v3748 = vpop.xlane.xlu0 %3747
        %v3749 = vmax.f32 %v3378, %v3379
        %3750 = vmax.xlane.f32.xlu0 %v3749
        %v3751 = vpop.xlane.xlu0 %3750
        %v3752 = vmax.f32 %v3380, %v3381
        %3753 = vmax.xlane.f32.xlu0 %v3752
        %v3754 = vpop.xlane.xlu0 %3753
        %v3755 = vmax.f32 %v3382, %v3383
        %3756 = vmax.xlane.f32.xlu0 %v3755
        %v3757 = vpop.xlane.xlu0 %3756
        %v3758 = vmax.f32 %v3384, %v3385
        %3759 = vmax.xlane.f32.xlu0 %v3758
        %v3760 = vpop.xlane.xlu0 %3759
        %v3761 = vmax.f32 %v3386, %v3387
        %3762 = vmax.xlane.f32.xlu0 %v3761
        %v3763 = vpop.xlane.xlu0 %3762
        %v3764 = vmax.f32 %v3388, %v3389
        %3765 = vmax.xlane.f32.xlu0 %v3764
        %v3766 = vpop.xlane.xlu0 %3765
        %v3767 = vmax.f32 %v3390, %v3391
        %3768 = vmax.xlane.f32.xlu0 %v3767
        %v3769 = vpop.xlane.xlu0 %3768
        %v3770 = vmax.f32 %v3392, %v3393
        %3771 = vmax.xlane.f32.xlu0 %v3770
        %v3772 = vpop.xlane.xlu0 %3771
        %v3773 = vmax.f32 %v3394, %v3395
        %3774 = vmax.xlane.f32.xlu0 %v3773
        %v3775 = vpop.xlane.xlu0 %3774
        %v3776 = vmax.f32 %v3396, %v3397
        %3777 = vmax.xlane.f32.xlu0 %v3776
        %v3778 = vpop.xlane.xlu0 %3777
        %v3779 = vmax.f32 %v3398, %v3399
        %3780 = vmax.xlane.f32.xlu0 %v3779
        %v3781 = vpop.xlane.xlu0 %3780
        %v3782 = vmax.f32 %v3400, %v3401
        %3783 = vmax.xlane.f32.xlu0 %v3782
        %v3784 = vpop.xlane.xlu0 %3783
        %v3785 = vmax.f32 %v3402, %v3403
        %3786 = vmax.xlane.f32.xlu0 %v3785
        %v3787 = vpop.xlane.xlu0 %3786
        %vm3788 = vcmask 7168
        %3789 = vst.msk [vmem:[#allocation2] sm:$0xff] %vm3788, %v3406
        %3790 = vst.msk [vmem:[#allocation2 + $0x8] sm:$0xff] %vm3788, %v3409
        %3791 = vst.msk [vmem:[#allocation2 + $0x10] sm:$0xff] %vm3788, %v3412
        %3792 = vst.msk [vmem:[#allocation2 + $0x18] sm:$0xff] %vm3788, %v3415
        %3793 = vst.msk [vmem:[#allocation2 + $0x20] sm:$0xff] %vm3788, %v3418
        %3794 = vst.msk [vmem:[#allocation2 + $0x28] sm:$0xff] %vm3788, %v3421
        %3795 = vst.msk [vmem:[#allocation2 + $0x30] sm:$0xff] %vm3788, %v3424
        %3796 = vst.msk [vmem:[#allocation2 + $0x38] sm:$0xff] %vm3788, %v3427
        %3797 = vst.msk [vmem:[#allocation2 + $0x40] sm:$0xff] %vm3788, %v3430
        %3798 = vst.msk [vmem:[#allocation2 + $0x48] sm:$0xff] %vm3788, %v3433
        %3799 = vst.msk [vmem:[#allocation2 + $0x50] sm:$0xff] %vm3788, %v3436
        %3800 = vst.msk [vmem:[#allocation2 + $0x58] sm:$0xff] %vm3788, %v3439
        %3801 = vst.msk [vmem:[#allocation2 + $0x60] sm:$0xff] %vm3788, %v3442
        %3802 = vst.msk [vmem:[#allocation2 + $0x68] sm:$0xff] %vm3788, %v3445
        %3803 = vst.msk [vmem:[#allocation2 + $0x70] sm:$0xff] %vm3788, %v3448
        %3804 = vst.msk [vmem:[#allocation2 + $0x78] sm:$0xff] %vm3788, %v3451
        %3805 = vst.msk [vmem:[#allocation2 + $0x80] sm:$0xff] %vm3788, %v3454
        %3806 = vst.msk [vmem:[#allocation2 + $0x88] sm:$0xff] %vm3788, %v3457
        %3807 = vst.msk [vmem:[#allocation2 + $0x90] sm:$0xff] %vm3788, %v3460
        %3808 = vst.msk [vmem:[#allocation2 + $0x98] sm:$0xff] %vm3788, %v3463
        %3809 = vst.msk [vmem:[#allocation2 + $0xa0] sm:$0xff] %vm3788, %v3466
        %3810 = vst.msk [vmem:[#allocation2 + $0xa8] sm:$0xff] %vm3788, %v3469
        %3811 = vst.msk [vmem:[#allocation2 + $0xb0] sm:$0xff] %vm3788, %v3472
        %3812 = vst.msk [vmem:[#allocation2 + $0xb8] sm:$0xff] %vm3788, %v3475
        %3813 = vst.msk [vmem:[#allocation2 + $0xc0] sm:$0xff] %vm3788, %v3478
        %3814 = vst.msk [vmem:[#allocation2 + $0xc8] sm:$0xff] %vm3788, %v3481
        %3815 = vst.msk [vmem:[#allocation2 + $0xd0] sm:$0xff] %vm3788, %v3484
        %3816 = vst.msk [vmem:[#allocation2 + $0xd8] sm:$0xff] %vm3788, %v3487
        %3817 = vst.msk [vmem:[#allocation2 + $0xe0] sm:$0xff] %vm3788, %v3490
        %3818 = vst.msk [vmem:[#allocation2 + $0xe8] sm:$0xff] %vm3788, %v3493
        %3819 = vst.msk [vmem:[#allocation2 + $0xf0] sm:$0xff] %vm3788, %v3496
        %3820 = vst.msk [vmem:[#allocation2 + $0xf8] sm:$0xff] %vm3788, %v3499
        %3821 = vst.msk [vmem:[#allocation2 + $0x100] sm:$0xff] %vm3788, %v3502
        %3822 = vst.msk [vmem:[#allocation2 + $0x108] sm:$0xff] %vm3788, %v3505
        %3823 = vst.msk [vmem:[#allocation2 + $0x110] sm:$0xff] %vm3788, %v3508
        %3824 = vst.msk [vmem:[#allocation2 + $0x118] sm:$0xff] %vm3788, %v3511
        %3825 = vst.msk [vmem:[#allocation2 + $0x120] sm:$0xff] %vm3788, %v3514
        %3826 = vst.msk [vmem:[#allocation2 + $0x128] sm:$0xff] %vm3788, %v3517
        %3827 = vst.msk [vmem:[#allocation2 + $0x130] sm:$0xff] %vm3788, %v3520
        %3828 = vst.msk [vmem:[#allocation2 + $0x138] sm:$0xff] %vm3788, %v3523
        %3829 = vst.msk [vmem:[#allocation2 + $0x140] sm:$0xff] %vm3788, %v3526
        %3830 = vst.msk [vmem:[#allocation2 + $0x148] sm:$0xff] %vm3788, %v3529
        %3831 = vst.msk [vmem:[#allocation2 + $0x150] sm:$0xff] %vm3788, %v3532
        %3832 = vst.msk [vmem:[#allocation2 + $0x158] sm:$0xff] %vm3788, %v3535
        %3833 = vst.msk [vmem:[#allocation2 + $0x160] sm:$0xff] %vm3788, %v3538
        %3834 = vst.msk [vmem:[#allocation2 + $0x168] sm:$0xff] %vm3788, %v3541
        %3835 = vst.msk [vmem:[#allocation2 + $0x170] sm:$0xff] %vm3788, %v3544
        %3836 = vst.msk [vmem:[#allocation2 + $0x178] sm:$0xff] %vm3788, %v3547
        %3837 = vst.msk [vmem:[#allocation2 + $0x180] sm:$0xff] %vm3788, %v3550
        %3838 = vst.msk [vmem:[#allocation2 + $0x188] sm:$0xff] %vm3788, %v3553
        %3839 = vst.msk [vmem:[#allocation2 + $0x190] sm:$0xff] %vm3788, %v3556
        %3840 = vst.msk [vmem:[#allocation2 + $0x198] sm:$0xff] %vm3788, %v3559
        %3841 = vst.msk [vmem:[#allocation2 + $0x1a0] sm:$0xff] %vm3788, %v3562
        %3842 = vst.msk [vmem:[#allocation2 + $0x1a8] sm:$0xff] %vm3788, %v3565
        %3843 = vst.msk [vmem:[#allocation2 + $0x1b0] sm:$0xff] %vm3788, %v3568
        %3844 = vst.msk [vmem:[#allocation2 + $0x1b8] sm:$0xff] %vm3788, %v3571
        %3845 = vst.msk [vmem:[#allocation2 + $0x1c0] sm:$0xff] %vm3788, %v3574
        %3846 = vst.msk [vmem:[#allocation2 + $0x1c8] sm:$0xff] %vm3788, %v3577
        %3847 = vst.msk [vmem:[#allocation2 + $0x1d0] sm:$0xff] %vm3788, %v3580
        %3848 = vst.msk [vmem:[#allocation2 + $0x1d8] sm:$0xff] %vm3788, %v3583
        %3849 = vst.msk [vmem:[#allocation2 + $0x1e0] sm:$0xff] %vm3788, %v3586
        %3850 = vst.msk [vmem:[#allocation2 + $0x1e8] sm:$0xff] %vm3788, %v3589
        %3851 = vst.msk [vmem:[#allocation2 + $0x1f0] sm:$0xff] %vm3788, %v3592
        %3852 = vst.msk [vmem:[#allocation2 + $0x1f8] sm:$0xff] %vm3788, %v3595
        %3853 = vst.msk [vmem:[#allocation2 + $0x200] sm:$0xff] %vm3788, %v3598
        %3854 = vst.msk [vmem:[#allocation2 + $0x208] sm:$0xff] %vm3788, %v3601
        %3855 = vst.msk [vmem:[#allocation2 + $0x210] sm:$0xff] %vm3788, %v3604
        %3856 = vst.msk [vmem:[#allocation2 + $0x218] sm:$0xff] %vm3788, %v3607
        %3857 = vst.msk [vmem:[#allocation2 + $0x220] sm:$0xff] %vm3788, %v3610
        %3858 = vst.msk [vmem:[#allocation2 + $0x228] sm:$0xff] %vm3788, %v3613
        %3859 = vst.msk [vmem:[#allocation2 + $0x230] sm:$0xff] %vm3788, %v3616
        %3860 = vst.msk [vmem:[#allocation2 + $0x238] sm:$0xff] %vm3788, %v3619
        %3861 = vst.msk [vmem:[#allocation2 + $0x240] sm:$0xff] %vm3788, %v3622
        %3862 = vst.msk [vmem:[#allocation2 + $0x248] sm:$0xff] %vm3788, %v3625
        %3863 = vst.msk [vmem:[#allocation2 + $0x250] sm:$0xff] %vm3788, %v3628
        %3864 = vst.msk [vmem:[#allocation2 + $0x258] sm:$0xff] %vm3788, %v3631
        %3865 = vst.msk [vmem:[#allocation2 + $0x260] sm:$0xff] %vm3788, %v3634
        %3866 = vst.msk [vmem:[#allocation2 + $0x268] sm:$0xff] %vm3788, %v3637
        %3867 = vst.msk [vmem:[#allocation2 + $0x270] sm:$0xff] %vm3788, %v3640
        %3868 = vst.msk [vmem:[#allocation2 + $0x278] sm:$0xff] %vm3788, %v3643
        %3869 = vst.msk [vmem:[#allocation2 + $0x280] sm:$0xff] %vm3788, %v3646
        %3870 = vst.msk [vmem:[#allocation2 + $0x288] sm:$0xff] %vm3788, %v3649
        %3871 = vst.msk [vmem:[#allocation2 + $0x290] sm:$0xff] %vm3788, %v3652
        %3872 = vst.msk [vmem:[#allocation2 + $0x298] sm:$0xff] %vm3788, %v3655
        %3873 = vst.msk [vmem:[#allocation2 + $0x2a0] sm:$0xff] %vm3788, %v3658
        %3874 = vst.msk [vmem:[#allocation2 + $0x2a8] sm:$0xff] %vm3788, %v3661
        %3875 = vst.msk [vmem:[#allocation2 + $0x2b0] sm:$0xff] %vm3788, %v3664
        %3876 = vst.msk [vmem:[#allocation2 + $0x2b8] sm:$0xff] %vm3788, %v3667
        %3877 = vst.msk [vmem:[#allocation2 + $0x2c0] sm:$0xff] %vm3788, %v3670
        %3878 = vst.msk [vmem:[#allocation2 + $0x2c8] sm:$0xff] %vm3788, %v3673
        %3879 = vst.msk [vmem:[#allocation2 + $0x2d0] sm:$0xff] %vm3788, %v3676
        %3880 = vst.msk [vmem:[#allocation2 + $0x2d8] sm:$0xff] %vm3788, %v3679
        %3881 = vst.msk [vmem:[#allocation2 + $0x2e0] sm:$0xff] %vm3788, %v3682
        %3882 = vst.msk [vmem:[#allocation2 + $0x2e8] sm:$0xff] %vm3788, %v3685
        %3883 = vst.msk [vmem:[#allocation2 + $0x2f0] sm:$0xff] %vm3788, %v3688
        %3884 = vst.msk [vmem:[#allocation2 + $0x2f8] sm:$0xff] %vm3788, %v3691
        %3885 = vst.msk [vmem:[#allocation2 + $0x300] sm:$0xff] %vm3788, %v3694
        %3886 = vst.msk [vmem:[#allocation2 + $0x308] sm:$0xff] %vm3788, %v3697
        %3887 = vst.msk [vmem:[#allocation2 + $0x310] sm:$0xff] %vm3788, %v3700
        %3888 = vst.msk [vmem:[#allocation2 + $0x318] sm:$0xff] %vm3788, %v3703
        %3889 = vst.msk [vmem:[#allocation2 + $0x320] sm:$0xff] %vm3788, %v3706
        %3890 = vst.msk [vmem:[#allocation2 + $0x328] sm:$0xff] %vm3788, %v3709
        %3891 = vst.msk [vmem:[#allocation2 + $0x330] sm:$0xff] %vm3788, %v3712
        %3892 = vst.msk [vmem:[#allocation2 + $0x338] sm:$0xff] %vm3788, %v3715
        %3893 = vst.msk [vmem:[#allocation2 + $0x340] sm:$0xff] %vm3788, %v3718
        %3894 = vst.msk [vmem:[#allocation2 + $0x348] sm:$0xff] %vm3788, %v3721
        %3895 = vst.msk [vmem:[#allocation2 + $0x350] sm:$0xff] %vm3788, %v3724
        %3896 = vst.msk [vmem:[#allocation2 + $0x358] sm:$0xff] %vm3788, %v3727
        %3897 = vst.msk [vmem:[#allocation2 + $0x360] sm:$0xff] %vm3788, %v3730
        %3898 = vst.msk [vmem:[#allocation2 + $0x368] sm:$0xff] %vm3788, %v3733
        %3899 = vst.msk [vmem:[#allocation2 + $0x370] sm:$0xff] %vm3788, %v3736
        %3900 = vst.msk [vmem:[#allocation2 + $0x378] sm:$0xff] %vm3788, %v3739
        %3901 = vst.msk [vmem:[#allocation2 + $0x380] sm:$0xff] %vm3788, %v3742
        %3902 = vst.msk [vmem:[#allocation2 + $0x388] sm:$0xff] %vm3788, %v3745
        %3903 = vst.msk [vmem:[#allocation2 + $0x390] sm:$0xff] %vm3788, %v3748
        %3904 = vst.msk [vmem:[#allocation2 + $0x398] sm:$0xff] %vm3788, %v3751
        %3905 = vst.msk [vmem:[#allocation2 + $0x3a0] sm:$0xff] %vm3788, %v3754
        %3906 = vst.msk [vmem:[#allocation2 + $0x3a8] sm:$0xff] %vm3788, %v3757
        %3907 = vst.msk [vmem:[#allocation2 + $0x3b0] sm:$0xff] %vm3788, %v3760
        %3908 = vst.msk [vmem:[#allocation2 + $0x3b8] sm:$0xff] %vm3788, %v3763
        %3909 = vst.msk [vmem:[#allocation2 + $0x3c0] sm:$0xff] %vm3788, %v3766
        %3910 = vst.msk [vmem:[#allocation2 + $0x3c8] sm:$0xff] %vm3788, %v3769
        %3911 = vst.msk [vmem:[#allocation2 + $0x3d0] sm:$0xff] %vm3788, %v3772
        %3912 = vst.msk [vmem:[#allocation2 + $0x3d8] sm:$0xff] %vm3788, %v3775
        %3913 = vst.msk [vmem:[#allocation2 + $0x3e0] sm:$0xff] %vm3788, %v3778
        %3914 = vst.msk [vmem:[#allocation2 + $0x3e8] sm:$0xff] %vm3788, %v3781
        %3915 = vst.msk [vmem:[#allocation2 + $0x3f0] sm:$0xff] %vm3788, %v3784
        %3916 = vst.msk [vmem:[#allocation2 + $0x3f8] sm:$0xff] %vm3788, %v3787
        %s3917 = scalar_lea.vmem %s505, 8
        %v3918 = vld [vmem:[%s3917] sm:$0x77]
        %v3920 = vlaneseq
        %v3921 = vshrl.u32 %v3920, 7
        %v3922 = vsub.s32 0, %v3921
        %v3923 = vrot.slane %v3918, %v3922
        %v3924 = vlaneseq
        %v3925 = vshrl.u32 %v3924, 7
        %v3926 = vsub.s32 4, %v3925
        %v3927 = vrot.slane %v3918, %v3926
        %v3930 = vlaneseq
        %v3931 = vshrl.u32 %v3930, 7
        %v3932 = vsub.s32 0, %v3931
        %v3933 = vrot.slane %v3923, %v3932
        %v3934 = vlaneseq
        %v3935 = vshrl.u32 %v3934, 7
        %v3936 = vsub.s32 0, %v3935
        %v3937 = vrot.slane %v3927, %v3936
        %v3938 = vmul.f32 %v541, %v3933
        %v3939 = vmul.f32 %v541, %v3937
        %v3940 = vmul.f32 %v546, %v3933
        %v3941 = vmul.f32 %v546, %v3937
        %v3942 = vmul.f32 %v551, %v3933
        %v3943 = vmul.f32 %v551, %v3937
        %v3944 = vmul.f32 %v556, %v3933
        %v3945 = vmul.f32 %v556, %v3937
        %v3946 = vmul.f32 %v561, %v3933
        %v3947 = vmul.f32 %v561, %v3937
        %v3948 = vmul.f32 %v566, %v3933
        %v3949 = vmul.f32 %v566, %v3937
        %v3950 = vmul.f32 %v571, %v3933
        %v3951 = vmul.f32 %v571, %v3937
        %v3952 = vmul.f32 %v576, %v3933
        %v3953 = vmul.f32 %v576, %v3937
        %v3954 = vlaneseq
        %v3955 = vshrl.u32 %v3954, 7
        %v3956 = vsub.s32 1, %v3955
        %v3957 = vrot.slane %v3918, %v3956
        %v3958 = vlaneseq
        %v3959 = vshrl.u32 %v3958, 7
        %v3960 = vsub.s32 5, %v3959
        %v3961 = vrot.slane %v3918, %v3960
        %v3964 = vlaneseq
        %v3965 = vshrl.u32 %v3964, 7
        %v3966 = vsub.s32 1, %v3965
        %v3967 = vrot.slane %v3957, %v3966
        %v3968 = vlaneseq
        %v3969 = vshrl.u32 %v3968, 7
        %v3970 = vsub.s32 1, %v3969
        %v3971 = vrot.slane %v3961, %v3970
        %v3972 = vmul.f32 %v615, %v3967
        %v3973 = vmul.f32 %v615, %v3971
        %v3974 = vmul.f32 %v619, %v3967
        %v3975 = vmul.f32 %v619, %v3971
        %v3976 = vmul.f32 %v623, %v3967
        %v3977 = vmul.f32 %v623, %v3971
        %v3978 = vmul.f32 %v627, %v3967
        %v3979 = vmul.f32 %v627, %v3971
        %v3980 = vmul.f32 %v631, %v3967
        %v3981 = vmul.f32 %v631, %v3971
        %v3982 = vmul.f32 %v635, %v3967
        %v3983 = vmul.f32 %v635, %v3971
        %v3984 = vmul.f32 %v639, %v3967
        %v3985 = vmul.f32 %v639, %v3971
        %v3986 = vmul.f32 %v643, %v3967
        %v3987 = vmul.f32 %v643, %v3971
        %v3988 = vadd.f32 %v3938, %v3972
        %v3989 = vadd.f32 %v3939, %v3973
        %v3990 = vadd.f32 %v3940, %v3974
        %v3991 = vadd.f32 %v3941, %v3975
        %v3992 = vadd.f32 %v3942, %v3976
        %v3993 = vadd.f32 %v3943, %v3977
        %v3994 = vadd.f32 %v3944, %v3978
        %v3995 = vadd.f32 %v3945, %v3979
        %v3996 = vadd.f32 %v3946, %v3980
        %v3997 = vadd.f32 %v3947, %v3981
        %v3998 = vadd.f32 %v3948, %v3982
        %v3999 = vadd.f32 %v3949, %v3983
        %v4000 = vadd.f32 %v3950, %v3984
        %v4001 = vadd.f32 %v3951, %v3985
        %v4002 = vadd.f32 %v3952, %v3986
        %v4003 = vadd.f32 %v3953, %v3987
        %v4004 = vlaneseq
        %v4005 = vshrl.u32 %v4004, 7
        %v4006 = vsub.s32 2, %v4005
        %v4007 = vrot.slane %v3918, %v4006
        %v4008 = vlaneseq
        %v4009 = vshrl.u32 %v4008, 7
        %v4010 = vsub.s32 6, %v4009
        %v4011 = vrot.slane %v3918, %v4010
        %v4014 = vlaneseq
        %v4015 = vshrl.u32 %v4014, 7
        %v4016 = vsub.s32 2, %v4015
        %v4017 = vrot.slane %v4007, %v4016
        %v4018 = vlaneseq
        %v4019 = vshrl.u32 %v4018, 7
        %v4020 = vsub.s32 2, %v4019
        %v4021 = vrot.slane %v4011, %v4020
        %v4022 = vmul.f32 %v697, %v4017
        %v4023 = vmul.f32 %v697, %v4021
        %v4024 = vmul.f32 %v701, %v4017
        %v4025 = vmul.f32 %v701, %v4021
        %v4026 = vmul.f32 %v705, %v4017
        %v4027 = vmul.f32 %v705, %v4021
        %v4028 = vmul.f32 %v709, %v4017
        %v4029 = vmul.f32 %v709, %v4021
        %v4030 = vmul.f32 %v713, %v4017
        %v4031 = vmul.f32 %v713, %v4021
        %v4032 = vmul.f32 %v717, %v4017
        %v4033 = vmul.f32 %v717, %v4021
        %v4034 = vmul.f32 %v721, %v4017
        %v4035 = vmul.f32 %v721, %v4021
        %v4036 = vmul.f32 %v725, %v4017
        %v4037 = vmul.f32 %v725, %v4021
        %v4038 = vadd.f32 %v3988, %v4022
        %v4039 = vadd.f32 %v3989, %v4023
        %v4040 = vadd.f32 %v3990, %v4024
        %v4041 = vadd.f32 %v3991, %v4025
        %v4042 = vadd.f32 %v3992, %v4026
        %v4043 = vadd.f32 %v3993, %v4027
        %v4044 = vadd.f32 %v3994, %v4028
        %v4045 = vadd.f32 %v3995, %v4029
        %v4046 = vadd.f32 %v3996, %v4030
        %v4047 = vadd.f32 %v3997, %v4031
        %v4048 = vadd.f32 %v3998, %v4032
        %v4049 = vadd.f32 %v3999, %v4033
        %v4050 = vadd.f32 %v4000, %v4034
        %v4051 = vadd.f32 %v4001, %v4035
        %v4052 = vadd.f32 %v4002, %v4036
        %v4053 = vadd.f32 %v4003, %v4037
        %v4054 = vadd.f32 %v4038, %v780
        %v4055 = vadd.f32 %v4039, %v780
        %v4056 = vadd.f32 %v4040, %v785
        %v4057 = vadd.f32 %v4041, %v785
        %v4058 = vadd.f32 %v4042, %v790
        %v4059 = vadd.f32 %v4043, %v790
        %v4060 = vadd.f32 %v4044, %v795
        %v4061 = vadd.f32 %v4045, %v795
        %v4062 = vadd.f32 %v4046, %v800
        %v4063 = vadd.f32 %v4047, %v800
        %v4064 = vadd.f32 %v4048, %v805
        %v4065 = vadd.f32 %v4049, %v805
        %v4066 = vadd.f32 %v4050, %v810
        %v4067 = vadd.f32 %v4051, %v810
        %v4068 = vadd.f32 %v4052, %v815
        %v4069 = vadd.f32 %v4053, %v815
        %v4070 = vmax.f32 %v4054, 0.0
        %v4071 = vmax.f32 %v4055, 0.0
        %v4072 = vmax.f32 %v4056, 0.0
        %v4073 = vmax.f32 %v4057, 0.0
        %v4074 = vmax.f32 %v4058, 0.0
        %v4075 = vmax.f32 %v4059, 0.0
        %v4076 = vmax.f32 %v4060, 0.0
        %v4077 = vmax.f32 %v4061, 0.0
        %v4078 = vmax.f32 %v4062, 0.0
        %v4079 = vmax.f32 %v4063, 0.0
        %v4080 = vmax.f32 %v4064, 0.0
        %v4081 = vmax.f32 %v4065, 0.0
        %v4082 = vmax.f32 %v4066, 0.0
        %v4083 = vmax.f32 %v4067, 0.0
        %v4084 = vmax.f32 %v4068, 0.0
        %v4085 = vmax.f32 %v4069, 0.0
        %v4086 = vld [vmem:[%s3] sm:$0xf]
        %v4087 = vld [vmem:[%s3 + $0x4] sm:$0xf]
        %v4088 = vld [vmem:[%s3 + $0x8] sm:$0xf]
        %v4089 = vld [vmem:[%s3 + $0xc] sm:$0xf]
        %v4090 = vld [vmem:[%s3 + $0x10] sm:$0xf]
        %v4091 = vld [vmem:[%s3 + $0x14] sm:$0xf]
        %v4092 = vld [vmem:[%s3 + $0x18] sm:$0xf]
        %v4093 = vld [vmem:[%s3 + $0x1c] sm:$0xf]
        %v4094 = vld [vmem:[%s3 + $0x20] sm:$0xf]
        %v4095 = vld [vmem:[%s3 + $0x24] sm:$0xf]
        %v4096 = vld [vmem:[%s3 + $0x28] sm:$0xf]
        %v4097 = vld [vmem:[%s3 + $0x2c] sm:$0xf]
        %v4098 = vld [vmem:[%s3 + $0x30] sm:$0xf]
        %v4099 = vld [vmem:[%s3 + $0x34] sm:$0xf]
        %v4100 = vld [vmem:[%s3 + $0x38] sm:$0xf]
        %v4101 = vld [vmem:[%s3 + $0x3c] sm:$0xf]
        %v4102 = vpack.c.bf16 %v4072, %v4070
        %v4103 = vpack.c.bf16 %v4073, %v4071
        %v4104 = vpack.c.bf16 %v4076, %v4074
        %v4105 = vpack.c.bf16 %v4077, %v4075
        %v4106 = vpack.c.bf16 %v4080, %v4078
        %v4107 = vpack.c.bf16 %v4081, %v4079
        %v4108 = vpack.c.bf16 %v4084, %v4082
        %v4109 = vpack.c.bf16 %v4085, %v4083
        %v4110 = vld [vmem:[%s4] sm:$0xff]
        %v4111 = vld [vmem:[%s4 + $0x8] sm:$0xff]
        %v4112 = vld [vmem:[%s4 + $0x10] sm:$0xff]
        %v4113 = vld [vmem:[%s4 + $0x18] sm:$0xff]
        %v4114 = vld [vmem:[%s4 + $0x20] sm:$0xff]
        %v4115 = vld [vmem:[%s4 + $0x28] sm:$0xff]
        %v4116 = vld [vmem:[%s4 + $0x30] sm:$0xff]
        %v4117 = vld [vmem:[%s4 + $0x38] sm:$0xff]
        %v4118 = vld [vmem:[%s4 + $0x40] sm:$0xff]
        %v4119 = vld [vmem:[%s4 + $0x48] sm:$0xff]
        %v4120 = vld [vmem:[%s4 + $0x50] sm:$0xff]
        %v4121 = vld [vmem:[%s4 + $0x58] sm:$0xff]
        %v4122 = vld [vmem:[%s4 + $0x60] sm:$0xff]
        %v4123 = vld [vmem:[%s4 + $0x68] sm:$0xff]
        %v4124 = vld [vmem:[%s4 + $0x70] sm:$0xff]
        %v4125 = vld [vmem:[%s4 + $0x78] sm:$0xff]
        %4127 = vset.pattern.permute.xlu0 0
        %4128 = vperm.xlu0 %4127, %v4110
        %v4129 = vpop.permute.xlu0 %4128
        %4132 = vset.pattern.permute.xlu0 0
        %4133 = vperm.xlu0 %4132, %v4111
        %v4134 = vpop.permute.xlu0 %4133
        %4137 = vset.pattern.permute.xlu0 0
        %4138 = vperm.xlu0 %4137, %v4112
        %v4139 = vpop.permute.xlu0 %4138
        %4142 = vset.pattern.permute.xlu0 0
        %4143 = vperm.xlu0 %4142, %v4113
        %v4144 = vpop.permute.xlu0 %4143
        %4147 = vset.pattern.permute.xlu0 0
        %4148 = vperm.xlu0 %4147, %v4114
        %v4149 = vpop.permute.xlu0 %4148
        %4152 = vset.pattern.permute.xlu0 0
        %4153 = vperm.xlu0 %4152, %v4115
        %v4154 = vpop.permute.xlu0 %4153
        %4157 = vset.pattern.permute.xlu0 0
        %4158 = vperm.xlu0 %4157, %v4116
        %v4159 = vpop.permute.xlu0 %4158
        %4162 = vset.pattern.permute.xlu0 0
        %4163 = vperm.xlu0 %4162, %v4117
        %v4164 = vpop.permute.xlu0 %4163
        %4167 = vset.pattern.permute.xlu0 0
        %4168 = vperm.xlu0 %4167, %v4118
        %v4169 = vpop.permute.xlu0 %4168
        %4172 = vset.pattern.permute.xlu0 0
        %4173 = vperm.xlu0 %4172, %v4119
        %v4174 = vpop.permute.xlu0 %4173
        %4177 = vset.pattern.permute.xlu0 0
        %4178 = vperm.xlu0 %4177, %v4120
        %v4179 = vpop.permute.xlu0 %4178
        %4182 = vset.pattern.permute.xlu0 0
        %4183 = vperm.xlu0 %4182, %v4121
        %v4184 = vpop.permute.xlu0 %4183
        %4187 = vset.pattern.permute.xlu0 0
        %4188 = vperm.xlu0 %4187, %v4122
        %v4189 = vpop.permute.xlu0 %4188
        %4192 = vset.pattern.permute.xlu0 0
        %4193 = vperm.xlu0 %4192, %v4123
        %v4194 = vpop.permute.xlu0 %4193
        %4197 = vset.pattern.permute.xlu0 0
        %4198 = vperm.xlu0 %4197, %v4124
        %v4199 = vpop.permute.xlu0 %4198
        %4202 = vset.pattern.permute.xlu0 0
        %4203 = vperm.xlu0 %4202, %v4125
        %v4204 = vpop.permute.xlu0 %4203
        %v4222 = vunpack.c.l.b16 %v4086
        %v4223 = vunpack.c.l.b16 %v4087
        %v4224 = vunpack.c.l.b16 %v4088
        %v4225 = vunpack.c.l.b16 %v4089
        %v4226 = vunpack.c.l.b16 %v4090
        %v4227 = vunpack.c.l.b16 %v4091
        %v4228 = vunpack.c.l.b16 %v4092
        %v4229 = vunpack.c.l.b16 %v4093
        %v4230 = vunpack.c.l.b16 %v4094
        %v4231 = vunpack.c.l.b16 %v4095
        %v4232 = vunpack.c.l.b16 %v4096
        %v4233 = vunpack.c.l.b16 %v4097
        %v4234 = vunpack.c.l.b16 %v4098
        %v4235 = vunpack.c.l.b16 %v4099
        %v4236 = vunpack.c.l.b16 %v4100
        %v4237 = vunpack.c.l.b16 %v4101
        %v4238 = vpack.c.b16 %v4223, %v4222
        %v4239 = vpack.c.b16 %v4225, %v4224
        %v4240 = vpack.c.b16 %v4227, %v4226
        %v4241 = vpack.c.b16 %v4229, %v4228
        %v4242 = vpack.c.b16 %v4231, %v4230
        %v4243 = vpack.c.b16 %v4233, %v4232
        %v4244 = vpack.c.b16 %v4235, %v4234
        %v4245 = vpack.c.b16 %v4237, %v4236
        %v4247 = vsel %vm1009, %v4238, 0
        %v4250 = vsel %vm1009, %v4239, 0
        %v4253 = vsel %vm1009, %v4240, 0
        %v4256 = vsel %vm1009, %v4241, 0
        %v4259 = vsel %vm1009, %v4242, 0
        %v4262 = vsel %vm1009, %v4243, 0
        %v4265 = vsel %vm1009, %v4244, 0
        %v4268 = vsel %vm1009, %v4245, 0
        %4270 = vmatprep.subr.bf16.mxu0 0
        %4271 = vmatpush1.bf16.msra.mxu0 0
        %4272 = vmatprep.subr.bf16.mxu0 0
        %4273 = vmatpush1.bf16.msra.mxu0 0
        %4274 = vmatprep.subr.bf16.mxu0 0
        %4275 = vmatpush1.bf16.msra.mxu0 0
        %4276 = vmatprep.subr.bf16.mxu0 0
        %4277 = vmatpush1.bf16.msra.mxu0 0
        %4278 = vmatprep.subr.bf16.mxu0 %v4109
        %4279 = vmatpush1.bf16.msra.mxu0 %v4108
        %4280 = vmatprep.subr.bf16.mxu0 %v4107
        %4281 = vmatpush1.bf16.msra.mxu0 %v4106
        %4282 = vmatprep.subr.bf16.mxu0 %v4105
        %4283 = vmatpush1.bf16.msra.mxu0 %v4104
        %4284 = vmatprep.subr.bf16.mxu0 %v4103
        %4285 = vmatpush1.bf16.msra.mxu0 %v4102
        %4286 = vmatprep.subr.bf16.mxu0 0
        %4287 = vmatpush2.bf16.msra.mxu0 0
        %4288 = vmatprep.subr.bf16.mxu0 0
        %4289 = vmatpush2.bf16.msra.mxu0 0
        %4290 = vmatprep.subr.bf16.mxu0 0
        %4291 = vmatpush2.bf16.msra.mxu0 0
        %4292 = vmatprep.subr.bf16.mxu0 0
        %4293 = vmatpush2.bf16.msra.mxu0 0
        %4294 = vmatprep.subr.bf16.mxu0 0
        %4295 = vmatpush2.bf16.msra.mxu0 0
        %4296 = vmatprep.subr.bf16.mxu0 0
        %4297 = vmatpush2.bf16.msra.mxu0 0
        %4298 = vmatprep.subr.bf16.mxu0 0
        %4299 = vmatpush2.bf16.msra.mxu0 0
        %4300 = vmatprep.subr.bf16.mxu0 0
        %4301 = vmatpush2.bf16.msra.mxu0 0
        %4302 = vmatprep.mubr.bf16.mxu0 0
        %4303 = vmatmul.mubr.bf16.gmra.mxu0 %v4247
        %v4304 = vpop.f32.mrf.mxu0
        %v4305 = vadd.f32 %v4129, %v4304
        %v4306 = vpop.f32.mrf.mxu0
        %v4307 = vadd.f32 %v4129, %v4306
        %v4308 = vpop.f32.mrf.mxu0
        %v4309 = vadd.f32 %v4134, %v4308
        %v4310 = vpop.f32.mrf.mxu0
        %v4311 = vadd.f32 %v4134, %v4310
        %4312 = vmatprep.mubr.bf16.mxu0 0
        %4313 = vmatmul.mubr.bf16.gmra.mxu0 %v4250
        %v4314 = vpop.f32.mrf.mxu0
        %v4315 = vadd.f32 %v4139, %v4314
        %v4316 = vpop.f32.mrf.mxu0
        %v4317 = vadd.f32 %v4139, %v4316
        %v4318 = vpop.f32.mrf.mxu0
        %v4319 = vadd.f32 %v4144, %v4318
        %v4320 = vpop.f32.mrf.mxu0
        %v4321 = vadd.f32 %v4144, %v4320
        %4322 = vmatprep.mubr.bf16.mxu0 0
        %4323 = vmatmul.mubr.bf16.gmra.mxu0 %v4253
        %v4324 = vpop.f32.mrf.mxu0
        %v4325 = vadd.f32 %v4149, %v4324
        %v4326 = vpop.f32.mrf.mxu0
        %v4327 = vadd.f32 %v4149, %v4326
        %v4328 = vpop.f32.mrf.mxu0
        %v4329 = vadd.f32 %v4154, %v4328
        %v4330 = vpop.f32.mrf.mxu0
        %v4331 = vadd.f32 %v4154, %v4330
        %4332 = vmatprep.mubr.bf16.mxu0 0
        %4333 = vmatmul.mubr.bf16.gmra.mxu0 %v4256
        %v4334 = vpop.f32.mrf.mxu0
        %v4335 = vadd.f32 %v4159, %v4334
        %v4336 = vpop.f32.mrf.mxu0
        %v4337 = vadd.f32 %v4159, %v4336
        %v4338 = vpop.f32.mrf.mxu0
        %v4339 = vadd.f32 %v4164, %v4338
        %v4340 = vpop.f32.mrf.mxu0
        %v4341 = vadd.f32 %v4164, %v4340
        %4342 = vmatprep.mubr.bf16.mxu0 0
        %4343 = vmatmul.mubr.bf16.gmra.mxu0 %v4259
        %v4344 = vpop.f32.mrf.mxu0
        %v4345 = vadd.f32 %v4169, %v4344
        %v4346 = vpop.f32.mrf.mxu0
        %v4347 = vadd.f32 %v4169, %v4346
        %v4348 = vpop.f32.mrf.mxu0
        %v4349 = vadd.f32 %v4174, %v4348
        %v4350 = vpop.f32.mrf.mxu0
        %v4351 = vadd.f32 %v4174, %v4350
        %4352 = vmatprep.mubr.bf16.mxu0 0
        %4353 = vmatmul.mubr.bf16.gmra.mxu0 %v4262
        %v4354 = vpop.f32.mrf.mxu0
        %v4355 = vadd.f32 %v4179, %v4354
        %v4356 = vpop.f32.mrf.mxu0
        %v4357 = vadd.f32 %v4179, %v4356
        %v4358 = vpop.f32.mrf.mxu0
        %v4359 = vadd.f32 %v4184, %v4358
        %v4360 = vpop.f32.mrf.mxu0
        %v4361 = vadd.f32 %v4184, %v4360
        %4362 = vmatprep.mubr.bf16.mxu0 0
        %4363 = vmatmul.mubr.bf16.gmra.mxu0 %v4265
        %v4364 = vpop.f32.mrf.mxu0
        %v4365 = vadd.f32 %v4189, %v4364
        %v4366 = vpop.f32.mrf.mxu0
        %v4367 = vadd.f32 %v4189, %v4366
        %v4368 = vpop.f32.mrf.mxu0
        %v4369 = vadd.f32 %v4194, %v4368
        %v4370 = vpop.f32.mrf.mxu0
        %v4371 = vadd.f32 %v4194, %v4370
        %4372 = vmatprep.mubr.bf16.mxu0 0
        %4373 = vmatmul.mubr.bf16.gmra.mxu0 %v4268
        %v4374 = vpop.f32.mrf.mxu0
        %v4375 = vadd.f32 %v4199, %v4374
        %v4376 = vpop.f32.mrf.mxu0
        %v4377 = vadd.f32 %v4199, %v4376
        %v4378 = vpop.f32.mrf.mxu0
        %v4379 = vadd.f32 %v4204, %v4378
        %v4380 = vpop.f32.mrf.mxu0
        %v4381 = vadd.f32 %v4204, %v4380
        %4382 = vdwg.mxu0
        %v4383 = vmax.f32 %v4305, 0.0
        %v4384 = vmax.f32 %v4307, 0.0
        %v4385 = vmax.f32 %v4309, 0.0
        %v4386 = vmax.f32 %v4311, 0.0
        %v4387 = vmax.f32 %v4315, 0.0
        %v4388 = vmax.f32 %v4317, 0.0
        %v4389 = vmax.f32 %v4319, 0.0
        %v4390 = vmax.f32 %v4321, 0.0
        %v4391 = vmax.f32 %v4325, 0.0
        %v4392 = vmax.f32 %v4327, 0.0
        %v4393 = vmax.f32 %v4329, 0.0
        %v4394 = vmax.f32 %v4331, 0.0
        %v4395 = vmax.f32 %v4335, 0.0
        %v4396 = vmax.f32 %v4337, 0.0
        %v4397 = vmax.f32 %v4339, 0.0
        %v4398 = vmax.f32 %v4341, 0.0
        %v4399 = vmax.f32 %v4345, 0.0
        %v4400 = vmax.f32 %v4347, 0.0
        %v4401 = vmax.f32 %v4349, 0.0
        %v4402 = vmax.f32 %v4351, 0.0
        %v4403 = vmax.f32 %v4355, 0.0
        %v4404 = vmax.f32 %v4357, 0.0
        %v4405 = vmax.f32 %v4359, 0.0
        %v4406 = vmax.f32 %v4361, 0.0
        %v4407 = vmax.f32 %v4365, 0.0
        %v4408 = vmax.f32 %v4367, 0.0
        %v4409 = vmax.f32 %v4369, 0.0
        %v4410 = vmax.f32 %v4371, 0.0
        %v4411 = vmax.f32 %v4375, 0.0
        %v4412 = vmax.f32 %v4377, 0.0
        %v4413 = vmax.f32 %v4379, 0.0
        %v4414 = vmax.f32 %v4381, 0.0
        %v4415 = vld [vmem:[#allocation3] sm:$0xf]
        %v4416 = vld [vmem:[#allocation3 + $0x4] sm:$0xf]
        %v4417 = vld [vmem:[#allocation3 + $0x8] sm:$0xf]
        %v4418 = vld [vmem:[#allocation3 + $0xc] sm:$0xf]
        %v4419 = vld [vmem:[#allocation3 + $0x10] sm:$0xf]
        %v4420 = vld [vmem:[#allocation3 + $0x14] sm:$0xf]
        %v4421 = vld [vmem:[#allocation3 + $0x18] sm:$0xf]
        %v4422 = vld [vmem:[#allocation3 + $0x1c] sm:$0xf]
        %v4423 = vld [vmem:[#allocation3 + $0x20] sm:$0xf]
        %v4424 = vld [vmem:[#allocation3 + $0x24] sm:$0xf]
        %v4425 = vld [vmem:[#allocation3 + $0x28] sm:$0xf]
        %v4426 = vld [vmem:[#allocation3 + $0x2c] sm:$0xf]
        %v4427 = vld [vmem:[#allocation3 + $0x30] sm:$0xf]
        %v4428 = vld [vmem:[#allocation3 + $0x34] sm:$0xf]
        %v4429 = vld [vmem:[#allocation3 + $0x38] sm:$0xf]
        %v4430 = vld [vmem:[#allocation3 + $0x3c] sm:$0xf]
        %v4431 = vld [vmem:[#allocation3 + $0x40] sm:$0xf]
        %v4432 = vld [vmem:[#allocation3 + $0x44] sm:$0xf]
        %v4433 = vld [vmem:[#allocation3 + $0x48] sm:$0xf]
        %v4434 = vld [vmem:[#allocation3 + $0x4c] sm:$0xf]
        %v4435 = vld [vmem:[#allocation3 + $0x50] sm:$0xf]
        %v4436 = vld [vmem:[#allocation3 + $0x54] sm:$0xf]
        %v4437 = vld [vmem:[#allocation3 + $0x58] sm:$0xf]
        %v4438 = vld [vmem:[#allocation3 + $0x5c] sm:$0xf]
        %v4439 = vld [vmem:[#allocation3 + $0x60] sm:$0xf]
        %v4440 = vld [vmem:[#allocation3 + $0x64] sm:$0xf]
        %v4441 = vld [vmem:[#allocation3 + $0x68] sm:$0xf]
        %v4442 = vld [vmem:[#allocation3 + $0x6c] sm:$0xf]
        %v4443 = vld [vmem:[#allocation3 + $0x70] sm:$0xf]
        %v4444 = vld [vmem:[#allocation3 + $0x74] sm:$0xf]
        %v4445 = vld [vmem:[#allocation3 + $0x78] sm:$0xf]
        %v4446 = vld [vmem:[#allocation3 + $0x7c] sm:$0xf]
        %v4447 = vld [vmem:[#allocation3 + $0x80] sm:$0xf]
        %v4448 = vld [vmem:[#allocation3 + $0x84] sm:$0xf]
        %v4449 = vld [vmem:[#allocation3 + $0x88] sm:$0xf]
        %v4450 = vld [vmem:[#allocation3 + $0x8c] sm:$0xf]
        %v4451 = vld [vmem:[#allocation3 + $0x90] sm:$0xf]
        %v4452 = vld [vmem:[#allocation3 + $0x94] sm:$0xf]
        %v4453 = vld [vmem:[#allocation3 + $0x98] sm:$0xf]
        %v4454 = vld [vmem:[#allocation3 + $0x9c] sm:$0xf]
        %v4455 = vld [vmem:[#allocation3 + $0xa0] sm:$0xf]
        %v4456 = vld [vmem:[#allocation3 + $0xa4] sm:$0xf]
        %v4457 = vld [vmem:[#allocation3 + $0xa8] sm:$0xf]
        %v4458 = vld [vmem:[#allocation3 + $0xac] sm:$0xf]
        %v4459 = vld [vmem:[#allocation3 + $0xb0] sm:$0xf]
        %v4460 = vld [vmem:[#allocation3 + $0xb4] sm:$0xf]
        %v4461 = vld [vmem:[#allocation3 + $0xb8] sm:$0xf]
        %v4462 = vld [vmem:[#allocation3 + $0xbc] sm:$0xf]
        %v4463 = vld [vmem:[#allocation3 + $0xc0] sm:$0xf]
        %v4464 = vld [vmem:[#allocation3 + $0xc4] sm:$0xf]
        %v4465 = vld [vmem:[#allocation3 + $0xc8] sm:$0xf]
        %v4466 = vld [vmem:[#allocation3 + $0xcc] sm:$0xf]
        %v4467 = vld [vmem:[#allocation3 + $0xd0] sm:$0xf]
        %v4468 = vld [vmem:[#allocation3 + $0xd4] sm:$0xf]
        %v4469 = vld [vmem:[#allocation3 + $0xd8] sm:$0xf]
        %v4470 = vld [vmem:[#allocation3 + $0xdc] sm:$0xf]
        %v4471 = vld [vmem:[#allocation3 + $0xe0] sm:$0xf]
        %v4472 = vld [vmem:[#allocation3 + $0xe4] sm:$0xf]
        %v4473 = vld [vmem:[#allocation3 + $0xe8] sm:$0xf]
        %v4474 = vld [vmem:[#allocation3 + $0xec] sm:$0xf]
        %v4475 = vld [vmem:[#allocation3 + $0xf0] sm:$0xf]
        %v4476 = vld [vmem:[#allocation3 + $0xf4] sm:$0xf]
        %v4477 = vld [vmem:[#allocation3 + $0xf8] sm:$0xf]
        %v4478 = vld [vmem:[#allocation3 + $0xfc] sm:$0xf]
        %v4479 = vld [vmem:[#allocation3 + $0x100] sm:$0xf]
        %v4480 = vld [vmem:[#allocation3 + $0x104] sm:$0xf]
        %v4481 = vld [vmem:[#allocation3 + $0x108] sm:$0xf]
        %v4482 = vld [vmem:[#allocation3 + $0x10c] sm:$0xf]
        %v4483 = vld [vmem:[#allocation3 + $0x110] sm:$0xf]
        %v4484 = vld [vmem:[#allocation3 + $0x114] sm:$0xf]
        %v4485 = vld [vmem:[#allocation3 + $0x118] sm:$0xf]
        %v4486 = vld [vmem:[#allocation3 + $0x11c] sm:$0xf]
        %v4487 = vld [vmem:[#allocation3 + $0x120] sm:$0xf]
        %v4488 = vld [vmem:[#allocation3 + $0x124] sm:$0xf]
        %v4489 = vld [vmem:[#allocation3 + $0x128] sm:$0xf]
        %v4490 = vld [vmem:[#allocation3 + $0x12c] sm:$0xf]
        %v4491 = vld [vmem:[#allocation3 + $0x130] sm:$0xf]
        %v4492 = vld [vmem:[#allocation3 + $0x134] sm:$0xf]
        %v4493 = vld [vmem:[#allocation3 + $0x138] sm:$0xf]
        %v4494 = vld [vmem:[#allocation3 + $0x13c] sm:$0xf]
        %v4495 = vld [vmem:[#allocation3 + $0x140] sm:$0xf]
        %v4496 = vld [vmem:[#allocation3 + $0x144] sm:$0xf]
        %v4497 = vld [vmem:[#allocation3 + $0x148] sm:$0xf]
        %v4498 = vld [vmem:[#allocation3 + $0x14c] sm:$0xf]
        %v4499 = vld [vmem:[#allocation3 + $0x150] sm:$0xf]
        %v4500 = vld [vmem:[#allocation3 + $0x154] sm:$0xf]
        %v4501 = vld [vmem:[#allocation3 + $0x158] sm:$0xf]
        %v4502 = vld [vmem:[#allocation3 + $0x15c] sm:$0xf]
        %v4503 = vld [vmem:[#allocation3 + $0x160] sm:$0xf]
        %v4504 = vld [vmem:[#allocation3 + $0x164] sm:$0xf]
        %v4505 = vld [vmem:[#allocation3 + $0x168] sm:$0xf]
        %v4506 = vld [vmem:[#allocation3 + $0x16c] sm:$0xf]
        %v4507 = vld [vmem:[#allocation3 + $0x170] sm:$0xf]
        %v4508 = vld [vmem:[#allocation3 + $0x174] sm:$0xf]
        %v4509 = vld [vmem:[#allocation3 + $0x178] sm:$0xf]
        %v4510 = vld [vmem:[#allocation3 + $0x17c] sm:$0xf]
        %v4511 = vld [vmem:[#allocation3 + $0x180] sm:$0xf]
        %v4512 = vld [vmem:[#allocation3 + $0x184] sm:$0xf]
        %v4513 = vld [vmem:[#allocation3 + $0x188] sm:$0xf]
        %v4514 = vld [vmem:[#allocation3 + $0x18c] sm:$0xf]
        %v4515 = vld [vmem:[#allocation3 + $0x190] sm:$0xf]
        %v4516 = vld [vmem:[#allocation3 + $0x194] sm:$0xf]
        %v4517 = vld [vmem:[#allocation3 + $0x198] sm:$0xf]
        %v4518 = vld [vmem:[#allocation3 + $0x19c] sm:$0xf]
        %v4519 = vld [vmem:[#allocation3 + $0x1a0] sm:$0xf]
        %v4520 = vld [vmem:[#allocation3 + $0x1a4] sm:$0xf]
        %v4521 = vld [vmem:[#allocation3 + $0x1a8] sm:$0xf]
        %v4522 = vld [vmem:[#allocation3 + $0x1ac] sm:$0xf]
        %v4523 = vld [vmem:[#allocation3 + $0x1b0] sm:$0xf]
        %v4524 = vld [vmem:[#allocation3 + $0x1b4] sm:$0xf]
        %v4525 = vld [vmem:[#allocation3 + $0x1b8] sm:$0xf]
        %v4526 = vld [vmem:[#allocation3 + $0x1bc] sm:$0xf]
        %v4527 = vld [vmem:[#allocation3 + $0x1c0] sm:$0xf]
        %v4528 = vld [vmem:[#allocation3 + $0x1c4] sm:$0xf]
        %v4529 = vld [vmem:[#allocation3 + $0x1c8] sm:$0xf]
        %v4530 = vld [vmem:[#allocation3 + $0x1cc] sm:$0xf]
        %v4531 = vld [vmem:[#allocation3 + $0x1d0] sm:$0xf]
        %v4532 = vld [vmem:[#allocation3 + $0x1d4] sm:$0xf]
        %v4533 = vld [vmem:[#allocation3 + $0x1d8] sm:$0xf]
        %v4534 = vld [vmem:[#allocation3 + $0x1dc] sm:$0xf]
        %v4535 = vld [vmem:[#allocation3 + $0x1e0] sm:$0xf]
        %v4536 = vld [vmem:[#allocation3 + $0x1e4] sm:$0xf]
        %v4537 = vld [vmem:[#allocation3 + $0x1e8] sm:$0xf]
        %v4538 = vld [vmem:[#allocation3 + $0x1ec] sm:$0xf]
        %v4539 = vld [vmem:[#allocation3 + $0x1f0] sm:$0xf]
        %v4540 = vld [vmem:[#allocation3 + $0x1f4] sm:$0xf]
        %v4541 = vld [vmem:[#allocation3 + $0x1f8] sm:$0xf]
        %v4542 = vld [vmem:[#allocation3 + $0x1fc] sm:$0xf]
        %v4543 = vpack.c.bf16 %v4385, %v4383
        %v4544 = vpack.c.bf16 %v4386, %v4384
        %v4545 = vpack.c.bf16 %v4389, %v4387
        %v4546 = vpack.c.bf16 %v4390, %v4388
        %v4547 = vpack.c.bf16 %v4393, %v4391
        %v4548 = vpack.c.bf16 %v4394, %v4392
        %v4549 = vpack.c.bf16 %v4397, %v4395
        %v4550 = vpack.c.bf16 %v4398, %v4396
        %v4551 = vpack.c.bf16 %v4401, %v4399
        %v4552 = vpack.c.bf16 %v4402, %v4400
        %v4553 = vpack.c.bf16 %v4405, %v4403
        %v4554 = vpack.c.bf16 %v4406, %v4404
        %v4555 = vpack.c.bf16 %v4409, %v4407
        %v4556 = vpack.c.bf16 %v4410, %v4408
        %v4557 = vpack.c.bf16 %v4413, %v4411
        %v4558 = vpack.c.bf16 %v4414, %v4412
        %v4559 = vld [vmem:[%s6] sm:$0xff]
        %v4560 = vld [vmem:[%s6 + $0x8] sm:$0xff]
        %v4561 = vld [vmem:[%s6 + $0x10] sm:$0xff]
        %v4562 = vld [vmem:[%s6 + $0x18] sm:$0xff]
        %v4563 = vld [vmem:[%s6 + $0x20] sm:$0xff]
        %v4564 = vld [vmem:[%s6 + $0x28] sm:$0xff]
        %v4565 = vld [vmem:[%s6 + $0x30] sm:$0xff]
        %v4566 = vld [vmem:[%s6 + $0x38] sm:$0xff]
        %v4567 = vld [vmem:[%s6 + $0x40] sm:$0xff]
        %v4568 = vld [vmem:[%s6 + $0x48] sm:$0xff]
        %v4569 = vld [vmem:[%s6 + $0x50] sm:$0xff]
        %v4570 = vld [vmem:[%s6 + $0x58] sm:$0xff]
        %v4571 = vld [vmem:[%s6 + $0x60] sm:$0xff]
        %v4572 = vld [vmem:[%s6 + $0x68] sm:$0xff]
        %v4573 = vld [vmem:[%s6 + $0x70] sm:$0xff]
        %v4574 = vld [vmem:[%s6 + $0x78] sm:$0xff]
        %v4575 = vld [vmem:[%s6 + $0x80] sm:$0xff]
        %v4576 = vld [vmem:[%s6 + $0x88] sm:$0xff]
        %v4577 = vld [vmem:[%s6 + $0x90] sm:$0xff]
        %v4578 = vld [vmem:[%s6 + $0x98] sm:$0xff]
        %v4579 = vld [vmem:[%s6 + $0xa0] sm:$0xff]
        %v4580 = vld [vmem:[%s6 + $0xa8] sm:$0xff]
        %v4581 = vld [vmem:[%s6 + $0xb0] sm:$0xff]
        %v4582 = vld [vmem:[%s6 + $0xb8] sm:$0xff]
        %v4583 = vld [vmem:[%s6 + $0xc0] sm:$0xff]
        %v4584 = vld [vmem:[%s6 + $0xc8] sm:$0xff]
        %v4585 = vld [vmem:[%s6 + $0xd0] sm:$0xff]
        %v4586 = vld [vmem:[%s6 + $0xd8] sm:$0xff]
        %v4587 = vld [vmem:[%s6 + $0xe0] sm:$0xff]
        %v4588 = vld [vmem:[%s6 + $0xe8] sm:$0xff]
        %v4589 = vld [vmem:[%s6 + $0xf0] sm:$0xff]
        %v4590 = vld [vmem:[%s6 + $0xf8] sm:$0xff]
        %v4591 = vld [vmem:[%s6 + $0x100] sm:$0xff]
        %v4592 = vld [vmem:[%s6 + $0x108] sm:$0xff]
        %v4593 = vld [vmem:[%s6 + $0x110] sm:$0xff]
        %v4594 = vld [vmem:[%s6 + $0x118] sm:$0xff]
        %v4595 = vld [vmem:[%s6 + $0x120] sm:$0xff]
        %v4596 = vld [vmem:[%s6 + $0x128] sm:$0xff]
        %v4597 = vld [vmem:[%s6 + $0x130] sm:$0xff]
        %v4598 = vld [vmem:[%s6 + $0x138] sm:$0xff]
        %v4599 = vld [vmem:[%s6 + $0x140] sm:$0xff]
        %v4600 = vld [vmem:[%s6 + $0x148] sm:$0xff]
        %v4601 = vld [vmem:[%s6 + $0x150] sm:$0xff]
        %v4602 = vld [vmem:[%s6 + $0x158] sm:$0xff]
        %v4603 = vld [vmem:[%s6 + $0x160] sm:$0xff]
        %v4604 = vld [vmem:[%s6 + $0x168] sm:$0xff]
        %v4605 = vld [vmem:[%s6 + $0x170] sm:$0xff]
        %v4606 = vld [vmem:[%s6 + $0x178] sm:$0xff]
        %v4607 = vld [vmem:[%s6 + $0x180] sm:$0xff]
        %v4608 = vld [vmem:[%s6 + $0x188] sm:$0xff]
        %v4609 = vld [vmem:[%s6 + $0x190] sm:$0xff]
        %v4610 = vld [vmem:[%s6 + $0x198] sm:$0xff]
        %v4611 = vld [vmem:[%s6 + $0x1a0] sm:$0xff]
        %v4612 = vld [vmem:[%s6 + $0x1a8] sm:$0xff]
        %v4613 = vld [vmem:[%s6 + $0x1b0] sm:$0xff]
        %v4614 = vld [vmem:[%s6 + $0x1b8] sm:$0xff]
        %v4615 = vld [vmem:[%s6 + $0x1c0] sm:$0xff]
        %v4616 = vld [vmem:[%s6 + $0x1c8] sm:$0xff]
        %v4617 = vld [vmem:[%s6 + $0x1d0] sm:$0xff]
        %v4618 = vld [vmem:[%s6 + $0x1d8] sm:$0xff]
        %v4619 = vld [vmem:[%s6 + $0x1e0] sm:$0xff]
        %v4620 = vld [vmem:[%s6 + $0x1e8] sm:$0xff]
        %v4621 = vld [vmem:[%s6 + $0x1f0] sm:$0xff]
        %v4622 = vld [vmem:[%s6 + $0x1f8] sm:$0xff]
        %v4623 = vld [vmem:[%s6 + $0x200] sm:$0xff]
        %v4624 = vld [vmem:[%s6 + $0x208] sm:$0xff]
        %v4625 = vld [vmem:[%s6 + $0x210] sm:$0xff]
        %v4626 = vld [vmem:[%s6 + $0x218] sm:$0xff]
        %v4627 = vld [vmem:[%s6 + $0x220] sm:$0xff]
        %v4628 = vld [vmem:[%s6 + $0x228] sm:$0xff]
        %v4629 = vld [vmem:[%s6 + $0x230] sm:$0xff]
        %v4630 = vld [vmem:[%s6 + $0x238] sm:$0xff]
        %v4631 = vld [vmem:[%s6 + $0x240] sm:$0xff]
        %v4632 = vld [vmem:[%s6 + $0x248] sm:$0xff]
        %v4633 = vld [vmem:[%s6 + $0x250] sm:$0xff]
        %v4634 = vld [vmem:[%s6 + $0x258] sm:$0xff]
        %v4635 = vld [vmem:[%s6 + $0x260] sm:$0xff]
        %v4636 = vld [vmem:[%s6 + $0x268] sm:$0xff]
        %v4637 = vld [vmem:[%s6 + $0x270] sm:$0xff]
        %v4638 = vld [vmem:[%s6 + $0x278] sm:$0xff]
        %v4639 = vld [vmem:[%s6 + $0x280] sm:$0xff]
        %v4640 = vld [vmem:[%s6 + $0x288] sm:$0xff]
        %v4641 = vld [vmem:[%s6 + $0x290] sm:$0xff]
        %v4642 = vld [vmem:[%s6 + $0x298] sm:$0xff]
        %v4643 = vld [vmem:[%s6 + $0x2a0] sm:$0xff]
        %v4644 = vld [vmem:[%s6 + $0x2a8] sm:$0xff]
        %v4645 = vld [vmem:[%s6 + $0x2b0] sm:$0xff]
        %v4646 = vld [vmem:[%s6 + $0x2b8] sm:$0xff]
        %v4647 = vld [vmem:[%s6 + $0x2c0] sm:$0xff]
        %v4648 = vld [vmem:[%s6 + $0x2c8] sm:$0xff]
        %v4649 = vld [vmem:[%s6 + $0x2d0] sm:$0xff]
        %v4650 = vld [vmem:[%s6 + $0x2d8] sm:$0xff]
        %v4651 = vld [vmem:[%s6 + $0x2e0] sm:$0xff]
        %v4652 = vld [vmem:[%s6 + $0x2e8] sm:$0xff]
        %v4653 = vld [vmem:[%s6 + $0x2f0] sm:$0xff]
        %v4654 = vld [vmem:[%s6 + $0x2f8] sm:$0xff]
        %v4655 = vld [vmem:[%s6 + $0x300] sm:$0xff]
        %v4656 = vld [vmem:[%s6 + $0x308] sm:$0xff]
        %v4657 = vld [vmem:[%s6 + $0x310] sm:$0xff]
        %v4658 = vld [vmem:[%s6 + $0x318] sm:$0xff]
        %v4659 = vld [vmem:[%s6 + $0x320] sm:$0xff]
        %v4660 = vld [vmem:[%s6 + $0x328] sm:$0xff]
        %v4661 = vld [vmem:[%s6 + $0x330] sm:$0xff]
        %v4662 = vld [vmem:[%s6 + $0x338] sm:$0xff]
        %v4663 = vld [vmem:[%s6 + $0x340] sm:$0xff]
        %v4664 = vld [vmem:[%s6 + $0x348] sm:$0xff]
        %v4665 = vld [vmem:[%s6 + $0x350] sm:$0xff]
        %v4666 = vld [vmem:[%s6 + $0x358] sm:$0xff]
        %v4667 = vld [vmem:[%s6 + $0x360] sm:$0xff]
        %v4668 = vld [vmem:[%s6 + $0x368] sm:$0xff]
        %v4669 = vld [vmem:[%s6 + $0x370] sm:$0xff]
        %v4670 = vld [vmem:[%s6 + $0x378] sm:$0xff]
        %v4671 = vld [vmem:[%s6 + $0x380] sm:$0xff]
        %v4672 = vld [vmem:[%s6 + $0x388] sm:$0xff]
        %v4673 = vld [vmem:[%s6 + $0x390] sm:$0xff]
        %v4674 = vld [vmem:[%s6 + $0x398] sm:$0xff]
        %v4675 = vld [vmem:[%s6 + $0x3a0] sm:$0xff]
        %v4676 = vld [vmem:[%s6 + $0x3a8] sm:$0xff]
        %v4677 = vld [vmem:[%s6 + $0x3b0] sm:$0xff]
        %v4678 = vld [vmem:[%s6 + $0x3b8] sm:$0xff]
        %v4679 = vld [vmem:[%s6 + $0x3c0] sm:$0xff]
        %v4680 = vld [vmem:[%s6 + $0x3c8] sm:$0xff]
        %v4681 = vld [vmem:[%s6 + $0x3d0] sm:$0xff]
        %v4682 = vld [vmem:[%s6 + $0x3d8] sm:$0xff]
        %v4683 = vld [vmem:[%s6 + $0x3e0] sm:$0xff]
        %v4684 = vld [vmem:[%s6 + $0x3e8] sm:$0xff]
        %v4685 = vld [vmem:[%s6 + $0x3f0] sm:$0xff]
        %v4686 = vld [vmem:[%s6 + $0x3f8] sm:$0xff]
        %4688 = vset.pattern.permute.xlu0 0
        %4689 = vperm.xlu0 %4688, %v4559
        %v4690 = vpop.permute.xlu0 %4689
        %4693 = vset.pattern.permute.xlu0 0
        %4694 = vperm.xlu0 %4693, %v4560
        %v4695 = vpop.permute.xlu0 %4694
        %4698 = vset.pattern.permute.xlu0 0
        %4699 = vperm.xlu0 %4698, %v4561
        %v4700 = vpop.permute.xlu0 %4699
        %4703 = vset.pattern.permute.xlu0 0
        %4704 = vperm.xlu0 %4703, %v4562
        %v4705 = vpop.permute.xlu0 %4704
        %4708 = vset.pattern.permute.xlu0 0
        %4709 = vperm.xlu0 %4708, %v4563
        %v4710 = vpop.permute.xlu0 %4709
        %4713 = vset.pattern.permute.xlu0 0
        %4714 = vperm.xlu0 %4713, %v4564
        %v4715 = vpop.permute.xlu0 %4714
        %4718 = vset.pattern.permute.xlu0 0
        %4719 = vperm.xlu0 %4718, %v4565
        %v4720 = vpop.permute.xlu0 %4719
        %4723 = vset.pattern.permute.xlu0 0
        %4724 = vperm.xlu0 %4723, %v4566
        %v4725 = vpop.permute.xlu0 %4724
        %4728 = vset.pattern.permute.xlu0 0
        %4729 = vperm.xlu0 %4728, %v4567
        %v4730 = vpop.permute.xlu0 %4729
        %4733 = vset.pattern.permute.xlu0 0
        %4734 = vperm.xlu0 %4733, %v4568
        %v4735 = vpop.permute.xlu0 %4734
        %4738 = vset.pattern.permute.xlu0 0
        %4739 = vperm.xlu0 %4738, %v4569
        %v4740 = vpop.permute.xlu0 %4739
        %4743 = vset.pattern.permute.xlu0 0
        %4744 = vperm.xlu0 %4743, %v4570
        %v4745 = vpop.permute.xlu0 %4744
        %4748 = vset.pattern.permute.xlu0 0
        %4749 = vperm.xlu0 %4748, %v4571
        %v4750 = vpop.permute.xlu0 %4749
        %4753 = vset.pattern.permute.xlu0 0
        %4754 = vperm.xlu0 %4753, %v4572
        %v4755 = vpop.permute.xlu0 %4754
        %4758 = vset.pattern.permute.xlu0 0
        %4759 = vperm.xlu0 %4758, %v4573
        %v4760 = vpop.permute.xlu0 %4759
        %4763 = vset.pattern.permute.xlu0 0
        %4764 = vperm.xlu0 %4763, %v4574
        %v4765 = vpop.permute.xlu0 %4764
        %4768 = vset.pattern.permute.xlu0 0
        %4769 = vperm.xlu0 %4768, %v4575
        %v4770 = vpop.permute.xlu0 %4769
        %4773 = vset.pattern.permute.xlu0 0
        %4774 = vperm.xlu0 %4773, %v4576
        %v4775 = vpop.permute.xlu0 %4774
        %4778 = vset.pattern.permute.xlu0 0
        %4779 = vperm.xlu0 %4778, %v4577
        %v4780 = vpop.permute.xlu0 %4779
        %4783 = vset.pattern.permute.xlu0 0
        %4784 = vperm.xlu0 %4783, %v4578
        %v4785 = vpop.permute.xlu0 %4784
        %4788 = vset.pattern.permute.xlu0 0
        %4789 = vperm.xlu0 %4788, %v4579
        %v4790 = vpop.permute.xlu0 %4789
        %4793 = vset.pattern.permute.xlu0 0
        %4794 = vperm.xlu0 %4793, %v4580
        %v4795 = vpop.permute.xlu0 %4794
        %4798 = vset.pattern.permute.xlu0 0
        %4799 = vperm.xlu0 %4798, %v4581
        %v4800 = vpop.permute.xlu0 %4799
        %4803 = vset.pattern.permute.xlu0 0
        %4804 = vperm.xlu0 %4803, %v4582
        %v4805 = vpop.permute.xlu0 %4804
        %4808 = vset.pattern.permute.xlu0 0
        %4809 = vperm.xlu0 %4808, %v4583
        %v4810 = vpop.permute.xlu0 %4809
        %4813 = vset.pattern.permute.xlu0 0
        %4814 = vperm.xlu0 %4813, %v4584
        %v4815 = vpop.permute.xlu0 %4814
        %4818 = vset.pattern.permute.xlu0 0
        %4819 = vperm.xlu0 %4818, %v4585
        %v4820 = vpop.permute.xlu0 %4819
        %4823 = vset.pattern.permute.xlu0 0
        %4824 = vperm.xlu0 %4823, %v4586
        %v4825 = vpop.permute.xlu0 %4824
        %4828 = vset.pattern.permute.xlu0 0
        %4829 = vperm.xlu0 %4828, %v4587
        %v4830 = vpop.permute.xlu0 %4829
        %4833 = vset.pattern.permute.xlu0 0
        %4834 = vperm.xlu0 %4833, %v4588
        %v4835 = vpop.permute.xlu0 %4834
        %4838 = vset.pattern.permute.xlu0 0
        %4839 = vperm.xlu0 %4838, %v4589
        %v4840 = vpop.permute.xlu0 %4839
        %4843 = vset.pattern.permute.xlu0 0
        %4844 = vperm.xlu0 %4843, %v4590
        %v4845 = vpop.permute.xlu0 %4844
        %4848 = vset.pattern.permute.xlu0 0
        %4849 = vperm.xlu0 %4848, %v4591
        %v4850 = vpop.permute.xlu0 %4849
        %4853 = vset.pattern.permute.xlu0 0
        %4854 = vperm.xlu0 %4853, %v4592
        %v4855 = vpop.permute.xlu0 %4854
        %4858 = vset.pattern.permute.xlu0 0
        %4859 = vperm.xlu0 %4858, %v4593
        %v4860 = vpop.permute.xlu0 %4859
        %4863 = vset.pattern.permute.xlu0 0
        %4864 = vperm.xlu0 %4863, %v4594
        %v4865 = vpop.permute.xlu0 %4864
        %4868 = vset.pattern.permute.xlu0 0
        %4869 = vperm.xlu0 %4868, %v4595
        %v4870 = vpop.permute.xlu0 %4869
        %4873 = vset.pattern.permute.xlu0 0
        %4874 = vperm.xlu0 %4873, %v4596
        %v4875 = vpop.permute.xlu0 %4874
        %4878 = vset.pattern.permute.xlu0 0
        %4879 = vperm.xlu0 %4878, %v4597
        %v4880 = vpop.permute.xlu0 %4879
        %4883 = vset.pattern.permute.xlu0 0
        %4884 = vperm.xlu0 %4883, %v4598
        %v4885 = vpop.permute.xlu0 %4884
        %4888 = vset.pattern.permute.xlu0 0
        %4889 = vperm.xlu0 %4888, %v4599
        %v4890 = vpop.permute.xlu0 %4889
        %4893 = vset.pattern.permute.xlu0 0
        %4894 = vperm.xlu0 %4893, %v4600
        %v4895 = vpop.permute.xlu0 %4894
        %4898 = vset.pattern.permute.xlu0 0
        %4899 = vperm.xlu0 %4898, %v4601
        %v4900 = vpop.permute.xlu0 %4899
        %4903 = vset.pattern.permute.xlu0 0
        %4904 = vperm.xlu0 %4903, %v4602
        %v4905 = vpop.permute.xlu0 %4904
        %4908 = vset.pattern.permute.xlu0 0
        %4909 = vperm.xlu0 %4908, %v4603
        %v4910 = vpop.permute.xlu0 %4909
        %4913 = vset.pattern.permute.xlu0 0
        %4914 = vperm.xlu0 %4913, %v4604
        %v4915 = vpop.permute.xlu0 %4914
        %4918 = vset.pattern.permute.xlu0 0
        %4919 = vperm.xlu0 %4918, %v4605
        %v4920 = vpop.permute.xlu0 %4919
        %4923 = vset.pattern.permute.xlu0 0
        %4924 = vperm.xlu0 %4923, %v4606
        %v4925 = vpop.permute.xlu0 %4924
        %4928 = vset.pattern.permute.xlu0 0
        %4929 = vperm.xlu0 %4928, %v4607
        %v4930 = vpop.permute.xlu0 %4929
        %4933 = vset.pattern.permute.xlu0 0
        %4934 = vperm.xlu0 %4933, %v4608
        %v4935 = vpop.permute.xlu0 %4934
        %4938 = vset.pattern.permute.xlu0 0
        %4939 = vperm.xlu0 %4938, %v4609
        %v4940 = vpop.permute.xlu0 %4939
        %4943 = vset.pattern.permute.xlu0 0
        %4944 = vperm.xlu0 %4943, %v4610
        %v4945 = vpop.permute.xlu0 %4944
        %4948 = vset.pattern.permute.xlu0 0
        %4949 = vperm.xlu0 %4948, %v4611
        %v4950 = vpop.permute.xlu0 %4949
        %4953 = vset.pattern.permute.xlu0 0
        %4954 = vperm.xlu0 %4953, %v4612
        %v4955 = vpop.permute.xlu0 %4954
        %4958 = vset.pattern.permute.xlu0 0
        %4959 = vperm.xlu0 %4958, %v4613
        %v4960 = vpop.permute.xlu0 %4959
        %4963 = vset.pattern.permute.xlu0 0
        %4964 = vperm.xlu0 %4963, %v4614
        %v4965 = vpop.permute.xlu0 %4964
        %4968 = vset.pattern.permute.xlu0 0
        %4969 = vperm.xlu0 %4968, %v4615
        %v4970 = vpop.permute.xlu0 %4969
        %4973 = vset.pattern.permute.xlu0 0
        %4974 = vperm.xlu0 %4973, %v4616
        %v4975 = vpop.permute.xlu0 %4974
        %4978 = vset.pattern.permute.xlu0 0
        %4979 = vperm.xlu0 %4978, %v4617
        %v4980 = vpop.permute.xlu0 %4979
        %4983 = vset.pattern.permute.xlu0 0
        %4984 = vperm.xlu0 %4983, %v4618
        %v4985 = vpop.permute.xlu0 %4984
        %4988 = vset.pattern.permute.xlu0 0
        %4989 = vperm.xlu0 %4988, %v4619
        %v4990 = vpop.permute.xlu0 %4989
        %4993 = vset.pattern.permute.xlu0 0
        %4994 = vperm.xlu0 %4993, %v4620
        %v4995 = vpop.permute.xlu0 %4994
        %4998 = vset.pattern.permute.xlu0 0
        %4999 = vperm.xlu0 %4998, %v4621
        %v5000 = vpop.permute.xlu0 %4999
        %5003 = vset.pattern.permute.xlu0 0
        %5004 = vperm.xlu0 %5003, %v4622
        %v5005 = vpop.permute.xlu0 %5004
        %5008 = vset.pattern.permute.xlu0 0
        %5009 = vperm.xlu0 %5008, %v4623
        %v5010 = vpop.permute.xlu0 %5009
        %5013 = vset.pattern.permute.xlu0 0
        %5014 = vperm.xlu0 %5013, %v4624
        %v5015 = vpop.permute.xlu0 %5014
        %5018 = vset.pattern.permute.xlu0 0
        %5019 = vperm.xlu0 %5018, %v4625
        %v5020 = vpop.permute.xlu0 %5019
        %5023 = vset.pattern.permute.xlu0 0
        %5024 = vperm.xlu0 %5023, %v4626
        %v5025 = vpop.permute.xlu0 %5024
        %5028 = vset.pattern.permute.xlu0 0
        %5029 = vperm.xlu0 %5028, %v4627
        %v5030 = vpop.permute.xlu0 %5029
        %5033 = vset.pattern.permute.xlu0 0
        %5034 = vperm.xlu0 %5033, %v4628
        %v5035 = vpop.permute.xlu0 %5034
        %5038 = vset.pattern.permute.xlu0 0
        %5039 = vperm.xlu0 %5038, %v4629
        %v5040 = vpop.permute.xlu0 %5039
        %5043 = vset.pattern.permute.xlu0 0
        %5044 = vperm.xlu0 %5043, %v4630
        %v5045 = vpop.permute.xlu0 %5044
        %5048 = vset.pattern.permute.xlu0 0
        %5049 = vperm.xlu0 %5048, %v4631
        %v5050 = vpop.permute.xlu0 %5049
        %5053 = vset.pattern.permute.xlu0 0
        %5054 = vperm.xlu0 %5053, %v4632
        %v5055 = vpop.permute.xlu0 %5054
        %5058 = vset.pattern.permute.xlu0 0
        %5059 = vperm.xlu0 %5058, %v4633
        %v5060 = vpop.permute.xlu0 %5059
        %5063 = vset.pattern.permute.xlu0 0
        %5064 = vperm.xlu0 %5063, %v4634
        %v5065 = vpop.permute.xlu0 %5064
        %5068 = vset.pattern.permute.xlu0 0
        %5069 = vperm.xlu0 %5068, %v4635
        %v5070 = vpop.permute.xlu0 %5069
        %5073 = vset.pattern.permute.xlu0 0
        %5074 = vperm.xlu0 %5073, %v4636
        %v5075 = vpop.permute.xlu0 %5074
        %5078 = vset.pattern.permute.xlu0 0
        %5079 = vperm.xlu0 %5078, %v4637
        %v5080 = vpop.permute.xlu0 %5079
        %5083 = vset.pattern.permute.xlu0 0
        %5084 = vperm.xlu0 %5083, %v4638
        %v5085 = vpop.permute.xlu0 %5084
        %5088 = vset.pattern.permute.xlu0 0
        %5089 = vperm.xlu0 %5088, %v4639
        %v5090 = vpop.permute.xlu0 %5089
        %5093 = vset.pattern.permute.xlu0 0
        %5094 = vperm.xlu0 %5093, %v4640
        %v5095 = vpop.permute.xlu0 %5094
        %5098 = vset.pattern.permute.xlu0 0
        %5099 = vperm.xlu0 %5098, %v4641
        %v5100 = vpop.permute.xlu0 %5099
        %5103 = vset.pattern.permute.xlu0 0
        %5104 = vperm.xlu0 %5103, %v4642
        %v5105 = vpop.permute.xlu0 %5104
        %5108 = vset.pattern.permute.xlu0 0
        %5109 = vperm.xlu0 %5108, %v4643
        %v5110 = vpop.permute.xlu0 %5109
        %5113 = vset.pattern.permute.xlu0 0
        %5114 = vperm.xlu0 %5113, %v4644
        %v5115 = vpop.permute.xlu0 %5114
        %5118 = vset.pattern.permute.xlu0 0
        %5119 = vperm.xlu0 %5118, %v4645
        %v5120 = vpop.permute.xlu0 %5119
        %5123 = vset.pattern.permute.xlu0 0
        %5124 = vperm.xlu0 %5123, %v4646
        %v5125 = vpop.permute.xlu0 %5124
        %5128 = vset.pattern.permute.xlu0 0
        %5129 = vperm.xlu0 %5128, %v4647
        %v5130 = vpop.permute.xlu0 %5129
        %5133 = vset.pattern.permute.xlu0 0
        %5134 = vperm.xlu0 %5133, %v4648
        %v5135 = vpop.permute.xlu0 %5134
        %5138 = vset.pattern.permute.xlu0 0
        %5139 = vperm.xlu0 %5138, %v4649
        %v5140 = vpop.permute.xlu0 %5139
        %5143 = vset.pattern.permute.xlu0 0
        %5144 = vperm.xlu0 %5143, %v4650
        %v5145 = vpop.permute.xlu0 %5144
        %5148 = vset.pattern.permute.xlu0 0
        %5149 = vperm.xlu0 %5148, %v4651
        %v5150 = vpop.permute.xlu0 %5149
        %5153 = vset.pattern.permute.xlu0 0
        %5154 = vperm.xlu0 %5153, %v4652
        %v5155 = vpop.permute.xlu0 %5154
        %5158 = vset.pattern.permute.xlu0 0
        %5159 = vperm.xlu0 %5158, %v4653
        %v5160 = vpop.permute.xlu0 %5159
        %5163 = vset.pattern.permute.xlu0 0
        %5164 = vperm.xlu0 %5163, %v4654
        %v5165 = vpop.permute.xlu0 %5164
        %5168 = vset.pattern.permute.xlu0 0
        %5169 = vperm.xlu0 %5168, %v4655
        %v5170 = vpop.permute.xlu0 %5169
        %5173 = vset.pattern.permute.xlu0 0
        %5174 = vperm.xlu0 %5173, %v4656
        %v5175 = vpop.permute.xlu0 %5174
        %5178 = vset.pattern.permute.xlu0 0
        %5179 = vperm.xlu0 %5178, %v4657
        %v5180 = vpop.permute.xlu0 %5179
        %5183 = vset.pattern.permute.xlu0 0
        %5184 = vperm.xlu0 %5183, %v4658
        %v5185 = vpop.permute.xlu0 %5184
        %5188 = vset.pattern.permute.xlu0 0
        %5189 = vperm.xlu0 %5188, %v4659
        %v5190 = vpop.permute.xlu0 %5189
        %5193 = vset.pattern.permute.xlu0 0
        %5194 = vperm.xlu0 %5193, %v4660
        %v5195 = vpop.permute.xlu0 %5194
        %5198 = vset.pattern.permute.xlu0 0
        %5199 = vperm.xlu0 %5198, %v4661
        %v5200 = vpop.permute.xlu0 %5199
        %5203 = vset.pattern.permute.xlu0 0
        %5204 = vperm.xlu0 %5203, %v4662
        %v5205 = vpop.permute.xlu0 %5204
        %5208 = vset.pattern.permute.xlu0 0
        %5209 = vperm.xlu0 %5208, %v4663
        %v5210 = vpop.permute.xlu0 %5209
        %5213 = vset.pattern.permute.xlu0 0
        %5214 = vperm.xlu0 %5213, %v4664
        %v5215 = vpop.permute.xlu0 %5214
        %5218 = vset.pattern.permute.xlu0 0
        %5219 = vperm.xlu0 %5218, %v4665
        %v5220 = vpop.permute.xlu0 %5219
        %5223 = vset.pattern.permute.xlu0 0
        %5224 = vperm.xlu0 %5223, %v4666
        %v5225 = vpop.permute.xlu0 %5224
        %5228 = vset.pattern.permute.xlu0 0
        %5229 = vperm.xlu0 %5228, %v4667
        %v5230 = vpop.permute.xlu0 %5229
        %5233 = vset.pattern.permute.xlu0 0
        %5234 = vperm.xlu0 %5233, %v4668
        %v5235 = vpop.permute.xlu0 %5234
        %5238 = vset.pattern.permute.xlu0 0
        %5239 = vperm.xlu0 %5238, %v4669
        %v5240 = vpop.permute.xlu0 %5239
        %5243 = vset.pattern.permute.xlu0 0
        %5244 = vperm.xlu0 %5243, %v4670
        %v5245 = vpop.permute.xlu0 %5244
        %5248 = vset.pattern.permute.xlu0 0
        %5249 = vperm.xlu0 %5248, %v4671
        %v5250 = vpop.permute.xlu0 %5249
        %5253 = vset.pattern.permute.xlu0 0
        %5254 = vperm.xlu0 %5253, %v4672
        %v5255 = vpop.permute.xlu0 %5254
        %5258 = vset.pattern.permute.xlu0 0
        %5259 = vperm.xlu0 %5258, %v4673
        %v5260 = vpop.permute.xlu0 %5259
        %5263 = vset.pattern.permute.xlu0 0
        %5264 = vperm.xlu0 %5263, %v4674
        %v5265 = vpop.permute.xlu0 %5264
        %5268 = vset.pattern.permute.xlu0 0
        %5269 = vperm.xlu0 %5268, %v4675
        %v5270 = vpop.permute.xlu0 %5269
        %5273 = vset.pattern.permute.xlu0 0
        %5274 = vperm.xlu0 %5273, %v4676
        %v5275 = vpop.permute.xlu0 %5274
        %5278 = vset.pattern.permute.xlu0 0
        %5279 = vperm.xlu0 %5278, %v4677
        %v5280 = vpop.permute.xlu0 %5279
        %5283 = vset.pattern.permute.xlu0 0
        %5284 = vperm.xlu0 %5283, %v4678
        %v5285 = vpop.permute.xlu0 %5284
        %5288 = vset.pattern.permute.xlu0 0
        %5289 = vperm.xlu0 %5288, %v4679
        %v5290 = vpop.permute.xlu0 %5289
        %5293 = vset.pattern.permute.xlu0 0
        %5294 = vperm.xlu0 %5293, %v4680
        %v5295 = vpop.permute.xlu0 %5294
        %5298 = vset.pattern.permute.xlu0 0
        %5299 = vperm.xlu0 %5298, %v4681
        %v5300 = vpop.permute.xlu0 %5299
        %5303 = vset.pattern.permute.xlu0 0
        %5304 = vperm.xlu0 %5303, %v4682
        %v5305 = vpop.permute.xlu0 %5304
        %5308 = vset.pattern.permute.xlu0 0
        %5309 = vperm.xlu0 %5308, %v4683
        %v5310 = vpop.permute.xlu0 %5309
        %5313 = vset.pattern.permute.xlu0 0
        %5314 = vperm.xlu0 %5313, %v4684
        %v5315 = vpop.permute.xlu0 %5314
        %5318 = vset.pattern.permute.xlu0 0
        %5319 = vperm.xlu0 %5318, %v4685
        %v5320 = vpop.permute.xlu0 %5319
        %5323 = vset.pattern.permute.xlu0 0
        %5324 = vperm.xlu0 %5323, %v4686
        %v5325 = vpop.permute.xlu0 %5324
        %v5455 = vunpack.c.l.b16 %v4415
        %v5456 = vunpack.c.l.b16 %v4416
        %v5457 = vunpack.c.l.b16 %v4417
        %v5458 = vunpack.c.l.b16 %v4418
        %v5459 = vunpack.c.l.b16 %v4419
        %v5460 = vunpack.c.l.b16 %v4420
        %v5461 = vunpack.c.l.b16 %v4421
        %v5462 = vunpack.c.l.b16 %v4422
        %v5463 = vunpack.c.l.b16 %v4423
        %v5464 = vunpack.c.l.b16 %v4424
        %v5465 = vunpack.c.l.b16 %v4425
        %v5466 = vunpack.c.l.b16 %v4426
        %v5467 = vunpack.c.l.b16 %v4427
        %v5468 = vunpack.c.l.b16 %v4428
        %v5469 = vunpack.c.l.b16 %v4429
        %v5470 = vunpack.c.l.b16 %v4430
        %v5471 = vunpack.c.l.b16 %v4431
        %v5472 = vunpack.c.l.b16 %v4432
        %v5473 = vunpack.c.l.b16 %v4433
        %v5474 = vunpack.c.l.b16 %v4434
        %v5475 = vunpack.c.l.b16 %v4435
        %v5476 = vunpack.c.l.b16 %v4436
        %v5477 = vunpack.c.l.b16 %v4437
        %v5478 = vunpack.c.l.b16 %v4438
        %v5479 = vunpack.c.l.b16 %v4439
        %v5480 = vunpack.c.l.b16 %v4440
        %v5481 = vunpack.c.l.b16 %v4441
        %v5482 = vunpack.c.l.b16 %v4442
        %v5483 = vunpack.c.l.b16 %v4443
        %v5484 = vunpack.c.l.b16 %v4444
        %v5485 = vunpack.c.l.b16 %v4445
        %v5486 = vunpack.c.l.b16 %v4446
        %v5487 = vunpack.c.l.b16 %v4447
        %v5488 = vunpack.c.l.b16 %v4448
        %v5489 = vunpack.c.l.b16 %v4449
        %v5490 = vunpack.c.l.b16 %v4450
        %v5491 = vunpack.c.l.b16 %v4451
        %v5492 = vunpack.c.l.b16 %v4452
        %v5493 = vunpack.c.l.b16 %v4453
        %v5494 = vunpack.c.l.b16 %v4454
        %v5495 = vunpack.c.l.b16 %v4455
        %v5496 = vunpack.c.l.b16 %v4456
        %v5497 = vunpack.c.l.b16 %v4457
        %v5498 = vunpack.c.l.b16 %v4458
        %v5499 = vunpack.c.l.b16 %v4459
        %v5500 = vunpack.c.l.b16 %v4460
        %v5501 = vunpack.c.l.b16 %v4461
        %v5502 = vunpack.c.l.b16 %v4462
        %v5503 = vunpack.c.l.b16 %v4463
        %v5504 = vunpack.c.l.b16 %v4464
        %v5505 = vunpack.c.l.b16 %v4465
        %v5506 = vunpack.c.l.b16 %v4466
        %v5507 = vunpack.c.l.b16 %v4467
        %v5508 = vunpack.c.l.b16 %v4468
        %v5509 = vunpack.c.l.b16 %v4469
        %v5510 = vunpack.c.l.b16 %v4470
        %v5511 = vunpack.c.l.b16 %v4471
        %v5512 = vunpack.c.l.b16 %v4472
        %v5513 = vunpack.c.l.b16 %v4473
        %v5514 = vunpack.c.l.b16 %v4474
        %v5515 = vunpack.c.l.b16 %v4475
        %v5516 = vunpack.c.l.b16 %v4476
        %v5517 = vunpack.c.l.b16 %v4477
        %v5518 = vunpack.c.l.b16 %v4478
        %v5519 = vunpack.c.l.b16 %v4479
        %v5520 = vunpack.c.l.b16 %v4480
        %v5521 = vunpack.c.l.b16 %v4481
        %v5522 = vunpack.c.l.b16 %v4482
        %v5523 = vunpack.c.l.b16 %v4483
        %v5524 = vunpack.c.l.b16 %v4484
        %v5525 = vunpack.c.l.b16 %v4485
        %v5526 = vunpack.c.l.b16 %v4486
        %v5527 = vunpack.c.l.b16 %v4487
        %v5528 = vunpack.c.l.b16 %v4488
        %v5529 = vunpack.c.l.b16 %v4489
        %v5530 = vunpack.c.l.b16 %v4490
        %v5531 = vunpack.c.l.b16 %v4491
        %v5532 = vunpack.c.l.b16 %v4492
        %v5533 = vunpack.c.l.b16 %v4493
        %v5534 = vunpack.c.l.b16 %v4494
        %v5535 = vunpack.c.l.b16 %v4495
        %v5536 = vunpack.c.l.b16 %v4496
        %v5537 = vunpack.c.l.b16 %v4497
        %v5538 = vunpack.c.l.b16 %v4498
        %v5539 = vunpack.c.l.b16 %v4499
        %v5540 = vunpack.c.l.b16 %v4500
        %v5541 = vunpack.c.l.b16 %v4501
        %v5542 = vunpack.c.l.b16 %v4502
        %v5543 = vunpack.c.l.b16 %v4503
        %v5544 = vunpack.c.l.b16 %v4504
        %v5545 = vunpack.c.l.b16 %v4505
        %v5546 = vunpack.c.l.b16 %v4506
        %v5547 = vunpack.c.l.b16 %v4507
        %v5548 = vunpack.c.l.b16 %v4508
        %v5549 = vunpack.c.l.b16 %v4509
        %v5550 = vunpack.c.l.b16 %v4510
        %v5551 = vunpack.c.l.b16 %v4511
        %v5552 = vunpack.c.l.b16 %v4512
        %v5553 = vunpack.c.l.b16 %v4513
        %v5554 = vunpack.c.l.b16 %v4514
        %v5555 = vunpack.c.l.b16 %v4515
        %v5556 = vunpack.c.l.b16 %v4516
        %v5557 = vunpack.c.l.b16 %v4517
        %v5558 = vunpack.c.l.b16 %v4518
        %v5559 = vunpack.c.l.b16 %v4519
        %v5560 = vunpack.c.l.b16 %v4520
        %v5561 = vunpack.c.l.b16 %v4521
        %v5562 = vunpack.c.l.b16 %v4522
        %v5563 = vunpack.c.l.b16 %v4523
        %v5564 = vunpack.c.l.b16 %v4524
        %v5565 = vunpack.c.l.b16 %v4525
        %v5566 = vunpack.c.l.b16 %v4526
        %v5567 = vunpack.c.l.b16 %v4527
        %v5568 = vunpack.c.l.b16 %v4528
        %v5569 = vunpack.c.l.b16 %v4529
        %v5570 = vunpack.c.l.b16 %v4530
        %v5571 = vunpack.c.l.b16 %v4531
        %v5572 = vunpack.c.l.b16 %v4532
        %v5573 = vunpack.c.l.b16 %v4533
        %v5574 = vunpack.c.l.b16 %v4534
        %v5575 = vunpack.c.l.b16 %v4535
        %v5576 = vunpack.c.l.b16 %v4536
        %v5577 = vunpack.c.l.b16 %v4537
        %v5578 = vunpack.c.l.b16 %v4538
        %v5579 = vunpack.c.l.b16 %v4539
        %v5580 = vunpack.c.l.b16 %v4540
        %v5581 = vunpack.c.l.b16 %v4541
        %v5582 = vunpack.c.l.b16 %v4542
        %v5583 = vpack.c.b16 %v5456, %v5455
        %v5584 = vpack.c.b16 %v5458, %v5457
        %v5585 = vpack.c.b16 %v5460, %v5459
        %v5586 = vpack.c.b16 %v5462, %v5461
        %v5587 = vpack.c.b16 %v5464, %v5463
        %v5588 = vpack.c.b16 %v5466, %v5465
        %v5589 = vpack.c.b16 %v5468, %v5467
        %v5590 = vpack.c.b16 %v5470, %v5469
        %v5591 = vpack.c.b16 %v5472, %v5471
        %v5592 = vpack.c.b16 %v5474, %v5473
        %v5593 = vpack.c.b16 %v5476, %v5475
        %v5594 = vpack.c.b16 %v5478, %v5477
        %v5595 = vpack.c.b16 %v5480, %v5479
        %v5596 = vpack.c.b16 %v5482, %v5481
        %v5597 = vpack.c.b16 %v5484, %v5483
        %v5598 = vpack.c.b16 %v5486, %v5485
        %v5599 = vpack.c.b16 %v5488, %v5487
        %v5600 = vpack.c.b16 %v5490, %v5489
        %v5601 = vpack.c.b16 %v5492, %v5491
        %v5602 = vpack.c.b16 %v5494, %v5493
        %v5603 = vpack.c.b16 %v5496, %v5495
        %v5604 = vpack.c.b16 %v5498, %v5497
        %v5605 = vpack.c.b16 %v5500, %v5499
        %v5606 = vpack.c.b16 %v5502, %v5501
        %v5607 = vpack.c.b16 %v5504, %v5503
        %v5608 = vpack.c.b16 %v5506, %v5505
        %v5609 = vpack.c.b16 %v5508, %v5507
        %v5610 = vpack.c.b16 %v5510, %v5509
        %v5611 = vpack.c.b16 %v5512, %v5511
        %v5612 = vpack.c.b16 %v5514, %v5513
        %v5613 = vpack.c.b16 %v5516, %v5515
        %v5614 = vpack.c.b16 %v5518, %v5517
        %v5615 = vpack.c.b16 %v5520, %v5519
        %v5616 = vpack.c.b16 %v5522, %v5521
        %v5617 = vpack.c.b16 %v5524, %v5523
        %v5618 = vpack.c.b16 %v5526, %v5525
        %v5619 = vpack.c.b16 %v5528, %v5527
        %v5620 = vpack.c.b16 %v5530, %v5529
        %v5621 = vpack.c.b16 %v5532, %v5531
        %v5622 = vpack.c.b16 %v5534, %v5533
        %v5623 = vpack.c.b16 %v5536, %v5535
        %v5624 = vpack.c.b16 %v5538, %v5537
        %v5625 = vpack.c.b16 %v5540, %v5539
        %v5626 = vpack.c.b16 %v5542, %v5541
        %v5627 = vpack.c.b16 %v5544, %v5543
        %v5628 = vpack.c.b16 %v5546, %v5545
        %v5629 = vpack.c.b16 %v5548, %v5547
        %v5630 = vpack.c.b16 %v5550, %v5549
        %v5631 = vpack.c.b16 %v5552, %v5551
        %v5632 = vpack.c.b16 %v5554, %v5553
        %v5633 = vpack.c.b16 %v5556, %v5555
        %v5634 = vpack.c.b16 %v5558, %v5557
        %v5635 = vpack.c.b16 %v5560, %v5559
        %v5636 = vpack.c.b16 %v5562, %v5561
        %v5637 = vpack.c.b16 %v5564, %v5563
        %v5638 = vpack.c.b16 %v5566, %v5565
        %v5639 = vpack.c.b16 %v5568, %v5567
        %v5640 = vpack.c.b16 %v5570, %v5569
        %v5641 = vpack.c.b16 %v5572, %v5571
        %v5642 = vpack.c.b16 %v5574, %v5573
        %v5643 = vpack.c.b16 %v5576, %v5575
        %v5644 = vpack.c.b16 %v5578, %v5577
        %v5645 = vpack.c.b16 %v5580, %v5579
        %v5646 = vpack.c.b16 %v5582, %v5581
        %5711 = vmatprep.subr.bf16.mxu0 %v4558
        %5712 = vmatpush1.bf16.msra.mxu0 %v4557
        %5713 = vmatprep.subr.bf16.mxu0 %v4556
        %5714 = vmatpush1.bf16.msra.mxu0 %v4555
        %5715 = vmatprep.subr.bf16.mxu0 %v4554
        %5716 = vmatpush1.bf16.msra.mxu0 %v4553
        %5717 = vmatprep.subr.bf16.mxu0 %v4552
        %5718 = vmatpush1.bf16.msra.mxu0 %v4551
        %5719 = vmatprep.subr.bf16.mxu0 %v4550
        %5720 = vmatpush1.bf16.msra.mxu0 %v4549
        %5721 = vmatprep.subr.bf16.mxu0 %v4548
        %5722 = vmatpush1.bf16.msra.mxu0 %v4547
        %5723 = vmatprep.subr.bf16.mxu0 %v4546
        %5724 = vmatpush1.bf16.msra.mxu0 %v4545
        %5725 = vmatprep.subr.bf16.mxu0 %v4544
        %5726 = vmatpush1.bf16.msra.mxu0 %v4543
        %5727 = vmatprep.subr.bf16.mxu0 0
        %5728 = vmatpush2.bf16.msra.mxu0 0
        %5729 = vmatprep.subr.bf16.mxu0 0
        %5730 = vmatpush2.bf16.msra.mxu0 0
        %5731 = vmatprep.subr.bf16.mxu0 0
        %5732 = vmatpush2.bf16.msra.mxu0 0
        %5733 = vmatprep.subr.bf16.mxu0 0
        %5734 = vmatpush2.bf16.msra.mxu0 0
        %5735 = vmatprep.subr.bf16.mxu0 0
        %5736 = vmatpush2.bf16.msra.mxu0 0
        %5737 = vmatprep.subr.bf16.mxu0 0
        %5738 = vmatpush2.bf16.msra.mxu0 0
        %5739 = vmatprep.subr.bf16.mxu0 0
        %5740 = vmatpush2.bf16.msra.mxu0 0
        %5741 = vmatprep.subr.bf16.mxu0 0
        %5742 = vmatpush2.bf16.msra.mxu0 0
        %5743 = vmatprep.mubr.bf16.mxu0 0
        %5744 = vmatmul.mubr.bf16.gmra.mxu0 %v5583
        %v5745 = vpop.f32.mrf.mxu0
        %v5746 = vadd.f32 %v4690, %v5745
        %v5747 = vpop.f32.mrf.mxu0
        %v5748 = vadd.f32 %v4690, %v5747
        %v5749 = vpop.f32.mrf.mxu0
        %v5750 = vadd.f32 %v4695, %v5749
        %v5751 = vpop.f32.mrf.mxu0
        %v5752 = vadd.f32 %v4695, %v5751
        %5753 = vmatprep.mubr.bf16.mxu0 0
        %5754 = vmatmul.mubr.bf16.gmra.mxu0 %v5584
        %v5755 = vpop.f32.mrf.mxu0
        %v5756 = vadd.f32 %v4700, %v5755
        %v5757 = vpop.f32.mrf.mxu0
        %v5758 = vadd.f32 %v4700, %v5757
        %v5759 = vpop.f32.mrf.mxu0
        %v5760 = vadd.f32 %v4705, %v5759
        %v5761 = vpop.f32.mrf.mxu0
        %v5762 = vadd.f32 %v4705, %v5761
        %5763 = vmatprep.mubr.bf16.mxu0 0
        %5764 = vmatmul.mubr.bf16.gmra.mxu0 %v5585
        %v5765 = vpop.f32.mrf.mxu0
        %v5766 = vadd.f32 %v4710, %v5765
        %v5767 = vpop.f32.mrf.mxu0
        %v5768 = vadd.f32 %v4710, %v5767
        %v5769 = vpop.f32.mrf.mxu0
        %v5770 = vadd.f32 %v4715, %v5769
        %v5771 = vpop.f32.mrf.mxu0
        %v5772 = vadd.f32 %v4715, %v5771
        %5773 = vmatprep.mubr.bf16.mxu0 0
        %5774 = vmatmul.mubr.bf16.gmra.mxu0 %v5586
        %v5775 = vpop.f32.mrf.mxu0
        %v5776 = vadd.f32 %v4720, %v5775
        %v5777 = vpop.f32.mrf.mxu0
        %v5778 = vadd.f32 %v4720, %v5777
        %v5779 = vpop.f32.mrf.mxu0
        %v5780 = vadd.f32 %v4725, %v5779
        %v5781 = vpop.f32.mrf.mxu0
        %v5782 = vadd.f32 %v4725, %v5781
        %5783 = vmatprep.mubr.bf16.mxu0 0
        %5784 = vmatmul.mubr.bf16.gmra.mxu0 %v5587
        %v5785 = vpop.f32.mrf.mxu0
        %v5786 = vadd.f32 %v4730, %v5785
        %v5787 = vpop.f32.mrf.mxu0
        %v5788 = vadd.f32 %v4730, %v5787
        %v5789 = vpop.f32.mrf.mxu0
        %v5790 = vadd.f32 %v4735, %v5789
        %v5791 = vpop.f32.mrf.mxu0
        %v5792 = vadd.f32 %v4735, %v5791
        %5793 = vmatprep.mubr.bf16.mxu0 0
        %5794 = vmatmul.mubr.bf16.gmra.mxu0 %v5588
        %v5795 = vpop.f32.mrf.mxu0
        %v5796 = vadd.f32 %v4740, %v5795
        %v5797 = vpop.f32.mrf.mxu0
        %v5798 = vadd.f32 %v4740, %v5797
        %v5799 = vpop.f32.mrf.mxu0
        %v5800 = vadd.f32 %v4745, %v5799
        %v5801 = vpop.f32.mrf.mxu0
        %v5802 = vadd.f32 %v4745, %v5801
        %5803 = vmatprep.mubr.bf16.mxu0 0
        %5804 = vmatmul.mubr.bf16.gmra.mxu0 %v5589
        %v5805 = vpop.f32.mrf.mxu0
        %v5806 = vadd.f32 %v4750, %v5805
        %v5807 = vpop.f32.mrf.mxu0
        %v5808 = vadd.f32 %v4750, %v5807
        %v5809 = vpop.f32.mrf.mxu0
        %v5810 = vadd.f32 %v4755, %v5809
        %v5811 = vpop.f32.mrf.mxu0
        %v5812 = vadd.f32 %v4755, %v5811
        %5813 = vmatprep.mubr.bf16.mxu0 0
        %5814 = vmatmul.mubr.bf16.gmra.mxu0 %v5590
        %v5815 = vpop.f32.mrf.mxu0
        %v5816 = vadd.f32 %v4760, %v5815
        %v5817 = vpop.f32.mrf.mxu0
        %v5818 = vadd.f32 %v4760, %v5817
        %v5819 = vpop.f32.mrf.mxu0
        %v5820 = vadd.f32 %v4765, %v5819
        %v5821 = vpop.f32.mrf.mxu0
        %v5822 = vadd.f32 %v4765, %v5821
        %5823 = vmatprep.mubr.bf16.mxu0 0
        %5824 = vmatmul.mubr.bf16.gmra.mxu0 %v5591
        %v5825 = vpop.f32.mrf.mxu0
        %v5826 = vadd.f32 %v4770, %v5825
        %v5827 = vpop.f32.mrf.mxu0
        %v5828 = vadd.f32 %v4770, %v5827
        %v5829 = vpop.f32.mrf.mxu0
        %v5830 = vadd.f32 %v4775, %v5829
        %v5831 = vpop.f32.mrf.mxu0
        %v5832 = vadd.f32 %v4775, %v5831
        %5833 = vmatprep.mubr.bf16.mxu0 0
        %5834 = vmatmul.mubr.bf16.gmra.mxu0 %v5592
        %v5835 = vpop.f32.mrf.mxu0
        %v5836 = vadd.f32 %v4780, %v5835
        %v5837 = vpop.f32.mrf.mxu0
        %v5838 = vadd.f32 %v4780, %v5837
        %v5839 = vpop.f32.mrf.mxu0
        %v5840 = vadd.f32 %v4785, %v5839
        %v5841 = vpop.f32.mrf.mxu0
        %v5842 = vadd.f32 %v4785, %v5841
        %5843 = vmatprep.mubr.bf16.mxu0 0
        %5844 = vmatmul.mubr.bf16.gmra.mxu0 %v5593
        %v5845 = vpop.f32.mrf.mxu0
        %v5846 = vadd.f32 %v4790, %v5845
        %v5847 = vpop.f32.mrf.mxu0
        %v5848 = vadd.f32 %v4790, %v5847
        %v5849 = vpop.f32.mrf.mxu0
        %v5850 = vadd.f32 %v4795, %v5849
        %v5851 = vpop.f32.mrf.mxu0
        %v5852 = vadd.f32 %v4795, %v5851
        %5853 = vmatprep.mubr.bf16.mxu0 0
        %5854 = vmatmul.mubr.bf16.gmra.mxu0 %v5594
        %v5855 = vpop.f32.mrf.mxu0
        %v5856 = vadd.f32 %v4800, %v5855
        %v5857 = vpop.f32.mrf.mxu0
        %v5858 = vadd.f32 %v4800, %v5857
        %v5859 = vpop.f32.mrf.mxu0
        %v5860 = vadd.f32 %v4805, %v5859
        %v5861 = vpop.f32.mrf.mxu0
        %v5862 = vadd.f32 %v4805, %v5861
        %5863 = vmatprep.mubr.bf16.mxu0 0
        %5864 = vmatmul.mubr.bf16.gmra.mxu0 %v5595
        %v5865 = vpop.f32.mrf.mxu0
        %v5866 = vadd.f32 %v4810, %v5865
        %v5867 = vpop.f32.mrf.mxu0
        %v5868 = vadd.f32 %v4810, %v5867
        %v5869 = vpop.f32.mrf.mxu0
        %v5870 = vadd.f32 %v4815, %v5869
        %v5871 = vpop.f32.mrf.mxu0
        %v5872 = vadd.f32 %v4815, %v5871
        %5873 = vmatprep.mubr.bf16.mxu0 0
        %5874 = vmatmul.mubr.bf16.gmra.mxu0 %v5596
        %v5875 = vpop.f32.mrf.mxu0
        %v5876 = vadd.f32 %v4820, %v5875
        %v5877 = vpop.f32.mrf.mxu0
        %v5878 = vadd.f32 %v4820, %v5877
        %v5879 = vpop.f32.mrf.mxu0
        %v5880 = vadd.f32 %v4825, %v5879
        %v5881 = vpop.f32.mrf.mxu0
        %v5882 = vadd.f32 %v4825, %v5881
        %5883 = vmatprep.mubr.bf16.mxu0 0
        %5884 = vmatmul.mubr.bf16.gmra.mxu0 %v5597
        %v5885 = vpop.f32.mrf.mxu0
        %v5886 = vadd.f32 %v4830, %v5885
        %v5887 = vpop.f32.mrf.mxu0
        %v5888 = vadd.f32 %v4830, %v5887
        %v5889 = vpop.f32.mrf.mxu0
        %v5890 = vadd.f32 %v4835, %v5889
        %v5891 = vpop.f32.mrf.mxu0
        %v5892 = vadd.f32 %v4835, %v5891
        %5893 = vmatprep.mubr.bf16.mxu0 0
        %5894 = vmatmul.mubr.bf16.gmra.mxu0 %v5598
        %v5895 = vpop.f32.mrf.mxu0
        %v5896 = vadd.f32 %v4840, %v5895
        %v5897 = vpop.f32.mrf.mxu0
        %v5898 = vadd.f32 %v4840, %v5897
        %v5899 = vpop.f32.mrf.mxu0
        %v5900 = vadd.f32 %v4845, %v5899
        %v5901 = vpop.f32.mrf.mxu0
        %v5902 = vadd.f32 %v4845, %v5901
        %5903 = vmatprep.mubr.bf16.mxu0 0
        %5904 = vmatmul.mubr.bf16.gmra.mxu0 %v5599
        %v5905 = vpop.f32.mrf.mxu0
        %v5906 = vadd.f32 %v4850, %v5905
        %v5907 = vpop.f32.mrf.mxu0
        %v5908 = vadd.f32 %v4850, %v5907
        %v5909 = vpop.f32.mrf.mxu0
        %v5910 = vadd.f32 %v4855, %v5909
        %v5911 = vpop.f32.mrf.mxu0
        %v5912 = vadd.f32 %v4855, %v5911
        %5913 = vmatprep.mubr.bf16.mxu0 0
        %5914 = vmatmul.mubr.bf16.gmra.mxu0 %v5600
        %v5915 = vpop.f32.mrf.mxu0
        %v5916 = vadd.f32 %v4860, %v5915
        %v5917 = vpop.f32.mrf.mxu0
        %v5918 = vadd.f32 %v4860, %v5917
        %v5919 = vpop.f32.mrf.mxu0
        %v5920 = vadd.f32 %v4865, %v5919
        %v5921 = vpop.f32.mrf.mxu0
        %v5922 = vadd.f32 %v4865, %v5921
        %5923 = vmatprep.mubr.bf16.mxu0 0
        %5924 = vmatmul.mubr.bf16.gmra.mxu0 %v5601
        %v5925 = vpop.f32.mrf.mxu0
        %v5926 = vadd.f32 %v4870, %v5925
        %v5927 = vpop.f32.mrf.mxu0
        %v5928 = vadd.f32 %v4870, %v5927
        %v5929 = vpop.f32.mrf.mxu0
        %v5930 = vadd.f32 %v4875, %v5929
        %v5931 = vpop.f32.mrf.mxu0
        %v5932 = vadd.f32 %v4875, %v5931
        %5933 = vmatprep.mubr.bf16.mxu0 0
        %5934 = vmatmul.mubr.bf16.gmra.mxu0 %v5602
        %v5935 = vpop.f32.mrf.mxu0
        %v5936 = vadd.f32 %v4880, %v5935
        %v5937 = vpop.f32.mrf.mxu0
        %v5938 = vadd.f32 %v4880, %v5937
        %v5939 = vpop.f32.mrf.mxu0
        %v5940 = vadd.f32 %v4885, %v5939
        %v5941 = vpop.f32.mrf.mxu0
        %v5942 = vadd.f32 %v4885, %v5941
        %5943 = vmatprep.mubr.bf16.mxu0 0
        %5944 = vmatmul.mubr.bf16.gmra.mxu0 %v5603
        %v5945 = vpop.f32.mrf.mxu0
        %v5946 = vadd.f32 %v4890, %v5945
        %v5947 = vpop.f32.mrf.mxu0
        %v5948 = vadd.f32 %v4890, %v5947
        %v5949 = vpop.f32.mrf.mxu0
        %v5950 = vadd.f32 %v4895, %v5949
        %v5951 = vpop.f32.mrf.mxu0
        %v5952 = vadd.f32 %v4895, %v5951
        %5953 = vmatprep.mubr.bf16.mxu0 0
        %5954 = vmatmul.mubr.bf16.gmra.mxu0 %v5604
        %v5955 = vpop.f32.mrf.mxu0
        %v5956 = vadd.f32 %v4900, %v5955
        %v5957 = vpop.f32.mrf.mxu0
        %v5958 = vadd.f32 %v4900, %v5957
        %v5959 = vpop.f32.mrf.mxu0
        %v5960 = vadd.f32 %v4905, %v5959
        %v5961 = vpop.f32.mrf.mxu0
        %v5962 = vadd.f32 %v4905, %v5961
        %5963 = vmatprep.mubr.bf16.mxu0 0
        %5964 = vmatmul.mubr.bf16.gmra.mxu0 %v5605
        %v5965 = vpop.f32.mrf.mxu0
        %v5966 = vadd.f32 %v4910, %v5965
        %v5967 = vpop.f32.mrf.mxu0
        %v5968 = vadd.f32 %v4910, %v5967
        %v5969 = vpop.f32.mrf.mxu0
        %v5970 = vadd.f32 %v4915, %v5969
        %v5971 = vpop.f32.mrf.mxu0
        %v5972 = vadd.f32 %v4915, %v5971
        %5973 = vmatprep.mubr.bf16.mxu0 0
        %5974 = vmatmul.mubr.bf16.gmra.mxu0 %v5606
        %v5975 = vpop.f32.mrf.mxu0
        %v5976 = vadd.f32 %v4920, %v5975
        %v5977 = vpop.f32.mrf.mxu0
        %v5978 = vadd.f32 %v4920, %v5977
        %v5979 = vpop.f32.mrf.mxu0
        %v5980 = vadd.f32 %v4925, %v5979
        %v5981 = vpop.f32.mrf.mxu0
        %v5982 = vadd.f32 %v4925, %v5981
        %5983 = vmatprep.mubr.bf16.mxu0 0
        %5984 = vmatmul.mubr.bf16.gmra.mxu0 %v5607
        %v5985 = vpop.f32.mrf.mxu0
        %v5986 = vadd.f32 %v4930, %v5985
        %v5987 = vpop.f32.mrf.mxu0
        %v5988 = vadd.f32 %v4930, %v5987
        %v5989 = vpop.f32.mrf.mxu0
        %v5990 = vadd.f32 %v4935, %v5989
        %v5991 = vpop.f32.mrf.mxu0
        %v5992 = vadd.f32 %v4935, %v5991
        %5993 = vmatprep.mubr.bf16.mxu0 0
        %5994 = vmatmul.mubr.bf16.gmra.mxu0 %v5608
        %v5995 = vpop.f32.mrf.mxu0
        %v5996 = vadd.f32 %v4940, %v5995
        %v5997 = vpop.f32.mrf.mxu0
        %v5998 = vadd.f32 %v4940, %v5997
        %v5999 = vpop.f32.mrf.mxu0
        %v6000 = vadd.f32 %v4945, %v5999
        %v6001 = vpop.f32.mrf.mxu0
        %v6002 = vadd.f32 %v4945, %v6001
        %6003 = vmatprep.mubr.bf16.mxu0 0
        %6004 = vmatmul.mubr.bf16.gmra.mxu0 %v5609
        %v6005 = vpop.f32.mrf.mxu0
        %v6006 = vadd.f32 %v4950, %v6005
        %v6007 = vpop.f32.mrf.mxu0
        %v6008 = vadd.f32 %v4950, %v6007
        %v6009 = vpop.f32.mrf.mxu0
        %v6010 = vadd.f32 %v4955, %v6009
        %v6011 = vpop.f32.mrf.mxu0
        %v6012 = vadd.f32 %v4955, %v6011
        %6013 = vmatprep.mubr.bf16.mxu0 0
        %6014 = vmatmul.mubr.bf16.gmra.mxu0 %v5610
        %v6015 = vpop.f32.mrf.mxu0
        %v6016 = vadd.f32 %v4960, %v6015
        %v6017 = vpop.f32.mrf.mxu0
        %v6018 = vadd.f32 %v4960, %v6017
        %v6019 = vpop.f32.mrf.mxu0
        %v6020 = vadd.f32 %v4965, %v6019
        %v6021 = vpop.f32.mrf.mxu0
        %v6022 = vadd.f32 %v4965, %v6021
        %6023 = vmatprep.mubr.bf16.mxu0 0
        %6024 = vmatmul.mubr.bf16.gmra.mxu0 %v5611
        %v6025 = vpop.f32.mrf.mxu0
        %v6026 = vadd.f32 %v4970, %v6025
        %v6027 = vpop.f32.mrf.mxu0
        %v6028 = vadd.f32 %v4970, %v6027
        %v6029 = vpop.f32.mrf.mxu0
        %v6030 = vadd.f32 %v4975, %v6029
        %v6031 = vpop.f32.mrf.mxu0
        %v6032 = vadd.f32 %v4975, %v6031
        %6033 = vmatprep.mubr.bf16.mxu0 0
        %6034 = vmatmul.mubr.bf16.gmra.mxu0 %v5612
        %v6035 = vpop.f32.mrf.mxu0
        %v6036 = vadd.f32 %v4980, %v6035
        %v6037 = vpop.f32.mrf.mxu0
        %v6038 = vadd.f32 %v4980, %v6037
        %v6039 = vpop.f32.mrf.mxu0
        %v6040 = vadd.f32 %v4985, %v6039
        %v6041 = vpop.f32.mrf.mxu0
        %v6042 = vadd.f32 %v4985, %v6041
        %6043 = vmatprep.mubr.bf16.mxu0 0
        %6044 = vmatmul.mubr.bf16.gmra.mxu0 %v5613
        %v6045 = vpop.f32.mrf.mxu0
        %v6046 = vadd.f32 %v4990, %v6045
        %v6047 = vpop.f32.mrf.mxu0
        %v6048 = vadd.f32 %v4990, %v6047
        %v6049 = vpop.f32.mrf.mxu0
        %v6050 = vadd.f32 %v4995, %v6049
        %v6051 = vpop.f32.mrf.mxu0
        %v6052 = vadd.f32 %v4995, %v6051
        %6053 = vmatprep.mubr.bf16.mxu0 0
        %6054 = vmatmul.mubr.bf16.gmra.mxu0 %v5614
        %v6055 = vpop.f32.mrf.mxu0
        %v6056 = vadd.f32 %v5000, %v6055
        %v6057 = vpop.f32.mrf.mxu0
        %v6058 = vadd.f32 %v5000, %v6057
        %v6059 = vpop.f32.mrf.mxu0
        %v6060 = vadd.f32 %v5005, %v6059
        %v6061 = vpop.f32.mrf.mxu0
        %v6062 = vadd.f32 %v5005, %v6061
        %6063 = vmatprep.mubr.bf16.mxu0 0
        %6064 = vmatmul.mubr.bf16.gmra.mxu0 %v5615
        %v6065 = vpop.f32.mrf.mxu0
        %v6066 = vadd.f32 %v5010, %v6065
        %v6067 = vpop.f32.mrf.mxu0
        %v6068 = vadd.f32 %v5010, %v6067
        %v6069 = vpop.f32.mrf.mxu0
        %v6070 = vadd.f32 %v5015, %v6069
        %v6071 = vpop.f32.mrf.mxu0
        %v6072 = vadd.f32 %v5015, %v6071
        %6073 = vmatprep.mubr.bf16.mxu0 0
        %6074 = vmatmul.mubr.bf16.gmra.mxu0 %v5616
        %v6075 = vpop.f32.mrf.mxu0
        %v6076 = vadd.f32 %v5020, %v6075
        %v6077 = vpop.f32.mrf.mxu0
        %v6078 = vadd.f32 %v5020, %v6077
        %v6079 = vpop.f32.mrf.mxu0
        %v6080 = vadd.f32 %v5025, %v6079
        %v6081 = vpop.f32.mrf.mxu0
        %v6082 = vadd.f32 %v5025, %v6081
        %6083 = vmatprep.mubr.bf16.mxu0 0
        %6084 = vmatmul.mubr.bf16.gmra.mxu0 %v5617
        %v6085 = vpop.f32.mrf.mxu0
        %v6086 = vadd.f32 %v5030, %v6085
        %v6087 = vpop.f32.mrf.mxu0
        %v6088 = vadd.f32 %v5030, %v6087
        %v6089 = vpop.f32.mrf.mxu0
        %v6090 = vadd.f32 %v5035, %v6089
        %v6091 = vpop.f32.mrf.mxu0
        %v6092 = vadd.f32 %v5035, %v6091
        %6093 = vmatprep.mubr.bf16.mxu0 0
        %6094 = vmatmul.mubr.bf16.gmra.mxu0 %v5618
        %v6095 = vpop.f32.mrf.mxu0
        %v6096 = vadd.f32 %v5040, %v6095
        %v6097 = vpop.f32.mrf.mxu0
        %v6098 = vadd.f32 %v5040, %v6097
        %v6099 = vpop.f32.mrf.mxu0
        %v6100 = vadd.f32 %v5045, %v6099
        %v6101 = vpop.f32.mrf.mxu0
        %v6102 = vadd.f32 %v5045, %v6101
        %6103 = vmatprep.mubr.bf16.mxu0 0
        %6104 = vmatmul.mubr.bf16.gmra.mxu0 %v5619
        %v6105 = vpop.f32.mrf.mxu0
        %v6106 = vadd.f32 %v5050, %v6105
        %v6107 = vpop.f32.mrf.mxu0
        %v6108 = vadd.f32 %v5050, %v6107
        %v6109 = vpop.f32.mrf.mxu0
        %v6110 = vadd.f32 %v5055, %v6109
        %v6111 = vpop.f32.mrf.mxu0
        %v6112 = vadd.f32 %v5055, %v6111
        %6113 = vmatprep.mubr.bf16.mxu0 0
        %6114 = vmatmul.mubr.bf16.gmra.mxu0 %v5620
        %v6115 = vpop.f32.mrf.mxu0
        %v6116 = vadd.f32 %v5060, %v6115
        %v6117 = vpop.f32.mrf.mxu0
        %v6118 = vadd.f32 %v5060, %v6117
        %v6119 = vpop.f32.mrf.mxu0
        %v6120 = vadd.f32 %v5065, %v6119
        %v6121 = vpop.f32.mrf.mxu0
        %v6122 = vadd.f32 %v5065, %v6121
        %6123 = vmatprep.mubr.bf16.mxu0 0
        %6124 = vmatmul.mubr.bf16.gmra.mxu0 %v5621
        %v6125 = vpop.f32.mrf.mxu0
        %v6126 = vadd.f32 %v5070, %v6125
        %v6127 = vpop.f32.mrf.mxu0
        %v6128 = vadd.f32 %v5070, %v6127
        %v6129 = vpop.f32.mrf.mxu0
        %v6130 = vadd.f32 %v5075, %v6129
        %v6131 = vpop.f32.mrf.mxu0
        %v6132 = vadd.f32 %v5075, %v6131
        %6133 = vmatprep.mubr.bf16.mxu0 0
        %6134 = vmatmul.mubr.bf16.gmra.mxu0 %v5622
        %v6135 = vpop.f32.mrf.mxu0
        %v6136 = vadd.f32 %v5080, %v6135
        %v6137 = vpop.f32.mrf.mxu0
        %v6138 = vadd.f32 %v5080, %v6137
        %v6139 = vpop.f32.mrf.mxu0
        %v6140 = vadd.f32 %v5085, %v6139
        %v6141 = vpop.f32.mrf.mxu0
        %v6142 = vadd.f32 %v5085, %v6141
        %6143 = vmatprep.mubr.bf16.mxu0 0
        %6144 = vmatmul.mubr.bf16.gmra.mxu0 %v5623
        %v6145 = vpop.f32.mrf.mxu0
        %v6146 = vadd.f32 %v5090, %v6145
        %v6147 = vpop.f32.mrf.mxu0
        %v6148 = vadd.f32 %v5090, %v6147
        %v6149 = vpop.f32.mrf.mxu0
        %v6150 = vadd.f32 %v5095, %v6149
        %v6151 = vpop.f32.mrf.mxu0
        %v6152 = vadd.f32 %v5095, %v6151
        %6153 = vmatprep.mubr.bf16.mxu0 0
        %6154 = vmatmul.mubr.bf16.gmra.mxu0 %v5624
        %v6155 = vpop.f32.mrf.mxu0
        %v6156 = vadd.f32 %v5100, %v6155
        %v6157 = vpop.f32.mrf.mxu0
        %v6158 = vadd.f32 %v5100, %v6157
        %v6159 = vpop.f32.mrf.mxu0
        %v6160 = vadd.f32 %v5105, %v6159
        %v6161 = vpop.f32.mrf.mxu0
        %v6162 = vadd.f32 %v5105, %v6161
        %6163 = vmatprep.mubr.bf16.mxu0 0
        %6164 = vmatmul.mubr.bf16.gmra.mxu0 %v5625
        %v6165 = vpop.f32.mrf.mxu0
        %v6166 = vadd.f32 %v5110, %v6165
        %v6167 = vpop.f32.mrf.mxu0
        %v6168 = vadd.f32 %v5110, %v6167
        %v6169 = vpop.f32.mrf.mxu0
        %v6170 = vadd.f32 %v5115, %v6169
        %v6171 = vpop.f32.mrf.mxu0
        %v6172 = vadd.f32 %v5115, %v6171
        %6173 = vmatprep.mubr.bf16.mxu0 0
        %6174 = vmatmul.mubr.bf16.gmra.mxu0 %v5626
        %v6175 = vpop.f32.mrf.mxu0
        %v6176 = vadd.f32 %v5120, %v6175
        %v6177 = vpop.f32.mrf.mxu0
        %v6178 = vadd.f32 %v5120, %v6177
        %v6179 = vpop.f32.mrf.mxu0
        %v6180 = vadd.f32 %v5125, %v6179
        %v6181 = vpop.f32.mrf.mxu0
        %v6182 = vadd.f32 %v5125, %v6181
        %6183 = vmatprep.mubr.bf16.mxu0 0
        %6184 = vmatmul.mubr.bf16.gmra.mxu0 %v5627
        %v6185 = vpop.f32.mrf.mxu0
        %v6186 = vadd.f32 %v5130, %v6185
        %v6187 = vpop.f32.mrf.mxu0
        %v6188 = vadd.f32 %v5130, %v6187
        %v6189 = vpop.f32.mrf.mxu0
        %v6190 = vadd.f32 %v5135, %v6189
        %v6191 = vpop.f32.mrf.mxu0
        %v6192 = vadd.f32 %v5135, %v6191
        %6193 = vmatprep.mubr.bf16.mxu0 0
        %6194 = vmatmul.mubr.bf16.gmra.mxu0 %v5628
        %v6195 = vpop.f32.mrf.mxu0
        %v6196 = vadd.f32 %v5140, %v6195
        %v6197 = vpop.f32.mrf.mxu0
        %v6198 = vadd.f32 %v5140, %v6197
        %v6199 = vpop.f32.mrf.mxu0
        %v6200 = vadd.f32 %v5145, %v6199
        %v6201 = vpop.f32.mrf.mxu0
        %v6202 = vadd.f32 %v5145, %v6201
        %6203 = vmatprep.mubr.bf16.mxu0 0
        %6204 = vmatmul.mubr.bf16.gmra.mxu0 %v5629
        %v6205 = vpop.f32.mrf.mxu0
        %v6206 = vadd.f32 %v5150, %v6205
        %v6207 = vpop.f32.mrf.mxu0
        %v6208 = vadd.f32 %v5150, %v6207
        %v6209 = vpop.f32.mrf.mxu0
        %v6210 = vadd.f32 %v5155, %v6209
        %v6211 = vpop.f32.mrf.mxu0
        %v6212 = vadd.f32 %v5155, %v6211
        %6213 = vmatprep.mubr.bf16.mxu0 0
        %6214 = vmatmul.mubr.bf16.gmra.mxu0 %v5630
        %v6215 = vpop.f32.mrf.mxu0
        %v6216 = vadd.f32 %v5160, %v6215
        %v6217 = vpop.f32.mrf.mxu0
        %v6218 = vadd.f32 %v5160, %v6217
        %v6219 = vpop.f32.mrf.mxu0
        %v6220 = vadd.f32 %v5165, %v6219
        %v6221 = vpop.f32.mrf.mxu0
        %v6222 = vadd.f32 %v5165, %v6221
        %6223 = vmatprep.mubr.bf16.mxu0 0
        %6224 = vmatmul.mubr.bf16.gmra.mxu0 %v5631
        %v6225 = vpop.f32.mrf.mxu0
        %v6226 = vadd.f32 %v5170, %v6225
        %v6227 = vpop.f32.mrf.mxu0
        %v6228 = vadd.f32 %v5170, %v6227
        %v6229 = vpop.f32.mrf.mxu0
        %v6230 = vadd.f32 %v5175, %v6229
        %v6231 = vpop.f32.mrf.mxu0
        %v6232 = vadd.f32 %v5175, %v6231
        %6233 = vmatprep.mubr.bf16.mxu0 0
        %6234 = vmatmul.mubr.bf16.gmra.mxu0 %v5632
        %v6235 = vpop.f32.mrf.mxu0
        %v6236 = vadd.f32 %v5180, %v6235
        %v6237 = vpop.f32.mrf.mxu0
        %v6238 = vadd.f32 %v5180, %v6237
        %v6239 = vpop.f32.mrf.mxu0
        %v6240 = vadd.f32 %v5185, %v6239
        %v6241 = vpop.f32.mrf.mxu0
        %v6242 = vadd.f32 %v5185, %v6241
        %6243 = vmatprep.mubr.bf16.mxu0 0
        %6244 = vmatmul.mubr.bf16.gmra.mxu0 %v5633
        %v6245 = vpop.f32.mrf.mxu0
        %v6246 = vadd.f32 %v5190, %v6245
        %v6247 = vpop.f32.mrf.mxu0
        %v6248 = vadd.f32 %v5190, %v6247
        %v6249 = vpop.f32.mrf.mxu0
        %v6250 = vadd.f32 %v5195, %v6249
        %v6251 = vpop.f32.mrf.mxu0
        %v6252 = vadd.f32 %v5195, %v6251
        %6253 = vmatprep.mubr.bf16.mxu0 0
        %6254 = vmatmul.mubr.bf16.gmra.mxu0 %v5634
        %v6255 = vpop.f32.mrf.mxu0
        %v6256 = vadd.f32 %v5200, %v6255
        %v6257 = vpop.f32.mrf.mxu0
        %v6258 = vadd.f32 %v5200, %v6257
        %v6259 = vpop.f32.mrf.mxu0
        %v6260 = vadd.f32 %v5205, %v6259
        %v6261 = vpop.f32.mrf.mxu0
        %v6262 = vadd.f32 %v5205, %v6261
        %6263 = vmatprep.mubr.bf16.mxu0 0
        %6264 = vmatmul.mubr.bf16.gmra.mxu0 %v5635
        %v6265 = vpop.f32.mrf.mxu0
        %v6266 = vadd.f32 %v5210, %v6265
        %v6267 = vpop.f32.mrf.mxu0
        %v6268 = vadd.f32 %v5210, %v6267
        %v6269 = vpop.f32.mrf.mxu0
        %v6270 = vadd.f32 %v5215, %v6269
        %v6271 = vpop.f32.mrf.mxu0
        %v6272 = vadd.f32 %v5215, %v6271
        %6273 = vmatprep.mubr.bf16.mxu0 0
        %6274 = vmatmul.mubr.bf16.gmra.mxu0 %v5636
        %v6275 = vpop.f32.mrf.mxu0
        %v6276 = vadd.f32 %v5220, %v6275
        %v6277 = vpop.f32.mrf.mxu0
        %v6278 = vadd.f32 %v5220, %v6277
        %v6279 = vpop.f32.mrf.mxu0
        %v6280 = vadd.f32 %v5225, %v6279
        %v6281 = vpop.f32.mrf.mxu0
        %v6282 = vadd.f32 %v5225, %v6281
        %6283 = vmatprep.mubr.bf16.mxu0 0
        %6284 = vmatmul.mubr.bf16.gmra.mxu0 %v5637
        %v6285 = vpop.f32.mrf.mxu0
        %v6286 = vadd.f32 %v5230, %v6285
        %v6287 = vpop.f32.mrf.mxu0
        %v6288 = vadd.f32 %v5230, %v6287
        %v6289 = vpop.f32.mrf.mxu0
        %v6290 = vadd.f32 %v5235, %v6289
        %v6291 = vpop.f32.mrf.mxu0
        %v6292 = vadd.f32 %v5235, %v6291
        %6293 = vmatprep.mubr.bf16.mxu0 0
        %6294 = vmatmul.mubr.bf16.gmra.mxu0 %v5638
        %v6295 = vpop.f32.mrf.mxu0
        %v6296 = vadd.f32 %v5240, %v6295
        %v6297 = vpop.f32.mrf.mxu0
        %v6298 = vadd.f32 %v5240, %v6297
        %v6299 = vpop.f32.mrf.mxu0
        %v6300 = vadd.f32 %v5245, %v6299
        %v6301 = vpop.f32.mrf.mxu0
        %v6302 = vadd.f32 %v5245, %v6301
        %6303 = vmatprep.mubr.bf16.mxu0 0
        %6304 = vmatmul.mubr.bf16.gmra.mxu0 %v5639
        %v6305 = vpop.f32.mrf.mxu0
        %v6306 = vadd.f32 %v5250, %v6305
        %v6307 = vpop.f32.mrf.mxu0
        %v6308 = vadd.f32 %v5250, %v6307
        %v6309 = vpop.f32.mrf.mxu0
        %v6310 = vadd.f32 %v5255, %v6309
        %v6311 = vpop.f32.mrf.mxu0
        %v6312 = vadd.f32 %v5255, %v6311
        %6313 = vmatprep.mubr.bf16.mxu0 0
        %6314 = vmatmul.mubr.bf16.gmra.mxu0 %v5640
        %v6315 = vpop.f32.mrf.mxu0
        %v6316 = vadd.f32 %v5260, %v6315
        %v6317 = vpop.f32.mrf.mxu0
        %v6318 = vadd.f32 %v5260, %v6317
        %v6319 = vpop.f32.mrf.mxu0
        %v6320 = vadd.f32 %v5265, %v6319
        %v6321 = vpop.f32.mrf.mxu0
        %v6322 = vadd.f32 %v5265, %v6321
        %6323 = vmatprep.mubr.bf16.mxu0 0
        %6324 = vmatmul.mubr.bf16.gmra.mxu0 %v5641
        %v6325 = vpop.f32.mrf.mxu0
        %v6326 = vadd.f32 %v5270, %v6325
        %v6327 = vpop.f32.mrf.mxu0
        %v6328 = vadd.f32 %v5270, %v6327
        %v6329 = vpop.f32.mrf.mxu0
        %v6330 = vadd.f32 %v5275, %v6329
        %v6331 = vpop.f32.mrf.mxu0
        %v6332 = vadd.f32 %v5275, %v6331
        %6333 = vmatprep.mubr.bf16.mxu0 0
        %6334 = vmatmul.mubr.bf16.gmra.mxu0 %v5642
        %v6335 = vpop.f32.mrf.mxu0
        %v6336 = vadd.f32 %v5280, %v6335
        %v6337 = vpop.f32.mrf.mxu0
        %v6338 = vadd.f32 %v5280, %v6337
        %v6339 = vpop.f32.mrf.mxu0
        %v6340 = vadd.f32 %v5285, %v6339
        %v6341 = vpop.f32.mrf.mxu0
        %v6342 = vadd.f32 %v5285, %v6341
        %6343 = vmatprep.mubr.bf16.mxu0 0
        %6344 = vmatmul.mubr.bf16.gmra.mxu0 %v5643
        %v6345 = vpop.f32.mrf.mxu0
        %v6346 = vadd.f32 %v5290, %v6345
        %v6347 = vpop.f32.mrf.mxu0
        %v6348 = vadd.f32 %v5290, %v6347
        %v6349 = vpop.f32.mrf.mxu0
        %v6350 = vadd.f32 %v5295, %v6349
        %v6351 = vpop.f32.mrf.mxu0
        %v6352 = vadd.f32 %v5295, %v6351
        %6353 = vmatprep.mubr.bf16.mxu0 0
        %6354 = vmatmul.mubr.bf16.gmra.mxu0 %v5644
        %v6355 = vpop.f32.mrf.mxu0
        %v6356 = vadd.f32 %v5300, %v6355
        %v6357 = vpop.f32.mrf.mxu0
        %v6358 = vadd.f32 %v5300, %v6357
        %v6359 = vpop.f32.mrf.mxu0
        %v6360 = vadd.f32 %v5305, %v6359
        %v6361 = vpop.f32.mrf.mxu0
        %v6362 = vadd.f32 %v5305, %v6361
        %6363 = vmatprep.mubr.bf16.mxu0 0
        %6364 = vmatmul.mubr.bf16.gmra.mxu0 %v5645
        %v6365 = vpop.f32.mrf.mxu0
        %v6366 = vadd.f32 %v5310, %v6365
        %v6367 = vpop.f32.mrf.mxu0
        %v6368 = vadd.f32 %v5310, %v6367
        %v6369 = vpop.f32.mrf.mxu0
        %v6370 = vadd.f32 %v5315, %v6369
        %v6371 = vpop.f32.mrf.mxu0
        %v6372 = vadd.f32 %v5315, %v6371
        %6373 = vmatprep.mubr.bf16.mxu0 0
        %6374 = vmatmul.mubr.bf16.gmra.mxu0 %v5646
        %v6375 = vpop.f32.mrf.mxu0
        %v6376 = vadd.f32 %v5320, %v6375
        %v6377 = vpop.f32.mrf.mxu0
        %v6378 = vadd.f32 %v5320, %v6377
        %v6379 = vpop.f32.mrf.mxu0
        %v6380 = vadd.f32 %v5325, %v6379
        %v6381 = vpop.f32.mrf.mxu0
        %v6382 = vadd.f32 %v5325, %v6381
        %6383 = vdwg.mxu0
        %v6384 = vmax.f32 %v5746, 0.0
        %v6385 = vmax.f32 %v5748, 0.0
        %v6386 = vmax.f32 %v5750, 0.0
        %v6387 = vmax.f32 %v5752, 0.0
        %v6388 = vmax.f32 %v5756, 0.0
        %v6389 = vmax.f32 %v5758, 0.0
        %v6390 = vmax.f32 %v5760, 0.0
        %v6391 = vmax.f32 %v5762, 0.0
        %v6392 = vmax.f32 %v5766, 0.0
        %v6393 = vmax.f32 %v5768, 0.0
        %v6394 = vmax.f32 %v5770, 0.0
        %v6395 = vmax.f32 %v5772, 0.0
        %v6396 = vmax.f32 %v5776, 0.0
        %v6397 = vmax.f32 %v5778, 0.0
        %v6398 = vmax.f32 %v5780, 0.0
        %v6399 = vmax.f32 %v5782, 0.0
        %v6400 = vmax.f32 %v5786, 0.0
        %v6401 = vmax.f32 %v5788, 0.0
        %v6402 = vmax.f32 %v5790, 0.0
        %v6403 = vmax.f32 %v5792, 0.0
        %v6404 = vmax.f32 %v5796, 0.0
        %v6405 = vmax.f32 %v5798, 0.0
        %v6406 = vmax.f32 %v5800, 0.0
        %v6407 = vmax.f32 %v5802, 0.0
        %v6408 = vmax.f32 %v5806, 0.0
        %v6409 = vmax.f32 %v5808, 0.0
        %v6410 = vmax.f32 %v5810, 0.0
        %v6411 = vmax.f32 %v5812, 0.0
        %v6412 = vmax.f32 %v5816, 0.0
        %v6413 = vmax.f32 %v5818, 0.0
        %v6414 = vmax.f32 %v5820, 0.0
        %v6415 = vmax.f32 %v5822, 0.0
        %v6416 = vmax.f32 %v5826, 0.0
        %v6417 = vmax.f32 %v5828, 0.0
        %v6418 = vmax.f32 %v5830, 0.0
        %v6419 = vmax.f32 %v5832, 0.0
        %v6420 = vmax.f32 %v5836, 0.0
        %v6421 = vmax.f32 %v5838, 0.0
        %v6422 = vmax.f32 %v5840, 0.0
        %v6423 = vmax.f32 %v5842, 0.0
        %v6424 = vmax.f32 %v5846, 0.0
        %v6425 = vmax.f32 %v5848, 0.0
        %v6426 = vmax.f32 %v5850, 0.0
        %v6427 = vmax.f32 %v5852, 0.0
        %v6428 = vmax.f32 %v5856, 0.0
        %v6429 = vmax.f32 %v5858, 0.0
        %v6430 = vmax.f32 %v5860, 0.0
        %v6431 = vmax.f32 %v5862, 0.0
        %v6432 = vmax.f32 %v5866, 0.0
        %v6433 = vmax.f32 %v5868, 0.0
        %v6434 = vmax.f32 %v5870, 0.0
        %v6435 = vmax.f32 %v5872, 0.0
        %v6436 = vmax.f32 %v5876, 0.0
        %v6437 = vmax.f32 %v5878, 0.0
        %v6438 = vmax.f32 %v5880, 0.0
        %v6439 = vmax.f32 %v5882, 0.0
        %v6440 = vmax.f32 %v5886, 0.0
        %v6441 = vmax.f32 %v5888, 0.0
        %v6442 = vmax.f32 %v5890, 0.0
        %v6443 = vmax.f32 %v5892, 0.0
        %v6444 = vmax.f32 %v5896, 0.0
        %v6445 = vmax.f32 %v5898, 0.0
        %v6446 = vmax.f32 %v5900, 0.0
        %v6447 = vmax.f32 %v5902, 0.0
        %v6448 = vmax.f32 %v5906, 0.0
        %v6449 = vmax.f32 %v5908, 0.0
        %v6450 = vmax.f32 %v5910, 0.0
        %v6451 = vmax.f32 %v5912, 0.0
        %v6452 = vmax.f32 %v5916, 0.0
        %v6453 = vmax.f32 %v5918, 0.0
        %v6454 = vmax.f32 %v5920, 0.0
        %v6455 = vmax.f32 %v5922, 0.0
        %v6456 = vmax.f32 %v5926, 0.0
        %v6457 = vmax.f32 %v5928, 0.0
        %v6458 = vmax.f32 %v5930, 0.0
        %v6459 = vmax.f32 %v5932, 0.0
        %v6460 = vmax.f32 %v5936, 0.0
        %v6461 = vmax.f32 %v5938, 0.0
        %v6462 = vmax.f32 %v5940, 0.0
        %v6463 = vmax.f32 %v5942, 0.0
        %v6464 = vmax.f32 %v5946, 0.0
        %v6465 = vmax.f32 %v5948, 0.0
        %v6466 = vmax.f32 %v5950, 0.0
        %v6467 = vmax.f32 %v5952, 0.0
        %v6468 = vmax.f32 %v5956, 0.0
        %v6469 = vmax.f32 %v5958, 0.0
        %v6470 = vmax.f32 %v5960, 0.0
        %v6471 = vmax.f32 %v5962, 0.0
        %v6472 = vmax.f32 %v5966, 0.0
        %v6473 = vmax.f32 %v5968, 0.0
        %v6474 = vmax.f32 %v5970, 0.0
        %v6475 = vmax.f32 %v5972, 0.0
        %v6476 = vmax.f32 %v5976, 0.0
        %v6477 = vmax.f32 %v5978, 0.0
        %v6478 = vmax.f32 %v5980, 0.0
        %v6479 = vmax.f32 %v5982, 0.0
        %v6480 = vmax.f32 %v5986, 0.0
        %v6481 = vmax.f32 %v5988, 0.0
        %v6482 = vmax.f32 %v5990, 0.0
        %v6483 = vmax.f32 %v5992, 0.0
        %v6484 = vmax.f32 %v5996, 0.0
        %v6485 = vmax.f32 %v5998, 0.0
        %v6486 = vmax.f32 %v6000, 0.0
        %v6487 = vmax.f32 %v6002, 0.0
        %v6488 = vmax.f32 %v6006, 0.0
        %v6489 = vmax.f32 %v6008, 0.0
        %v6490 = vmax.f32 %v6010, 0.0
        %v6491 = vmax.f32 %v6012, 0.0
        %v6492 = vmax.f32 %v6016, 0.0
        %v6493 = vmax.f32 %v6018, 0.0
        %v6494 = vmax.f32 %v6020, 0.0
        %v6495 = vmax.f32 %v6022, 0.0
        %v6496 = vmax.f32 %v6026, 0.0
        %v6497 = vmax.f32 %v6028, 0.0
        %v6498 = vmax.f32 %v6030, 0.0
        %v6499 = vmax.f32 %v6032, 0.0
        %v6500 = vmax.f32 %v6036, 0.0
        %v6501 = vmax.f32 %v6038, 0.0
        %v6502 = vmax.f32 %v6040, 0.0
        %v6503 = vmax.f32 %v6042, 0.0
        %v6504 = vmax.f32 %v6046, 0.0
        %v6505 = vmax.f32 %v6048, 0.0
        %v6506 = vmax.f32 %v6050, 0.0
        %v6507 = vmax.f32 %v6052, 0.0
        %v6508 = vmax.f32 %v6056, 0.0
        %v6509 = vmax.f32 %v6058, 0.0
        %v6510 = vmax.f32 %v6060, 0.0
        %v6511 = vmax.f32 %v6062, 0.0
        %v6512 = vmax.f32 %v6066, 0.0
        %v6513 = vmax.f32 %v6068, 0.0
        %v6514 = vmax.f32 %v6070, 0.0
        %v6515 = vmax.f32 %v6072, 0.0
        %v6516 = vmax.f32 %v6076, 0.0
        %v6517 = vmax.f32 %v6078, 0.0
        %v6518 = vmax.f32 %v6080, 0.0
        %v6519 = vmax.f32 %v6082, 0.0
        %v6520 = vmax.f32 %v6086, 0.0
        %v6521 = vmax.f32 %v6088, 0.0
        %v6522 = vmax.f32 %v6090, 0.0
        %v6523 = vmax.f32 %v6092, 0.0
        %v6524 = vmax.f32 %v6096, 0.0
        %v6525 = vmax.f32 %v6098, 0.0
        %v6526 = vmax.f32 %v6100, 0.0
        %v6527 = vmax.f32 %v6102, 0.0
        %v6528 = vmax.f32 %v6106, 0.0
        %v6529 = vmax.f32 %v6108, 0.0
        %v6530 = vmax.f32 %v6110, 0.0
        %v6531 = vmax.f32 %v6112, 0.0
        %v6532 = vmax.f32 %v6116, 0.0
        %v6533 = vmax.f32 %v6118, 0.0
        %v6534 = vmax.f32 %v6120, 0.0
        %v6535 = vmax.f32 %v6122, 0.0
        %v6536 = vmax.f32 %v6126, 0.0
        %v6537 = vmax.f32 %v6128, 0.0
        %v6538 = vmax.f32 %v6130, 0.0
        %v6539 = vmax.f32 %v6132, 0.0
        %v6540 = vmax.f32 %v6136, 0.0
        %v6541 = vmax.f32 %v6138, 0.0
        %v6542 = vmax.f32 %v6140, 0.0
        %v6543 = vmax.f32 %v6142, 0.0
        %v6544 = vmax.f32 %v6146, 0.0
        %v6545 = vmax.f32 %v6148, 0.0
        %v6546 = vmax.f32 %v6150, 0.0
        %v6547 = vmax.f32 %v6152, 0.0
        %v6548 = vmax.f32 %v6156, 0.0
        %v6549 = vmax.f32 %v6158, 0.0
        %v6550 = vmax.f32 %v6160, 0.0
        %v6551 = vmax.f32 %v6162, 0.0
        %v6552 = vmax.f32 %v6166, 0.0
        %v6553 = vmax.f32 %v6168, 0.0
        %v6554 = vmax.f32 %v6170, 0.0
        %v6555 = vmax.f32 %v6172, 0.0
        %v6556 = vmax.f32 %v6176, 0.0
        %v6557 = vmax.f32 %v6178, 0.0
        %v6558 = vmax.f32 %v6180, 0.0
        %v6559 = vmax.f32 %v6182, 0.0
        %v6560 = vmax.f32 %v6186, 0.0
        %v6561 = vmax.f32 %v6188, 0.0
        %v6562 = vmax.f32 %v6190, 0.0
        %v6563 = vmax.f32 %v6192, 0.0
        %v6564 = vmax.f32 %v6196, 0.0
        %v6565 = vmax.f32 %v6198, 0.0
        %v6566 = vmax.f32 %v6200, 0.0
        %v6567 = vmax.f32 %v6202, 0.0
        %v6568 = vmax.f32 %v6206, 0.0
        %v6569 = vmax.f32 %v6208, 0.0
        %v6570 = vmax.f32 %v6210, 0.0
        %v6571 = vmax.f32 %v6212, 0.0
        %v6572 = vmax.f32 %v6216, 0.0
        %v6573 = vmax.f32 %v6218, 0.0
        %v6574 = vmax.f32 %v6220, 0.0
        %v6575 = vmax.f32 %v6222, 0.0
        %v6576 = vmax.f32 %v6226, 0.0
        %v6577 = vmax.f32 %v6228, 0.0
        %v6578 = vmax.f32 %v6230, 0.0
        %v6579 = vmax.f32 %v6232, 0.0
        %v6580 = vmax.f32 %v6236, 0.0
        %v6581 = vmax.f32 %v6238, 0.0
        %v6582 = vmax.f32 %v6240, 0.0
        %v6583 = vmax.f32 %v6242, 0.0
        %v6584 = vmax.f32 %v6246, 0.0
        %v6585 = vmax.f32 %v6248, 0.0
        %v6586 = vmax.f32 %v6250, 0.0
        %v6587 = vmax.f32 %v6252, 0.0
        %v6588 = vmax.f32 %v6256, 0.0
        %v6589 = vmax.f32 %v6258, 0.0
        %v6590 = vmax.f32 %v6260, 0.0
        %v6591 = vmax.f32 %v6262, 0.0
        %v6592 = vmax.f32 %v6266, 0.0
        %v6593 = vmax.f32 %v6268, 0.0
        %v6594 = vmax.f32 %v6270, 0.0
        %v6595 = vmax.f32 %v6272, 0.0
        %v6596 = vmax.f32 %v6276, 0.0
        %v6597 = vmax.f32 %v6278, 0.0
        %v6598 = vmax.f32 %v6280, 0.0
        %v6599 = vmax.f32 %v6282, 0.0
        %v6600 = vmax.f32 %v6286, 0.0
        %v6601 = vmax.f32 %v6288, 0.0
        %v6602 = vmax.f32 %v6290, 0.0
        %v6603 = vmax.f32 %v6292, 0.0
        %v6604 = vmax.f32 %v6296, 0.0
        %v6605 = vmax.f32 %v6298, 0.0
        %v6606 = vmax.f32 %v6300, 0.0
        %v6607 = vmax.f32 %v6302, 0.0
        %v6608 = vmax.f32 %v6306, 0.0
        %v6609 = vmax.f32 %v6308, 0.0
        %v6610 = vmax.f32 %v6310, 0.0
        %v6611 = vmax.f32 %v6312, 0.0
        %v6612 = vmax.f32 %v6316, 0.0
        %v6613 = vmax.f32 %v6318, 0.0
        %v6614 = vmax.f32 %v6320, 0.0
        %v6615 = vmax.f32 %v6322, 0.0
        %v6616 = vmax.f32 %v6326, 0.0
        %v6617 = vmax.f32 %v6328, 0.0
        %v6618 = vmax.f32 %v6330, 0.0
        %v6619 = vmax.f32 %v6332, 0.0
        %v6620 = vmax.f32 %v6336, 0.0
        %v6621 = vmax.f32 %v6338, 0.0
        %v6622 = vmax.f32 %v6340, 0.0
        %v6623 = vmax.f32 %v6342, 0.0
        %v6624 = vmax.f32 %v6346, 0.0
        %v6625 = vmax.f32 %v6348, 0.0
        %v6626 = vmax.f32 %v6350, 0.0
        %v6627 = vmax.f32 %v6352, 0.0
        %v6628 = vmax.f32 %v6356, 0.0
        %v6629 = vmax.f32 %v6358, 0.0
        %v6630 = vmax.f32 %v6360, 0.0
        %v6631 = vmax.f32 %v6362, 0.0
        %v6632 = vmax.f32 %v6366, 0.0
        %v6633 = vmax.f32 %v6368, 0.0
        %v6634 = vmax.f32 %v6370, 0.0
        %v6635 = vmax.f32 %v6372, 0.0
        %v6636 = vmax.f32 %v6376, 0.0
        %v6637 = vmax.f32 %v6378, 0.0
        %v6638 = vmax.f32 %v6380, 0.0
        %v6639 = vmax.f32 %v6382, 0.0
        %v6640 = vmax.f32 %v6384, %v6385
        %6641 = vmax.xlane.f32.xlu0 %v6640
        %v6642 = vpop.xlane.xlu0 %6641
        %v6643 = vmax.f32 %v6386, %v6387
        %6644 = vmax.xlane.f32.xlu0 %v6643
        %v6645 = vpop.xlane.xlu0 %6644
        %v6646 = vmax.f32 %v6388, %v6389
        %6647 = vmax.xlane.f32.xlu0 %v6646
        %v6648 = vpop.xlane.xlu0 %6647
        %v6649 = vmax.f32 %v6390, %v6391
        %6650 = vmax.xlane.f32.xlu0 %v6649
        %v6651 = vpop.xlane.xlu0 %6650
        %v6652 = vmax.f32 %v6392, %v6393
        %6653 = vmax.xlane.f32.xlu0 %v6652
        %v6654 = vpop.xlane.xlu0 %6653
        %v6655 = vmax.f32 %v6394, %v6395
        %6656 = vmax.xlane.f32.xlu0 %v6655
        %v6657 = vpop.xlane.xlu0 %6656
        %v6658 = vmax.f32 %v6396, %v6397
        %6659 = vmax.xlane.f32.xlu0 %v6658
        %v6660 = vpop.xlane.xlu0 %6659
        %v6661 = vmax.f32 %v6398, %v6399
        %6662 = vmax.xlane.f32.xlu0 %v6661
        %v6663 = vpop.xlane.xlu0 %6662
        %v6664 = vmax.f32 %v6400, %v6401
        %6665 = vmax.xlane.f32.xlu0 %v6664
        %v6666 = vpop.xlane.xlu0 %6665
        %v6667 = vmax.f32 %v6402, %v6403
        %6668 = vmax.xlane.f32.xlu0 %v6667
        %v6669 = vpop.xlane.xlu0 %6668
        %v6670 = vmax.f32 %v6404, %v6405
        %6671 = vmax.xlane.f32.xlu0 %v6670
        %v6672 = vpop.xlane.xlu0 %6671
        %v6673 = vmax.f32 %v6406, %v6407
        %6674 = vmax.xlane.f32.xlu0 %v6673
        %v6675 = vpop.xlane.xlu0 %6674
        %v6676 = vmax.f32 %v6408, %v6409
        %6677 = vmax.xlane.f32.xlu0 %v6676
        %v6678 = vpop.xlane.xlu0 %6677
        %v6679 = vmax.f32 %v6410, %v6411
        %6680 = vmax.xlane.f32.xlu0 %v6679
        %v6681 = vpop.xlane.xlu0 %6680
        %v6682 = vmax.f32 %v6412, %v6413
        %6683 = vmax.xlane.f32.xlu0 %v6682
        %v6684 = vpop.xlane.xlu0 %6683
        %v6685 = vmax.f32 %v6414, %v6415
        %6686 = vmax.xlane.f32.xlu0 %v6685
        %v6687 = vpop.xlane.xlu0 %6686
        %v6688 = vmax.f32 %v6416, %v6417
        %6689 = vmax.xlane.f32.xlu0 %v6688
        %v6690 = vpop.xlane.xlu0 %6689
        %v6691 = vmax.f32 %v6418, %v6419
        %6692 = vmax.xlane.f32.xlu0 %v6691
        %v6693 = vpop.xlane.xlu0 %6692
        %v6694 = vmax.f32 %v6420, %v6421
        %6695 = vmax.xlane.f32.xlu0 %v6694
        %v6696 = vpop.xlane.xlu0 %6695
        %v6697 = vmax.f32 %v6422, %v6423
        %6698 = vmax.xlane.f32.xlu0 %v6697
        %v6699 = vpop.xlane.xlu0 %6698
        %v6700 = vmax.f32 %v6424, %v6425
        %6701 = vmax.xlane.f32.xlu0 %v6700
        %v6702 = vpop.xlane.xlu0 %6701
        %v6703 = vmax.f32 %v6426, %v6427
        %6704 = vmax.xlane.f32.xlu0 %v6703
        %v6705 = vpop.xlane.xlu0 %6704
        %v6706 = vmax.f32 %v6428, %v6429
        %6707 = vmax.xlane.f32.xlu0 %v6706
        %v6708 = vpop.xlane.xlu0 %6707
        %v6709 = vmax.f32 %v6430, %v6431
        %6710 = vmax.xlane.f32.xlu0 %v6709
        %v6711 = vpop.xlane.xlu0 %6710
        %v6712 = vmax.f32 %v6432, %v6433
        %6713 = vmax.xlane.f32.xlu0 %v6712
        %v6714 = vpop.xlane.xlu0 %6713
        %v6715 = vmax.f32 %v6434, %v6435
        %6716 = vmax.xlane.f32.xlu0 %v6715
        %v6717 = vpop.xlane.xlu0 %6716
        %v6718 = vmax.f32 %v6436, %v6437
        %6719 = vmax.xlane.f32.xlu0 %v6718
        %v6720 = vpop.xlane.xlu0 %6719
        %v6721 = vmax.f32 %v6438, %v6439
        %6722 = vmax.xlane.f32.xlu0 %v6721
        %v6723 = vpop.xlane.xlu0 %6722
        %v6724 = vmax.f32 %v6440, %v6441
        %6725 = vmax.xlane.f32.xlu0 %v6724
        %v6726 = vpop.xlane.xlu0 %6725
        %v6727 = vmax.f32 %v6442, %v6443
        %6728 = vmax.xlane.f32.xlu0 %v6727
        %v6729 = vpop.xlane.xlu0 %6728
        %v6730 = vmax.f32 %v6444, %v6445
        %6731 = vmax.xlane.f32.xlu0 %v6730
        %v6732 = vpop.xlane.xlu0 %6731
        %v6733 = vmax.f32 %v6446, %v6447
        %6734 = vmax.xlane.f32.xlu0 %v6733
        %v6735 = vpop.xlane.xlu0 %6734
        %v6736 = vmax.f32 %v6448, %v6449
        %6737 = vmax.xlane.f32.xlu0 %v6736
        %v6738 = vpop.xlane.xlu0 %6737
        %v6739 = vmax.f32 %v6450, %v6451
        %6740 = vmax.xlane.f32.xlu0 %v6739
        %v6741 = vpop.xlane.xlu0 %6740
        %v6742 = vmax.f32 %v6452, %v6453
        %6743 = vmax.xlane.f32.xlu0 %v6742
        %v6744 = vpop.xlane.xlu0 %6743
        %v6745 = vmax.f32 %v6454, %v6455
        %6746 = vmax.xlane.f32.xlu0 %v6745
        %v6747 = vpop.xlane.xlu0 %6746
        %v6748 = vmax.f32 %v6456, %v6457
        %6749 = vmax.xlane.f32.xlu0 %v6748
        %v6750 = vpop.xlane.xlu0 %6749
        %v6751 = vmax.f32 %v6458, %v6459
        %6752 = vmax.xlane.f32.xlu0 %v6751
        %v6753 = vpop.xlane.xlu0 %6752
        %v6754 = vmax.f32 %v6460, %v6461
        %6755 = vmax.xlane.f32.xlu0 %v6754
        %v6756 = vpop.xlane.xlu0 %6755
        %v6757 = vmax.f32 %v6462, %v6463
        %6758 = vmax.xlane.f32.xlu0 %v6757
        %v6759 = vpop.xlane.xlu0 %6758
        %v6760 = vmax.f32 %v6464, %v6465
        %6761 = vmax.xlane.f32.xlu0 %v6760
        %v6762 = vpop.xlane.xlu0 %6761
        %v6763 = vmax.f32 %v6466, %v6467
        %6764 = vmax.xlane.f32.xlu0 %v6763
        %v6765 = vpop.xlane.xlu0 %6764
        %v6766 = vmax.f32 %v6468, %v6469
        %6767 = vmax.xlane.f32.xlu0 %v6766
        %v6768 = vpop.xlane.xlu0 %6767
        %v6769 = vmax.f32 %v6470, %v6471
        %6770 = vmax.xlane.f32.xlu0 %v6769
        %v6771 = vpop.xlane.xlu0 %6770
        %v6772 = vmax.f32 %v6472, %v6473
        %6773 = vmax.xlane.f32.xlu0 %v6772
        %v6774 = vpop.xlane.xlu0 %6773
        %v6775 = vmax.f32 %v6474, %v6475
        %6776 = vmax.xlane.f32.xlu0 %v6775
        %v6777 = vpop.xlane.xlu0 %6776
        %v6778 = vmax.f32 %v6476, %v6477
        %6779 = vmax.xlane.f32.xlu0 %v6778
        %v6780 = vpop.xlane.xlu0 %6779
        %v6781 = vmax.f32 %v6478, %v6479
        %6782 = vmax.xlane.f32.xlu0 %v6781
        %v6783 = vpop.xlane.xlu0 %6782
        %v6784 = vmax.f32 %v6480, %v6481
        %6785 = vmax.xlane.f32.xlu0 %v6784
        %v6786 = vpop.xlane.xlu0 %6785
        %v6787 = vmax.f32 %v6482, %v6483
        %6788 = vmax.xlane.f32.xlu0 %v6787
        %v6789 = vpop.xlane.xlu0 %6788
        %v6790 = vmax.f32 %v6484, %v6485
        %6791 = vmax.xlane.f32.xlu0 %v6790
        %v6792 = vpop.xlane.xlu0 %6791
        %v6793 = vmax.f32 %v6486, %v6487
        %6794 = vmax.xlane.f32.xlu0 %v6793
        %v6795 = vpop.xlane.xlu0 %6794
        %v6796 = vmax.f32 %v6488, %v6489
        %6797 = vmax.xlane.f32.xlu0 %v6796
        %v6798 = vpop.xlane.xlu0 %6797
        %v6799 = vmax.f32 %v6490, %v6491
        %6800 = vmax.xlane.f32.xlu0 %v6799
        %v6801 = vpop.xlane.xlu0 %6800
        %v6802 = vmax.f32 %v6492, %v6493
        %6803 = vmax.xlane.f32.xlu0 %v6802
        %v6804 = vpop.xlane.xlu0 %6803
        %v6805 = vmax.f32 %v6494, %v6495
        %6806 = vmax.xlane.f32.xlu0 %v6805
        %v6807 = vpop.xlane.xlu0 %6806
        %v6808 = vmax.f32 %v6496, %v6497
        %6809 = vmax.xlane.f32.xlu0 %v6808
        %v6810 = vpop.xlane.xlu0 %6809
        %v6811 = vmax.f32 %v6498, %v6499
        %6812 = vmax.xlane.f32.xlu0 %v6811
        %v6813 = vpop.xlane.xlu0 %6812
        %v6814 = vmax.f32 %v6500, %v6501
        %6815 = vmax.xlane.f32.xlu0 %v6814
        %v6816 = vpop.xlane.xlu0 %6815
        %v6817 = vmax.f32 %v6502, %v6503
        %6818 = vmax.xlane.f32.xlu0 %v6817
        %v6819 = vpop.xlane.xlu0 %6818
        %v6820 = vmax.f32 %v6504, %v6505
        %6821 = vmax.xlane.f32.xlu0 %v6820
        %v6822 = vpop.xlane.xlu0 %6821
        %v6823 = vmax.f32 %v6506, %v6507
        %6824 = vmax.xlane.f32.xlu0 %v6823
        %v6825 = vpop.xlane.xlu0 %6824
        %v6826 = vmax.f32 %v6508, %v6509
        %6827 = vmax.xlane.f32.xlu0 %v6826
        %v6828 = vpop.xlane.xlu0 %6827
        %v6829 = vmax.f32 %v6510, %v6511
        %6830 = vmax.xlane.f32.xlu0 %v6829
        %v6831 = vpop.xlane.xlu0 %6830
        %v6832 = vmax.f32 %v6512, %v6513
        %6833 = vmax.xlane.f32.xlu0 %v6832
        %v6834 = vpop.xlane.xlu0 %6833
        %v6835 = vmax.f32 %v6514, %v6515
        %6836 = vmax.xlane.f32.xlu0 %v6835
        %v6837 = vpop.xlane.xlu0 %6836
        %v6838 = vmax.f32 %v6516, %v6517
        %6839 = vmax.xlane.f32.xlu0 %v6838
        %v6840 = vpop.xlane.xlu0 %6839
        %v6841 = vmax.f32 %v6518, %v6519
        %6842 = vmax.xlane.f32.xlu0 %v6841
        %v6843 = vpop.xlane.xlu0 %6842
        %v6844 = vmax.f32 %v6520, %v6521
        %6845 = vmax.xlane.f32.xlu0 %v6844
        %v6846 = vpop.xlane.xlu0 %6845
        %v6847 = vmax.f32 %v6522, %v6523
        %6848 = vmax.xlane.f32.xlu0 %v6847
        %v6849 = vpop.xlane.xlu0 %6848
        %v6850 = vmax.f32 %v6524, %v6525
        %6851 = vmax.xlane.f32.xlu0 %v6850
        %v6852 = vpop.xlane.xlu0 %6851
        %v6853 = vmax.f32 %v6526, %v6527
        %6854 = vmax.xlane.f32.xlu0 %v6853
        %v6855 = vpop.xlane.xlu0 %6854
        %v6856 = vmax.f32 %v6528, %v6529
        %6857 = vmax.xlane.f32.xlu0 %v6856
        %v6858 = vpop.xlane.xlu0 %6857
        %v6859 = vmax.f32 %v6530, %v6531
        %6860 = vmax.xlane.f32.xlu0 %v6859
        %v6861 = vpop.xlane.xlu0 %6860
        %v6862 = vmax.f32 %v6532, %v6533
        %6863 = vmax.xlane.f32.xlu0 %v6862
        %v6864 = vpop.xlane.xlu0 %6863
        %v6865 = vmax.f32 %v6534, %v6535
        %6866 = vmax.xlane.f32.xlu0 %v6865
        %v6867 = vpop.xlane.xlu0 %6866
        %v6868 = vmax.f32 %v6536, %v6537
        %6869 = vmax.xlane.f32.xlu0 %v6868
        %v6870 = vpop.xlane.xlu0 %6869
        %v6871 = vmax.f32 %v6538, %v6539
        %6872 = vmax.xlane.f32.xlu0 %v6871
        %v6873 = vpop.xlane.xlu0 %6872
        %v6874 = vmax.f32 %v6540, %v6541
        %6875 = vmax.xlane.f32.xlu0 %v6874
        %v6876 = vpop.xlane.xlu0 %6875
        %v6877 = vmax.f32 %v6542, %v6543
        %6878 = vmax.xlane.f32.xlu0 %v6877
        %v6879 = vpop.xlane.xlu0 %6878
        %v6880 = vmax.f32 %v6544, %v6545
        %6881 = vmax.xlane.f32.xlu0 %v6880
        %v6882 = vpop.xlane.xlu0 %6881
        %v6883 = vmax.f32 %v6546, %v6547
        %6884 = vmax.xlane.f32.xlu0 %v6883
        %v6885 = vpop.xlane.xlu0 %6884
        %v6886 = vmax.f32 %v6548, %v6549
        %6887 = vmax.xlane.f32.xlu0 %v6886
        %v6888 = vpop.xlane.xlu0 %6887
        %v6889 = vmax.f32 %v6550, %v6551
        %6890 = vmax.xlane.f32.xlu0 %v6889
        %v6891 = vpop.xlane.xlu0 %6890
        %v6892 = vmax.f32 %v6552, %v6553
        %6893 = vmax.xlane.f32.xlu0 %v6892
        %v6894 = vpop.xlane.xlu0 %6893
        %v6895 = vmax.f32 %v6554, %v6555
        %6896 = vmax.xlane.f32.xlu0 %v6895
        %v6897 = vpop.xlane.xlu0 %6896
        %v6898 = vmax.f32 %v6556, %v6557
        %6899 = vmax.xlane.f32.xlu0 %v6898
        %v6900 = vpop.xlane.xlu0 %6899
        %v6901 = vmax.f32 %v6558, %v6559
        %6902 = vmax.xlane.f32.xlu0 %v6901
        %v6903 = vpop.xlane.xlu0 %6902
        %v6904 = vmax.f32 %v6560, %v6561
        %6905 = vmax.xlane.f32.xlu0 %v6904
        %v6906 = vpop.xlane.xlu0 %6905
        %v6907 = vmax.f32 %v6562, %v6563
        %6908 = vmax.xlane.f32.xlu0 %v6907
        %v6909 = vpop.xlane.xlu0 %6908
        %v6910 = vmax.f32 %v6564, %v6565
        %6911 = vmax.xlane.f32.xlu0 %v6910
        %v6912 = vpop.xlane.xlu0 %6911
        %v6913 = vmax.f32 %v6566, %v6567
        %6914 = vmax.xlane.f32.xlu0 %v6913
        %v6915 = vpop.xlane.xlu0 %6914
        %v6916 = vmax.f32 %v6568, %v6569
        %6917 = vmax.xlane.f32.xlu0 %v6916
        %v6918 = vpop.xlane.xlu0 %6917
        %v6919 = vmax.f32 %v6570, %v6571
        %6920 = vmax.xlane.f32.xlu0 %v6919
        %v6921 = vpop.xlane.xlu0 %6920
        %v6922 = vmax.f32 %v6572, %v6573
        %6923 = vmax.xlane.f32.xlu0 %v6922
        %v6924 = vpop.xlane.xlu0 %6923
        %v6925 = vmax.f32 %v6574, %v6575
        %6926 = vmax.xlane.f32.xlu0 %v6925
        %v6927 = vpop.xlane.xlu0 %6926
        %v6928 = vmax.f32 %v6576, %v6577
        %6929 = vmax.xlane.f32.xlu0 %v6928
        %v6930 = vpop.xlane.xlu0 %6929
        %v6931 = vmax.f32 %v6578, %v6579
        %6932 = vmax.xlane.f32.xlu0 %v6931
        %v6933 = vpop.xlane.xlu0 %6932
        %v6934 = vmax.f32 %v6580, %v6581
        %6935 = vmax.xlane.f32.xlu0 %v6934
        %v6936 = vpop.xlane.xlu0 %6935
        %v6937 = vmax.f32 %v6582, %v6583
        %6938 = vmax.xlane.f32.xlu0 %v6937
        %v6939 = vpop.xlane.xlu0 %6938
        %v6940 = vmax.f32 %v6584, %v6585
        %6941 = vmax.xlane.f32.xlu0 %v6940
        %v6942 = vpop.xlane.xlu0 %6941
        %v6943 = vmax.f32 %v6586, %v6587
        %6944 = vmax.xlane.f32.xlu0 %v6943
        %v6945 = vpop.xlane.xlu0 %6944
        %v6946 = vmax.f32 %v6588, %v6589
        %6947 = vmax.xlane.f32.xlu0 %v6946
        %v6948 = vpop.xlane.xlu0 %6947
        %v6949 = vmax.f32 %v6590, %v6591
        %6950 = vmax.xlane.f32.xlu0 %v6949
        %v6951 = vpop.xlane.xlu0 %6950
        %v6952 = vmax.f32 %v6592, %v6593
        %6953 = vmax.xlane.f32.xlu0 %v6952
        %v6954 = vpop.xlane.xlu0 %6953
        %v6955 = vmax.f32 %v6594, %v6595
        %6956 = vmax.xlane.f32.xlu0 %v6955
        %v6957 = vpop.xlane.xlu0 %6956
        %v6958 = vmax.f32 %v6596, %v6597
        %6959 = vmax.xlane.f32.xlu0 %v6958
        %v6960 = vpop.xlane.xlu0 %6959
        %v6961 = vmax.f32 %v6598, %v6599
        %6962 = vmax.xlane.f32.xlu0 %v6961
        %v6963 = vpop.xlane.xlu0 %6962
        %v6964 = vmax.f32 %v6600, %v6601
        %6965 = vmax.xlane.f32.xlu0 %v6964
        %v6966 = vpop.xlane.xlu0 %6965
        %v6967 = vmax.f32 %v6602, %v6603
        %6968 = vmax.xlane.f32.xlu0 %v6967
        %v6969 = vpop.xlane.xlu0 %6968
        %v6970 = vmax.f32 %v6604, %v6605
        %6971 = vmax.xlane.f32.xlu0 %v6970
        %v6972 = vpop.xlane.xlu0 %6971
        %v6973 = vmax.f32 %v6606, %v6607
        %6974 = vmax.xlane.f32.xlu0 %v6973
        %v6975 = vpop.xlane.xlu0 %6974
        %v6976 = vmax.f32 %v6608, %v6609
        %6977 = vmax.xlane.f32.xlu0 %v6976
        %v6978 = vpop.xlane.xlu0 %6977
        %v6979 = vmax.f32 %v6610, %v6611
        %6980 = vmax.xlane.f32.xlu0 %v6979
        %v6981 = vpop.xlane.xlu0 %6980
        %v6982 = vmax.f32 %v6612, %v6613
        %6983 = vmax.xlane.f32.xlu0 %v6982
        %v6984 = vpop.xlane.xlu0 %6983
        %v6985 = vmax.f32 %v6614, %v6615
        %6986 = vmax.xlane.f32.xlu0 %v6985
        %v6987 = vpop.xlane.xlu0 %6986
        %v6988 = vmax.f32 %v6616, %v6617
        %6989 = vmax.xlane.f32.xlu0 %v6988
        %v6990 = vpop.xlane.xlu0 %6989
        %v6991 = vmax.f32 %v6618, %v6619
        %6992 = vmax.xlane.f32.xlu0 %v6991
        %v6993 = vpop.xlane.xlu0 %6992
        %v6994 = vmax.f32 %v6620, %v6621
        %6995 = vmax.xlane.f32.xlu0 %v6994
        %v6996 = vpop.xlane.xlu0 %6995
        %v6997 = vmax.f32 %v6622, %v6623
        %6998 = vmax.xlane.f32.xlu0 %v6997
        %v6999 = vpop.xlane.xlu0 %6998
        %v7000 = vmax.f32 %v6624, %v6625
        %7001 = vmax.xlane.f32.xlu0 %v7000
        %v7002 = vpop.xlane.xlu0 %7001
        %v7003 = vmax.f32 %v6626, %v6627
        %7004 = vmax.xlane.f32.xlu0 %v7003
        %v7005 = vpop.xlane.xlu0 %7004
        %v7006 = vmax.f32 %v6628, %v6629
        %7007 = vmax.xlane.f32.xlu0 %v7006
        %v7008 = vpop.xlane.xlu0 %7007
        %v7009 = vmax.f32 %v6630, %v6631
        %7010 = vmax.xlane.f32.xlu0 %v7009
        %v7011 = vpop.xlane.xlu0 %7010
        %v7012 = vmax.f32 %v6632, %v6633
        %7013 = vmax.xlane.f32.xlu0 %v7012
        %v7014 = vpop.xlane.xlu0 %7013
        %v7015 = vmax.f32 %v6634, %v6635
        %7016 = vmax.xlane.f32.xlu0 %v7015
        %v7017 = vpop.xlane.xlu0 %7016
        %v7018 = vmax.f32 %v6636, %v6637
        %7019 = vmax.xlane.f32.xlu0 %v7018
        %v7020 = vpop.xlane.xlu0 %7019
        %v7021 = vmax.f32 %v6638, %v6639
        %7022 = vmax.xlane.f32.xlu0 %v7021
        %v7023 = vpop.xlane.xlu0 %7022
        %vm7024 = vcmask 15368
        %7025 = vst.msk [vmem:[#allocation2] sm:$0xff] %vm7024, %v6642
        %7026 = vst.msk [vmem:[#allocation2 + $0x8] sm:$0xff] %vm7024, %v6645
        %7027 = vst.msk [vmem:[#allocation2 + $0x10] sm:$0xff] %vm7024, %v6648
        %7028 = vst.msk [vmem:[#allocation2 + $0x18] sm:$0xff] %vm7024, %v6651
        %7029 = vst.msk [vmem:[#allocation2 + $0x20] sm:$0xff] %vm7024, %v6654
        %7030 = vst.msk [vmem:[#allocation2 + $0x28] sm:$0xff] %vm7024, %v6657
        %7031 = vst.msk [vmem:[#allocation2 + $0x30] sm:$0xff] %vm7024, %v6660
        %7032 = vst.msk [vmem:[#allocation2 + $0x38] sm:$0xff] %vm7024, %v6663
        %7033 = vst.msk [vmem:[#allocation2 + $0x40] sm:$0xff] %vm7024, %v6666
        %7034 = vst.msk [vmem:[#allocation2 + $0x48] sm:$0xff] %vm7024, %v6669
        %7035 = vst.msk [vmem:[#allocation2 + $0x50] sm:$0xff] %vm7024, %v6672
        %7036 = vst.msk [vmem:[#allocation2 + $0x58] sm:$0xff] %vm7024, %v6675
        %7037 = vst.msk [vmem:[#allocation2 + $0x60] sm:$0xff] %vm7024, %v6678
        %7038 = vst.msk [vmem:[#allocation2 + $0x68] sm:$0xff] %vm7024, %v6681
        %7039 = vst.msk [vmem:[#allocation2 + $0x70] sm:$0xff] %vm7024, %v6684
        %7040 = vst.msk [vmem:[#allocation2 + $0x78] sm:$0xff] %vm7024, %v6687
        %7041 = vst.msk [vmem:[#allocation2 + $0x80] sm:$0xff] %vm7024, %v6690
        %7042 = vst.msk [vmem:[#allocation2 + $0x88] sm:$0xff] %vm7024, %v6693
        %7043 = vst.msk [vmem:[#allocation2 + $0x90] sm:$0xff] %vm7024, %v6696
        %7044 = vst.msk [vmem:[#allocation2 + $0x98] sm:$0xff] %vm7024, %v6699
        %7045 = vst.msk [vmem:[#allocation2 + $0xa0] sm:$0xff] %vm7024, %v6702
        %7046 = vst.msk [vmem:[#allocation2 + $0xa8] sm:$0xff] %vm7024, %v6705
        %7047 = vst.msk [vmem:[#allocation2 + $0xb0] sm:$0xff] %vm7024, %v6708
        %7048 = vst.msk [vmem:[#allocation2 + $0xb8] sm:$0xff] %vm7024, %v6711
        %7049 = vst.msk [vmem:[#allocation2 + $0xc0] sm:$0xff] %vm7024, %v6714
        %7050 = vst.msk [vmem:[#allocation2 + $0xc8] sm:$0xff] %vm7024, %v6717
        %7051 = vst.msk [vmem:[#allocation2 + $0xd0] sm:$0xff] %vm7024, %v6720
        %7052 = vst.msk [vmem:[#allocation2 + $0xd8] sm:$0xff] %vm7024, %v6723
        %7053 = vst.msk [vmem:[#allocation2 + $0xe0] sm:$0xff] %vm7024, %v6726
        %7054 = vst.msk [vmem:[#allocation2 + $0xe8] sm:$0xff] %vm7024, %v6729
        %7055 = vst.msk [vmem:[#allocation2 + $0xf0] sm:$0xff] %vm7024, %v6732
        %7056 = vst.msk [vmem:[#allocation2 + $0xf8] sm:$0xff] %vm7024, %v6735
        %7057 = vst.msk [vmem:[#allocation2 + $0x100] sm:$0xff] %vm7024, %v6738
        %7058 = vst.msk [vmem:[#allocation2 + $0x108] sm:$0xff] %vm7024, %v6741
        %7059 = vst.msk [vmem:[#allocation2 + $0x110] sm:$0xff] %vm7024, %v6744
        %7060 = vst.msk [vmem:[#allocation2 + $0x118] sm:$0xff] %vm7024, %v6747
        %7061 = vst.msk [vmem:[#allocation2 + $0x120] sm:$0xff] %vm7024, %v6750
        %7062 = vst.msk [vmem:[#allocation2 + $0x128] sm:$0xff] %vm7024, %v6753
        %7063 = vst.msk [vmem:[#allocation2 + $0x130] sm:$0xff] %vm7024, %v6756
        %7064 = vst.msk [vmem:[#allocation2 + $0x138] sm:$0xff] %vm7024, %v6759
        %7065 = vst.msk [vmem:[#allocation2 + $0x140] sm:$0xff] %vm7024, %v6762
        %7066 = vst.msk [vmem:[#allocation2 + $0x148] sm:$0xff] %vm7024, %v6765
        %7067 = vst.msk [vmem:[#allocation2 + $0x150] sm:$0xff] %vm7024, %v6768
        %7068 = vst.msk [vmem:[#allocation2 + $0x158] sm:$0xff] %vm7024, %v6771
        %7069 = vst.msk [vmem:[#allocation2 + $0x160] sm:$0xff] %vm7024, %v6774
        %7070 = vst.msk [vmem:[#allocation2 + $0x168] sm:$0xff] %vm7024, %v6777
        %7071 = vst.msk [vmem:[#allocation2 + $0x170] sm:$0xff] %vm7024, %v6780
        %7072 = vst.msk [vmem:[#allocation2 + $0x178] sm:$0xff] %vm7024, %v6783
        %7073 = vst.msk [vmem:[#allocation2 + $0x180] sm:$0xff] %vm7024, %v6786
        %7074 = vst.msk [vmem:[#allocation2 + $0x188] sm:$0xff] %vm7024, %v6789
        %7075 = vst.msk [vmem:[#allocation2 + $0x190] sm:$0xff] %vm7024, %v6792
        %7076 = vst.msk [vmem:[#allocation2 + $0x198] sm:$0xff] %vm7024, %v6795
        %7077 = vst.msk [vmem:[#allocation2 + $0x1a0] sm:$0xff] %vm7024, %v6798
        %7078 = vst.msk [vmem:[#allocation2 + $0x1a8] sm:$0xff] %vm7024, %v6801
        %7079 = vst.msk [vmem:[#allocation2 + $0x1b0] sm:$0xff] %vm7024, %v6804
        %7080 = vst.msk [vmem:[#allocation2 + $0x1b8] sm:$0xff] %vm7024, %v6807
        %7081 = vst.msk [vmem:[#allocation2 + $0x1c0] sm:$0xff] %vm7024, %v6810
        %7082 = vst.msk [vmem:[#allocation2 + $0x1c8] sm:$0xff] %vm7024, %v6813
        %7083 = vst.msk [vmem:[#allocation2 + $0x1d0] sm:$0xff] %vm7024, %v6816
        %7084 = vst.msk [vmem:[#allocation2 + $0x1d8] sm:$0xff] %vm7024, %v6819
        %7085 = vst.msk [vmem:[#allocation2 + $0x1e0] sm:$0xff] %vm7024, %v6822
        %7086 = vst.msk [vmem:[#allocation2 + $0x1e8] sm:$0xff] %vm7024, %v6825
        %7087 = vst.msk [vmem:[#allocation2 + $0x1f0] sm:$0xff] %vm7024, %v6828
        %7088 = vst.msk [vmem:[#allocation2 + $0x1f8] sm:$0xff] %vm7024, %v6831
        %7089 = vst.msk [vmem:[#allocation2 + $0x200] sm:$0xff] %vm7024, %v6834
        %7090 = vst.msk [vmem:[#allocation2 + $0x208] sm:$0xff] %vm7024, %v6837
        %7091 = vst.msk [vmem:[#allocation2 + $0x210] sm:$0xff] %vm7024, %v6840
        %7092 = vst.msk [vmem:[#allocation2 + $0x218] sm:$0xff] %vm7024, %v6843
        %7093 = vst.msk [vmem:[#allocation2 + $0x220] sm:$0xff] %vm7024, %v6846
        %7094 = vst.msk [vmem:[#allocation2 + $0x228] sm:$0xff] %vm7024, %v6849
        %7095 = vst.msk [vmem:[#allocation2 + $0x230] sm:$0xff] %vm7024, %v6852
        %7096 = vst.msk [vmem:[#allocation2 + $0x238] sm:$0xff] %vm7024, %v6855
        %7097 = vst.msk [vmem:[#allocation2 + $0x240] sm:$0xff] %vm7024, %v6858
        %7098 = vst.msk [vmem:[#allocation2 + $0x248] sm:$0xff] %vm7024, %v6861
        %7099 = vst.msk [vmem:[#allocation2 + $0x250] sm:$0xff] %vm7024, %v6864
        %7100 = vst.msk [vmem:[#allocation2 + $0x258] sm:$0xff] %vm7024, %v6867
        %7101 = vst.msk [vmem:[#allocation2 + $0x260] sm:$0xff] %vm7024, %v6870
        %7102 = vst.msk [vmem:[#allocation2 + $0x268] sm:$0xff] %vm7024, %v6873
        %7103 = vst.msk [vmem:[#allocation2 + $0x270] sm:$0xff] %vm7024, %v6876
        %7104 = vst.msk [vmem:[#allocation2 + $0x278] sm:$0xff] %vm7024, %v6879
        %7105 = vst.msk [vmem:[#allocation2 + $0x280] sm:$0xff] %vm7024, %v6882
        %7106 = vst.msk [vmem:[#allocation2 + $0x288] sm:$0xff] %vm7024, %v6885
        %7107 = vst.msk [vmem:[#allocation2 + $0x290] sm:$0xff] %vm7024, %v6888
        %7108 = vst.msk [vmem:[#allocation2 + $0x298] sm:$0xff] %vm7024, %v6891
        %7109 = vst.msk [vmem:[#allocation2 + $0x2a0] sm:$0xff] %vm7024, %v6894
        %7110 = vst.msk [vmem:[#allocation2 + $0x2a8] sm:$0xff] %vm7024, %v6897
        %7111 = vst.msk [vmem:[#allocation2 + $0x2b0] sm:$0xff] %vm7024, %v6900
        %7112 = vst.msk [vmem:[#allocation2 + $0x2b8] sm:$0xff] %vm7024, %v6903
        %7113 = vst.msk [vmem:[#allocation2 + $0x2c0] sm:$0xff] %vm7024, %v6906
        %7114 = vst.msk [vmem:[#allocation2 + $0x2c8] sm:$0xff] %vm7024, %v6909
        %7115 = vst.msk [vmem:[#allocation2 + $0x2d0] sm:$0xff] %vm7024, %v6912
        %7116 = vst.msk [vmem:[#allocation2 + $0x2d8] sm:$0xff] %vm7024, %v6915
        %7117 = vst.msk [vmem:[#allocation2 + $0x2e0] sm:$0xff] %vm7024, %v6918
        %7118 = vst.msk [vmem:[#allocation2 + $0x2e8] sm:$0xff] %vm7024, %v6921
        %7119 = vst.msk [vmem:[#allocation2 + $0x2f0] sm:$0xff] %vm7024, %v6924
        %7120 = vst.msk [vmem:[#allocation2 + $0x2f8] sm:$0xff] %vm7024, %v6927
        %7121 = vst.msk [vmem:[#allocation2 + $0x300] sm:$0xff] %vm7024, %v6930
        %7122 = vst.msk [vmem:[#allocation2 + $0x308] sm:$0xff] %vm7024, %v6933
        %7123 = vst.msk [vmem:[#allocation2 + $0x310] sm:$0xff] %vm7024, %v6936
        %7124 = vst.msk [vmem:[#allocation2 + $0x318] sm:$0xff] %vm7024, %v6939
        %7125 = vst.msk [vmem:[#allocation2 + $0x320] sm:$0xff] %vm7024, %v6942
        %7126 = vst.msk [vmem:[#allocation2 + $0x328] sm:$0xff] %vm7024, %v6945
        %7127 = vst.msk [vmem:[#allocation2 + $0x330] sm:$0xff] %vm7024, %v6948
        %7128 = vst.msk [vmem:[#allocation2 + $0x338] sm:$0xff] %vm7024, %v6951
        %7129 = vst.msk [vmem:[#allocation2 + $0x340] sm:$0xff] %vm7024, %v6954
        %7130 = vst.msk [vmem:[#allocation2 + $0x348] sm:$0xff] %vm7024, %v6957
        %7131 = vst.msk [vmem:[#allocation2 + $0x350] sm:$0xff] %vm7024, %v6960
        %7132 = vst.msk [vmem:[#allocation2 + $0x358] sm:$0xff] %vm7024, %v6963
        %7133 = vst.msk [vmem:[#allocation2 + $0x360] sm:$0xff] %vm7024, %v6966
        %7134 = vst.msk [vmem:[#allocation2 + $0x368] sm:$0xff] %vm7024, %v6969
        %7135 = vst.msk [vmem:[#allocation2 + $0x370] sm:$0xff] %vm7024, %v6972
        %7136 = vst.msk [vmem:[#allocation2 + $0x378] sm:$0xff] %vm7024, %v6975
        %7137 = vst.msk [vmem:[#allocation2 + $0x380] sm:$0xff] %vm7024, %v6978
        %7138 = vst.msk [vmem:[#allocation2 + $0x388] sm:$0xff] %vm7024, %v6981
        %7139 = vst.msk [vmem:[#allocation2 + $0x390] sm:$0xff] %vm7024, %v6984
        %7140 = vst.msk [vmem:[#allocation2 + $0x398] sm:$0xff] %vm7024, %v6987
        %7141 = vst.msk [vmem:[#allocation2 + $0x3a0] sm:$0xff] %vm7024, %v6990
        %7142 = vst.msk [vmem:[#allocation2 + $0x3a8] sm:$0xff] %vm7024, %v6993
        %7143 = vst.msk [vmem:[#allocation2 + $0x3b0] sm:$0xff] %vm7024, %v6996
        %7144 = vst.msk [vmem:[#allocation2 + $0x3b8] sm:$0xff] %vm7024, %v6999
        %7145 = vst.msk [vmem:[#allocation2 + $0x3c0] sm:$0xff] %vm7024, %v7002
        %7146 = vst.msk [vmem:[#allocation2 + $0x3c8] sm:$0xff] %vm7024, %v7005
        %7147 = vst.msk [vmem:[#allocation2 + $0x3d0] sm:$0xff] %vm7024, %v7008
        %7148 = vst.msk [vmem:[#allocation2 + $0x3d8] sm:$0xff] %vm7024, %v7011
        %7149 = vst.msk [vmem:[#allocation2 + $0x3e0] sm:$0xff] %vm7024, %v7014
        %7150 = vst.msk [vmem:[#allocation2 + $0x3e8] sm:$0xff] %vm7024, %v7017
        %7151 = vst.msk [vmem:[#allocation2 + $0x3f0] sm:$0xff] %vm7024, %v7020
        %7152 = vst.msk [vmem:[#allocation2 + $0x3f8] sm:$0xff] %vm7024, %v7023
        %v7153 = vld [vmem:[#allocation2] sm:$0xff]
        %v7154 = vld [vmem:[#allocation2 + $0x8] sm:$0xff]
        %v7155 = vld [vmem:[#allocation2 + $0x10] sm:$0xff]
        %v7156 = vld [vmem:[#allocation2 + $0x18] sm:$0xff]
        %v7157 = vld [vmem:[#allocation2 + $0x20] sm:$0xff]
        %v7158 = vld [vmem:[#allocation2 + $0x28] sm:$0xff]
        %v7159 = vld [vmem:[#allocation2 + $0x30] sm:$0xff]
        %v7160 = vld [vmem:[#allocation2 + $0x38] sm:$0xff]
        %v7161 = vld [vmem:[#allocation2 + $0x40] sm:$0xff]
        %v7162 = vld [vmem:[#allocation2 + $0x48] sm:$0xff]
        %v7163 = vld [vmem:[#allocation2 + $0x50] sm:$0xff]
        %v7164 = vld [vmem:[#allocation2 + $0x58] sm:$0xff]
        %v7165 = vld [vmem:[#allocation2 + $0x60] sm:$0xff]
        %v7166 = vld [vmem:[#allocation2 + $0x68] sm:$0xff]
        %v7167 = vld [vmem:[#allocation2 + $0x70] sm:$0xff]
        %v7168 = vld [vmem:[#allocation2 + $0x78] sm:$0xff]
        %v7169 = vld [vmem:[#allocation2 + $0x80] sm:$0xff]
        %v7170 = vld [vmem:[#allocation2 + $0x88] sm:$0xff]
        %v7171 = vld [vmem:[#allocation2 + $0x90] sm:$0xff]
        %v7172 = vld [vmem:[#allocation2 + $0x98] sm:$0xff]
        %v7173 = vld [vmem:[#allocation2 + $0xa0] sm:$0xff]
        %v7174 = vld [vmem:[#allocation2 + $0xa8] sm:$0xff]
        %v7175 = vld [vmem:[#allocation2 + $0xb0] sm:$0xff]
        %v7176 = vld [vmem:[#allocation2 + $0xb8] sm:$0xff]
        %v7177 = vld [vmem:[#allocation2 + $0xc0] sm:$0xff]
        %v7178 = vld [vmem:[#allocation2 + $0xc8] sm:$0xff]
        %v7179 = vld [vmem:[#allocation2 + $0xd0] sm:$0xff]
        %v7180 = vld [vmem:[#allocation2 + $0xd8] sm:$0xff]
        %v7181 = vld [vmem:[#allocation2 + $0xe0] sm:$0xff]
        %v7182 = vld [vmem:[#allocation2 + $0xe8] sm:$0xff]
        %v7183 = vld [vmem:[#allocation2 + $0xf0] sm:$0xff]
        %v7184 = vld [vmem:[#allocation2 + $0xf8] sm:$0xff]
        %v7185 = vld [vmem:[#allocation2 + $0x100] sm:$0xff]
        %v7186 = vld [vmem:[#allocation2 + $0x108] sm:$0xff]
        %v7187 = vld [vmem:[#allocation2 + $0x110] sm:$0xff]
        %v7188 = vld [vmem:[#allocation2 + $0x118] sm:$0xff]
        %v7189 = vld [vmem:[#allocation2 + $0x120] sm:$0xff]
        %v7190 = vld [vmem:[#allocation2 + $0x128] sm:$0xff]
        %v7191 = vld [vmem:[#allocation2 + $0x130] sm:$0xff]
        %v7192 = vld [vmem:[#allocation2 + $0x138] sm:$0xff]
        %v7193 = vld [vmem:[#allocation2 + $0x140] sm:$0xff]
        %v7194 = vld [vmem:[#allocation2 + $0x148] sm:$0xff]
        %v7195 = vld [vmem:[#allocation2 + $0x150] sm:$0xff]
        %v7196 = vld [vmem:[#allocation2 + $0x158] sm:$0xff]
        %v7197 = vld [vmem:[#allocation2 + $0x160] sm:$0xff]
        %v7198 = vld [vmem:[#allocation2 + $0x168] sm:$0xff]
        %v7199 = vld [vmem:[#allocation2 + $0x170] sm:$0xff]
        %v7200 = vld [vmem:[#allocation2 + $0x178] sm:$0xff]
        %v7201 = vld [vmem:[#allocation2 + $0x180] sm:$0xff]
        %v7202 = vld [vmem:[#allocation2 + $0x188] sm:$0xff]
        %v7203 = vld [vmem:[#allocation2 + $0x190] sm:$0xff]
        %v7204 = vld [vmem:[#allocation2 + $0x198] sm:$0xff]
        %v7205 = vld [vmem:[#allocation2 + $0x1a0] sm:$0xff]
        %v7206 = vld [vmem:[#allocation2 + $0x1a8] sm:$0xff]
        %v7207 = vld [vmem:[#allocation2 + $0x1b0] sm:$0xff]
        %v7208 = vld [vmem:[#allocation2 + $0x1b8] sm:$0xff]
        %v7209 = vld [vmem:[#allocation2 + $0x1c0] sm:$0xff]
        %v7210 = vld [vmem:[#allocation2 + $0x1c8] sm:$0xff]
        %v7211 = vld [vmem:[#allocation2 + $0x1d0] sm:$0xff]
        %v7212 = vld [vmem:[#allocation2 + $0x1d8] sm:$0xff]
        %v7213 = vld [vmem:[#allocation2 + $0x1e0] sm:$0xff]
        %v7214 = vld [vmem:[#allocation2 + $0x1e8] sm:$0xff]
        %v7215 = vld [vmem:[#allocation2 + $0x1f0] sm:$0xff]
        %v7216 = vld [vmem:[#allocation2 + $0x1f8] sm:$0xff]
        %v7217 = vld [vmem:[#allocation2 + $0x200] sm:$0xff]
        %v7218 = vld [vmem:[#allocation2 + $0x208] sm:$0xff]
        %v7219 = vld [vmem:[#allocation2 + $0x210] sm:$0xff]
        %v7220 = vld [vmem:[#allocation2 + $0x218] sm:$0xff]
        %v7221 = vld [vmem:[#allocation2 + $0x220] sm:$0xff]
        %v7222 = vld [vmem:[#allocation2 + $0x228] sm:$0xff]
        %v7223 = vld [vmem:[#allocation2 + $0x230] sm:$0xff]
        %v7224 = vld [vmem:[#allocation2 + $0x238] sm:$0xff]
        %v7225 = vld [vmem:[#allocation2 + $0x240] sm:$0xff]
        %v7226 = vld [vmem:[#allocation2 + $0x248] sm:$0xff]
        %v7227 = vld [vmem:[#allocation2 + $0x250] sm:$0xff]
        %v7228 = vld [vmem:[#allocation2 + $0x258] sm:$0xff]
        %v7229 = vld [vmem:[#allocation2 + $0x260] sm:$0xff]
        %v7230 = vld [vmem:[#allocation2 + $0x268] sm:$0xff]
        %v7231 = vld [vmem:[#allocation2 + $0x270] sm:$0xff]
        %v7232 = vld [vmem:[#allocation2 + $0x278] sm:$0xff]
        %v7233 = vld [vmem:[#allocation2 + $0x280] sm:$0xff]
        %v7234 = vld [vmem:[#allocation2 + $0x288] sm:$0xff]
        %v7235 = vld [vmem:[#allocation2 + $0x290] sm:$0xff]
        %v7236 = vld [vmem:[#allocation2 + $0x298] sm:$0xff]
        %v7237 = vld [vmem:[#allocation2 + $0x2a0] sm:$0xff]
        %v7238 = vld [vmem:[#allocation2 + $0x2a8] sm:$0xff]
        %v7239 = vld [vmem:[#allocation2 + $0x2b0] sm:$0xff]
        %v7240 = vld [vmem:[#allocation2 + $0x2b8] sm:$0xff]
        %v7241 = vld [vmem:[#allocation2 + $0x2c0] sm:$0xff]
        %v7242 = vld [vmem:[#allocation2 + $0x2c8] sm:$0xff]
        %v7243 = vld [vmem:[#allocation2 + $0x2d0] sm:$0xff]
        %v7244 = vld [vmem:[#allocation2 + $0x2d8] sm:$0xff]
        %v7245 = vld [vmem:[#allocation2 + $0x2e0] sm:$0xff]
        %v7246 = vld [vmem:[#allocation2 + $0x2e8] sm:$0xff]
        %v7247 = vld [vmem:[#allocation2 + $0x2f0] sm:$0xff]
        %v7248 = vld [vmem:[#allocation2 + $0x2f8] sm:$0xff]
        %v7249 = vld [vmem:[#allocation2 + $0x300] sm:$0xff]
        %v7250 = vld [vmem:[#allocation2 + $0x308] sm:$0xff]
        %v7251 = vld [vmem:[#allocation2 + $0x310] sm:$0xff]
        %v7252 = vld [vmem:[#allocation2 + $0x318] sm:$0xff]
        %v7253 = vld [vmem:[#allocation2 + $0x320] sm:$0xff]
        %v7254 = vld [vmem:[#allocation2 + $0x328] sm:$0xff]
        %v7255 = vld [vmem:[#allocation2 + $0x330] sm:$0xff]
        %v7256 = vld [vmem:[#allocation2 + $0x338] sm:$0xff]
        %v7257 = vld [vmem:[#allocation2 + $0x340] sm:$0xff]
        %v7258 = vld [vmem:[#allocation2 + $0x348] sm:$0xff]
        %v7259 = vld [vmem:[#allocation2 + $0x350] sm:$0xff]
        %v7260 = vld [vmem:[#allocation2 + $0x358] sm:$0xff]
        %v7261 = vld [vmem:[#allocation2 + $0x360] sm:$0xff]
        %v7262 = vld [vmem:[#allocation2 + $0x368] sm:$0xff]
        %v7263 = vld [vmem:[#allocation2 + $0x370] sm:$0xff]
        %v7264 = vld [vmem:[#allocation2 + $0x378] sm:$0xff]
        %v7265 = vld [vmem:[#allocation2 + $0x380] sm:$0xff]
        %v7266 = vld [vmem:[#allocation2 + $0x388] sm:$0xff]
        %v7267 = vld [vmem:[#allocation2 + $0x390] sm:$0xff]
        %v7268 = vld [vmem:[#allocation2 + $0x398] sm:$0xff]
        %v7269 = vld [vmem:[#allocation2 + $0x3a0] sm:$0xff]
        %v7270 = vld [vmem:[#allocation2 + $0x3a8] sm:$0xff]
        %v7271 = vld [vmem:[#allocation2 + $0x3b0] sm:$0xff]
        %v7272 = vld [vmem:[#allocation2 + $0x3b8] sm:$0xff]
        %v7273 = vld [vmem:[#allocation2 + $0x3c0] sm:$0xff]
        %v7274 = vld [vmem:[#allocation2 + $0x3c8] sm:$0xff]
        %v7275 = vld [vmem:[#allocation2 + $0x3d0] sm:$0xff]
        %v7276 = vld [vmem:[#allocation2 + $0x3d8] sm:$0xff]
        %v7277 = vld [vmem:[#allocation2 + $0x3e0] sm:$0xff]
        %v7278 = vld [vmem:[#allocation2 + $0x3e8] sm:$0xff]
        %v7279 = vld [vmem:[#allocation2 + $0x3f0] sm:$0xff]
        %v7280 = vld [vmem:[#allocation2 + $0x3f8] sm:$0xff]
        %v7281 = vld [vmem:[%s7] sm:$0xff]
        %v7282 = vld [vmem:[%s7 + $0x8] sm:$0xff]
        %v7283 = vld [vmem:[%s7 + $0x10] sm:$0xff]
        %v7284 = vld [vmem:[%s7 + $0x18] sm:$0xff]
        %v7285 = vld [vmem:[%s7 + $0x20] sm:$0xff]
        %v7286 = vld [vmem:[%s7 + $0x28] sm:$0xff]
        %v7287 = vld [vmem:[%s7 + $0x30] sm:$0xff]
        %v7288 = vld [vmem:[%s7 + $0x38] sm:$0xff]
        %v7289 = vld [vmem:[%s7 + $0x40] sm:$0xff]
        %v7290 = vld [vmem:[%s7 + $0x48] sm:$0xff]
        %v7291 = vld [vmem:[%s7 + $0x50] sm:$0xff]
        %v7292 = vld [vmem:[%s7 + $0x58] sm:$0xff]
        %v7293 = vld [vmem:[%s7 + $0x60] sm:$0xff]
        %v7294 = vld [vmem:[%s7 + $0x68] sm:$0xff]
        %v7295 = vld [vmem:[%s7 + $0x70] sm:$0xff]
        %v7296 = vld [vmem:[%s7 + $0x78] sm:$0xff]
        %v7297 = vld [vmem:[%s7 + $0x80] sm:$0xff]
        %v7298 = vld [vmem:[%s7 + $0x88] sm:$0xff]
        %v7299 = vld [vmem:[%s7 + $0x90] sm:$0xff]
        %v7300 = vld [vmem:[%s7 + $0x98] sm:$0xff]
        %v7301 = vld [vmem:[%s7 + $0xa0] sm:$0xff]
        %v7302 = vld [vmem:[%s7 + $0xa8] sm:$0xff]
        %v7303 = vld [vmem:[%s7 + $0xb0] sm:$0xff]
        %v7304 = vld [vmem:[%s7 + $0xb8] sm:$0xff]
        %v7305 = vld [vmem:[%s7 + $0xc0] sm:$0xff]
        %v7306 = vld [vmem:[%s7 + $0xc8] sm:$0xff]
        %v7307 = vld [vmem:[%s7 + $0xd0] sm:$0xff]
        %v7308 = vld [vmem:[%s7 + $0xd8] sm:$0xff]
        %v7309 = vld [vmem:[%s7 + $0xe0] sm:$0xff]
        %v7310 = vld [vmem:[%s7 + $0xe8] sm:$0xff]
        %v7311 = vld [vmem:[%s7 + $0xf0] sm:$0xff]
        %v7312 = vld [vmem:[%s7 + $0xf8] sm:$0xff]
        %v7313 = vld [vmem:[%s7 + $0x100] sm:$0xff]
        %v7314 = vld [vmem:[%s7 + $0x108] sm:$0xff]
        %v7315 = vld [vmem:[%s7 + $0x110] sm:$0xff]
        %v7316 = vld [vmem:[%s7 + $0x118] sm:$0xff]
        %v7317 = vld [vmem:[%s7 + $0x120] sm:$0xff]
        %v7318 = vld [vmem:[%s7 + $0x128] sm:$0xff]
        %v7319 = vld [vmem:[%s7 + $0x130] sm:$0xff]
        %v7320 = vld [vmem:[%s7 + $0x138] sm:$0xff]
        %v7321 = vld [vmem:[%s7 + $0x140] sm:$0xff]
        %v7322 = vld [vmem:[%s7 + $0x148] sm:$0xff]
        %v7323 = vld [vmem:[%s7 + $0x150] sm:$0xff]
        %v7324 = vld [vmem:[%s7 + $0x158] sm:$0xff]
        %v7325 = vld [vmem:[%s7 + $0x160] sm:$0xff]
        %v7326 = vld [vmem:[%s7 + $0x168] sm:$0xff]
        %v7327 = vld [vmem:[%s7 + $0x170] sm:$0xff]
        %v7328 = vld [vmem:[%s7 + $0x178] sm:$0xff]
        %v7329 = vld [vmem:[%s7 + $0x180] sm:$0xff]
        %v7330 = vld [vmem:[%s7 + $0x188] sm:$0xff]
        %v7331 = vld [vmem:[%s7 + $0x190] sm:$0xff]
        %v7332 = vld [vmem:[%s7 + $0x198] sm:$0xff]
        %v7333 = vld [vmem:[%s7 + $0x1a0] sm:$0xff]
        %v7334 = vld [vmem:[%s7 + $0x1a8] sm:$0xff]
        %v7335 = vld [vmem:[%s7 + $0x1b0] sm:$0xff]
        %v7336 = vld [vmem:[%s7 + $0x1b8] sm:$0xff]
        %v7337 = vld [vmem:[%s7 + $0x1c0] sm:$0xff]
        %v7338 = vld [vmem:[%s7 + $0x1c8] sm:$0xff]
        %v7339 = vld [vmem:[%s7 + $0x1d0] sm:$0xff]
        %v7340 = vld [vmem:[%s7 + $0x1d8] sm:$0xff]
        %v7341 = vld [vmem:[%s7 + $0x1e0] sm:$0xff]
        %v7342 = vld [vmem:[%s7 + $0x1e8] sm:$0xff]
        %v7343 = vld [vmem:[%s7 + $0x1f0] sm:$0xff]
        %v7344 = vld [vmem:[%s7 + $0x1f8] sm:$0xff]
        %v7345 = vld [vmem:[%s7 + $0x200] sm:$0xff]
        %v7346 = vld [vmem:[%s7 + $0x208] sm:$0xff]
        %v7347 = vld [vmem:[%s7 + $0x210] sm:$0xff]
        %v7348 = vld [vmem:[%s7 + $0x218] sm:$0xff]
        %v7349 = vld [vmem:[%s7 + $0x220] sm:$0xff]
        %v7350 = vld [vmem:[%s7 + $0x228] sm:$0xff]
        %v7351 = vld [vmem:[%s7 + $0x230] sm:$0xff]
        %v7352 = vld [vmem:[%s7 + $0x238] sm:$0xff]
        %v7353 = vld [vmem:[%s7 + $0x240] sm:$0xff]
        %v7354 = vld [vmem:[%s7 + $0x248] sm:$0xff]
        %v7355 = vld [vmem:[%s7 + $0x250] sm:$0xff]
        %v7356 = vld [vmem:[%s7 + $0x258] sm:$0xff]
        %v7357 = vld [vmem:[%s7 + $0x260] sm:$0xff]
        %v7358 = vld [vmem:[%s7 + $0x268] sm:$0xff]
        %v7359 = vld [vmem:[%s7 + $0x270] sm:$0xff]
        %v7360 = vld [vmem:[%s7 + $0x278] sm:$0xff]
        %v7361 = vld [vmem:[%s7 + $0x280] sm:$0xff]
        %v7362 = vld [vmem:[%s7 + $0x288] sm:$0xff]
        %v7363 = vld [vmem:[%s7 + $0x290] sm:$0xff]
        %v7364 = vld [vmem:[%s7 + $0x298] sm:$0xff]
        %v7365 = vld [vmem:[%s7 + $0x2a0] sm:$0xff]
        %v7366 = vld [vmem:[%s7 + $0x2a8] sm:$0xff]
        %v7367 = vld [vmem:[%s7 + $0x2b0] sm:$0xff]
        %v7368 = vld [vmem:[%s7 + $0x2b8] sm:$0xff]
        %v7369 = vld [vmem:[%s7 + $0x2c0] sm:$0xff]
        %v7370 = vld [vmem:[%s7 + $0x2c8] sm:$0xff]
        %v7371 = vld [vmem:[%s7 + $0x2d0] sm:$0xff]
        %v7372 = vld [vmem:[%s7 + $0x2d8] sm:$0xff]
        %v7373 = vld [vmem:[%s7 + $0x2e0] sm:$0xff]
        %v7374 = vld [vmem:[%s7 + $0x2e8] sm:$0xff]
        %v7375 = vld [vmem:[%s7 + $0x2f0] sm:$0xff]
        %v7376 = vld [vmem:[%s7 + $0x2f8] sm:$0xff]
        %v7377 = vld [vmem:[%s7 + $0x300] sm:$0xff]
        %v7378 = vld [vmem:[%s7 + $0x308] sm:$0xff]
        %v7379 = vld [vmem:[%s7 + $0x310] sm:$0xff]
        %v7380 = vld [vmem:[%s7 + $0x318] sm:$0xff]
        %v7381 = vld [vmem:[%s7 + $0x320] sm:$0xff]
        %v7382 = vld [vmem:[%s7 + $0x328] sm:$0xff]
        %v7383 = vld [vmem:[%s7 + $0x330] sm:$0xff]
        %v7384 = vld [vmem:[%s7 + $0x338] sm:$0xff]
        %v7385 = vld [vmem:[%s7 + $0x340] sm:$0xff]
        %v7386 = vld [vmem:[%s7 + $0x348] sm:$0xff]
        %v7387 = vld [vmem:[%s7 + $0x350] sm:$0xff]
        %v7388 = vld [vmem:[%s7 + $0x358] sm:$0xff]
        %v7389 = vld [vmem:[%s7 + $0x360] sm:$0xff]
        %v7390 = vld [vmem:[%s7 + $0x368] sm:$0xff]
        %v7391 = vld [vmem:[%s7 + $0x370] sm:$0xff]
        %v7392 = vld [vmem:[%s7 + $0x378] sm:$0xff]
        %v7393 = vld [vmem:[%s7 + $0x380] sm:$0xff]
        %v7394 = vld [vmem:[%s7 + $0x388] sm:$0xff]
        %v7395 = vld [vmem:[%s7 + $0x390] sm:$0xff]
        %v7396 = vld [vmem:[%s7 + $0x398] sm:$0xff]
        %v7397 = vld [vmem:[%s7 + $0x3a0] sm:$0xff]
        %v7398 = vld [vmem:[%s7 + $0x3a8] sm:$0xff]
        %v7399 = vld [vmem:[%s7 + $0x3b0] sm:$0xff]
        %v7400 = vld [vmem:[%s7 + $0x3b8] sm:$0xff]
        %v7401 = vld [vmem:[%s7 + $0x3c0] sm:$0xff]
        %v7402 = vld [vmem:[%s7 + $0x3c8] sm:$0xff]
        %v7403 = vld [vmem:[%s7 + $0x3d0] sm:$0xff]
        %v7404 = vld [vmem:[%s7 + $0x3d8] sm:$0xff]
        %v7405 = vld [vmem:[%s7 + $0x3e0] sm:$0xff]
        %v7406 = vld [vmem:[%s7 + $0x3e8] sm:$0xff]
        %v7407 = vld [vmem:[%s7 + $0x3f0] sm:$0xff]
        %v7408 = vld [vmem:[%s7 + $0x3f8] sm:$0xff]
        %v7409 = vld [vmem:[%s7 + $0x400] sm:$0xff]
        %v7410 = vld [vmem:[%s7 + $0x408] sm:$0xff]
        %v7411 = vld [vmem:[%s7 + $0x410] sm:$0xff]
        %v7412 = vld [vmem:[%s7 + $0x418] sm:$0xff]
        %v7413 = vld [vmem:[%s7 + $0x420] sm:$0xff]
        %v7414 = vld [vmem:[%s7 + $0x428] sm:$0xff]
        %v7415 = vld [vmem:[%s7 + $0x430] sm:$0xff]
        %v7416 = vld [vmem:[%s7 + $0x438] sm:$0xff]
        %v7417 = vld [vmem:[%s7 + $0x440] sm:$0xff]
        %v7418 = vld [vmem:[%s7 + $0x448] sm:$0xff]
        %v7419 = vld [vmem:[%s7 + $0x450] sm:$0xff]
        %v7420 = vld [vmem:[%s7 + $0x458] sm:$0xff]
        %v7421 = vld [vmem:[%s7 + $0x460] sm:$0xff]
        %v7422 = vld [vmem:[%s7 + $0x468] sm:$0xff]
        %v7423 = vld [vmem:[%s7 + $0x470] sm:$0xff]
        %v7424 = vld [vmem:[%s7 + $0x478] sm:$0xff]
        %v7425 = vld [vmem:[%s7 + $0x480] sm:$0xff]
        %v7426 = vld [vmem:[%s7 + $0x488] sm:$0xff]
        %v7427 = vld [vmem:[%s7 + $0x490] sm:$0xff]
        %v7428 = vld [vmem:[%s7 + $0x498] sm:$0xff]
        %v7429 = vld [vmem:[%s7 + $0x4a0] sm:$0xff]
        %v7430 = vld [vmem:[%s7 + $0x4a8] sm:$0xff]
        %v7431 = vld [vmem:[%s7 + $0x4b0] sm:$0xff]
        %v7432 = vld [vmem:[%s7 + $0x4b8] sm:$0xff]
        %v7433 = vld [vmem:[%s7 + $0x4c0] sm:$0xff]
        %v7434 = vld [vmem:[%s7 + $0x4c8] sm:$0xff]
        %v7435 = vld [vmem:[%s7 + $0x4d0] sm:$0xff]
        %v7436 = vld [vmem:[%s7 + $0x4d8] sm:$0xff]
        %v7437 = vld [vmem:[%s7 + $0x4e0] sm:$0xff]
        %v7438 = vld [vmem:[%s7 + $0x4e8] sm:$0xff]
        %v7439 = vld [vmem:[%s7 + $0x4f0] sm:$0xff]
        %v7440 = vld [vmem:[%s7 + $0x4f8] sm:$0xff]
        %v7441 = vld [vmem:[%s7 + $0x500] sm:$0xff]
        %v7442 = vld [vmem:[%s7 + $0x508] sm:$0xff]
        %v7443 = vld [vmem:[%s7 + $0x510] sm:$0xff]
        %v7444 = vld [vmem:[%s7 + $0x518] sm:$0xff]
        %v7445 = vld [vmem:[%s7 + $0x520] sm:$0xff]
        %v7446 = vld [vmem:[%s7 + $0x528] sm:$0xff]
        %v7447 = vld [vmem:[%s7 + $0x530] sm:$0xff]
        %v7448 = vld [vmem:[%s7 + $0x538] sm:$0xff]
        %v7449 = vld [vmem:[%s7 + $0x540] sm:$0xff]
        %v7450 = vld [vmem:[%s7 + $0x548] sm:$0xff]
        %v7451 = vld [vmem:[%s7 + $0x550] sm:$0xff]
        %v7452 = vld [vmem:[%s7 + $0x558] sm:$0xff]
        %v7453 = vld [vmem:[%s7 + $0x560] sm:$0xff]
        %v7454 = vld [vmem:[%s7 + $0x568] sm:$0xff]
        %v7455 = vld [vmem:[%s7 + $0x570] sm:$0xff]
        %v7456 = vld [vmem:[%s7 + $0x578] sm:$0xff]
        %v7457 = vld [vmem:[%s7 + $0x580] sm:$0xff]
        %v7458 = vld [vmem:[%s7 + $0x588] sm:$0xff]
        %v7459 = vld [vmem:[%s7 + $0x590] sm:$0xff]
        %v7460 = vld [vmem:[%s7 + $0x598] sm:$0xff]
        %v7461 = vld [vmem:[%s7 + $0x5a0] sm:$0xff]
        %v7462 = vld [vmem:[%s7 + $0x5a8] sm:$0xff]
        %v7463 = vld [vmem:[%s7 + $0x5b0] sm:$0xff]
        %v7464 = vld [vmem:[%s7 + $0x5b8] sm:$0xff]
        %v7465 = vld [vmem:[%s7 + $0x5c0] sm:$0xff]
        %v7466 = vld [vmem:[%s7 + $0x5c8] sm:$0xff]
        %v7467 = vld [vmem:[%s7 + $0x5d0] sm:$0xff]
        %v7468 = vld [vmem:[%s7 + $0x5d8] sm:$0xff]
        %v7469 = vld [vmem:[%s7 + $0x5e0] sm:$0xff]
        %v7470 = vld [vmem:[%s7 + $0x5e8] sm:$0xff]
        %v7471 = vld [vmem:[%s7 + $0x5f0] sm:$0xff]
        %v7472 = vld [vmem:[%s7 + $0x5f8] sm:$0xff]
        %v7473 = vld [vmem:[%s7 + $0x600] sm:$0xff]
        %v7474 = vld [vmem:[%s7 + $0x608] sm:$0xff]
        %v7475 = vld [vmem:[%s7 + $0x610] sm:$0xff]
        %v7476 = vld [vmem:[%s7 + $0x618] sm:$0xff]
        %v7477 = vld [vmem:[%s7 + $0x620] sm:$0xff]
        %v7478 = vld [vmem:[%s7 + $0x628] sm:$0xff]
        %v7479 = vld [vmem:[%s7 + $0x630] sm:$0xff]
        %v7480 = vld [vmem:[%s7 + $0x638] sm:$0xff]
        %v7481 = vld [vmem:[%s7 + $0x640] sm:$0xff]
        %v7482 = vld [vmem:[%s7 + $0x648] sm:$0xff]
        %v7483 = vld [vmem:[%s7 + $0x650] sm:$0xff]
        %v7484 = vld [vmem:[%s7 + $0x658] sm:$0xff]
        %v7485 = vld [vmem:[%s7 + $0x660] sm:$0xff]
        %v7486 = vld [vmem:[%s7 + $0x668] sm:$0xff]
        %v7487 = vld [vmem:[%s7 + $0x670] sm:$0xff]
        %v7488 = vld [vmem:[%s7 + $0x678] sm:$0xff]
        %v7489 = vld [vmem:[%s7 + $0x680] sm:$0xff]
        %v7490 = vld [vmem:[%s7 + $0x688] sm:$0xff]
        %v7491 = vld [vmem:[%s7 + $0x690] sm:$0xff]
        %v7492 = vld [vmem:[%s7 + $0x698] sm:$0xff]
        %v7493 = vld [vmem:[%s7 + $0x6a0] sm:$0xff]
        %v7494 = vld [vmem:[%s7 + $0x6a8] sm:$0xff]
        %v7495 = vld [vmem:[%s7 + $0x6b0] sm:$0xff]
        %v7496 = vld [vmem:[%s7 + $0x6b8] sm:$0xff]
        %v7497 = vld [vmem:[%s7 + $0x6c0] sm:$0xff]
        %v7498 = vld [vmem:[%s7 + $0x6c8] sm:$0xff]
        %v7499 = vld [vmem:[%s7 + $0x6d0] sm:$0xff]
        %v7500 = vld [vmem:[%s7 + $0x6d8] sm:$0xff]
        %v7501 = vld [vmem:[%s7 + $0x6e0] sm:$0xff]
        %v7502 = vld [vmem:[%s7 + $0x6e8] sm:$0xff]
        %v7503 = vld [vmem:[%s7 + $0x6f0] sm:$0xff]
        %v7504 = vld [vmem:[%s7 + $0x6f8] sm:$0xff]
        %v7505 = vld [vmem:[%s7 + $0x700] sm:$0xff]
        %v7506 = vld [vmem:[%s7 + $0x708] sm:$0xff]
        %v7507 = vld [vmem:[%s7 + $0x710] sm:$0xff]
        %v7508 = vld [vmem:[%s7 + $0x718] sm:$0xff]
        %v7509 = vld [vmem:[%s7 + $0x720] sm:$0xff]
        %v7510 = vld [vmem:[%s7 + $0x728] sm:$0xff]
        %v7511 = vld [vmem:[%s7 + $0x730] sm:$0xff]
        %v7512 = vld [vmem:[%s7 + $0x738] sm:$0xff]
        %v7513 = vld [vmem:[%s7 + $0x740] sm:$0xff]
        %v7514 = vld [vmem:[%s7 + $0x748] sm:$0xff]
        %v7515 = vld [vmem:[%s7 + $0x750] sm:$0xff]
        %v7516 = vld [vmem:[%s7 + $0x758] sm:$0xff]
        %v7517 = vld [vmem:[%s7 + $0x760] sm:$0xff]
        %v7518 = vld [vmem:[%s7 + $0x768] sm:$0xff]
        %v7519 = vld [vmem:[%s7 + $0x770] sm:$0xff]
        %v7520 = vld [vmem:[%s7 + $0x778] sm:$0xff]
        %v7521 = vld [vmem:[%s7 + $0x780] sm:$0xff]
        %v7522 = vld [vmem:[%s7 + $0x788] sm:$0xff]
        %v7523 = vld [vmem:[%s7 + $0x790] sm:$0xff]
        %v7524 = vld [vmem:[%s7 + $0x798] sm:$0xff]
        %v7525 = vld [vmem:[%s7 + $0x7a0] sm:$0xff]
        %v7526 = vld [vmem:[%s7 + $0x7a8] sm:$0xff]
        %v7527 = vld [vmem:[%s7 + $0x7b0] sm:$0xff]
        %v7528 = vld [vmem:[%s7 + $0x7b8] sm:$0xff]
        %v7529 = vld [vmem:[%s7 + $0x7c0] sm:$0xff]
        %v7530 = vld [vmem:[%s7 + $0x7c8] sm:$0xff]
        %v7531 = vld [vmem:[%s7 + $0x7d0] sm:$0xff]
        %v7532 = vld [vmem:[%s7 + $0x7d8] sm:$0xff]
        %v7533 = vld [vmem:[%s7 + $0x7e0] sm:$0xff]
        %v7534 = vld [vmem:[%s7 + $0x7e8] sm:$0xff]
        %v7535 = vld [vmem:[%s7 + $0x7f0] sm:$0xff]
        %v7536 = vld [vmem:[%s7 + $0x7f8] sm:$0xff]
        %v7537 = vpack.c.bf16 %v7154, %v7153
        %v7538 = vpack.c.bf16 %v7156, %v7155
        %v7539 = vpack.c.bf16 %v7158, %v7157
        %v7540 = vpack.c.bf16 %v7160, %v7159
        %v7541 = vpack.c.bf16 %v7162, %v7161
        %v7542 = vpack.c.bf16 %v7164, %v7163
        %v7543 = vpack.c.bf16 %v7166, %v7165
        %v7544 = vpack.c.bf16 %v7168, %v7167
        %v7545 = vpack.c.bf16 %v7170, %v7169
        %v7546 = vpack.c.bf16 %v7172, %v7171
        %v7547 = vpack.c.bf16 %v7174, %v7173
        %v7548 = vpack.c.bf16 %v7176, %v7175
        %v7549 = vpack.c.bf16 %v7178, %v7177
        %v7550 = vpack.c.bf16 %v7180, %v7179
        %v7551 = vpack.c.bf16 %v7182, %v7181
        %v7552 = vpack.c.bf16 %v7184, %v7183
        %v7553 = vpack.c.bf16 %v7186, %v7185
        %v7554 = vpack.c.bf16 %v7188, %v7187
        %v7555 = vpack.c.bf16 %v7190, %v7189
        %v7556 = vpack.c.bf16 %v7192, %v7191
        %v7557 = vpack.c.bf16 %v7194, %v7193
        %v7558 = vpack.c.bf16 %v7196, %v7195
        %v7559 = vpack.c.bf16 %v7198, %v7197
        %v7560 = vpack.c.bf16 %v7200, %v7199
        %v7561 = vpack.c.bf16 %v7202, %v7201
        %v7562 = vpack.c.bf16 %v7204, %v7203
        %v7563 = vpack.c.bf16 %v7206, %v7205
        %v7564 = vpack.c.bf16 %v7208, %v7207
        %v7565 = vpack.c.bf16 %v7210, %v7209
        %v7566 = vpack.c.bf16 %v7212, %v7211
        %v7567 = vpack.c.bf16 %v7214, %v7213
        %v7568 = vpack.c.bf16 %v7216, %v7215
        %v7569 = vpack.c.bf16 %v7218, %v7217
        %v7570 = vpack.c.bf16 %v7220, %v7219
        %v7571 = vpack.c.bf16 %v7222, %v7221
        %v7572 = vpack.c.bf16 %v7224, %v7223
        %v7573 = vpack.c.bf16 %v7226, %v7225
        %v7574 = vpack.c.bf16 %v7228, %v7227
        %v7575 = vpack.c.bf16 %v7230, %v7229
        %v7576 = vpack.c.bf16 %v7232, %v7231
        %v7577 = vpack.c.bf16 %v7234, %v7233
        %v7578 = vpack.c.bf16 %v7236, %v7235
        %v7579 = vpack.c.bf16 %v7238, %v7237
        %v7580 = vpack.c.bf16 %v7240, %v7239
        %v7581 = vpack.c.bf16 %v7242, %v7241
        %v7582 = vpack.c.bf16 %v7244, %v7243
        %v7583 = vpack.c.bf16 %v7246, %v7245
        %v7584 = vpack.c.bf16 %v7248, %v7247
        %v7585 = vpack.c.bf16 %v7250, %v7249
        %v7586 = vpack.c.bf16 %v7252, %v7251
        %v7587 = vpack.c.bf16 %v7254, %v7253
        %v7588 = vpack.c.bf16 %v7256, %v7255
        %v7589 = vpack.c.bf16 %v7258, %v7257
        %v7590 = vpack.c.bf16 %v7260, %v7259
        %v7591 = vpack.c.bf16 %v7262, %v7261
        %v7592 = vpack.c.bf16 %v7264, %v7263
        %v7593 = vpack.c.bf16 %v7266, %v7265
        %v7594 = vpack.c.bf16 %v7268, %v7267
        %v7595 = vpack.c.bf16 %v7270, %v7269
        %v7596 = vpack.c.bf16 %v7272, %v7271
        %v7597 = vpack.c.bf16 %v7274, %v7273
        %v7598 = vpack.c.bf16 %v7276, %v7275
        %v7599 = vpack.c.bf16 %v7278, %v7277
        %v7600 = vpack.c.bf16 %v7280, %v7279
        %v7601 = vld [vmem:[%s8] sm:$0xff]
        %v7602 = vld [vmem:[%s8 + $0x8] sm:$0xff]
        %v7603 = vld [vmem:[%s8 + $0x10] sm:$0xff]
        %v7604 = vld [vmem:[%s8 + $0x18] sm:$0xff]
        %v7605 = vld [vmem:[%s8 + $0x20] sm:$0xff]
        %v7606 = vld [vmem:[%s8 + $0x28] sm:$0xff]
        %v7607 = vld [vmem:[%s8 + $0x30] sm:$0xff]
        %v7608 = vld [vmem:[%s8 + $0x38] sm:$0xff]
        %v7609 = vld [vmem:[%s8 + $0x40] sm:$0xff]
        %v7610 = vld [vmem:[%s8 + $0x48] sm:$0xff]
        %v7611 = vld [vmem:[%s8 + $0x50] sm:$0xff]
        %v7612 = vld [vmem:[%s8 + $0x58] sm:$0xff]
        %v7613 = vld [vmem:[%s8 + $0x60] sm:$0xff]
        %v7614 = vld [vmem:[%s8 + $0x68] sm:$0xff]
        %v7615 = vld [vmem:[%s8 + $0x70] sm:$0xff]
        %v7616 = vld [vmem:[%s8 + $0x78] sm:$0xff]
        %v7617 = vld [vmem:[%s8 + $0x80] sm:$0xff]
        %v7618 = vld [vmem:[%s8 + $0x88] sm:$0xff]
        %v7619 = vld [vmem:[%s8 + $0x90] sm:$0xff]
        %v7620 = vld [vmem:[%s8 + $0x98] sm:$0xff]
        %v7621 = vld [vmem:[%s8 + $0xa0] sm:$0xff]
        %v7622 = vld [vmem:[%s8 + $0xa8] sm:$0xff]
        %v7623 = vld [vmem:[%s8 + $0xb0] sm:$0xff]
        %v7624 = vld [vmem:[%s8 + $0xb8] sm:$0xff]
        %v7625 = vld [vmem:[%s8 + $0xc0] sm:$0xff]
        %v7626 = vld [vmem:[%s8 + $0xc8] sm:$0xff]
        %v7627 = vld [vmem:[%s8 + $0xd0] sm:$0xff]
        %v7628 = vld [vmem:[%s8 + $0xd8] sm:$0xff]
        %v7629 = vld [vmem:[%s8 + $0xe0] sm:$0xff]
        %v7630 = vld [vmem:[%s8 + $0xe8] sm:$0xff]
        %v7631 = vld [vmem:[%s8 + $0xf0] sm:$0xff]
        %v7632 = vld [vmem:[%s8 + $0xf8] sm:$0xff]
        %v7633 = vld [vmem:[%s8 + $0x100] sm:$0xff]
        %v7634 = vld [vmem:[%s8 + $0x108] sm:$0xff]
        %v7635 = vld [vmem:[%s8 + $0x110] sm:$0xff]
        %v7636 = vld [vmem:[%s8 + $0x118] sm:$0xff]
        %v7637 = vld [vmem:[%s8 + $0x120] sm:$0xff]
        %v7638 = vld [vmem:[%s8 + $0x128] sm:$0xff]
        %v7639 = vld [vmem:[%s8 + $0x130] sm:$0xff]
        %v7640 = vld [vmem:[%s8 + $0x138] sm:$0xff]
        %v7641 = vld [vmem:[%s8 + $0x140] sm:$0xff]
        %v7642 = vld [vmem:[%s8 + $0x148] sm:$0xff]
        %v7643 = vld [vmem:[%s8 + $0x150] sm:$0xff]
        %v7644 = vld [vmem:[%s8 + $0x158] sm:$0xff]
        %v7645 = vld [vmem:[%s8 + $0x160] sm:$0xff]
        %v7646 = vld [vmem:[%s8 + $0x168] sm:$0xff]
        %v7647 = vld [vmem:[%s8 + $0x170] sm:$0xff]
        %v7648 = vld [vmem:[%s8 + $0x178] sm:$0xff]
        %v7649 = vld [vmem:[%s8 + $0x180] sm:$0xff]
        %v7650 = vld [vmem:[%s8 + $0x188] sm:$0xff]
        %v7651 = vld [vmem:[%s8 + $0x190] sm:$0xff]
        %v7652 = vld [vmem:[%s8 + $0x198] sm:$0xff]
        %v7653 = vld [vmem:[%s8 + $0x1a0] sm:$0xff]
        %v7654 = vld [vmem:[%s8 + $0x1a8] sm:$0xff]
        %v7655 = vld [vmem:[%s8 + $0x1b0] sm:$0xff]
        %v7656 = vld [vmem:[%s8 + $0x1b8] sm:$0xff]
        %v7657 = vld [vmem:[%s8 + $0x1c0] sm:$0xff]
        %v7658 = vld [vmem:[%s8 + $0x1c8] sm:$0xff]
        %v7659 = vld [vmem:[%s8 + $0x1d0] sm:$0xff]
        %v7660 = vld [vmem:[%s8 + $0x1d8] sm:$0xff]
        %v7661 = vld [vmem:[%s8 + $0x1e0] sm:$0xff]
        %v7662 = vld [vmem:[%s8 + $0x1e8] sm:$0xff]
        %v7663 = vld [vmem:[%s8 + $0x1f0] sm:$0xff]
        %v7664 = vld [vmem:[%s8 + $0x1f8] sm:$0xff]
        %7666 = vset.pattern.permute.xlu0 0
        %7667 = vperm.xlu0 %7666, %v7601
        %v7668 = vpop.permute.xlu0 %7667
        %7671 = vset.pattern.permute.xlu0 0
        %7672 = vperm.xlu0 %7671, %v7602
        %v7673 = vpop.permute.xlu0 %7672
        %7676 = vset.pattern.permute.xlu0 0
        %7677 = vperm.xlu0 %7676, %v7603
        %v7678 = vpop.permute.xlu0 %7677
        %7681 = vset.pattern.permute.xlu0 0
        %7682 = vperm.xlu0 %7681, %v7604
        %v7683 = vpop.permute.xlu0 %7682
        %7686 = vset.pattern.permute.xlu0 0
        %7687 = vperm.xlu0 %7686, %v7605
        %v7688 = vpop.permute.xlu0 %7687
        %7691 = vset.pattern.permute.xlu0 0
        %7692 = vperm.xlu0 %7691, %v7606
        %v7693 = vpop.permute.xlu0 %7692
        %7696 = vset.pattern.permute.xlu0 0
        %7697 = vperm.xlu0 %7696, %v7607
        %v7698 = vpop.permute.xlu0 %7697
        %7701 = vset.pattern.permute.xlu0 0
        %7702 = vperm.xlu0 %7701, %v7608
        %v7703 = vpop.permute.xlu0 %7702
        %7706 = vset.pattern.permute.xlu0 0
        %7707 = vperm.xlu0 %7706, %v7609
        %v7708 = vpop.permute.xlu0 %7707
        %7711 = vset.pattern.permute.xlu0 0
        %7712 = vperm.xlu0 %7711, %v7610
        %v7713 = vpop.permute.xlu0 %7712
        %7716 = vset.pattern.permute.xlu0 0
        %7717 = vperm.xlu0 %7716, %v7611
        %v7718 = vpop.permute.xlu0 %7717
        %7721 = vset.pattern.permute.xlu0 0
        %7722 = vperm.xlu0 %7721, %v7612
        %v7723 = vpop.permute.xlu0 %7722
        %7726 = vset.pattern.permute.xlu0 0
        %7727 = vperm.xlu0 %7726, %v7613
        %v7728 = vpop.permute.xlu0 %7727
        %7731 = vset.pattern.permute.xlu0 0
        %7732 = vperm.xlu0 %7731, %v7614
        %v7733 = vpop.permute.xlu0 %7732
        %7736 = vset.pattern.permute.xlu0 0
        %7737 = vperm.xlu0 %7736, %v7615
        %v7738 = vpop.permute.xlu0 %7737
        %7741 = vset.pattern.permute.xlu0 0
        %7742 = vperm.xlu0 %7741, %v7616
        %v7743 = vpop.permute.xlu0 %7742
        %7746 = vset.pattern.permute.xlu0 0
        %7747 = vperm.xlu0 %7746, %v7617
        %v7748 = vpop.permute.xlu0 %7747
        %7751 = vset.pattern.permute.xlu0 0
        %7752 = vperm.xlu0 %7751, %v7618
        %v7753 = vpop.permute.xlu0 %7752
        %7756 = vset.pattern.permute.xlu0 0
        %7757 = vperm.xlu0 %7756, %v7619
        %v7758 = vpop.permute.xlu0 %7757
        %7761 = vset.pattern.permute.xlu0 0
        %7762 = vperm.xlu0 %7761, %v7620
        %v7763 = vpop.permute.xlu0 %7762
        %7766 = vset.pattern.permute.xlu0 0
        %7767 = vperm.xlu0 %7766, %v7621
        %v7768 = vpop.permute.xlu0 %7767
        %7771 = vset.pattern.permute.xlu0 0
        %7772 = vperm.xlu0 %7771, %v7622
        %v7773 = vpop.permute.xlu0 %7772
        %7776 = vset.pattern.permute.xlu0 0
        %7777 = vperm.xlu0 %7776, %v7623
        %v7778 = vpop.permute.xlu0 %7777
        %7781 = vset.pattern.permute.xlu0 0
        %7782 = vperm.xlu0 %7781, %v7624
        %v7783 = vpop.permute.xlu0 %7782
        %7786 = vset.pattern.permute.xlu0 0
        %7787 = vperm.xlu0 %7786, %v7625
        %v7788 = vpop.permute.xlu0 %7787
        %7791 = vset.pattern.permute.xlu0 0
        %7792 = vperm.xlu0 %7791, %v7626
        %v7793 = vpop.permute.xlu0 %7792
        %7796 = vset.pattern.permute.xlu0 0
        %7797 = vperm.xlu0 %7796, %v7627
        %v7798 = vpop.permute.xlu0 %7797
        %7801 = vset.pattern.permute.xlu0 0
        %7802 = vperm.xlu0 %7801, %v7628
        %v7803 = vpop.permute.xlu0 %7802
        %7806 = vset.pattern.permute.xlu0 0
        %7807 = vperm.xlu0 %7806, %v7629
        %v7808 = vpop.permute.xlu0 %7807
        %7811 = vset.pattern.permute.xlu0 0
        %7812 = vperm.xlu0 %7811, %v7630
        %v7813 = vpop.permute.xlu0 %7812
        %7816 = vset.pattern.permute.xlu0 0
        %7817 = vperm.xlu0 %7816, %v7631
        %v7818 = vpop.permute.xlu0 %7817
        %7821 = vset.pattern.permute.xlu0 0
        %7822 = vperm.xlu0 %7821, %v7632
        %v7823 = vpop.permute.xlu0 %7822
        %7826 = vset.pattern.permute.xlu0 0
        %7827 = vperm.xlu0 %7826, %v7633
        %v7828 = vpop.permute.xlu0 %7827
        %7831 = vset.pattern.permute.xlu0 0
        %7832 = vperm.xlu0 %7831, %v7634
        %v7833 = vpop.permute.xlu0 %7832
        %7836 = vset.pattern.permute.xlu0 0
        %7837 = vperm.xlu0 %7836, %v7635
        %v7838 = vpop.permute.xlu0 %7837
        %7841 = vset.pattern.permute.xlu0 0
        %7842 = vperm.xlu0 %7841, %v7636
        %v7843 = vpop.permute.xlu0 %7842
        %7846 = vset.pattern.permute.xlu0 0
        %7847 = vperm.xlu0 %7846, %v7637
        %v7848 = vpop.permute.xlu0 %7847
        %7851 = vset.pattern.permute.xlu0 0
        %7852 = vperm.xlu0 %7851, %v7638
        %v7853 = vpop.permute.xlu0 %7852
        %7856 = vset.pattern.permute.xlu0 0
        %7857 = vperm.xlu0 %7856, %v7639
        %v7858 = vpop.permute.xlu0 %7857
        %7861 = vset.pattern.permute.xlu0 0
        %7862 = vperm.xlu0 %7861, %v7640
        %v7863 = vpop.permute.xlu0 %7862
        %7866 = vset.pattern.permute.xlu0 0
        %7867 = vperm.xlu0 %7866, %v7641
        %v7868 = vpop.permute.xlu0 %7867
        %7871 = vset.pattern.permute.xlu0 0
        %7872 = vperm.xlu0 %7871, %v7642
        %v7873 = vpop.permute.xlu0 %7872
        %7876 = vset.pattern.permute.xlu0 0
        %7877 = vperm.xlu0 %7876, %v7643
        %v7878 = vpop.permute.xlu0 %7877
        %7881 = vset.pattern.permute.xlu0 0
        %7882 = vperm.xlu0 %7881, %v7644
        %v7883 = vpop.permute.xlu0 %7882
        %7886 = vset.pattern.permute.xlu0 0
        %7887 = vperm.xlu0 %7886, %v7645
        %v7888 = vpop.permute.xlu0 %7887
        %7891 = vset.pattern.permute.xlu0 0
        %7892 = vperm.xlu0 %7891, %v7646
        %v7893 = vpop.permute.xlu0 %7892
        %7896 = vset.pattern.permute.xlu0 0
        %7897 = vperm.xlu0 %7896, %v7647
        %v7898 = vpop.permute.xlu0 %7897
        %7901 = vset.pattern.permute.xlu0 0
        %7902 = vperm.xlu0 %7901, %v7648
        %v7903 = vpop.permute.xlu0 %7902
        %7906 = vset.pattern.permute.xlu0 0
        %7907 = vperm.xlu0 %7906, %v7649
        %v7908 = vpop.permute.xlu0 %7907
        %7911 = vset.pattern.permute.xlu0 0
        %7912 = vperm.xlu0 %7911, %v7650
        %v7913 = vpop.permute.xlu0 %7912
        %7916 = vset.pattern.permute.xlu0 0
        %7917 = vperm.xlu0 %7916, %v7651
        %v7918 = vpop.permute.xlu0 %7917
        %7921 = vset.pattern.permute.xlu0 0
        %7922 = vperm.xlu0 %7921, %v7652
        %v7923 = vpop.permute.xlu0 %7922
        %7926 = vset.pattern.permute.xlu0 0
        %7927 = vperm.xlu0 %7926, %v7653
        %v7928 = vpop.permute.xlu0 %7927
        %7931 = vset.pattern.permute.xlu0 0
        %7932 = vperm.xlu0 %7931, %v7654
        %v7933 = vpop.permute.xlu0 %7932
        %7936 = vset.pattern.permute.xlu0 0
        %7937 = vperm.xlu0 %7936, %v7655
        %v7938 = vpop.permute.xlu0 %7937
        %7941 = vset.pattern.permute.xlu0 0
        %7942 = vperm.xlu0 %7941, %v7656
        %v7943 = vpop.permute.xlu0 %7942
        %7946 = vset.pattern.permute.xlu0 0
        %7947 = vperm.xlu0 %7946, %v7657
        %v7948 = vpop.permute.xlu0 %7947
        %7951 = vset.pattern.permute.xlu0 0
        %7952 = vperm.xlu0 %7951, %v7658
        %v7953 = vpop.permute.xlu0 %7952
        %7956 = vset.pattern.permute.xlu0 0
        %7957 = vperm.xlu0 %7956, %v7659
        %v7958 = vpop.permute.xlu0 %7957
        %7961 = vset.pattern.permute.xlu0 0
        %7962 = vperm.xlu0 %7961, %v7660
        %v7963 = vpop.permute.xlu0 %7962
        %7966 = vset.pattern.permute.xlu0 0
        %7967 = vperm.xlu0 %7966, %v7661
        %v7968 = vpop.permute.xlu0 %7967
        %7971 = vset.pattern.permute.xlu0 0
        %7972 = vperm.xlu0 %7971, %v7662
        %v7973 = vpop.permute.xlu0 %7972
        %7976 = vset.pattern.permute.xlu0 0
        %7977 = vperm.xlu0 %7976, %v7663
        %v7978 = vpop.permute.xlu0 %7977
        %7981 = vset.pattern.permute.xlu0 0
        %7982 = vperm.xlu0 %7981, %v7664
        %v7983 = vpop.permute.xlu0 %7982
        %v8241 = vunpack.c.l.b16 %v7281
        %v8242 = vunpack.c.h.b16 %v7281
        %v8243 = vunpack.c.l.b16 %v7282
        %v8244 = vunpack.c.h.b16 %v7282
        %v8245 = vunpack.c.l.b16 %v7283
        %v8246 = vunpack.c.h.b16 %v7283
        %v8247 = vunpack.c.l.b16 %v7284
        %v8248 = vunpack.c.h.b16 %v7284
        %v8249 = vunpack.c.l.b16 %v7285
        %v8250 = vunpack.c.h.b16 %v7285
        %v8251 = vunpack.c.l.b16 %v7286
        %v8252 = vunpack.c.h.b16 %v7286
        %v8253 = vunpack.c.l.b16 %v7287
        %v8254 = vunpack.c.h.b16 %v7287
        %v8255 = vunpack.c.l.b16 %v7288
        %v8256 = vunpack.c.h.b16 %v7288
        %v8257 = vunpack.c.l.b16 %v7289
        %v8258 = vunpack.c.h.b16 %v7289
        %v8259 = vunpack.c.l.b16 %v7290
        %v8260 = vunpack.c.h.b16 %v7290
        %v8261 = vunpack.c.l.b16 %v7291
        %v8262 = vunpack.c.h.b16 %v7291
        %v8263 = vunpack.c.l.b16 %v7292
        %v8264 = vunpack.c.h.b16 %v7292
        %v8265 = vunpack.c.l.b16 %v7293
        %v8266 = vunpack.c.h.b16 %v7293
        %v8267 = vunpack.c.l.b16 %v7294
        %v8268 = vunpack.c.h.b16 %v7294
        %v8269 = vunpack.c.l.b16 %v7295
        %v8270 = vunpack.c.h.b16 %v7295
        %v8271 = vunpack.c.l.b16 %v7296
        %v8272 = vunpack.c.h.b16 %v7296
        %v8273 = vunpack.c.l.b16 %v7297
        %v8274 = vunpack.c.h.b16 %v7297
        %v8275 = vunpack.c.l.b16 %v7298
        %v8276 = vunpack.c.h.b16 %v7298
        %v8277 = vunpack.c.l.b16 %v7299
        %v8278 = vunpack.c.h.b16 %v7299
        %v8279 = vunpack.c.l.b16 %v7300
        %v8280 = vunpack.c.h.b16 %v7300
        %v8281 = vunpack.c.l.b16 %v7301
        %v8282 = vunpack.c.h.b16 %v7301
        %v8283 = vunpack.c.l.b16 %v7302
        %v8284 = vunpack.c.h.b16 %v7302
        %v8285 = vunpack.c.l.b16 %v7303
        %v8286 = vunpack.c.h.b16 %v7303
        %v8287 = vunpack.c.l.b16 %v7304
        %v8288 = vunpack.c.h.b16 %v7304
        %v8289 = vunpack.c.l.b16 %v7305
        %v8290 = vunpack.c.h.b16 %v7305
        %v8291 = vunpack.c.l.b16 %v7306
        %v8292 = vunpack.c.h.b16 %v7306
        %v8293 = vunpack.c.l.b16 %v7307
        %v8294 = vunpack.c.h.b16 %v7307
        %v8295 = vunpack.c.l.b16 %v7308
        %v8296 = vunpack.c.h.b16 %v7308
        %v8297 = vunpack.c.l.b16 %v7309
        %v8298 = vunpack.c.h.b16 %v7309
        %v8299 = vunpack.c.l.b16 %v7310
        %v8300 = vunpack.c.h.b16 %v7310
        %v8301 = vunpack.c.l.b16 %v7311
        %v8302 = vunpack.c.h.b16 %v7311
        %v8303 = vunpack.c.l.b16 %v7312
        %v8304 = vunpack.c.h.b16 %v7312
        %v8305 = vunpack.c.l.b16 %v7313
        %v8306 = vunpack.c.h.b16 %v7313
        %v8307 = vunpack.c.l.b16 %v7314
        %v8308 = vunpack.c.h.b16 %v7314
        %v8309 = vunpack.c.l.b16 %v7315
        %v8310 = vunpack.c.h.b16 %v7315
        %v8311 = vunpack.c.l.b16 %v7316
        %v8312 = vunpack.c.h.b16 %v7316
        %v8313 = vunpack.c.l.b16 %v7317
        %v8314 = vunpack.c.h.b16 %v7317
        %v8315 = vunpack.c.l.b16 %v7318
        %v8316 = vunpack.c.h.b16 %v7318
        %v8317 = vunpack.c.l.b16 %v7319
        %v8318 = vunpack.c.h.b16 %v7319
        %v8319 = vunpack.c.l.b16 %v7320
        %v8320 = vunpack.c.h.b16 %v7320
        %v8321 = vunpack.c.l.b16 %v7321
        %v8322 = vunpack.c.h.b16 %v7321
        %v8323 = vunpack.c.l.b16 %v7322
        %v8324 = vunpack.c.h.b16 %v7322
        %v8325 = vunpack.c.l.b16 %v7323
        %v8326 = vunpack.c.h.b16 %v7323
        %v8327 = vunpack.c.l.b16 %v7324
        %v8328 = vunpack.c.h.b16 %v7324
        %v8329 = vunpack.c.l.b16 %v7325
        %v8330 = vunpack.c.h.b16 %v7325
        %v8331 = vunpack.c.l.b16 %v7326
        %v8332 = vunpack.c.h.b16 %v7326
        %v8333 = vunpack.c.l.b16 %v7327
        %v8334 = vunpack.c.h.b16 %v7327
        %v8335 = vunpack.c.l.b16 %v7328
        %v8336 = vunpack.c.h.b16 %v7328
        %v8337 = vunpack.c.l.b16 %v7329
        %v8338 = vunpack.c.h.b16 %v7329
        %v8339 = vunpack.c.l.b16 %v7330
        %v8340 = vunpack.c.h.b16 %v7330
        %v8341 = vunpack.c.l.b16 %v7331
        %v8342 = vunpack.c.h.b16 %v7331
        %v8343 = vunpack.c.l.b16 %v7332
        %v8344 = vunpack.c.h.b16 %v7332
        %v8345 = vunpack.c.l.b16 %v7333
        %v8346 = vunpack.c.h.b16 %v7333
        %v8347 = vunpack.c.l.b16 %v7334
        %v8348 = vunpack.c.h.b16 %v7334
        %v8349 = vunpack.c.l.b16 %v7335
        %v8350 = vunpack.c.h.b16 %v7335
        %v8351 = vunpack.c.l.b16 %v7336
        %v8352 = vunpack.c.h.b16 %v7336
        %v8353 = vunpack.c.l.b16 %v7337
        %v8354 = vunpack.c.h.b16 %v7337
        %v8355 = vunpack.c.l.b16 %v7338
        %v8356 = vunpack.c.h.b16 %v7338
        %v8357 = vunpack.c.l.b16 %v7339
        %v8358 = vunpack.c.h.b16 %v7339
        %v8359 = vunpack.c.l.b16 %v7340
        %v8360 = vunpack.c.h.b16 %v7340
        %v8361 = vunpack.c.l.b16 %v7341
        %v8362 = vunpack.c.h.b16 %v7341
        %v8363 = vunpack.c.l.b16 %v7342
        %v8364 = vunpack.c.h.b16 %v7342
        %v8365 = vunpack.c.l.b16 %v7343
        %v8366 = vunpack.c.h.b16 %v7343
        %v8367 = vunpack.c.l.b16 %v7344
        %v8368 = vunpack.c.h.b16 %v7344
        %v8369 = vunpack.c.l.b16 %v7345
        %v8370 = vunpack.c.h.b16 %v7345
        %v8371 = vunpack.c.l.b16 %v7346
        %v8372 = vunpack.c.h.b16 %v7346
        %v8373 = vunpack.c.l.b16 %v7347
        %v8374 = vunpack.c.h.b16 %v7347
        %v8375 = vunpack.c.l.b16 %v7348
        %v8376 = vunpack.c.h.b16 %v7348
        %v8377 = vunpack.c.l.b16 %v7349
        %v8378 = vunpack.c.h.b16 %v7349
        %v8379 = vunpack.c.l.b16 %v7350
        %v8380 = vunpack.c.h.b16 %v7350
        %v8381 = vunpack.c.l.b16 %v7351
        %v8382 = vunpack.c.h.b16 %v7351
        %v8383 = vunpack.c.l.b16 %v7352
        %v8384 = vunpack.c.h.b16 %v7352
        %v8385 = vunpack.c.l.b16 %v7353
        %v8386 = vunpack.c.h.b16 %v7353
        %v8387 = vunpack.c.l.b16 %v7354
        %v8388 = vunpack.c.h.b16 %v7354
        %v8389 = vunpack.c.l.b16 %v7355
        %v8390 = vunpack.c.h.b16 %v7355
        %v8391 = vunpack.c.l.b16 %v7356
        %v8392 = vunpack.c.h.b16 %v7356
        %v8393 = vunpack.c.l.b16 %v7357
        %v8394 = vunpack.c.h.b16 %v7357
        %v8395 = vunpack.c.l.b16 %v7358
        %v8396 = vunpack.c.h.b16 %v7358
        %v8397 = vunpack.c.l.b16 %v7359
        %v8398 = vunpack.c.h.b16 %v7359
        %v8399 = vunpack.c.l.b16 %v7360
        %v8400 = vunpack.c.h.b16 %v7360
        %v8401 = vunpack.c.l.b16 %v7361
        %v8402 = vunpack.c.h.b16 %v7361
        %v8403 = vunpack.c.l.b16 %v7362
        %v8404 = vunpack.c.h.b16 %v7362
        %v8405 = vunpack.c.l.b16 %v7363
        %v8406 = vunpack.c.h.b16 %v7363
        %v8407 = vunpack.c.l.b16 %v7364
        %v8408 = vunpack.c.h.b16 %v7364
        %v8409 = vunpack.c.l.b16 %v7365
        %v8410 = vunpack.c.h.b16 %v7365
        %v8411 = vunpack.c.l.b16 %v7366
        %v8412 = vunpack.c.h.b16 %v7366
        %v8413 = vunpack.c.l.b16 %v7367
        %v8414 = vunpack.c.h.b16 %v7367
        %v8415 = vunpack.c.l.b16 %v7368
        %v8416 = vunpack.c.h.b16 %v7368
        %v8417 = vunpack.c.l.b16 %v7369
        %v8418 = vunpack.c.h.b16 %v7369
        %v8419 = vunpack.c.l.b16 %v7370
        %v8420 = vunpack.c.h.b16 %v7370
        %v8421 = vunpack.c.l.b16 %v7371
        %v8422 = vunpack.c.h.b16 %v7371
        %v8423 = vunpack.c.l.b16 %v7372
        %v8424 = vunpack.c.h.b16 %v7372
        %v8425 = vunpack.c.l.b16 %v7373
        %v8426 = vunpack.c.h.b16 %v7373
        %v8427 = vunpack.c.l.b16 %v7374
        %v8428 = vunpack.c.h.b16 %v7374
        %v8429 = vunpack.c.l.b16 %v7375
        %v8430 = vunpack.c.h.b16 %v7375
        %v8431 = vunpack.c.l.b16 %v7376
        %v8432 = vunpack.c.h.b16 %v7376
        %v8433 = vunpack.c.l.b16 %v7377
        %v8434 = vunpack.c.h.b16 %v7377
        %v8435 = vunpack.c.l.b16 %v7378
        %v8436 = vunpack.c.h.b16 %v7378
        %v8437 = vunpack.c.l.b16 %v7379
        %v8438 = vunpack.c.h.b16 %v7379
        %v8439 = vunpack.c.l.b16 %v7380
        %v8440 = vunpack.c.h.b16 %v7380
        %v8441 = vunpack.c.l.b16 %v7381
        %v8442 = vunpack.c.h.b16 %v7381
        %v8443 = vunpack.c.l.b16 %v7382
        %v8444 = vunpack.c.h.b16 %v7382
        %v8445 = vunpack.c.l.b16 %v7383
        %v8446 = vunpack.c.h.b16 %v7383
        %v8447 = vunpack.c.l.b16 %v7384
        %v8448 = vunpack.c.h.b16 %v7384
        %v8449 = vunpack.c.l.b16 %v7385
        %v8450 = vunpack.c.h.b16 %v7385
        %v8451 = vunpack.c.l.b16 %v7386
        %v8452 = vunpack.c.h.b16 %v7386
        %v8453 = vunpack.c.l.b16 %v7387
        %v8454 = vunpack.c.h.b16 %v7387
        %v8455 = vunpack.c.l.b16 %v7388
        %v8456 = vunpack.c.h.b16 %v7388
        %v8457 = vunpack.c.l.b16 %v7389
        %v8458 = vunpack.c.h.b16 %v7389
        %v8459 = vunpack.c.l.b16 %v7390
        %v8460 = vunpack.c.h.b16 %v7390
        %v8461 = vunpack.c.l.b16 %v7391
        %v8462 = vunpack.c.h.b16 %v7391
        %v8463 = vunpack.c.l.b16 %v7392
        %v8464 = vunpack.c.h.b16 %v7392
        %v8465 = vunpack.c.l.b16 %v7393
        %v8466 = vunpack.c.h.b16 %v7393
        %v8467 = vunpack.c.l.b16 %v7394
        %v8468 = vunpack.c.h.b16 %v7394
        %v8469 = vunpack.c.l.b16 %v7395
        %v8470 = vunpack.c.h.b16 %v7395
        %v8471 = vunpack.c.l.b16 %v7396
        %v8472 = vunpack.c.h.b16 %v7396
        %v8473 = vunpack.c.l.b16 %v7397
        %v8474 = vunpack.c.h.b16 %v7397
        %v8475 = vunpack.c.l.b16 %v7398
        %v8476 = vunpack.c.h.b16 %v7398
        %v8477 = vunpack.c.l.b16 %v7399
        %v8478 = vunpack.c.h.b16 %v7399
        %v8479 = vunpack.c.l.b16 %v7400
        %v8480 = vunpack.c.h.b16 %v7400
        %v8481 = vunpack.c.l.b16 %v7401
        %v8482 = vunpack.c.h.b16 %v7401
        %v8483 = vunpack.c.l.b16 %v7402
        %v8484 = vunpack.c.h.b16 %v7402
        %v8485 = vunpack.c.l.b16 %v7403
        %v8486 = vunpack.c.h.b16 %v7403
        %v8487 = vunpack.c.l.b16 %v7404
        %v8488 = vunpack.c.h.b16 %v7404
        %v8489 = vunpack.c.l.b16 %v7405
        %v8490 = vunpack.c.h.b16 %v7405
        %v8491 = vunpack.c.l.b16 %v7406
        %v8492 = vunpack.c.h.b16 %v7406
        %v8493 = vunpack.c.l.b16 %v7407
        %v8494 = vunpack.c.h.b16 %v7407
        %v8495 = vunpack.c.l.b16 %v7408
        %v8496 = vunpack.c.h.b16 %v7408
        %v8497 = vunpack.c.l.b16 %v7409
        %v8498 = vunpack.c.h.b16 %v7409
        %v8499 = vunpack.c.l.b16 %v7410
        %v8500 = vunpack.c.h.b16 %v7410
        %v8501 = vunpack.c.l.b16 %v7411
        %v8502 = vunpack.c.h.b16 %v7411
        %v8503 = vunpack.c.l.b16 %v7412
        %v8504 = vunpack.c.h.b16 %v7412
        %v8505 = vunpack.c.l.b16 %v7413
        %v8506 = vunpack.c.h.b16 %v7413
        %v8507 = vunpack.c.l.b16 %v7414
        %v8508 = vunpack.c.h.b16 %v7414
        %v8509 = vunpack.c.l.b16 %v7415
        %v8510 = vunpack.c.h.b16 %v7415
        %v8511 = vunpack.c.l.b16 %v7416
        %v8512 = vunpack.c.h.b16 %v7416
        %v8513 = vunpack.c.l.b16 %v7417
        %v8514 = vunpack.c.h.b16 %v7417
        %v8515 = vunpack.c.l.b16 %v7418
        %v8516 = vunpack.c.h.b16 %v7418
        %v8517 = vunpack.c.l.b16 %v7419
        %v8518 = vunpack.c.h.b16 %v7419
        %v8519 = vunpack.c.l.b16 %v7420
        %v8520 = vunpack.c.h.b16 %v7420
        %v8521 = vunpack.c.l.b16 %v7421
        %v8522 = vunpack.c.h.b16 %v7421
        %v8523 = vunpack.c.l.b16 %v7422
        %v8524 = vunpack.c.h.b16 %v7422
        %v8525 = vunpack.c.l.b16 %v7423
        %v8526 = vunpack.c.h.b16 %v7423
        %v8527 = vunpack.c.l.b16 %v7424
        %v8528 = vunpack.c.h.b16 %v7424
        %v8529 = vunpack.c.l.b16 %v7425
        %v8530 = vunpack.c.h.b16 %v7425
        %v8531 = vunpack.c.l.b16 %v7426
        %v8532 = vunpack.c.h.b16 %v7426
        %v8533 = vunpack.c.l.b16 %v7427
        %v8534 = vunpack.c.h.b16 %v7427
        %v8535 = vunpack.c.l.b16 %v7428
        %v8536 = vunpack.c.h.b16 %v7428
        %v8537 = vunpack.c.l.b16 %v7429
        %v8538 = vunpack.c.h.b16 %v7429
        %v8539 = vunpack.c.l.b16 %v7430
        %v8540 = vunpack.c.h.b16 %v7430
        %v8541 = vunpack.c.l.b16 %v7431
        %v8542 = vunpack.c.h.b16 %v7431
        %v8543 = vunpack.c.l.b16 %v7432
        %v8544 = vunpack.c.h.b16 %v7432
        %v8545 = vunpack.c.l.b16 %v7433
        %v8546 = vunpack.c.h.b16 %v7433
        %v8547 = vunpack.c.l.b16 %v7434
        %v8548 = vunpack.c.h.b16 %v7434
        %v8549 = vunpack.c.l.b16 %v7435
        %v8550 = vunpack.c.h.b16 %v7435
        %v8551 = vunpack.c.l.b16 %v7436
        %v8552 = vunpack.c.h.b16 %v7436
        %v8553 = vunpack.c.l.b16 %v7437
        %v8554 = vunpack.c.h.b16 %v7437
        %v8555 = vunpack.c.l.b16 %v7438
        %v8556 = vunpack.c.h.b16 %v7438
        %v8557 = vunpack.c.l.b16 %v7439
        %v8558 = vunpack.c.h.b16 %v7439
        %v8559 = vunpack.c.l.b16 %v7440
        %v8560 = vunpack.c.h.b16 %v7440
        %v8561 = vunpack.c.l.b16 %v7441
        %v8562 = vunpack.c.h.b16 %v7441
        %v8563 = vunpack.c.l.b16 %v7442
        %v8564 = vunpack.c.h.b16 %v7442
        %v8565 = vunpack.c.l.b16 %v7443
        %v8566 = vunpack.c.h.b16 %v7443
        %v8567 = vunpack.c.l.b16 %v7444
        %v8568 = vunpack.c.h.b16 %v7444
        %v8569 = vunpack.c.l.b16 %v7445
        %v8570 = vunpack.c.h.b16 %v7445
        %v8571 = vunpack.c.l.b16 %v7446
        %v8572 = vunpack.c.h.b16 %v7446
        %v8573 = vunpack.c.l.b16 %v7447
        %v8574 = vunpack.c.h.b16 %v7447
        %v8575 = vunpack.c.l.b16 %v7448
        %v8576 = vunpack.c.h.b16 %v7448
        %v8577 = vunpack.c.l.b16 %v7449
        %v8578 = vunpack.c.h.b16 %v7449
        %v8579 = vunpack.c.l.b16 %v7450
        %v8580 = vunpack.c.h.b16 %v7450
        %v8581 = vunpack.c.l.b16 %v7451
        %v8582 = vunpack.c.h.b16 %v7451
        %v8583 = vunpack.c.l.b16 %v7452
        %v8584 = vunpack.c.h.b16 %v7452
        %v8585 = vunpack.c.l.b16 %v7453
        %v8586 = vunpack.c.h.b16 %v7453
        %v8587 = vunpack.c.l.b16 %v7454
        %v8588 = vunpack.c.h.b16 %v7454
        %v8589 = vunpack.c.l.b16 %v7455
        %v8590 = vunpack.c.h.b16 %v7455
        %v8591 = vunpack.c.l.b16 %v7456
        %v8592 = vunpack.c.h.b16 %v7456
        %v8593 = vunpack.c.l.b16 %v7457
        %v8594 = vunpack.c.h.b16 %v7457
        %v8595 = vunpack.c.l.b16 %v7458
        %v8596 = vunpack.c.h.b16 %v7458
        %v8597 = vunpack.c.l.b16 %v7459
        %v8598 = vunpack.c.h.b16 %v7459
        %v8599 = vunpack.c.l.b16 %v7460
        %v8600 = vunpack.c.h.b16 %v7460
        %v8601 = vunpack.c.l.b16 %v7461
        %v8602 = vunpack.c.h.b16 %v7461
        %v8603 = vunpack.c.l.b16 %v7462
        %v8604 = vunpack.c.h.b16 %v7462
        %v8605 = vunpack.c.l.b16 %v7463
        %v8606 = vunpack.c.h.b16 %v7463
        %v8607 = vunpack.c.l.b16 %v7464
        %v8608 = vunpack.c.h.b16 %v7464
        %v8609 = vunpack.c.l.b16 %v7465
        %v8610 = vunpack.c.h.b16 %v7465
        %v8611 = vunpack.c.l.b16 %v7466
        %v8612 = vunpack.c.h.b16 %v7466
        %v8613 = vunpack.c.l.b16 %v7467
        %v8614 = vunpack.c.h.b16 %v7467
        %v8615 = vunpack.c.l.b16 %v7468
        %v8616 = vunpack.c.h.b16 %v7468
        %v8617 = vunpack.c.l.b16 %v7469
        %v8618 = vunpack.c.h.b16 %v7469
        %v8619 = vunpack.c.l.b16 %v7470
        %v8620 = vunpack.c.h.b16 %v7470
        %v8621 = vunpack.c.l.b16 %v7471
        %v8622 = vunpack.c.h.b16 %v7471
        %v8623 = vunpack.c.l.b16 %v7472
        %v8624 = vunpack.c.h.b16 %v7472
        %v8625 = vunpack.c.l.b16 %v7473
        %v8626 = vunpack.c.h.b16 %v7473
        %v8627 = vunpack.c.l.b16 %v7474
        %v8628 = vunpack.c.h.b16 %v7474
        %v8629 = vunpack.c.l.b16 %v7475
        %v8630 = vunpack.c.h.b16 %v7475
        %v8631 = vunpack.c.l.b16 %v7476
        %v8632 = vunpack.c.h.b16 %v7476
        %v8633 = vunpack.c.l.b16 %v7477
        %v8634 = vunpack.c.h.b16 %v7477
        %v8635 = vunpack.c.l.b16 %v7478
        %v8636 = vunpack.c.h.b16 %v7478
        %v8637 = vunpack.c.l.b16 %v7479
        %v8638 = vunpack.c.h.b16 %v7479
        %v8639 = vunpack.c.l.b16 %v7480
        %v8640 = vunpack.c.h.b16 %v7480
        %v8641 = vunpack.c.l.b16 %v7481
        %v8642 = vunpack.c.h.b16 %v7481
        %v8643 = vunpack.c.l.b16 %v7482
        %v8644 = vunpack.c.h.b16 %v7482
        %v8645 = vunpack.c.l.b16 %v7483
        %v8646 = vunpack.c.h.b16 %v7483
        %v8647 = vunpack.c.l.b16 %v7484
        %v8648 = vunpack.c.h.b16 %v7484
        %v8649 = vunpack.c.l.b16 %v7485
        %v8650 = vunpack.c.h.b16 %v7485
        %v8651 = vunpack.c.l.b16 %v7486
        %v8652 = vunpack.c.h.b16 %v7486
        %v8653 = vunpack.c.l.b16 %v7487
        %v8654 = vunpack.c.h.b16 %v7487
        %v8655 = vunpack.c.l.b16 %v7488
        %v8656 = vunpack.c.h.b16 %v7488
        %v8657 = vunpack.c.l.b16 %v7489
        %v8658 = vunpack.c.h.b16 %v7489
        %v8659 = vunpack.c.l.b16 %v7490
        %v8660 = vunpack.c.h.b16 %v7490
        %v8661 = vunpack.c.l.b16 %v7491
        %v8662 = vunpack.c.h.b16 %v7491
        %v8663 = vunpack.c.l.b16 %v7492
        %v8664 = vunpack.c.h.b16 %v7492
        %v8665 = vunpack.c.l.b16 %v7493
        %v8666 = vunpack.c.h.b16 %v7493
        %v8667 = vunpack.c.l.b16 %v7494
        %v8668 = vunpack.c.h.b16 %v7494
        %v8669 = vunpack.c.l.b16 %v7495
        %v8670 = vunpack.c.h.b16 %v7495
        %v8671 = vunpack.c.l.b16 %v7496
        %v8672 = vunpack.c.h.b16 %v7496
        %v8673 = vunpack.c.l.b16 %v7497
        %v8674 = vunpack.c.h.b16 %v7497
        %v8675 = vunpack.c.l.b16 %v7498
        %v8676 = vunpack.c.h.b16 %v7498
        %v8677 = vunpack.c.l.b16 %v7499
        %v8678 = vunpack.c.h.b16 %v7499
        %v8679 = vunpack.c.l.b16 %v7500
        %v8680 = vunpack.c.h.b16 %v7500
        %v8681 = vunpack.c.l.b16 %v7501
        %v8682 = vunpack.c.h.b16 %v7501
        %v8683 = vunpack.c.l.b16 %v7502
        %v8684 = vunpack.c.h.b16 %v7502
        %v8685 = vunpack.c.l.b16 %v7503
        %v8686 = vunpack.c.h.b16 %v7503
        %v8687 = vunpack.c.l.b16 %v7504
        %v8688 = vunpack.c.h.b16 %v7504
        %v8689 = vunpack.c.l.b16 %v7505
        %v8690 = vunpack.c.h.b16 %v7505
        %v8691 = vunpack.c.l.b16 %v7506
        %v8692 = vunpack.c.h.b16 %v7506
        %v8693 = vunpack.c.l.b16 %v7507
        %v8694 = vunpack.c.h.b16 %v7507
        %v8695 = vunpack.c.l.b16 %v7508
        %v8696 = vunpack.c.h.b16 %v7508
        %v8697 = vunpack.c.l.b16 %v7509
        %v8698 = vunpack.c.h.b16 %v7509
        %v8699 = vunpack.c.l.b16 %v7510
        %v8700 = vunpack.c.h.b16 %v7510
        %v8701 = vunpack.c.l.b16 %v7511
        %v8702 = vunpack.c.h.b16 %v7511
        %v8703 = vunpack.c.l.b16 %v7512
        %v8704 = vunpack.c.h.b16 %v7512
        %v8705 = vunpack.c.l.b16 %v7513
        %v8706 = vunpack.c.h.b16 %v7513
        %v8707 = vunpack.c.l.b16 %v7514
        %v8708 = vunpack.c.h.b16 %v7514
        %v8709 = vunpack.c.l.b16 %v7515
        %v8710 = vunpack.c.h.b16 %v7515
        %v8711 = vunpack.c.l.b16 %v7516
        %v8712 = vunpack.c.h.b16 %v7516
        %v8713 = vunpack.c.l.b16 %v7517
        %v8714 = vunpack.c.h.b16 %v7517
        %v8715 = vunpack.c.l.b16 %v7518
        %v8716 = vunpack.c.h.b16 %v7518
        %v8717 = vunpack.c.l.b16 %v7519
        %v8718 = vunpack.c.h.b16 %v7519
        %v8719 = vunpack.c.l.b16 %v7520
        %v8720 = vunpack.c.h.b16 %v7520
        %v8721 = vunpack.c.l.b16 %v7521
        %v8722 = vunpack.c.h.b16 %v7521
        %v8723 = vunpack.c.l.b16 %v7522
        %v8724 = vunpack.c.h.b16 %v7522
        %v8725 = vunpack.c.l.b16 %v7523
        %v8726 = vunpack.c.h.b16 %v7523
        %v8727 = vunpack.c.l.b16 %v7524
        %v8728 = vunpack.c.h.b16 %v7524
        %v8729 = vunpack.c.l.b16 %v7525
        %v8730 = vunpack.c.h.b16 %v7525
        %v8731 = vunpack.c.l.b16 %v7526
        %v8732 = vunpack.c.h.b16 %v7526
        %v8733 = vunpack.c.l.b16 %v7527
        %v8734 = vunpack.c.h.b16 %v7527
        %v8735 = vunpack.c.l.b16 %v7528
        %v8736 = vunpack.c.h.b16 %v7528
        %v8737 = vunpack.c.l.b16 %v7529
        %v8738 = vunpack.c.h.b16 %v7529
        %v8739 = vunpack.c.l.b16 %v7530
        %v8740 = vunpack.c.h.b16 %v7530
        %v8741 = vunpack.c.l.b16 %v7531
        %v8742 = vunpack.c.h.b16 %v7531
        %v8743 = vunpack.c.l.b16 %v7532
        %v8744 = vunpack.c.h.b16 %v7532
        %v8745 = vunpack.c.l.b16 %v7533
        %v8746 = vunpack.c.h.b16 %v7533
        %v8747 = vunpack.c.l.b16 %v7534
        %v8748 = vunpack.c.h.b16 %v7534
        %v8749 = vunpack.c.l.b16 %v7535
        %v8750 = vunpack.c.h.b16 %v7535
        %v8751 = vunpack.c.l.b16 %v7536
        %v8752 = vunpack.c.h.b16 %v7536
        %v8753 = vpack.c.b16 %v8249, %v8241
        %v8754 = vpack.c.b16 %v8250, %v8242
        %v8755 = vpack.c.b16 %v8251, %v8243
        %v8756 = vpack.c.b16 %v8252, %v8244
        %v8757 = vpack.c.b16 %v8253, %v8245
        %v8758 = vpack.c.b16 %v8254, %v8246
        %v8759 = vpack.c.b16 %v8255, %v8247
        %v8760 = vpack.c.b16 %v8256, %v8248
        %v8761 = vpack.c.b16 %v8265, %v8257
        %v8762 = vpack.c.b16 %v8266, %v8258
        %v8763 = vpack.c.b16 %v8267, %v8259
        %v8764 = vpack.c.b16 %v8268, %v8260
        %v8765 = vpack.c.b16 %v8269, %v8261
        %v8766 = vpack.c.b16 %v8270, %v8262
        %v8767 = vpack.c.b16 %v8271, %v8263
        %v8768 = vpack.c.b16 %v8272, %v8264
        %v8769 = vpack.c.b16 %v8281, %v8273
        %v8770 = vpack.c.b16 %v8282, %v8274
        %v8771 = vpack.c.b16 %v8283, %v8275
        %v8772 = vpack.c.b16 %v8284, %v8276
        %v8773 = vpack.c.b16 %v8285, %v8277
        %v8774 = vpack.c.b16 %v8286, %v8278
        %v8775 = vpack.c.b16 %v8287, %v8279
        %v8776 = vpack.c.b16 %v8288, %v8280
        %v8777 = vpack.c.b16 %v8297, %v8289
        %v8778 = vpack.c.b16 %v8298, %v8290
        %v8779 = vpack.c.b16 %v8299, %v8291
        %v8780 = vpack.c.b16 %v8300, %v8292
        %v8781 = vpack.c.b16 %v8301, %v8293
        %v8782 = vpack.c.b16 %v8302, %v8294
        %v8783 = vpack.c.b16 %v8303, %v8295
        %v8784 = vpack.c.b16 %v8304, %v8296
        %v8785 = vpack.c.b16 %v8313, %v8305
        %v8786 = vpack.c.b16 %v8314, %v8306
        %v8787 = vpack.c.b16 %v8315, %v8307
        %v8788 = vpack.c.b16 %v8316, %v8308
        %v8789 = vpack.c.b16 %v8317, %v8309
        %v8790 = vpack.c.b16 %v8318, %v8310
        %v8791 = vpack.c.b16 %v8319, %v8311
        %v8792 = vpack.c.b16 %v8320, %v8312
        %v8793 = vpack.c.b16 %v8329, %v8321
        %v8794 = vpack.c.b16 %v8330, %v8322
        %v8795 = vpack.c.b16 %v8331, %v8323
        %v8796 = vpack.c.b16 %v8332, %v8324
        %v8797 = vpack.c.b16 %v8333, %v8325
        %v8798 = vpack.c.b16 %v8334, %v8326
        %v8799 = vpack.c.b16 %v8335, %v8327
        %v8800 = vpack.c.b16 %v8336, %v8328
        %v8801 = vpack.c.b16 %v8345, %v8337
        %v8802 = vpack.c.b16 %v8346, %v8338
        %v8803 = vpack.c.b16 %v8347, %v8339
        %v8804 = vpack.c.b16 %v8348, %v8340
        %v8805 = vpack.c.b16 %v8349, %v8341
        %v8806 = vpack.c.b16 %v8350, %v8342
        %v8807 = vpack.c.b16 %v8351, %v8343
        %v8808 = vpack.c.b16 %v8352, %v8344
        %v8809 = vpack.c.b16 %v8361, %v8353
        %v8810 = vpack.c.b16 %v8362, %v8354
        %v8811 = vpack.c.b16 %v8363, %v8355
        %v8812 = vpack.c.b16 %v8364, %v8356
        %v8813 = vpack.c.b16 %v8365, %v8357
        %v8814 = vpack.c.b16 %v8366, %v8358
        %v8815 = vpack.c.b16 %v8367, %v8359
        %v8816 = vpack.c.b16 %v8368, %v8360
        %v8817 = vpack.c.b16 %v8377, %v8369
        %v8818 = vpack.c.b16 %v8378, %v8370
        %v8819 = vpack.c.b16 %v8379, %v8371
        %v8820 = vpack.c.b16 %v8380, %v8372
        %v8821 = vpack.c.b16 %v8381, %v8373
        %v8822 = vpack.c.b16 %v8382, %v8374
        %v8823 = vpack.c.b16 %v8383, %v8375
        %v8824 = vpack.c.b16 %v8384, %v8376
        %v8825 = vpack.c.b16 %v8393, %v8385
        %v8826 = vpack.c.b16 %v8394, %v8386
        %v8827 = vpack.c.b16 %v8395, %v8387
        %v8828 = vpack.c.b16 %v8396, %v8388
        %v8829 = vpack.c.b16 %v8397, %v8389
        %v8830 = vpack.c.b16 %v8398, %v8390
        %v8831 = vpack.c.b16 %v8399, %v8391
        %v8832 = vpack.c.b16 %v8400, %v8392
        %v8833 = vpack.c.b16 %v8409, %v8401
        %v8834 = vpack.c.b16 %v8410, %v8402
        %v8835 = vpack.c.b16 %v8411, %v8403
        %v8836 = vpack.c.b16 %v8412, %v8404
        %v8837 = vpack.c.b16 %v8413, %v8405
        %v8838 = vpack.c.b16 %v8414, %v8406
        %v8839 = vpack.c.b16 %v8415, %v8407
        %v8840 = vpack.c.b16 %v8416, %v8408
        %v8841 = vpack.c.b16 %v8425, %v8417
        %v8842 = vpack.c.b16 %v8426, %v8418
        %v8843 = vpack.c.b16 %v8427, %v8419
        %v8844 = vpack.c.b16 %v8428, %v8420
        %v8845 = vpack.c.b16 %v8429, %v8421
        %v8846 = vpack.c.b16 %v8430, %v8422
        %v8847 = vpack.c.b16 %v8431, %v8423
        %v8848 = vpack.c.b16 %v8432, %v8424
        %v8849 = vpack.c.b16 %v8441, %v8433
        %v8850 = vpack.c.b16 %v8442, %v8434
        %v8851 = vpack.c.b16 %v8443, %v8435
        %v8852 = vpack.c.b16 %v8444, %v8436
        %v8853 = vpack.c.b16 %v8445, %v8437
        %v8854 = vpack.c.b16 %v8446, %v8438
        %v8855 = vpack.c.b16 %v8447, %v8439
        %v8856 = vpack.c.b16 %v8448, %v8440
        %v8857 = vpack.c.b16 %v8457, %v8449
        %v8858 = vpack.c.b16 %v8458, %v8450
        %v8859 = vpack.c.b16 %v8459, %v8451
        %v8860 = vpack.c.b16 %v8460, %v8452
        %v8861 = vpack.c.b16 %v8461, %v8453
        %v8862 = vpack.c.b16 %v8462, %v8454
        %v8863 = vpack.c.b16 %v8463, %v8455
        %v8864 = vpack.c.b16 %v8464, %v8456
        %v8865 = vpack.c.b16 %v8473, %v8465
        %v8866 = vpack.c.b16 %v8474, %v8466
        %v8867 = vpack.c.b16 %v8475, %v8467
        %v8868 = vpack.c.b16 %v8476, %v8468
        %v8869 = vpack.c.b16 %v8477, %v8469
        %v8870 = vpack.c.b16 %v8478, %v8470
        %v8871 = vpack.c.b16 %v8479, %v8471
        %v8872 = vpack.c.b16 %v8480, %v8472
        %v8873 = vpack.c.b16 %v8489, %v8481
        %v8874 = vpack.c.b16 %v8490, %v8482
        %v8875 = vpack.c.b16 %v8491, %v8483
        %v8876 = vpack.c.b16 %v8492, %v8484
        %v8877 = vpack.c.b16 %v8493, %v8485
        %v8878 = vpack.c.b16 %v8494, %v8486
        %v8879 = vpack.c.b16 %v8495, %v8487
        %v8880 = vpack.c.b16 %v8496, %v8488
        %v8881 = vpack.c.b16 %v8505, %v8497
        %v8882 = vpack.c.b16 %v8506, %v8498
        %v8883 = vpack.c.b16 %v8507, %v8499
        %v8884 = vpack.c.b16 %v8508, %v8500
        %v8885 = vpack.c.b16 %v8509, %v8501
        %v8886 = vpack.c.b16 %v8510, %v8502
        %v8887 = vpack.c.b16 %v8511, %v8503
        %v8888 = vpack.c.b16 %v8512, %v8504
        %v8889 = vpack.c.b16 %v8521, %v8513
        %v8890 = vpack.c.b16 %v8522, %v8514
        %v8891 = vpack.c.b16 %v8523, %v8515
        %v8892 = vpack.c.b16 %v8524, %v8516
        %v8893 = vpack.c.b16 %v8525, %v8517
        %v8894 = vpack.c.b16 %v8526, %v8518
        %v8895 = vpack.c.b16 %v8527, %v8519
        %v8896 = vpack.c.b16 %v8528, %v8520
        %v8897 = vpack.c.b16 %v8537, %v8529
        %v8898 = vpack.c.b16 %v8538, %v8530
        %v8899 = vpack.c.b16 %v8539, %v8531
        %v8900 = vpack.c.b16 %v8540, %v8532
        %v8901 = vpack.c.b16 %v8541, %v8533
        %v8902 = vpack.c.b16 %v8542, %v8534
        %v8903 = vpack.c.b16 %v8543, %v8535
        %v8904 = vpack.c.b16 %v8544, %v8536
        %v8905 = vpack.c.b16 %v8553, %v8545
        %v8906 = vpack.c.b16 %v8554, %v8546
        %v8907 = vpack.c.b16 %v8555, %v8547
        %v8908 = vpack.c.b16 %v8556, %v8548
        %v8909 = vpack.c.b16 %v8557, %v8549
        %v8910 = vpack.c.b16 %v8558, %v8550
        %v8911 = vpack.c.b16 %v8559, %v8551
        %v8912 = vpack.c.b16 %v8560, %v8552
        %v8913 = vpack.c.b16 %v8569, %v8561
        %v8914 = vpack.c.b16 %v8570, %v8562
        %v8915 = vpack.c.b16 %v8571, %v8563
        %v8916 = vpack.c.b16 %v8572, %v8564
        %v8917 = vpack.c.b16 %v8573, %v8565
        %v8918 = vpack.c.b16 %v8574, %v8566
        %v8919 = vpack.c.b16 %v8575, %v8567
        %v8920 = vpack.c.b16 %v8576, %v8568
        %v8921 = vpack.c.b16 %v8585, %v8577
        %v8922 = vpack.c.b16 %v8586, %v8578
        %v8923 = vpack.c.b16 %v8587, %v8579
        %v8924 = vpack.c.b16 %v8588, %v8580
        %v8925 = vpack.c.b16 %v8589, %v8581
        %v8926 = vpack.c.b16 %v8590, %v8582
        %v8927 = vpack.c.b16 %v8591, %v8583
        %v8928 = vpack.c.b16 %v8592, %v8584
        %v8929 = vpack.c.b16 %v8601, %v8593
        %v8930 = vpack.c.b16 %v8602, %v8594
        %v8931 = vpack.c.b16 %v8603, %v8595
        %v8932 = vpack.c.b16 %v8604, %v8596
        %v8933 = vpack.c.b16 %v8605, %v8597
        %v8934 = vpack.c.b16 %v8606, %v8598
        %v8935 = vpack.c.b16 %v8607, %v8599
        %v8936 = vpack.c.b16 %v8608, %v8600
        %v8937 = vpack.c.b16 %v8617, %v8609
        %v8938 = vpack.c.b16 %v8618, %v8610
        %v8939 = vpack.c.b16 %v8619, %v8611
        %v8940 = vpack.c.b16 %v8620, %v8612
        %v8941 = vpack.c.b16 %v8621, %v8613
        %v8942 = vpack.c.b16 %v8622, %v8614
        %v8943 = vpack.c.b16 %v8623, %v8615
        %v8944 = vpack.c.b16 %v8624, %v8616
        %v8945 = vpack.c.b16 %v8633, %v8625
        %v8946 = vpack.c.b16 %v8634, %v8626
        %v8947 = vpack.c.b16 %v8635, %v8627
        %v8948 = vpack.c.b16 %v8636, %v8628
        %v8949 = vpack.c.b16 %v8637, %v8629
        %v8950 = vpack.c.b16 %v8638, %v8630
        %v8951 = vpack.c.b16 %v8639, %v8631
        %v8952 = vpack.c.b16 %v8640, %v8632
        %v8953 = vpack.c.b16 %v8649, %v8641
        %v8954 = vpack.c.b16 %v8650, %v8642
        %v8955 = vpack.c.b16 %v8651, %v8643
        %v8956 = vpack.c.b16 %v8652, %v8644
        %v8957 = vpack.c.b16 %v8653, %v8645
        %v8958 = vpack.c.b16 %v8654, %v8646
        %v8959 = vpack.c.b16 %v8655, %v8647
        %v8960 = vpack.c.b16 %v8656, %v8648
        %v8961 = vpack.c.b16 %v8665, %v8657
        %v8962 = vpack.c.b16 %v8666, %v8658
        %v8963 = vpack.c.b16 %v8667, %v8659
        %v8964 = vpack.c.b16 %v8668, %v8660
        %v8965 = vpack.c.b16 %v8669, %v8661
        %v8966 = vpack.c.b16 %v8670, %v8662
        %v8967 = vpack.c.b16 %v8671, %v8663
        %v8968 = vpack.c.b16 %v8672, %v8664
        %v8969 = vpack.c.b16 %v8681, %v8673
        %v8970 = vpack.c.b16 %v8682, %v8674
        %v8971 = vpack.c.b16 %v8683, %v8675
        %v8972 = vpack.c.b16 %v8684, %v8676
        %v8973 = vpack.c.b16 %v8685, %v8677
        %v8974 = vpack.c.b16 %v8686, %v8678
        %v8975 = vpack.c.b16 %v8687, %v8679
        %v8976 = vpack.c.b16 %v8688, %v8680
        %v8977 = vpack.c.b16 %v8697, %v8689
        %v8978 = vpack.c.b16 %v8698, %v8690
        %v8979 = vpack.c.b16 %v8699, %v8691
        %v8980 = vpack.c.b16 %v8700, %v8692
        %v8981 = vpack.c.b16 %v8701, %v8693
        %v8982 = vpack.c.b16 %v8702, %v8694
        %v8983 = vpack.c.b16 %v8703, %v8695
        %v8984 = vpack.c.b16 %v8704, %v8696
        %v8985 = vpack.c.b16 %v8713, %v8705
        %v8986 = vpack.c.b16 %v8714, %v8706
        %v8987 = vpack.c.b16 %v8715, %v8707
        %v8988 = vpack.c.b16 %v8716, %v8708
        %v8989 = vpack.c.b16 %v8717, %v8709
        %v8990 = vpack.c.b16 %v8718, %v8710
        %v8991 = vpack.c.b16 %v8719, %v8711
        %v8992 = vpack.c.b16 %v8720, %v8712
        %v8993 = vpack.c.b16 %v8729, %v8721
        %v8994 = vpack.c.b16 %v8730, %v8722
        %v8995 = vpack.c.b16 %v8731, %v8723
        %v8996 = vpack.c.b16 %v8732, %v8724
        %v8997 = vpack.c.b16 %v8733, %v8725
        %v8998 = vpack.c.b16 %v8734, %v8726
        %v8999 = vpack.c.b16 %v8735, %v8727
        %v9000 = vpack.c.b16 %v8736, %v8728
        %v9001 = vpack.c.b16 %v8745, %v8737
        %v9002 = vpack.c.b16 %v8746, %v8738
        %v9003 = vpack.c.b16 %v8747, %v8739
        %v9004 = vpack.c.b16 %v8748, %v8740
        %v9005 = vpack.c.b16 %v8749, %v8741
        %v9006 = vpack.c.b16 %v8750, %v8742
        %v9007 = vpack.c.b16 %v8751, %v8743
        %v9008 = vpack.c.b16 %v8752, %v8744
        %9265 = vmatprep.subr.bf16.mxu0 0
        %9266 = vmatpush1.bf16.msra.mxu0 %v7544
        %9267 = vmatprep.subr.bf16.mxu0 0
        %9268 = vmatpush1.bf16.msra.mxu0 %v7543
        %9269 = vmatprep.subr.bf16.mxu0 0
        %9270 = vmatpush1.bf16.msra.mxu0 %v7542
        %9271 = vmatprep.subr.bf16.mxu0 0
        %9272 = vmatpush1.bf16.msra.mxu0 %v7541
        %9273 = vmatprep.subr.bf16.mxu0 0
        %9274 = vmatpush1.bf16.msra.mxu0 %v7540
        %9275 = vmatprep.subr.bf16.mxu0 0
        %9276 = vmatpush1.bf16.msra.mxu0 %v7539
        %9277 = vmatprep.subr.bf16.mxu0 0
        %9278 = vmatpush1.bf16.msra.mxu0 %v7538
        %9279 = vmatprep.subr.bf16.mxu0 0
        %9280 = vmatpush1.bf16.msra.mxu0 %v7537
        %9281 = vmatprep.subr.bf16.mxu0 0
        %9282 = vmatpush2.bf16.msra.mxu0 %v7552
        %9283 = vmatprep.subr.bf16.mxu0 0
        %9284 = vmatpush2.bf16.msra.mxu0 %v7551
        %9285 = vmatprep.subr.bf16.mxu0 0
        %9286 = vmatpush2.bf16.msra.mxu0 %v7550
        %9287 = vmatprep.subr.bf16.mxu0 0
        %9288 = vmatpush2.bf16.msra.mxu0 %v7549
        %9289 = vmatprep.subr.bf16.mxu0 0
        %9290 = vmatpush2.bf16.msra.mxu0 %v7548
        %9291 = vmatprep.subr.bf16.mxu0 0
        %9292 = vmatpush2.bf16.msra.mxu0 %v7547
        %9293 = vmatprep.subr.bf16.mxu0 0
        %9294 = vmatpush2.bf16.msra.mxu0 %v7546
        %9295 = vmatprep.subr.bf16.mxu0 0
        %9296 = vmatpush2.bf16.msra.mxu0 %v7545
        %9297 = vmatprep.mubr.bf16.mxu0 %v8754
        %9298 = vmatmul.mubr.bf16.gmra.mxu0 %v8753
        %v9299 = vpop.f32.mrf.mxu0
        %v9300 = vadd.f32 %v7668, %v9299
        %v9301 = vpop.f32.mrf.mxu0
        %v9302 = vpop.f32.mrf.mxu0
        %v9303 = vadd.f32 %v7673, %v9302
        %v9304 = vpop.f32.mrf.mxu0
        %9305 = vmatprep.mubr.bf16.mxu0 %v8762
        %9306 = vmatmul.mubr.bf16.gmra.mxu0 %v8761
        %v9307 = vpop.f32.mrf.mxu0
        %v9308 = vadd.f32 %v7678, %v9307
        %v9309 = vpop.f32.mrf.mxu0
        %v9310 = vpop.f32.mrf.mxu0
        %v9311 = vadd.f32 %v7683, %v9310
        %v9312 = vpop.f32.mrf.mxu0
        %9313 = vmatprep.mubr.bf16.mxu0 %v8770
        %9314 = vmatmul.mubr.bf16.gmra.mxu0 %v8769
        %v9315 = vpop.f32.mrf.mxu0
        %v9316 = vadd.f32 %v7688, %v9315
        %v9317 = vpop.f32.mrf.mxu0
        %v9318 = vpop.f32.mrf.mxu0
        %v9319 = vadd.f32 %v7693, %v9318
        %v9320 = vpop.f32.mrf.mxu0
        %9321 = vmatprep.mubr.bf16.mxu0 %v8778
        %9322 = vmatmul.mubr.bf16.gmra.mxu0 %v8777
        %v9323 = vpop.f32.mrf.mxu0
        %v9324 = vadd.f32 %v7698, %v9323
        %v9325 = vpop.f32.mrf.mxu0
        %v9326 = vpop.f32.mrf.mxu0
        %v9327 = vadd.f32 %v7703, %v9326
        %v9328 = vpop.f32.mrf.mxu0
        %9329 = vmatprep.mubr.bf16.mxu0 %v8786
        %9330 = vmatmul.mubr.bf16.gmra.mxu0 %v8785
        %v9331 = vpop.f32.mrf.mxu0
        %v9332 = vadd.f32 %v7708, %v9331
        %v9333 = vpop.f32.mrf.mxu0
        %v9334 = vpop.f32.mrf.mxu0
        %v9335 = vadd.f32 %v7713, %v9334
        %v9336 = vpop.f32.mrf.mxu0
        %9337 = vmatprep.mubr.bf16.mxu0 %v8794
        %9338 = vmatmul.mubr.bf16.gmra.mxu0 %v8793
        %v9339 = vpop.f32.mrf.mxu0
        %v9340 = vadd.f32 %v7718, %v9339
        %v9341 = vpop.f32.mrf.mxu0
        %v9342 = vpop.f32.mrf.mxu0
        %v9343 = vadd.f32 %v7723, %v9342
        %v9344 = vpop.f32.mrf.mxu0
        %9345 = vmatprep.mubr.bf16.mxu0 %v8802
        %9346 = vmatmul.mubr.bf16.gmra.mxu0 %v8801
        %v9347 = vpop.f32.mrf.mxu0
        %v9348 = vadd.f32 %v7728, %v9347
        %v9349 = vpop.f32.mrf.mxu0
        %v9350 = vpop.f32.mrf.mxu0
        %v9351 = vadd.f32 %v7733, %v9350
        %v9352 = vpop.f32.mrf.mxu0
        %9353 = vmatprep.mubr.bf16.mxu0 %v8810
        %9354 = vmatmul.mubr.bf16.gmra.mxu0 %v8809
        %v9355 = vpop.f32.mrf.mxu0
        %v9356 = vadd.f32 %v7738, %v9355
        %v9357 = vpop.f32.mrf.mxu0
        %v9358 = vpop.f32.mrf.mxu0
        %v9359 = vadd.f32 %v7743, %v9358
        %v9360 = vpop.f32.mrf.mxu0
        %9361 = vmatprep.mubr.bf16.mxu0 %v8818
        %9362 = vmatmul.mubr.bf16.gmra.mxu0 %v8817
        %v9363 = vpop.f32.mrf.mxu0
        %v9364 = vadd.f32 %v7748, %v9363
        %v9365 = vpop.f32.mrf.mxu0
        %v9366 = vpop.f32.mrf.mxu0
        %v9367 = vadd.f32 %v7753, %v9366
        %v9368 = vpop.f32.mrf.mxu0
        %9369 = vmatprep.mubr.bf16.mxu0 %v8826
        %9370 = vmatmul.mubr.bf16.gmra.mxu0 %v8825
        %v9371 = vpop.f32.mrf.mxu0
        %v9372 = vadd.f32 %v7758, %v9371
        %v9373 = vpop.f32.mrf.mxu0
        %v9374 = vpop.f32.mrf.mxu0
        %v9375 = vadd.f32 %v7763, %v9374
        %v9376 = vpop.f32.mrf.mxu0
        %9377 = vmatprep.mubr.bf16.mxu0 %v8834
        %9378 = vmatmul.mubr.bf16.gmra.mxu0 %v8833
        %v9379 = vpop.f32.mrf.mxu0
        %v9380 = vadd.f32 %v7768, %v9379
        %v9381 = vpop.f32.mrf.mxu0
        %v9382 = vpop.f32.mrf.mxu0
        %v9383 = vadd.f32 %v7773, %v9382
        %v9384 = vpop.f32.mrf.mxu0
        %9385 = vmatprep.mubr.bf16.mxu0 %v8842
        %9386 = vmatmul.mubr.bf16.gmra.mxu0 %v8841
        %v9387 = vpop.f32.mrf.mxu0
        %v9388 = vadd.f32 %v7778, %v9387
        %v9389 = vpop.f32.mrf.mxu0
        %v9390 = vpop.f32.mrf.mxu0
        %v9391 = vadd.f32 %v7783, %v9390
        %v9392 = vpop.f32.mrf.mxu0
        %9393 = vmatprep.mubr.bf16.mxu0 %v8850
        %9394 = vmatmul.mubr.bf16.gmra.mxu0 %v8849
        %v9395 = vpop.f32.mrf.mxu0
        %v9396 = vadd.f32 %v7788, %v9395
        %v9397 = vpop.f32.mrf.mxu0
        %v9398 = vpop.f32.mrf.mxu0
        %v9399 = vadd.f32 %v7793, %v9398
        %v9400 = vpop.f32.mrf.mxu0
        %9401 = vmatprep.mubr.bf16.mxu0 %v8858
        %9402 = vmatmul.mubr.bf16.gmra.mxu0 %v8857
        %v9403 = vpop.f32.mrf.mxu0
        %v9404 = vadd.f32 %v7798, %v9403
        %v9405 = vpop.f32.mrf.mxu0
        %v9406 = vpop.f32.mrf.mxu0
        %v9407 = vadd.f32 %v7803, %v9406
        %v9408 = vpop.f32.mrf.mxu0
        %9409 = vmatprep.mubr.bf16.mxu0 %v8866
        %9410 = vmatmul.mubr.bf16.gmra.mxu0 %v8865
        %v9411 = vpop.f32.mrf.mxu0
        %v9412 = vadd.f32 %v7808, %v9411
        %v9413 = vpop.f32.mrf.mxu0
        %v9414 = vpop.f32.mrf.mxu0
        %v9415 = vadd.f32 %v7813, %v9414
        %v9416 = vpop.f32.mrf.mxu0
        %9417 = vmatprep.mubr.bf16.mxu0 %v8874
        %9418 = vmatmul.mubr.bf16.gmra.mxu0 %v8873
        %v9419 = vpop.f32.mrf.mxu0
        %v9420 = vadd.f32 %v7818, %v9419
        %v9421 = vpop.f32.mrf.mxu0
        %v9422 = vpop.f32.mrf.mxu0
        %v9423 = vadd.f32 %v7823, %v9422
        %v9424 = vpop.f32.mrf.mxu0
        %9425 = vmatprep.mubr.bf16.mxu0 %v8882
        %9426 = vmatmul.mubr.bf16.gmra.mxu0 %v8881
        %v9427 = vpop.f32.mrf.mxu0
        %v9428 = vadd.f32 %v7828, %v9427
        %v9429 = vpop.f32.mrf.mxu0
        %v9430 = vpop.f32.mrf.mxu0
        %v9431 = vadd.f32 %v7833, %v9430
        %v9432 = vpop.f32.mrf.mxu0
        %9433 = vmatprep.mubr.bf16.mxu0 %v8890
        %9434 = vmatmul.mubr.bf16.gmra.mxu0 %v8889
        %v9435 = vpop.f32.mrf.mxu0
        %v9436 = vadd.f32 %v7838, %v9435
        %v9437 = vpop.f32.mrf.mxu0
        %v9438 = vpop.f32.mrf.mxu0
        %v9439 = vadd.f32 %v7843, %v9438
        %v9440 = vpop.f32.mrf.mxu0
        %9441 = vmatprep.mubr.bf16.mxu0 %v8898
        %9442 = vmatmul.mubr.bf16.gmra.mxu0 %v8897
        %v9443 = vpop.f32.mrf.mxu0
        %v9444 = vadd.f32 %v7848, %v9443
        %v9445 = vpop.f32.mrf.mxu0
        %v9446 = vpop.f32.mrf.mxu0
        %v9447 = vadd.f32 %v7853, %v9446
        %v9448 = vpop.f32.mrf.mxu0
        %9449 = vmatprep.mubr.bf16.mxu0 %v8906
        %9450 = vmatmul.mubr.bf16.gmra.mxu0 %v8905
        %v9451 = vpop.f32.mrf.mxu0
        %v9452 = vadd.f32 %v7858, %v9451
        %v9453 = vpop.f32.mrf.mxu0
        %v9454 = vpop.f32.mrf.mxu0
        %v9455 = vadd.f32 %v7863, %v9454
        %v9456 = vpop.f32.mrf.mxu0
        %9457 = vmatprep.mubr.bf16.mxu0 %v8914
        %9458 = vmatmul.mubr.bf16.gmra.mxu0 %v8913
        %v9459 = vpop.f32.mrf.mxu0
        %v9460 = vadd.f32 %v7868, %v9459
        %v9461 = vpop.f32.mrf.mxu0
        %v9462 = vpop.f32.mrf.mxu0
        %v9463 = vadd.f32 %v7873, %v9462
        %v9464 = vpop.f32.mrf.mxu0
        %9465 = vmatprep.mubr.bf16.mxu0 %v8922
        %9466 = vmatmul.mubr.bf16.gmra.mxu0 %v8921
        %v9467 = vpop.f32.mrf.mxu0
        %v9468 = vadd.f32 %v7878, %v9467
        %v9469 = vpop.f32.mrf.mxu0
        %v9470 = vpop.f32.mrf.mxu0
        %v9471 = vadd.f32 %v7883, %v9470
        %v9472 = vpop.f32.mrf.mxu0
        %9473 = vmatprep.mubr.bf16.mxu0 %v8930
        %9474 = vmatmul.mubr.bf16.gmra.mxu0 %v8929
        %v9475 = vpop.f32.mrf.mxu0
        %v9476 = vadd.f32 %v7888, %v9475
        %v9477 = vpop.f32.mrf.mxu0
        %v9478 = vpop.f32.mrf.mxu0
        %v9479 = vadd.f32 %v7893, %v9478
        %v9480 = vpop.f32.mrf.mxu0
        %9481 = vmatprep.mubr.bf16.mxu0 %v8938
        %9482 = vmatmul.mubr.bf16.gmra.mxu0 %v8937
        %v9483 = vpop.f32.mrf.mxu0
        %v9484 = vadd.f32 %v7898, %v9483
        %v9485 = vpop.f32.mrf.mxu0
        %v9486 = vpop.f32.mrf.mxu0
        %v9487 = vadd.f32 %v7903, %v9486
        %v9488 = vpop.f32.mrf.mxu0
        %9489 = vmatprep.mubr.bf16.mxu0 %v8946
        %9490 = vmatmul.mubr.bf16.gmra.mxu0 %v8945
        %v9491 = vpop.f32.mrf.mxu0
        %v9492 = vadd.f32 %v7908, %v9491
        %v9493 = vpop.f32.mrf.mxu0
        %v9494 = vpop.f32.mrf.mxu0
        %v9495 = vadd.f32 %v7913, %v9494
        %v9496 = vpop.f32.mrf.mxu0
        %9497 = vmatprep.mubr.bf16.mxu0 %v8954
        %9498 = vmatmul.mubr.bf16.gmra.mxu0 %v8953
        %v9499 = vpop.f32.mrf.mxu0
        %v9500 = vadd.f32 %v7918, %v9499
        %v9501 = vpop.f32.mrf.mxu0
        %v9502 = vpop.f32.mrf.mxu0
        %v9503 = vadd.f32 %v7923, %v9502
        %v9504 = vpop.f32.mrf.mxu0
        %9505 = vmatprep.mubr.bf16.mxu0 %v8962
        %9506 = vmatmul.mubr.bf16.gmra.mxu0 %v8961
        %v9507 = vpop.f32.mrf.mxu0
        %v9508 = vadd.f32 %v7928, %v9507
        %v9509 = vpop.f32.mrf.mxu0
        %v9510 = vpop.f32.mrf.mxu0
        %v9511 = vadd.f32 %v7933, %v9510
        %v9512 = vpop.f32.mrf.mxu0
        %9513 = vmatprep.mubr.bf16.mxu0 %v8970
        %9514 = vmatmul.mubr.bf16.gmra.mxu0 %v8969
        %v9515 = vpop.f32.mrf.mxu0
        %v9516 = vadd.f32 %v7938, %v9515
        %v9517 = vpop.f32.mrf.mxu0
        %v9518 = vpop.f32.mrf.mxu0
        %v9519 = vadd.f32 %v7943, %v9518
        %v9520 = vpop.f32.mrf.mxu0
        %9521 = vmatprep.mubr.bf16.mxu0 %v8978
        %9522 = vmatmul.mubr.bf16.gmra.mxu0 %v8977
        %v9523 = vpop.f32.mrf.mxu0
        %v9524 = vadd.f32 %v7948, %v9523
        %v9525 = vpop.f32.mrf.mxu0
        %v9526 = vpop.f32.mrf.mxu0
        %v9527 = vadd.f32 %v7953, %v9526
        %v9528 = vpop.f32.mrf.mxu0
        %9529 = vmatprep.mubr.bf16.mxu0 %v8986
        %9530 = vmatmul.mubr.bf16.gmra.mxu0 %v8985
        %v9531 = vpop.f32.mrf.mxu0
        %v9532 = vadd.f32 %v7958, %v9531
        %v9533 = vpop.f32.mrf.mxu0
        %v9534 = vpop.f32.mrf.mxu0
        %v9535 = vadd.f32 %v7963, %v9534
        %v9536 = vpop.f32.mrf.mxu0
        %9537 = vmatprep.mubr.bf16.mxu0 %v8994
        %9538 = vmatmul.mubr.bf16.gmra.mxu0 %v8993
        %v9539 = vpop.f32.mrf.mxu0
        %v9540 = vadd.f32 %v7968, %v9539
        %v9541 = vpop.f32.mrf.mxu0
        %v9542 = vpop.f32.mrf.mxu0
        %v9543 = vadd.f32 %v7973, %v9542
        %v9544 = vpop.f32.mrf.mxu0
        %9545 = vmatprep.mubr.bf16.mxu0 %v9002
        %9546 = vmatmul.mubr.bf16.gmra.mxu0 %v9001
        %v9547 = vpop.f32.mrf.mxu0
        %v9548 = vadd.f32 %v7978, %v9547
        %v9549 = vpop.f32.mrf.mxu0
        %v9550 = vpop.f32.mrf.mxu0
        %v9551 = vadd.f32 %v7983, %v9550
        %v9552 = vpop.f32.mrf.mxu0
        %9553 = vdwg.mxu0
        %9554 = vmatprep.subr.bf16.mxu0 0
        %9555 = vmatpush1.bf16.msra.mxu0 %v7560
        %9556 = vmatprep.subr.bf16.mxu0 0
        %9557 = vmatpush1.bf16.msra.mxu0 %v7559
        %9558 = vmatprep.subr.bf16.mxu0 0
        %9559 = vmatpush1.bf16.msra.mxu0 %v7558
        %9560 = vmatprep.subr.bf16.mxu0 0
        %9561 = vmatpush1.bf16.msra.mxu0 %v7557
        %9562 = vmatprep.subr.bf16.mxu0 0
        %9563 = vmatpush1.bf16.msra.mxu0 %v7556
        %9564 = vmatprep.subr.bf16.mxu0 0
        %9565 = vmatpush1.bf16.msra.mxu0 %v7555
        %9566 = vmatprep.subr.bf16.mxu0 0
        %9567 = vmatpush1.bf16.msra.mxu0 %v7554
        %9568 = vmatprep.subr.bf16.mxu0 0
        %9569 = vmatpush1.bf16.msra.mxu0 %v7553
        %9570 = vmatprep.subr.bf16.mxu0 0
        %9571 = vmatpush2.bf16.msra.mxu0 %v7568
        %9572 = vmatprep.subr.bf16.mxu0 0
        %9573 = vmatpush2.bf16.msra.mxu0 %v7567
        %9574 = vmatprep.subr.bf16.mxu0 0
        %9575 = vmatpush2.bf16.msra.mxu0 %v7566
        %9576 = vmatprep.subr.bf16.mxu0 0
        %9577 = vmatpush2.bf16.msra.mxu0 %v7565
        %9578 = vmatprep.subr.bf16.mxu0 0
        %9579 = vmatpush2.bf16.msra.mxu0 %v7564
        %9580 = vmatprep.subr.bf16.mxu0 0
        %9581 = vmatpush2.bf16.msra.mxu0 %v7563
        %9582 = vmatprep.subr.bf16.mxu0 0
        %9583 = vmatpush2.bf16.msra.mxu0 %v7562
        %9584 = vmatprep.subr.bf16.mxu0 0
        %9585 = vmatpush2.bf16.msra.mxu0 %v7561
        %9586 = vmatprep.mubr.bf16.mxu0 %v8756
        %9587 = vmatmul.mubr.bf16.gmra.mxu0 %v8755
        %v9588 = vpop.f32.mrf.mxu0
        %v9589 = vadd.f32 %v9300, %v9588
        %v9590 = vpop.f32.mrf.mxu0
        %v9591 = vpop.f32.mrf.mxu0
        %v9592 = vadd.f32 %v9303, %v9591
        %v9593 = vpop.f32.mrf.mxu0
        %9594 = vmatprep.mubr.bf16.mxu0 %v8764
        %9595 = vmatmul.mubr.bf16.gmra.mxu0 %v8763
        %v9596 = vpop.f32.mrf.mxu0
        %v9597 = vadd.f32 %v9308, %v9596
        %v9598 = vpop.f32.mrf.mxu0
        %v9599 = vpop.f32.mrf.mxu0
        %v9600 = vadd.f32 %v9311, %v9599
        %v9601 = vpop.f32.mrf.mxu0
        %9602 = vmatprep.mubr.bf16.mxu0 %v8772
        %9603 = vmatmul.mubr.bf16.gmra.mxu0 %v8771
        %v9604 = vpop.f32.mrf.mxu0
        %v9605 = vadd.f32 %v9316, %v9604
        %v9606 = vpop.f32.mrf.mxu0
        %v9607 = vpop.f32.mrf.mxu0
        %v9608 = vadd.f32 %v9319, %v9607
        %v9609 = vpop.f32.mrf.mxu0
        %9610 = vmatprep.mubr.bf16.mxu0 %v8780
        %9611 = vmatmul.mubr.bf16.gmra.mxu0 %v8779
        %v9612 = vpop.f32.mrf.mxu0
        %v9613 = vadd.f32 %v9324, %v9612
        %v9614 = vpop.f32.mrf.mxu0
        %v9615 = vpop.f32.mrf.mxu0
        %v9616 = vadd.f32 %v9327, %v9615
        %v9617 = vpop.f32.mrf.mxu0
        %9618 = vmatprep.mubr.bf16.mxu0 %v8788
        %9619 = vmatmul.mubr.bf16.gmra.mxu0 %v8787
        %v9620 = vpop.f32.mrf.mxu0
        %v9621 = vadd.f32 %v9332, %v9620
        %v9622 = vpop.f32.mrf.mxu0
        %v9623 = vpop.f32.mrf.mxu0
        %v9624 = vadd.f32 %v9335, %v9623
        %v9625 = vpop.f32.mrf.mxu0
        %9626 = vmatprep.mubr.bf16.mxu0 %v8796
        %9627 = vmatmul.mubr.bf16.gmra.mxu0 %v8795
        %v9628 = vpop.f32.mrf.mxu0
        %v9629 = vadd.f32 %v9340, %v9628
        %v9630 = vpop.f32.mrf.mxu0
        %v9631 = vpop.f32.mrf.mxu0
        %v9632 = vadd.f32 %v9343, %v9631
        %v9633 = vpop.f32.mrf.mxu0
        %9634 = vmatprep.mubr.bf16.mxu0 %v8804
        %9635 = vmatmul.mubr.bf16.gmra.mxu0 %v8803
        %v9636 = vpop.f32.mrf.mxu0
        %v9637 = vadd.f32 %v9348, %v9636
        %v9638 = vpop.f32.mrf.mxu0
        %v9639 = vpop.f32.mrf.mxu0
        %v9640 = vadd.f32 %v9351, %v9639
        %v9641 = vpop.f32.mrf.mxu0
        %9642 = vmatprep.mubr.bf16.mxu0 %v8812
        %9643 = vmatmul.mubr.bf16.gmra.mxu0 %v8811
        %v9644 = vpop.f32.mrf.mxu0
        %v9645 = vadd.f32 %v9356, %v9644
        %v9646 = vpop.f32.mrf.mxu0
        %v9647 = vpop.f32.mrf.mxu0
        %v9648 = vadd.f32 %v9359, %v9647
        %v9649 = vpop.f32.mrf.mxu0
        %9650 = vmatprep.mubr.bf16.mxu0 %v8820
        %9651 = vmatmul.mubr.bf16.gmra.mxu0 %v8819
        %v9652 = vpop.f32.mrf.mxu0
        %v9653 = vadd.f32 %v9364, %v9652
        %v9654 = vpop.f32.mrf.mxu0
        %v9655 = vpop.f32.mrf.mxu0
        %v9656 = vadd.f32 %v9367, %v9655
        %v9657 = vpop.f32.mrf.mxu0
        %9658 = vmatprep.mubr.bf16.mxu0 %v8828
        %9659 = vmatmul.mubr.bf16.gmra.mxu0 %v8827
        %v9660 = vpop.f32.mrf.mxu0
        %v9661 = vadd.f32 %v9372, %v9660
        %v9662 = vpop.f32.mrf.mxu0
        %v9663 = vpop.f32.mrf.mxu0
        %v9664 = vadd.f32 %v9375, %v9663
        %v9665 = vpop.f32.mrf.mxu0
        %9666 = vmatprep.mubr.bf16.mxu0 %v8836
        %9667 = vmatmul.mubr.bf16.gmra.mxu0 %v8835
        %v9668 = vpop.f32.mrf.mxu0
        %v9669 = vadd.f32 %v9380, %v9668
        %v9670 = vpop.f32.mrf.mxu0
        %v9671 = vpop.f32.mrf.mxu0
        %v9672 = vadd.f32 %v9383, %v9671
        %v9673 = vpop.f32.mrf.mxu0
        %9674 = vmatprep.mubr.bf16.mxu0 %v8844
        %9675 = vmatmul.mubr.bf16.gmra.mxu0 %v8843
        %v9676 = vpop.f32.mrf.mxu0
        %v9677 = vadd.f32 %v9388, %v9676
        %v9678 = vpop.f32.mrf.mxu0
        %v9679 = vpop.f32.mrf.mxu0
        %v9680 = vadd.f32 %v9391, %v9679
        %v9681 = vpop.f32.mrf.mxu0
        %9682 = vmatprep.mubr.bf16.mxu0 %v8852
        %9683 = vmatmul.mubr.bf16.gmra.mxu0 %v8851
        %v9684 = vpop.f32.mrf.mxu0
        %v9685 = vadd.f32 %v9396, %v9684
        %v9686 = vpop.f32.mrf.mxu0
        %v9687 = vpop.f32.mrf.mxu0
        %v9688 = vadd.f32 %v9399, %v9687
        %v9689 = vpop.f32.mrf.mxu0
        %9690 = vmatprep.mubr.bf16.mxu0 %v8860
        %9691 = vmatmul.mubr.bf16.gmra.mxu0 %v8859
        %v9692 = vpop.f32.mrf.mxu0
        %v9693 = vadd.f32 %v9404, %v9692
        %v9694 = vpop.f32.mrf.mxu0
        %v9695 = vpop.f32.mrf.mxu0
        %v9696 = vadd.f32 %v9407, %v9695
        %v9697 = vpop.f32.mrf.mxu0
        %9698 = vmatprep.mubr.bf16.mxu0 %v8868
        %9699 = vmatmul.mubr.bf16.gmra.mxu0 %v8867
        %v9700 = vpop.f32.mrf.mxu0
        %v9701 = vadd.f32 %v9412, %v9700
        %v9702 = vpop.f32.mrf.mxu0
        %v9703 = vpop.f32.mrf.mxu0
        %v9704 = vadd.f32 %v9415, %v9703
        %v9705 = vpop.f32.mrf.mxu0
        %9706 = vmatprep.mubr.bf16.mxu0 %v8876
        %9707 = vmatmul.mubr.bf16.gmra.mxu0 %v8875
        %v9708 = vpop.f32.mrf.mxu0
        %v9709 = vadd.f32 %v9420, %v9708
        %v9710 = vpop.f32.mrf.mxu0
        %v9711 = vpop.f32.mrf.mxu0
        %v9712 = vadd.f32 %v9423, %v9711
        %v9713 = vpop.f32.mrf.mxu0
        %9714 = vmatprep.mubr.bf16.mxu0 %v8884
        %9715 = vmatmul.mubr.bf16.gmra.mxu0 %v8883
        %v9716 = vpop.f32.mrf.mxu0
        %v9717 = vadd.f32 %v9428, %v9716
        %v9718 = vpop.f32.mrf.mxu0
        %v9719 = vpop.f32.mrf.mxu0
        %v9720 = vadd.f32 %v9431, %v9719
        %v9721 = vpop.f32.mrf.mxu0
        %9722 = vmatprep.mubr.bf16.mxu0 %v8892
        %9723 = vmatmul.mubr.bf16.gmra.mxu0 %v8891
        %v9724 = vpop.f32.mrf.mxu0
        %v9725 = vadd.f32 %v9436, %v9724
        %v9726 = vpop.f32.mrf.mxu0
        %v9727 = vpop.f32.mrf.mxu0
        %v9728 = vadd.f32 %v9439, %v9727
        %v9729 = vpop.f32.mrf.mxu0
        %9730 = vmatprep.mubr.bf16.mxu0 %v8900
        %9731 = vmatmul.mubr.bf16.gmra.mxu0 %v8899
        %v9732 = vpop.f32.mrf.mxu0
        %v9733 = vadd.f32 %v9444, %v9732
        %v9734 = vpop.f32.mrf.mxu0
        %v9735 = vpop.f32.mrf.mxu0
        %v9736 = vadd.f32 %v9447, %v9735
        %v9737 = vpop.f32.mrf.mxu0
        %9738 = vmatprep.mubr.bf16.mxu0 %v8908
        %9739 = vmatmul.mubr.bf16.gmra.mxu0 %v8907
        %v9740 = vpop.f32.mrf.mxu0
        %v9741 = vadd.f32 %v9452, %v9740
        %v9742 = vpop.f32.mrf.mxu0
        %v9743 = vpop.f32.mrf.mxu0
        %v9744 = vadd.f32 %v9455, %v9743
        %v9745 = vpop.f32.mrf.mxu0
        %9746 = vmatprep.mubr.bf16.mxu0 %v8916
        %9747 = vmatmul.mubr.bf16.gmra.mxu0 %v8915
        %v9748 = vpop.f32.mrf.mxu0
        %v9749 = vadd.f32 %v9460, %v9748
        %v9750 = vpop.f32.mrf.mxu0
        %v9751 = vpop.f32.mrf.mxu0
        %v9752 = vadd.f32 %v9463, %v9751
        %v9753 = vpop.f32.mrf.mxu0
        %9754 = vmatprep.mubr.bf16.mxu0 %v8924
        %9755 = vmatmul.mubr.bf16.gmra.mxu0 %v8923
        %v9756 = vpop.f32.mrf.mxu0
        %v9757 = vadd.f32 %v9468, %v9756
        %v9758 = vpop.f32.mrf.mxu0
        %v9759 = vpop.f32.mrf.mxu0
        %v9760 = vadd.f32 %v9471, %v9759
        %v9761 = vpop.f32.mrf.mxu0
        %9762 = vmatprep.mubr.bf16.mxu0 %v8932
        %9763 = vmatmul.mubr.bf16.gmra.mxu0 %v8931
        %v9764 = vpop.f32.mrf.mxu0
        %v9765 = vadd.f32 %v9476, %v9764
        %v9766 = vpop.f32.mrf.mxu0
        %v9767 = vpop.f32.mrf.mxu0
        %v9768 = vadd.f32 %v9479, %v9767
        %v9769 = vpop.f32.mrf.mxu0
        %9770 = vmatprep.mubr.bf16.mxu0 %v8940
        %9771 = vmatmul.mubr.bf16.gmra.mxu0 %v8939
        %v9772 = vpop.f32.mrf.mxu0
        %v9773 = vadd.f32 %v9484, %v9772
        %v9774 = vpop.f32.mrf.mxu0
        %v9775 = vpop.f32.mrf.mxu0
        %v9776 = vadd.f32 %v9487, %v9775
        %v9777 = vpop.f32.mrf.mxu0
        %9778 = vmatprep.mubr.bf16.mxu0 %v8948
        %9779 = vmatmul.mubr.bf16.gmra.mxu0 %v8947
        %v9780 = vpop.f32.mrf.mxu0
        %v9781 = vadd.f32 %v9492, %v9780
        %v9782 = vpop.f32.mrf.mxu0
        %v9783 = vpop.f32.mrf.mxu0
        %v9784 = vadd.f32 %v9495, %v9783
        %v9785 = vpop.f32.mrf.mxu0
        %9786 = vmatprep.mubr.bf16.mxu0 %v8956
        %9787 = vmatmul.mubr.bf16.gmra.mxu0 %v8955
        %v9788 = vpop.f32.mrf.mxu0
        %v9789 = vadd.f32 %v9500, %v9788
        %v9790 = vpop.f32.mrf.mxu0
        %v9791 = vpop.f32.mrf.mxu0
        %v9792 = vadd.f32 %v9503, %v9791
        %v9793 = vpop.f32.mrf.mxu0
        %9794 = vmatprep.mubr.bf16.mxu0 %v8964
        %9795 = vmatmul.mubr.bf16.gmra.mxu0 %v8963
        %v9796 = vpop.f32.mrf.mxu0
        %v9797 = vadd.f32 %v9508, %v9796
        %v9798 = vpop.f32.mrf.mxu0
        %v9799 = vpop.f32.mrf.mxu0
        %v9800 = vadd.f32 %v9511, %v9799
        %v9801 = vpop.f32.mrf.mxu0
        %9802 = vmatprep.mubr.bf16.mxu0 %v8972
        %9803 = vmatmul.mubr.bf16.gmra.mxu0 %v8971
        %v9804 = vpop.f32.mrf.mxu0
        %v9805 = vadd.f32 %v9516, %v9804
        %v9806 = vpop.f32.mrf.mxu0
        %v9807 = vpop.f32.mrf.mxu0
        %v9808 = vadd.f32 %v9519, %v9807
        %v9809 = vpop.f32.mrf.mxu0
        %9810 = vmatprep.mubr.bf16.mxu0 %v8980
        %9811 = vmatmul.mubr.bf16.gmra.mxu0 %v8979
        %v9812 = vpop.f32.mrf.mxu0
        %v9813 = vadd.f32 %v9524, %v9812
        %v9814 = vpop.f32.mrf.mxu0
        %v9815 = vpop.f32.mrf.mxu0
        %v9816 = vadd.f32 %v9527, %v9815
        %v9817 = vpop.f32.mrf.mxu0
        %9818 = vmatprep.mubr.bf16.mxu0 %v8988
        %9819 = vmatmul.mubr.bf16.gmra.mxu0 %v8987
        %v9820 = vpop.f32.mrf.mxu0
        %v9821 = vadd.f32 %v9532, %v9820
        %v9822 = vpop.f32.mrf.mxu0
        %v9823 = vpop.f32.mrf.mxu0
        %v9824 = vadd.f32 %v9535, %v9823
        %v9825 = vpop.f32.mrf.mxu0
        %9826 = vmatprep.mubr.bf16.mxu0 %v8996
        %9827 = vmatmul.mubr.bf16.gmra.mxu0 %v8995
        %v9828 = vpop.f32.mrf.mxu0
        %v9829 = vadd.f32 %v9540, %v9828
        %v9830 = vpop.f32.mrf.mxu0
        %v9831 = vpop.f32.mrf.mxu0
        %v9832 = vadd.f32 %v9543, %v9831
        %v9833 = vpop.f32.mrf.mxu0
        %9834 = vmatprep.mubr.bf16.mxu0 %v9004
        %9835 = vmatmul.mubr.bf16.gmra.mxu0 %v9003
        %v9836 = vpop.f32.mrf.mxu0
        %v9837 = vadd.f32 %v9548, %v9836
        %v9838 = vpop.f32.mrf.mxu0
        %v9839 = vpop.f32.mrf.mxu0
        %v9840 = vadd.f32 %v9551, %v9839
        %v9841 = vpop.f32.mrf.mxu0
        %9842 = vdwg.mxu0
        %9843 = vmatprep.subr.bf16.mxu0 0
        %9844 = vmatpush1.bf16.msra.mxu0 %v7576
        %9845 = vmatprep.subr.bf16.mxu0 0
        %9846 = vmatpush1.bf16.msra.mxu0 %v7575
        %9847 = vmatprep.subr.bf16.mxu0 0
        %9848 = vmatpush1.bf16.msra.mxu0 %v7574
        %9849 = vmatprep.subr.bf16.mxu0 0
        %9850 = vmatpush1.bf16.msra.mxu0 %v7573
        %9851 = vmatprep.subr.bf16.mxu0 0
        %9852 = vmatpush1.bf16.msra.mxu0 %v7572
        %9853 = vmatprep.subr.bf16.mxu0 0
        %9854 = vmatpush1.bf16.msra.mxu0 %v7571
        %9855 = vmatprep.subr.bf16.mxu0 0
        %9856 = vmatpush1.bf16.msra.mxu0 %v7570
        %9857 = vmatprep.subr.bf16.mxu0 0
        %9858 = vmatpush1.bf16.msra.mxu0 %v7569
        %9859 = vmatprep.subr.bf16.mxu0 0
        %9860 = vmatpush2.bf16.msra.mxu0 %v7584
        %9861 = vmatprep.subr.bf16.mxu0 0
        %9862 = vmatpush2.bf16.msra.mxu0 %v7583
        %9863 = vmatprep.subr.bf16.mxu0 0
        %9864 = vmatpush2.bf16.msra.mxu0 %v7582
        %9865 = vmatprep.subr.bf16.mxu0 0
        %9866 = vmatpush2.bf16.msra.mxu0 %v7581
        %9867 = vmatprep.subr.bf16.mxu0 0
        %9868 = vmatpush2.bf16.msra.mxu0 %v7580
        %9869 = vmatprep.subr.bf16.mxu0 0
        %9870 = vmatpush2.bf16.msra.mxu0 %v7579
        %9871 = vmatprep.subr.bf16.mxu0 0
        %9872 = vmatpush2.bf16.msra.mxu0 %v7578
        %9873 = vmatprep.subr.bf16.mxu0 0
        %9874 = vmatpush2.bf16.msra.mxu0 %v7577
        %9875 = vmatprep.mubr.bf16.mxu0 %v8758
        %9876 = vmatmul.mubr.bf16.gmra.mxu0 %v8757
        %v9877 = vpop.f32.mrf.mxu0
        %v9878 = vadd.f32 %v9589, %v9877
        %v9879 = vpop.f32.mrf.mxu0
        %v9880 = vpop.f32.mrf.mxu0
        %v9881 = vadd.f32 %v9592, %v9880
        %v9882 = vpop.f32.mrf.mxu0
        %9883 = vmatprep.mubr.bf16.mxu0 %v8766
        %9884 = vmatmul.mubr.bf16.gmra.mxu0 %v8765
        %v9885 = vpop.f32.mrf.mxu0
        %v9886 = vadd.f32 %v9597, %v9885
        %v9887 = vpop.f32.mrf.mxu0
        %v9888 = vpop.f32.mrf.mxu0
        %v9889 = vadd.f32 %v9600, %v9888
        %v9890 = vpop.f32.mrf.mxu0
        %9891 = vmatprep.mubr.bf16.mxu0 %v8774
        %9892 = vmatmul.mubr.bf16.gmra.mxu0 %v8773
        %v9893 = vpop.f32.mrf.mxu0
        %v9894 = vadd.f32 %v9605, %v9893
        %v9895 = vpop.f32.mrf.mxu0
        %v9896 = vpop.f32.mrf.mxu0
        %v9897 = vadd.f32 %v9608, %v9896
        %v9898 = vpop.f32.mrf.mxu0
        %9899 = vmatprep.mubr.bf16.mxu0 %v8782
        %9900 = vmatmul.mubr.bf16.gmra.mxu0 %v8781
        %v9901 = vpop.f32.mrf.mxu0
        %v9902 = vadd.f32 %v9613, %v9901
        %v9903 = vpop.f32.mrf.mxu0
        %v9904 = vpop.f32.mrf.mxu0
        %v9905 = vadd.f32 %v9616, %v9904
        %v9906 = vpop.f32.mrf.mxu0
        %9907 = vmatprep.mubr.bf16.mxu0 %v8790
        %9908 = vmatmul.mubr.bf16.gmra.mxu0 %v8789
        %v9909 = vpop.f32.mrf.mxu0
        %v9910 = vadd.f32 %v9621, %v9909
        %v9911 = vpop.f32.mrf.mxu0
        %v9912 = vpop.f32.mrf.mxu0
        %v9913 = vadd.f32 %v9624, %v9912
        %v9914 = vpop.f32.mrf.mxu0
        %9915 = vmatprep.mubr.bf16.mxu0 %v8798
        %9916 = vmatmul.mubr.bf16.gmra.mxu0 %v8797
        %v9917 = vpop.f32.mrf.mxu0
        %v9918 = vadd.f32 %v9629, %v9917
        %v9919 = vpop.f32.mrf.mxu0
        %v9920 = vpop.f32.mrf.mxu0
        %v9921 = vadd.f32 %v9632, %v9920
        %v9922 = vpop.f32.mrf.mxu0
        %9923 = vmatprep.mubr.bf16.mxu0 %v8806
        %9924 = vmatmul.mubr.bf16.gmra.mxu0 %v8805
        %v9925 = vpop.f32.mrf.mxu0
        %v9926 = vadd.f32 %v9637, %v9925
        %v9927 = vpop.f32.mrf.mxu0
        %v9928 = vpop.f32.mrf.mxu0
        %v9929 = vadd.f32 %v9640, %v9928
        %v9930 = vpop.f32.mrf.mxu0
        %9931 = vmatprep.mubr.bf16.mxu0 %v8814
        %9932 = vmatmul.mubr.bf16.gmra.mxu0 %v8813
        %v9933 = vpop.f32.mrf.mxu0
        %v9934 = vadd.f32 %v9645, %v9933
        %v9935 = vpop.f32.mrf.mxu0
        %v9936 = vpop.f32.mrf.mxu0
        %v9937 = vadd.f32 %v9648, %v9936
        %v9938 = vpop.f32.mrf.mxu0
        %9939 = vmatprep.mubr.bf16.mxu0 %v8822
        %9940 = vmatmul.mubr.bf16.gmra.mxu0 %v8821
        %v9941 = vpop.f32.mrf.mxu0
        %v9942 = vadd.f32 %v9653, %v9941
        %v9943 = vpop.f32.mrf.mxu0
        %v9944 = vpop.f32.mrf.mxu0
        %v9945 = vadd.f32 %v9656, %v9944
        %v9946 = vpop.f32.mrf.mxu0
        %9947 = vmatprep.mubr.bf16.mxu0 %v8830
        %9948 = vmatmul.mubr.bf16.gmra.mxu0 %v8829
        %v9949 = vpop.f32.mrf.mxu0
        %v9950 = vadd.f32 %v9661, %v9949
        %v9951 = vpop.f32.mrf.mxu0
        %v9952 = vpop.f32.mrf.mxu0
        %v9953 = vadd.f32 %v9664, %v9952
        %v9954 = vpop.f32.mrf.mxu0
        %9955 = vmatprep.mubr.bf16.mxu0 %v8838
        %9956 = vmatmul.mubr.bf16.gmra.mxu0 %v8837
        %v9957 = vpop.f32.mrf.mxu0
        %v9958 = vadd.f32 %v9669, %v9957
        %v9959 = vpop.f32.mrf.mxu0
        %v9960 = vpop.f32.mrf.mxu0
        %v9961 = vadd.f32 %v9672, %v9960
        %v9962 = vpop.f32.mrf.mxu0
        %9963 = vmatprep.mubr.bf16.mxu0 %v8846
        %9964 = vmatmul.mubr.bf16.gmra.mxu0 %v8845
        %v9965 = vpop.f32.mrf.mxu0
        %v9966 = vadd.f32 %v9677, %v9965
        %v9967 = vpop.f32.mrf.mxu0
        %v9968 = vpop.f32.mrf.mxu0
        %v9969 = vadd.f32 %v9680, %v9968
        %v9970 = vpop.f32.mrf.mxu0
        %9971 = vmatprep.mubr.bf16.mxu0 %v8854
        %9972 = vmatmul.mubr.bf16.gmra.mxu0 %v8853
        %v9973 = vpop.f32.mrf.mxu0
        %v9974 = vadd.f32 %v9685, %v9973
        %v9975 = vpop.f32.mrf.mxu0
        %v9976 = vpop.f32.mrf.mxu0
        %v9977 = vadd.f32 %v9688, %v9976
        %v9978 = vpop.f32.mrf.mxu0
        %9979 = vmatprep.mubr.bf16.mxu0 %v8862
        %9980 = vmatmul.mubr.bf16.gmra.mxu0 %v8861
        %v9981 = vpop.f32.mrf.mxu0
        %v9982 = vadd.f32 %v9693, %v9981
        %v9983 = vpop.f32.mrf.mxu0
        %v9984 = vpop.f32.mrf.mxu0
        %v9985 = vadd.f32 %v9696, %v9984
        %v9986 = vpop.f32.mrf.mxu0
        %9987 = vmatprep.mubr.bf16.mxu0 %v8870
        %9988 = vmatmul.mubr.bf16.gmra.mxu0 %v8869
        %v9989 = vpop.f32.mrf.mxu0
        %v9990 = vadd.f32 %v9701, %v9989
        %v9991 = vpop.f32.mrf.mxu0
        %v9992 = vpop.f32.mrf.mxu0
        %v9993 = vadd.f32 %v9704, %v9992
        %v9994 = vpop.f32.mrf.mxu0
        %9995 = vmatprep.mubr.bf16.mxu0 %v8878
        %9996 = vmatmul.mubr.bf16.gmra.mxu0 %v8877
        %v9997 = vpop.f32.mrf.mxu0
        %v9998 = vadd.f32 %v9709, %v9997
        %v9999 = vpop.f32.mrf.mxu0
        %v10000 = vpop.f32.mrf.mxu0
        %v10001 = vadd.f32 %v9712, %v10000
        %v10002 = vpop.f32.mrf.mxu0
        %10003 = vmatprep.mubr.bf16.mxu0 %v8886
        %10004 = vmatmul.mubr.bf16.gmra.mxu0 %v8885
        %v10005 = vpop.f32.mrf.mxu0
        %v10006 = vadd.f32 %v9717, %v10005
        %v10007 = vpop.f32.mrf.mxu0
        %v10008 = vpop.f32.mrf.mxu0
        %v10009 = vadd.f32 %v9720, %v10008
        %v10010 = vpop.f32.mrf.mxu0
        %10011 = vmatprep.mubr.bf16.mxu0 %v8894
        %10012 = vmatmul.mubr.bf16.gmra.mxu0 %v8893
        %v10013 = vpop.f32.mrf.mxu0
        %v10014 = vadd.f32 %v9725, %v10013
        %v10015 = vpop.f32.mrf.mxu0
        %v10016 = vpop.f32.mrf.mxu0
        %v10017 = vadd.f32 %v9728, %v10016
        %v10018 = vpop.f32.mrf.mxu0
        %10019 = vmatprep.mubr.bf16.mxu0 %v8902
        %10020 = vmatmul.mubr.bf16.gmra.mxu0 %v8901
        %v10021 = vpop.f32.mrf.mxu0
        %v10022 = vadd.f32 %v9733, %v10021
        %v10023 = vpop.f32.mrf.mxu0
        %v10024 = vpop.f32.mrf.mxu0
        %v10025 = vadd.f32 %v9736, %v10024
        %v10026 = vpop.f32.mrf.mxu0
        %10027 = vmatprep.mubr.bf16.mxu0 %v8910
        %10028 = vmatmul.mubr.bf16.gmra.mxu0 %v8909
        %v10029 = vpop.f32.mrf.mxu0
        %v10030 = vadd.f32 %v9741, %v10029
        %v10031 = vpop.f32.mrf.mxu0
        %v10032 = vpop.f32.mrf.mxu0
        %v10033 = vadd.f32 %v9744, %v10032
        %v10034 = vpop.f32.mrf.mxu0
        %10035 = vmatprep.mubr.bf16.mxu0 %v8918
        %10036 = vmatmul.mubr.bf16.gmra.mxu0 %v8917
        %v10037 = vpop.f32.mrf.mxu0
        %v10038 = vadd.f32 %v9749, %v10037
        %v10039 = vpop.f32.mrf.mxu0
        %v10040 = vpop.f32.mrf.mxu0
        %v10041 = vadd.f32 %v9752, %v10040
        %v10042 = vpop.f32.mrf.mxu0
        %10043 = vmatprep.mubr.bf16.mxu0 %v8926
        %10044 = vmatmul.mubr.bf16.gmra.mxu0 %v8925
        %v10045 = vpop.f32.mrf.mxu0
        %v10046 = vadd.f32 %v9757, %v10045
        %v10047 = vpop.f32.mrf.mxu0
        %v10048 = vpop.f32.mrf.mxu0
        %v10049 = vadd.f32 %v9760, %v10048
        %v10050 = vpop.f32.mrf.mxu0
        %10051 = vmatprep.mubr.bf16.mxu0 %v8934
        %10052 = vmatmul.mubr.bf16.gmra.mxu0 %v8933
        %v10053 = vpop.f32.mrf.mxu0
        %v10054 = vadd.f32 %v9765, %v10053
        %v10055 = vpop.f32.mrf.mxu0
        %v10056 = vpop.f32.mrf.mxu0
        %v10057 = vadd.f32 %v9768, %v10056
        %v10058 = vpop.f32.mrf.mxu0
        %10059 = vmatprep.mubr.bf16.mxu0 %v8942
        %10060 = vmatmul.mubr.bf16.gmra.mxu0 %v8941
        %v10061 = vpop.f32.mrf.mxu0
        %v10062 = vadd.f32 %v9773, %v10061
        %v10063 = vpop.f32.mrf.mxu0
        %v10064 = vpop.f32.mrf.mxu0
        %v10065 = vadd.f32 %v9776, %v10064
        %v10066 = vpop.f32.mrf.mxu0
        %10067 = vmatprep.mubr.bf16.mxu0 %v8950
        %10068 = vmatmul.mubr.bf16.gmra.mxu0 %v8949
        %v10069 = vpop.f32.mrf.mxu0
        %v10070 = vadd.f32 %v9781, %v10069
        %v10071 = vpop.f32.mrf.mxu0
        %v10072 = vpop.f32.mrf.mxu0
        %v10073 = vadd.f32 %v9784, %v10072
        %v10074 = vpop.f32.mrf.mxu0
        %10075 = vmatprep.mubr.bf16.mxu0 %v8958
        %10076 = vmatmul.mubr.bf16.gmra.mxu0 %v8957
        %v10077 = vpop.f32.mrf.mxu0
        %v10078 = vadd.f32 %v9789, %v10077
        %v10079 = vpop.f32.mrf.mxu0
        %v10080 = vpop.f32.mrf.mxu0
        %v10081 = vadd.f32 %v9792, %v10080
        %v10082 = vpop.f32.mrf.mxu0
        %10083 = vmatprep.mubr.bf16.mxu0 %v8966
        %10084 = vmatmul.mubr.bf16.gmra.mxu0 %v8965
        %v10085 = vpop.f32.mrf.mxu0
        %v10086 = vadd.f32 %v9797, %v10085
        %v10087 = vpop.f32.mrf.mxu0
        %v10088 = vpop.f32.mrf.mxu0
        %v10089 = vadd.f32 %v9800, %v10088
        %v10090 = vpop.f32.mrf.mxu0
        %10091 = vmatprep.mubr.bf16.mxu0 %v8974
        %10092 = vmatmul.mubr.bf16.gmra.mxu0 %v8973
        %v10093 = vpop.f32.mrf.mxu0
        %v10094 = vadd.f32 %v9805, %v10093
        %v10095 = vpop.f32.mrf.mxu0
        %v10096 = vpop.f32.mrf.mxu0
        %v10097 = vadd.f32 %v9808, %v10096
        %v10098 = vpop.f32.mrf.mxu0
        %10099 = vmatprep.mubr.bf16.mxu0 %v8982
        %10100 = vmatmul.mubr.bf16.gmra.mxu0 %v8981
        %v10101 = vpop.f32.mrf.mxu0
        %v10102 = vadd.f32 %v9813, %v10101
        %v10103 = vpop.f32.mrf.mxu0
        %v10104 = vpop.f32.mrf.mxu0
        %v10105 = vadd.f32 %v9816, %v10104
        %v10106 = vpop.f32.mrf.mxu0
        %10107 = vmatprep.mubr.bf16.mxu0 %v8990
        %10108 = vmatmul.mubr.bf16.gmra.mxu0 %v8989
        %v10109 = vpop.f32.mrf.mxu0
        %v10110 = vadd.f32 %v9821, %v10109
        %v10111 = vpop.f32.mrf.mxu0
        %v10112 = vpop.f32.mrf.mxu0
        %v10113 = vadd.f32 %v9824, %v10112
        %v10114 = vpop.f32.mrf.mxu0
        %10115 = vmatprep.mubr.bf16.mxu0 %v8998
        %10116 = vmatmul.mubr.bf16.gmra.mxu0 %v8997
        %v10117 = vpop.f32.mrf.mxu0
        %v10118 = vadd.f32 %v9829, %v10117
        %v10119 = vpop.f32.mrf.mxu0
        %v10120 = vpop.f32.mrf.mxu0
        %v10121 = vadd.f32 %v9832, %v10120
        %v10122 = vpop.f32.mrf.mxu0
        %10123 = vmatprep.mubr.bf16.mxu0 %v9006
        %10124 = vmatmul.mubr.bf16.gmra.mxu0 %v9005
        %v10125 = vpop.f32.mrf.mxu0
        %v10126 = vadd.f32 %v9837, %v10125
        %v10127 = vpop.f32.mrf.mxu0
        %v10128 = vpop.f32.mrf.mxu0
        %v10129 = vadd.f32 %v9840, %v10128
        %v10130 = vpop.f32.mrf.mxu0
        %10131 = vdwg.mxu0
        %10132 = vmatprep.subr.bf16.mxu0 0
        %10133 = vmatpush1.bf16.msra.mxu0 %v7592
        %10134 = vmatprep.subr.bf16.mxu0 0
        %10135 = vmatpush1.bf16.msra.mxu0 %v7591
        %10136 = vmatprep.subr.bf16.mxu0 0
        %10137 = vmatpush1.bf16.msra.mxu0 %v7590
        %10138 = vmatprep.subr.bf16.mxu0 0
        %10139 = vmatpush1.bf16.msra.mxu0 %v7589
        %10140 = vmatprep.subr.bf16.mxu0 0
        %10141 = vmatpush1.bf16.msra.mxu0 %v7588
        %10142 = vmatprep.subr.bf16.mxu0 0
        %10143 = vmatpush1.bf16.msra.mxu0 %v7587
        %10144 = vmatprep.subr.bf16.mxu0 0
        %10145 = vmatpush1.bf16.msra.mxu0 %v7586
        %10146 = vmatprep.subr.bf16.mxu0 0
        %10147 = vmatpush1.bf16.msra.mxu0 %v7585
        %10148 = vmatprep.subr.bf16.mxu0 0
        %10149 = vmatpush2.bf16.msra.mxu0 %v7600
        %10150 = vmatprep.subr.bf16.mxu0 0
        %10151 = vmatpush2.bf16.msra.mxu0 %v7599
        %10152 = vmatprep.subr.bf16.mxu0 0
        %10153 = vmatpush2.bf16.msra.mxu0 %v7598
        %10154 = vmatprep.subr.bf16.mxu0 0
        %10155 = vmatpush2.bf16.msra.mxu0 %v7597
        %10156 = vmatprep.subr.bf16.mxu0 0
        %10157 = vmatpush2.bf16.msra.mxu0 %v7596
        %10158 = vmatprep.subr.bf16.mxu0 0
        %10159 = vmatpush2.bf16.msra.mxu0 %v7595
        %10160 = vmatprep.subr.bf16.mxu0 0
        %10161 = vmatpush2.bf16.msra.mxu0 %v7594
        %10162 = vmatprep.subr.bf16.mxu0 0
        %10163 = vmatpush2.bf16.msra.mxu0 %v7593
        %10164 = vmatprep.mubr.bf16.mxu0 %v8760
        %10165 = vmatmul.mubr.bf16.gmra.mxu0 %v8759
        %v10166 = vpop.f32.mrf.mxu0
        %v10167 = vadd.f32 %v9878, %v10166
        %v10168 = vpop.f32.mrf.mxu0
        %v10169 = vpop.f32.mrf.mxu0
        %v10170 = vadd.f32 %v9881, %v10169
        %v10171 = vpop.f32.mrf.mxu0
        %10172 = vmatprep.mubr.bf16.mxu0 %v8768
        %10173 = vmatmul.mubr.bf16.gmra.mxu0 %v8767
        %v10174 = vpop.f32.mrf.mxu0
        %v10175 = vadd.f32 %v9886, %v10174
        %v10176 = vpop.f32.mrf.mxu0
        %v10177 = vpop.f32.mrf.mxu0
        %v10178 = vadd.f32 %v9889, %v10177
        %v10179 = vpop.f32.mrf.mxu0
        %10180 = vmatprep.mubr.bf16.mxu0 %v8776
        %10181 = vmatmul.mubr.bf16.gmra.mxu0 %v8775
        %v10182 = vpop.f32.mrf.mxu0
        %v10183 = vadd.f32 %v9894, %v10182
        %v10184 = vpop.f32.mrf.mxu0
        %v10185 = vpop.f32.mrf.mxu0
        %v10186 = vadd.f32 %v9897, %v10185
        %v10187 = vpop.f32.mrf.mxu0
        %10188 = vmatprep.mubr.bf16.mxu0 %v8784
        %10189 = vmatmul.mubr.bf16.gmra.mxu0 %v8783
        %v10190 = vpop.f32.mrf.mxu0
        %v10191 = vadd.f32 %v9902, %v10190
        %v10192 = vpop.f32.mrf.mxu0
        %v10193 = vpop.f32.mrf.mxu0
        %v10194 = vadd.f32 %v9905, %v10193
        %v10195 = vpop.f32.mrf.mxu0
        %10196 = vmatprep.mubr.bf16.mxu0 %v8792
        %10197 = vmatmul.mubr.bf16.gmra.mxu0 %v8791
        %v10198 = vpop.f32.mrf.mxu0
        %v10199 = vadd.f32 %v9910, %v10198
        %v10200 = vpop.f32.mrf.mxu0
        %v10201 = vpop.f32.mrf.mxu0
        %v10202 = vadd.f32 %v9913, %v10201
        %v10203 = vpop.f32.mrf.mxu0
        %10204 = vmatprep.mubr.bf16.mxu0 %v8800
        %10205 = vmatmul.mubr.bf16.gmra.mxu0 %v8799
        %v10206 = vpop.f32.mrf.mxu0
        %v10207 = vadd.f32 %v9918, %v10206
        %v10208 = vpop.f32.mrf.mxu0
        %v10209 = vpop.f32.mrf.mxu0
        %v10210 = vadd.f32 %v9921, %v10209
        %v10211 = vpop.f32.mrf.mxu0
        %10212 = vmatprep.mubr.bf16.mxu0 %v8808
        %10213 = vmatmul.mubr.bf16.gmra.mxu0 %v8807
        %v10214 = vpop.f32.mrf.mxu0
        %v10215 = vadd.f32 %v9926, %v10214
        %v10216 = vpop.f32.mrf.mxu0
        %v10217 = vpop.f32.mrf.mxu0
        %v10218 = vadd.f32 %v9929, %v10217
        %v10219 = vpop.f32.mrf.mxu0
        %10220 = vmatprep.mubr.bf16.mxu0 %v8816
        %10221 = vmatmul.mubr.bf16.gmra.mxu0 %v8815
        %v10222 = vpop.f32.mrf.mxu0
        %v10223 = vadd.f32 %v9934, %v10222
        %v10224 = vpop.f32.mrf.mxu0
        %v10225 = vpop.f32.mrf.mxu0
        %v10226 = vadd.f32 %v9937, %v10225
        %v10227 = vpop.f32.mrf.mxu0
        %10228 = vmatprep.mubr.bf16.mxu0 %v8824
        %10229 = vmatmul.mubr.bf16.gmra.mxu0 %v8823
        %v10230 = vpop.f32.mrf.mxu0
        %v10231 = vadd.f32 %v9942, %v10230
        %v10232 = vpop.f32.mrf.mxu0
        %v10233 = vpop.f32.mrf.mxu0
        %v10234 = vadd.f32 %v9945, %v10233
        %v10235 = vpop.f32.mrf.mxu0
        %10236 = vmatprep.mubr.bf16.mxu0 %v8832
        %10237 = vmatmul.mubr.bf16.gmra.mxu0 %v8831
        %v10238 = vpop.f32.mrf.mxu0
        %v10239 = vadd.f32 %v9950, %v10238
        %v10240 = vpop.f32.mrf.mxu0
        %v10241 = vpop.f32.mrf.mxu0
        %v10242 = vadd.f32 %v9953, %v10241
        %v10243 = vpop.f32.mrf.mxu0
        %10244 = vmatprep.mubr.bf16.mxu0 %v8840
        %10245 = vmatmul.mubr.bf16.gmra.mxu0 %v8839
        %v10246 = vpop.f32.mrf.mxu0
        %v10247 = vadd.f32 %v9958, %v10246
        %v10248 = vpop.f32.mrf.mxu0
        %v10249 = vpop.f32.mrf.mxu0
        %v10250 = vadd.f32 %v9961, %v10249
        %v10251 = vpop.f32.mrf.mxu0
        %10252 = vmatprep.mubr.bf16.mxu0 %v8848
        %10253 = vmatmul.mubr.bf16.gmra.mxu0 %v8847
        %v10254 = vpop.f32.mrf.mxu0
        %v10255 = vadd.f32 %v9966, %v10254
        %v10256 = vpop.f32.mrf.mxu0
        %v10257 = vpop.f32.mrf.mxu0
        %v10258 = vadd.f32 %v9969, %v10257
        %v10259 = vpop.f32.mrf.mxu0
        %10260 = vmatprep.mubr.bf16.mxu0 %v8856
        %10261 = vmatmul.mubr.bf16.gmra.mxu0 %v8855
        %v10262 = vpop.f32.mrf.mxu0
        %v10263 = vadd.f32 %v9974, %v10262
        %v10264 = vpop.f32.mrf.mxu0
        %v10265 = vpop.f32.mrf.mxu0
        %v10266 = vadd.f32 %v9977, %v10265
        %v10267 = vpop.f32.mrf.mxu0
        %10268 = vmatprep.mubr.bf16.mxu0 %v8864
        %10269 = vmatmul.mubr.bf16.gmra.mxu0 %v8863
        %v10270 = vpop.f32.mrf.mxu0
        %v10271 = vadd.f32 %v9982, %v10270
        %v10272 = vpop.f32.mrf.mxu0
        %v10273 = vpop.f32.mrf.mxu0
        %v10274 = vadd.f32 %v9985, %v10273
        %v10275 = vpop.f32.mrf.mxu0
        %10276 = vmatprep.mubr.bf16.mxu0 %v8872
        %10277 = vmatmul.mubr.bf16.gmra.mxu0 %v8871
        %v10278 = vpop.f32.mrf.mxu0
        %v10279 = vadd.f32 %v9990, %v10278
        %v10280 = vpop.f32.mrf.mxu0
        %v10281 = vpop.f32.mrf.mxu0
        %v10282 = vadd.f32 %v9993, %v10281
        %v10283 = vpop.f32.mrf.mxu0
        %10284 = vmatprep.mubr.bf16.mxu0 %v8880
        %10285 = vmatmul.mubr.bf16.gmra.mxu0 %v8879
        %v10286 = vpop.f32.mrf.mxu0
        %v10287 = vadd.f32 %v9998, %v10286
        %v10288 = vpop.f32.mrf.mxu0
        %v10289 = vpop.f32.mrf.mxu0
        %v10290 = vadd.f32 %v10001, %v10289
        %v10291 = vpop.f32.mrf.mxu0
        %10292 = vmatprep.mubr.bf16.mxu0 %v8888
        %10293 = vmatmul.mubr.bf16.gmra.mxu0 %v8887
        %v10294 = vpop.f32.mrf.mxu0
        %v10295 = vadd.f32 %v10006, %v10294
        %v10296 = vpop.f32.mrf.mxu0
        %v10297 = vpop.f32.mrf.mxu0
        %v10298 = vadd.f32 %v10009, %v10297
        %v10299 = vpop.f32.mrf.mxu0
        %10300 = vmatprep.mubr.bf16.mxu0 %v8896
        %10301 = vmatmul.mubr.bf16.gmra.mxu0 %v8895
        %v10302 = vpop.f32.mrf.mxu0
        %v10303 = vadd.f32 %v10014, %v10302
        %v10304 = vpop.f32.mrf.mxu0
        %v10305 = vpop.f32.mrf.mxu0
        %v10306 = vadd.f32 %v10017, %v10305
        %v10307 = vpop.f32.mrf.mxu0
        %10308 = vmatprep.mubr.bf16.mxu0 %v8904
        %10309 = vmatmul.mubr.bf16.gmra.mxu0 %v8903
        %v10310 = vpop.f32.mrf.mxu0
        %v10311 = vadd.f32 %v10022, %v10310
        %v10312 = vpop.f32.mrf.mxu0
        %v10313 = vpop.f32.mrf.mxu0
        %v10314 = vadd.f32 %v10025, %v10313
        %v10315 = vpop.f32.mrf.mxu0
        %10316 = vmatprep.mubr.bf16.mxu0 %v8912
        %10317 = vmatmul.mubr.bf16.gmra.mxu0 %v8911
        %v10318 = vpop.f32.mrf.mxu0
        %v10319 = vadd.f32 %v10030, %v10318
        %v10320 = vpop.f32.mrf.mxu0
        %v10321 = vpop.f32.mrf.mxu0
        %v10322 = vadd.f32 %v10033, %v10321
        %v10323 = vpop.f32.mrf.mxu0
        %10324 = vmatprep.mubr.bf16.mxu0 %v8920
        %10325 = vmatmul.mubr.bf16.gmra.mxu0 %v8919
        %v10326 = vpop.f32.mrf.mxu0
        %v10327 = vadd.f32 %v10038, %v10326
        %v10328 = vpop.f32.mrf.mxu0
        %v10329 = vpop.f32.mrf.mxu0
        %v10330 = vadd.f32 %v10041, %v10329
        %v10331 = vpop.f32.mrf.mxu0
        %10332 = vmatprep.mubr.bf16.mxu0 %v8928
        %10333 = vmatmul.mubr.bf16.gmra.mxu0 %v8927
        %v10334 = vpop.f32.mrf.mxu0
        %v10335 = vadd.f32 %v10046, %v10334
        %v10336 = vpop.f32.mrf.mxu0
        %v10337 = vpop.f32.mrf.mxu0
        %v10338 = vadd.f32 %v10049, %v10337
        %v10339 = vpop.f32.mrf.mxu0
        %10340 = vmatprep.mubr.bf16.mxu0 %v8936
        %10341 = vmatmul.mubr.bf16.gmra.mxu0 %v8935
        %v10342 = vpop.f32.mrf.mxu0
        %v10343 = vadd.f32 %v10054, %v10342
        %v10344 = vpop.f32.mrf.mxu0
        %v10345 = vpop.f32.mrf.mxu0
        %v10346 = vadd.f32 %v10057, %v10345
        %v10347 = vpop.f32.mrf.mxu0
        %10348 = vmatprep.mubr.bf16.mxu0 %v8944
        %10349 = vmatmul.mubr.bf16.gmra.mxu0 %v8943
        %v10350 = vpop.f32.mrf.mxu0
        %v10351 = vadd.f32 %v10062, %v10350
        %v10352 = vpop.f32.mrf.mxu0
        %v10353 = vpop.f32.mrf.mxu0
        %v10354 = vadd.f32 %v10065, %v10353
        %v10355 = vpop.f32.mrf.mxu0
        %10356 = vmatprep.mubr.bf16.mxu0 %v8952
        %10357 = vmatmul.mubr.bf16.gmra.mxu0 %v8951
        %v10358 = vpop.f32.mrf.mxu0
        %v10359 = vadd.f32 %v10070, %v10358
        %v10360 = vpop.f32.mrf.mxu0
        %v10361 = vpop.f32.mrf.mxu0
        %v10362 = vadd.f32 %v10073, %v10361
        %v10363 = vpop.f32.mrf.mxu0
        %10364 = vmatprep.mubr.bf16.mxu0 %v8960
        %10365 = vmatmul.mubr.bf16.gmra.mxu0 %v8959
        %v10366 = vpop.f32.mrf.mxu0
        %v10367 = vadd.f32 %v10078, %v10366
        %v10368 = vpop.f32.mrf.mxu0
        %v10369 = vpop.f32.mrf.mxu0
        %v10370 = vadd.f32 %v10081, %v10369
        %v10371 = vpop.f32.mrf.mxu0
        %10372 = vmatprep.mubr.bf16.mxu0 %v8968
        %10373 = vmatmul.mubr.bf16.gmra.mxu0 %v8967
        %v10374 = vpop.f32.mrf.mxu0
        %v10375 = vadd.f32 %v10086, %v10374
        %v10376 = vpop.f32.mrf.mxu0
        %v10377 = vpop.f32.mrf.mxu0
        %v10378 = vadd.f32 %v10089, %v10377
        %v10379 = vpop.f32.mrf.mxu0
        %10380 = vmatprep.mubr.bf16.mxu0 %v8976
        %10381 = vmatmul.mubr.bf16.gmra.mxu0 %v8975
        %v10382 = vpop.f32.mrf.mxu0
        %v10383 = vadd.f32 %v10094, %v10382
        %v10384 = vpop.f32.mrf.mxu0
        %v10385 = vpop.f32.mrf.mxu0
        %v10386 = vadd.f32 %v10097, %v10385
        %v10387 = vpop.f32.mrf.mxu0
        %10388 = vmatprep.mubr.bf16.mxu0 %v8984
        %10389 = vmatmul.mubr.bf16.gmra.mxu0 %v8983
        %v10390 = vpop.f32.mrf.mxu0
        %v10391 = vadd.f32 %v10102, %v10390
        %v10392 = vpop.f32.mrf.mxu0
        %v10393 = vpop.f32.mrf.mxu0
        %v10394 = vadd.f32 %v10105, %v10393
        %v10395 = vpop.f32.mrf.mxu0
        %10396 = vmatprep.mubr.bf16.mxu0 %v8992
        %10397 = vmatmul.mubr.bf16.gmra.mxu0 %v8991
        %v10398 = vpop.f32.mrf.mxu0
        %v10399 = vadd.f32 %v10110, %v10398
        %v10400 = vpop.f32.mrf.mxu0
        %v10401 = vpop.f32.mrf.mxu0
        %v10402 = vadd.f32 %v10113, %v10401
        %v10403 = vpop.f32.mrf.mxu0
        %10404 = vmatprep.mubr.bf16.mxu0 %v9000
        %10405 = vmatmul.mubr.bf16.gmra.mxu0 %v8999
        %v10406 = vpop.f32.mrf.mxu0
        %v10407 = vadd.f32 %v10118, %v10406
        %v10408 = vpop.f32.mrf.mxu0
        %v10409 = vpop.f32.mrf.mxu0
        %v10410 = vadd.f32 %v10121, %v10409
        %v10411 = vpop.f32.mrf.mxu0
        %10412 = vmatprep.mubr.bf16.mxu0 %v9008
        %10413 = vmatmul.mubr.bf16.gmra.mxu0 %v9007
        %v10414 = vpop.f32.mrf.mxu0
        %v10415 = vadd.f32 %v10126, %v10414
        %v10416 = vpop.f32.mrf.mxu0
        %v10417 = vpop.f32.mrf.mxu0
        %v10418 = vadd.f32 %v10129, %v10417
        %v10419 = vpop.f32.mrf.mxu0
        %10420 = vdwg.mxu0
        %v10421 = vmax.f32 %v10167, 0.0
        %v10422 = vmax.f32 %v10170, 0.0
        %v10423 = vmax.f32 %v10175, 0.0
        %v10424 = vmax.f32 %v10178, 0.0
        %v10425 = vmax.f32 %v10183, 0.0
        %v10426 = vmax.f32 %v10186, 0.0
        %v10427 = vmax.f32 %v10191, 0.0
        %v10428 = vmax.f32 %v10194, 0.0
        %v10429 = vmax.f32 %v10199, 0.0
        %v10430 = vmax.f32 %v10202, 0.0
        %v10431 = vmax.f32 %v10207, 0.0
        %v10432 = vmax.f32 %v10210, 0.0
        %v10433 = vmax.f32 %v10215, 0.0
        %v10434 = vmax.f32 %v10218, 0.0
        %v10435 = vmax.f32 %v10223, 0.0
        %v10436 = vmax.f32 %v10226, 0.0
        %v10437 = vmax.f32 %v10231, 0.0
        %v10438 = vmax.f32 %v10234, 0.0
        %v10439 = vmax.f32 %v10239, 0.0
        %v10440 = vmax.f32 %v10242, 0.0
        %v10441 = vmax.f32 %v10247, 0.0
        %v10442 = vmax.f32 %v10250, 0.0
        %v10443 = vmax.f32 %v10255, 0.0
        %v10444 = vmax.f32 %v10258, 0.0
        %v10445 = vmax.f32 %v10263, 0.0
        %v10446 = vmax.f32 %v10266, 0.0
        %v10447 = vmax.f32 %v10271, 0.0
        %v10448 = vmax.f32 %v10274, 0.0
        %v10449 = vmax.f32 %v10279, 0.0
        %v10450 = vmax.f32 %v10282, 0.0
        %v10451 = vmax.f32 %v10287, 0.0
        %v10452 = vmax.f32 %v10290, 0.0
        %v10453 = vmax.f32 %v10295, 0.0
        %v10454 = vmax.f32 %v10298, 0.0
        %v10455 = vmax.f32 %v10303, 0.0
        %v10456 = vmax.f32 %v10306, 0.0
        %v10457 = vmax.f32 %v10311, 0.0
        %v10458 = vmax.f32 %v10314, 0.0
        %v10459 = vmax.f32 %v10319, 0.0
        %v10460 = vmax.f32 %v10322, 0.0
        %v10461 = vmax.f32 %v10327, 0.0
        %v10462 = vmax.f32 %v10330, 0.0
        %v10463 = vmax.f32 %v10335, 0.0
        %v10464 = vmax.f32 %v10338, 0.0
        %v10465 = vmax.f32 %v10343, 0.0
        %v10466 = vmax.f32 %v10346, 0.0
        %v10467 = vmax.f32 %v10351, 0.0
        %v10468 = vmax.f32 %v10354, 0.0
        %v10469 = vmax.f32 %v10359, 0.0
        %v10470 = vmax.f32 %v10362, 0.0
        %v10471 = vmax.f32 %v10367, 0.0
        %v10472 = vmax.f32 %v10370, 0.0
        %v10473 = vmax.f32 %v10375, 0.0
        %v10474 = vmax.f32 %v10378, 0.0
        %v10475 = vmax.f32 %v10383, 0.0
        %v10476 = vmax.f32 %v10386, 0.0
        %v10477 = vmax.f32 %v10391, 0.0
        %v10478 = vmax.f32 %v10394, 0.0
        %v10479 = vmax.f32 %v10399, 0.0
        %v10480 = vmax.f32 %v10402, 0.0
        %v10481 = vmax.f32 %v10407, 0.0
        %v10482 = vmax.f32 %v10410, 0.0
        %v10483 = vmax.f32 %v10415, 0.0
        %v10484 = vmax.f32 %v10418, 0.0
        %v10485 = vld [vmem:[#allocation5] sm:$0xff]
        %v10486 = vld [vmem:[#allocation5 + $0x8] sm:$0xff]
        %v10487 = vld [vmem:[#allocation5 + $0x10] sm:$0xff]
        %v10488 = vld [vmem:[#allocation5 + $0x18] sm:$0xff]
        %v10489 = vld [vmem:[#allocation5 + $0x20] sm:$0xff]
        %v10490 = vld [vmem:[#allocation5 + $0x28] sm:$0xff]
        %v10491 = vld [vmem:[#allocation5 + $0x30] sm:$0xff]
        %v10492 = vld [vmem:[#allocation5 + $0x38] sm:$0xff]
        %v10493 = vld [vmem:[#allocation5 + $0x40] sm:$0xff]
        %v10494 = vld [vmem:[#allocation5 + $0x48] sm:$0xff]
        %v10495 = vld [vmem:[#allocation5 + $0x50] sm:$0xff]
        %v10496 = vld [vmem:[#allocation5 + $0x58] sm:$0xff]
        %v10497 = vld [vmem:[#allocation5 + $0x60] sm:$0xff]
        %v10498 = vld [vmem:[#allocation5 + $0x68] sm:$0xff]
        %v10499 = vld [vmem:[#allocation5 + $0x70] sm:$0xff]
        %v10500 = vld [vmem:[#allocation5 + $0x78] sm:$0xff]
        %v10501 = vld [vmem:[#allocation5 + $0x80] sm:$0xff]
        %v10502 = vld [vmem:[#allocation5 + $0x88] sm:$0xff]
        %v10503 = vld [vmem:[#allocation5 + $0x90] sm:$0xff]
        %v10504 = vld [vmem:[#allocation5 + $0x98] sm:$0xff]
        %v10505 = vld [vmem:[#allocation5 + $0xa0] sm:$0xff]
        %v10506 = vld [vmem:[#allocation5 + $0xa8] sm:$0xff]
        %v10507 = vld [vmem:[#allocation5 + $0xb0] sm:$0xff]
        %v10508 = vld [vmem:[#allocation5 + $0xb8] sm:$0xff]
        %v10509 = vld [vmem:[#allocation5 + $0xc0] sm:$0xff]
        %v10510 = vld [vmem:[#allocation5 + $0xc8] sm:$0xff]
        %v10511 = vld [vmem:[#allocation5 + $0xd0] sm:$0xff]
        %v10512 = vld [vmem:[#allocation5 + $0xd8] sm:$0xff]
        %v10513 = vld [vmem:[#allocation5 + $0xe0] sm:$0xff]
        %v10514 = vld [vmem:[#allocation5 + $0xe8] sm:$0xff]
        %v10515 = vld [vmem:[#allocation5 + $0xf0] sm:$0xff]
        %v10516 = vld [vmem:[#allocation5 + $0xf8] sm:$0xff]
        %v10517 = vld [vmem:[#allocation5 + $0x100] sm:$0xff]
        %v10518 = vld [vmem:[#allocation5 + $0x108] sm:$0xff]
        %v10519 = vld [vmem:[#allocation5 + $0x110] sm:$0xff]
        %v10520 = vld [vmem:[#allocation5 + $0x118] sm:$0xff]
        %v10521 = vld [vmem:[#allocation5 + $0x120] sm:$0xff]
        %v10522 = vld [vmem:[#allocation5 + $0x128] sm:$0xff]
        %v10523 = vld [vmem:[#allocation5 + $0x130] sm:$0xff]
        %v10524 = vld [vmem:[#allocation5 + $0x138] sm:$0xff]
        %v10525 = vld [vmem:[#allocation5 + $0x140] sm:$0xff]
        %v10526 = vld [vmem:[#allocation5 + $0x148] sm:$0xff]
        %v10527 = vld [vmem:[#allocation5 + $0x150] sm:$0xff]
        %v10528 = vld [vmem:[#allocation5 + $0x158] sm:$0xff]
        %v10529 = vld [vmem:[#allocation5 + $0x160] sm:$0xff]
        %v10530 = vld [vmem:[#allocation5 + $0x168] sm:$0xff]
        %v10531 = vld [vmem:[#allocation5 + $0x170] sm:$0xff]
        %v10532 = vld [vmem:[#allocation5 + $0x178] sm:$0xff]
        %v10533 = vld [vmem:[#allocation5 + $0x180] sm:$0xff]
        %v10534 = vld [vmem:[#allocation5 + $0x188] sm:$0xff]
        %v10535 = vld [vmem:[#allocation5 + $0x190] sm:$0xff]
        %v10536 = vld [vmem:[#allocation5 + $0x198] sm:$0xff]
        %v10537 = vld [vmem:[#allocation5 + $0x1a0] sm:$0xff]
        %v10538 = vld [vmem:[#allocation5 + $0x1a8] sm:$0xff]
        %v10539 = vld [vmem:[#allocation5 + $0x1b0] sm:$0xff]
        %v10540 = vld [vmem:[#allocation5 + $0x1b8] sm:$0xff]
        %v10541 = vld [vmem:[#allocation5 + $0x1c0] sm:$0xff]
        %v10542 = vld [vmem:[#allocation5 + $0x1c8] sm:$0xff]
        %v10543 = vld [vmem:[#allocation5 + $0x1d0] sm:$0xff]
        %v10544 = vld [vmem:[#allocation5 + $0x1d8] sm:$0xff]
        %v10545 = vld [vmem:[#allocation5 + $0x1e0] sm:$0xff]
        %v10546 = vld [vmem:[#allocation5 + $0x1e8] sm:$0xff]
        %v10547 = vld [vmem:[#allocation5 + $0x1f0] sm:$0xff]
        %v10548 = vld [vmem:[#allocation5 + $0x1f8] sm:$0xff]
        %v10549 = vpack.c.bf16 %v10422, %v10421
        %v10550 = vpack.c.bf16 %v10424, %v10423
        %v10551 = vpack.c.bf16 %v10426, %v10425
        %v10552 = vpack.c.bf16 %v10428, %v10427
        %v10553 = vpack.c.bf16 %v10430, %v10429
        %v10554 = vpack.c.bf16 %v10432, %v10431
        %v10555 = vpack.c.bf16 %v10434, %v10433
        %v10556 = vpack.c.bf16 %v10436, %v10435
        %v10557 = vpack.c.bf16 %v10438, %v10437
        %v10558 = vpack.c.bf16 %v10440, %v10439
        %v10559 = vpack.c.bf16 %v10442, %v10441
        %v10560 = vpack.c.bf16 %v10444, %v10443
        %v10561 = vpack.c.bf16 %v10446, %v10445
        %v10562 = vpack.c.bf16 %v10448, %v10447
        %v10563 = vpack.c.bf16 %v10450, %v10449
        %v10564 = vpack.c.bf16 %v10452, %v10451
        %v10565 = vpack.c.bf16 %v10454, %v10453
        %v10566 = vpack.c.bf16 %v10456, %v10455
        %v10567 = vpack.c.bf16 %v10458, %v10457
        %v10568 = vpack.c.bf16 %v10460, %v10459
        %v10569 = vpack.c.bf16 %v10462, %v10461
        %v10570 = vpack.c.bf16 %v10464, %v10463
        %v10571 = vpack.c.bf16 %v10466, %v10465
        %v10572 = vpack.c.bf16 %v10468, %v10467
        %v10573 = vpack.c.bf16 %v10470, %v10469
        %v10574 = vpack.c.bf16 %v10472, %v10471
        %v10575 = vpack.c.bf16 %v10474, %v10473
        %v10576 = vpack.c.bf16 %v10476, %v10475
        %v10577 = vpack.c.bf16 %v10478, %v10477
        %v10578 = vpack.c.bf16 %v10480, %v10479
        %v10579 = vpack.c.bf16 %v10482, %v10481
        %v10580 = vpack.c.bf16 %v10484, %v10483
        %v10581 = vld [vmem:[%s10] sm:$0xff]
        %v10582 = vld [vmem:[%s10 + $0x8] sm:$0xff]
        %v10583 = vld [vmem:[%s10 + $0x10] sm:$0xff]
        %v10584 = vld [vmem:[%s10 + $0x18] sm:$0xff]
        %v10585 = vld [vmem:[%s10 + $0x20] sm:$0xff]
        %v10586 = vld [vmem:[%s10 + $0x28] sm:$0xff]
        %v10587 = vld [vmem:[%s10 + $0x30] sm:$0xff]
        %v10588 = vld [vmem:[%s10 + $0x38] sm:$0xff]
        %v10589 = vld [vmem:[%s10 + $0x40] sm:$0xff]
        %v10590 = vld [vmem:[%s10 + $0x48] sm:$0xff]
        %v10591 = vld [vmem:[%s10 + $0x50] sm:$0xff]
        %v10592 = vld [vmem:[%s10 + $0x58] sm:$0xff]
        %v10593 = vld [vmem:[%s10 + $0x60] sm:$0xff]
        %v10594 = vld [vmem:[%s10 + $0x68] sm:$0xff]
        %v10595 = vld [vmem:[%s10 + $0x70] sm:$0xff]
        %v10596 = vld [vmem:[%s10 + $0x78] sm:$0xff]
        %v10597 = vld [vmem:[%s10 + $0x80] sm:$0xff]
        %v10598 = vld [vmem:[%s10 + $0x88] sm:$0xff]
        %v10599 = vld [vmem:[%s10 + $0x90] sm:$0xff]
        %v10600 = vld [vmem:[%s10 + $0x98] sm:$0xff]
        %v10601 = vld [vmem:[%s10 + $0xa0] sm:$0xff]
        %v10602 = vld [vmem:[%s10 + $0xa8] sm:$0xff]
        %v10603 = vld [vmem:[%s10 + $0xb0] sm:$0xff]
        %v10604 = vld [vmem:[%s10 + $0xb8] sm:$0xff]
        %v10605 = vld [vmem:[%s10 + $0xc0] sm:$0xff]
        %v10606 = vld [vmem:[%s10 + $0xc8] sm:$0xff]
        %v10607 = vld [vmem:[%s10 + $0xd0] sm:$0xff]
        %v10608 = vld [vmem:[%s10 + $0xd8] sm:$0xff]
        %v10609 = vld [vmem:[%s10 + $0xe0] sm:$0xff]
        %v10610 = vld [vmem:[%s10 + $0xe8] sm:$0xff]
        %v10611 = vld [vmem:[%s10 + $0xf0] sm:$0xff]
        %v10612 = vld [vmem:[%s10 + $0xf8] sm:$0xff]
        %10614 = vset.pattern.permute.xlu0 0
        %10615 = vperm.xlu0 %10614, %v10581
        %v10616 = vpop.permute.xlu0 %10615
        %10619 = vset.pattern.permute.xlu0 0
        %10620 = vperm.xlu0 %10619, %v10582
        %v10621 = vpop.permute.xlu0 %10620
        %10624 = vset.pattern.permute.xlu0 0
        %10625 = vperm.xlu0 %10624, %v10583
        %v10626 = vpop.permute.xlu0 %10625
        %10629 = vset.pattern.permute.xlu0 0
        %10630 = vperm.xlu0 %10629, %v10584
        %v10631 = vpop.permute.xlu0 %10630
        %10634 = vset.pattern.permute.xlu0 0
        %10635 = vperm.xlu0 %10634, %v10585
        %v10636 = vpop.permute.xlu0 %10635
        %10639 = vset.pattern.permute.xlu0 0
        %10640 = vperm.xlu0 %10639, %v10586
        %v10641 = vpop.permute.xlu0 %10640
        %10644 = vset.pattern.permute.xlu0 0
        %10645 = vperm.xlu0 %10644, %v10587
        %v10646 = vpop.permute.xlu0 %10645
        %10649 = vset.pattern.permute.xlu0 0
        %10650 = vperm.xlu0 %10649, %v10588
        %v10651 = vpop.permute.xlu0 %10650
        %10654 = vset.pattern.permute.xlu0 0
        %10655 = vperm.xlu0 %10654, %v10589
        %v10656 = vpop.permute.xlu0 %10655
        %10659 = vset.pattern.permute.xlu0 0
        %10660 = vperm.xlu0 %10659, %v10590
        %v10661 = vpop.permute.xlu0 %10660
        %10664 = vset.pattern.permute.xlu0 0
        %10665 = vperm.xlu0 %10664, %v10591
        %v10666 = vpop.permute.xlu0 %10665
        %10669 = vset.pattern.permute.xlu0 0
        %10670 = vperm.xlu0 %10669, %v10592
        %v10671 = vpop.permute.xlu0 %10670
        %10674 = vset.pattern.permute.xlu0 0
        %10675 = vperm.xlu0 %10674, %v10593
        %v10676 = vpop.permute.xlu0 %10675
        %10679 = vset.pattern.permute.xlu0 0
        %10680 = vperm.xlu0 %10679, %v10594
        %v10681 = vpop.permute.xlu0 %10680
        %10684 = vset.pattern.permute.xlu0 0
        %10685 = vperm.xlu0 %10684, %v10595
        %v10686 = vpop.permute.xlu0 %10685
        %10689 = vset.pattern.permute.xlu0 0
        %10690 = vperm.xlu0 %10689, %v10596
        %v10691 = vpop.permute.xlu0 %10690
        %10694 = vset.pattern.permute.xlu0 0
        %10695 = vperm.xlu0 %10694, %v10597
        %v10696 = vpop.permute.xlu0 %10695
        %10699 = vset.pattern.permute.xlu0 0
        %10700 = vperm.xlu0 %10699, %v10598
        %v10701 = vpop.permute.xlu0 %10700
        %10704 = vset.pattern.permute.xlu0 0
        %10705 = vperm.xlu0 %10704, %v10599
        %v10706 = vpop.permute.xlu0 %10705
        %10709 = vset.pattern.permute.xlu0 0
        %10710 = vperm.xlu0 %10709, %v10600
        %v10711 = vpop.permute.xlu0 %10710
        %10714 = vset.pattern.permute.xlu0 0
        %10715 = vperm.xlu0 %10714, %v10601
        %v10716 = vpop.permute.xlu0 %10715
        %10719 = vset.pattern.permute.xlu0 0
        %10720 = vperm.xlu0 %10719, %v10602
        %v10721 = vpop.permute.xlu0 %10720
        %10724 = vset.pattern.permute.xlu0 0
        %10725 = vperm.xlu0 %10724, %v10603
        %v10726 = vpop.permute.xlu0 %10725
        %10729 = vset.pattern.permute.xlu0 0
        %10730 = vperm.xlu0 %10729, %v10604
        %v10731 = vpop.permute.xlu0 %10730
        %10734 = vset.pattern.permute.xlu0 0
        %10735 = vperm.xlu0 %10734, %v10605
        %v10736 = vpop.permute.xlu0 %10735
        %10739 = vset.pattern.permute.xlu0 0
        %10740 = vperm.xlu0 %10739, %v10606
        %v10741 = vpop.permute.xlu0 %10740
        %10744 = vset.pattern.permute.xlu0 0
        %10745 = vperm.xlu0 %10744, %v10607
        %v10746 = vpop.permute.xlu0 %10745
        %10749 = vset.pattern.permute.xlu0 0
        %10750 = vperm.xlu0 %10749, %v10608
        %v10751 = vpop.permute.xlu0 %10750
        %10754 = vset.pattern.permute.xlu0 0
        %10755 = vperm.xlu0 %10754, %v10609
        %v10756 = vpop.permute.xlu0 %10755
        %10759 = vset.pattern.permute.xlu0 0
        %10760 = vperm.xlu0 %10759, %v10610
        %v10761 = vpop.permute.xlu0 %10760
        %10764 = vset.pattern.permute.xlu0 0
        %10765 = vperm.xlu0 %10764, %v10611
        %v10766 = vpop.permute.xlu0 %10765
        %10769 = vset.pattern.permute.xlu0 0
        %10770 = vperm.xlu0 %10769, %v10612
        %v10771 = vpop.permute.xlu0 %10770
        %v10837 = vunpack.c.l.b16 %v10485
        %v10838 = vunpack.c.h.b16 %v10485
        %v10839 = vunpack.c.l.b16 %v10486
        %v10840 = vunpack.c.h.b16 %v10486
        %v10841 = vunpack.c.l.b16 %v10487
        %v10842 = vunpack.c.h.b16 %v10487
        %v10843 = vunpack.c.l.b16 %v10488
        %v10844 = vunpack.c.h.b16 %v10488
        %v10845 = vunpack.c.l.b16 %v10489
        %v10846 = vunpack.c.h.b16 %v10489
        %v10847 = vunpack.c.l.b16 %v10490
        %v10848 = vunpack.c.h.b16 %v10490
        %v10849 = vunpack.c.l.b16 %v10491
        %v10850 = vunpack.c.h.b16 %v10491
        %v10851 = vunpack.c.l.b16 %v10492
        %v10852 = vunpack.c.h.b16 %v10492
        %v10853 = vunpack.c.l.b16 %v10493
        %v10854 = vunpack.c.h.b16 %v10493
        %v10855 = vunpack.c.l.b16 %v10494
        %v10856 = vunpack.c.h.b16 %v10494
        %v10857 = vunpack.c.l.b16 %v10495
        %v10858 = vunpack.c.h.b16 %v10495
        %v10859 = vunpack.c.l.b16 %v10496
        %v10860 = vunpack.c.h.b16 %v10496
        %v10861 = vunpack.c.l.b16 %v10497
        %v10862 = vunpack.c.h.b16 %v10497
        %v10863 = vunpack.c.l.b16 %v10498
        %v10864 = vunpack.c.h.b16 %v10498
        %v10865 = vunpack.c.l.b16 %v10499
        %v10866 = vunpack.c.h.b16 %v10499
        %v10867 = vunpack.c.l.b16 %v10500
        %v10868 = vunpack.c.h.b16 %v10500
        %v10869 = vunpack.c.l.b16 %v10501
        %v10870 = vunpack.c.h.b16 %v10501
        %v10871 = vunpack.c.l.b16 %v10502
        %v10872 = vunpack.c.h.b16 %v10502
        %v10873 = vunpack.c.l.b16 %v10503
        %v10874 = vunpack.c.h.b16 %v10503
        %v10875 = vunpack.c.l.b16 %v10504
        %v10876 = vunpack.c.h.b16 %v10504
        %v10877 = vunpack.c.l.b16 %v10505
        %v10878 = vunpack.c.h.b16 %v10505
        %v10879 = vunpack.c.l.b16 %v10506
        %v10880 = vunpack.c.h.b16 %v10506
        %v10881 = vunpack.c.l.b16 %v10507
        %v10882 = vunpack.c.h.b16 %v10507
        %v10883 = vunpack.c.l.b16 %v10508
        %v10884 = vunpack.c.h.b16 %v10508
        %v10885 = vunpack.c.l.b16 %v10509
        %v10886 = vunpack.c.h.b16 %v10509
        %v10887 = vunpack.c.l.b16 %v10510
        %v10888 = vunpack.c.h.b16 %v10510
        %v10889 = vunpack.c.l.b16 %v10511
        %v10890 = vunpack.c.h.b16 %v10511
        %v10891 = vunpack.c.l.b16 %v10512
        %v10892 = vunpack.c.h.b16 %v10512
        %v10893 = vunpack.c.l.b16 %v10513
        %v10894 = vunpack.c.h.b16 %v10513
        %v10895 = vunpack.c.l.b16 %v10514
        %v10896 = vunpack.c.h.b16 %v10514
        %v10897 = vunpack.c.l.b16 %v10515
        %v10898 = vunpack.c.h.b16 %v10515
        %v10899 = vunpack.c.l.b16 %v10516
        %v10900 = vunpack.c.h.b16 %v10516
        %v10901 = vunpack.c.l.b16 %v10517
        %v10902 = vunpack.c.h.b16 %v10517
        %v10903 = vunpack.c.l.b16 %v10518
        %v10904 = vunpack.c.h.b16 %v10518
        %v10905 = vunpack.c.l.b16 %v10519
        %v10906 = vunpack.c.h.b16 %v10519
        %v10907 = vunpack.c.l.b16 %v10520
        %v10908 = vunpack.c.h.b16 %v10520
        %v10909 = vunpack.c.l.b16 %v10521
        %v10910 = vunpack.c.h.b16 %v10521
        %v10911 = vunpack.c.l.b16 %v10522
        %v10912 = vunpack.c.h.b16 %v10522
        %v10913 = vunpack.c.l.b16 %v10523
        %v10914 = vunpack.c.h.b16 %v10523
        %v10915 = vunpack.c.l.b16 %v10524
        %v10916 = vunpack.c.h.b16 %v10524
        %v10917 = vunpack.c.l.b16 %v10525
        %v10918 = vunpack.c.h.b16 %v10525
        %v10919 = vunpack.c.l.b16 %v10526
        %v10920 = vunpack.c.h.b16 %v10526
        %v10921 = vunpack.c.l.b16 %v10527
        %v10922 = vunpack.c.h.b16 %v10527
        %v10923 = vunpack.c.l.b16 %v10528
        %v10924 = vunpack.c.h.b16 %v10528
        %v10925 = vunpack.c.l.b16 %v10529
        %v10926 = vunpack.c.h.b16 %v10529
        %v10927 = vunpack.c.l.b16 %v10530
        %v10928 = vunpack.c.h.b16 %v10530
        %v10929 = vunpack.c.l.b16 %v10531
        %v10930 = vunpack.c.h.b16 %v10531
        %v10931 = vunpack.c.l.b16 %v10532
        %v10932 = vunpack.c.h.b16 %v10532
        %v10933 = vunpack.c.l.b16 %v10533
        %v10934 = vunpack.c.h.b16 %v10533
        %v10935 = vunpack.c.l.b16 %v10534
        %v10936 = vunpack.c.h.b16 %v10534
        %v10937 = vunpack.c.l.b16 %v10535
        %v10938 = vunpack.c.h.b16 %v10535
        %v10939 = vunpack.c.l.b16 %v10536
        %v10940 = vunpack.c.h.b16 %v10536
        %v10941 = vunpack.c.l.b16 %v10537
        %v10942 = vunpack.c.h.b16 %v10537
        %v10943 = vunpack.c.l.b16 %v10538
        %v10944 = vunpack.c.h.b16 %v10538
        %v10945 = vunpack.c.l.b16 %v10539
        %v10946 = vunpack.c.h.b16 %v10539
        %v10947 = vunpack.c.l.b16 %v10540
        %v10948 = vunpack.c.h.b16 %v10540
        %v10949 = vunpack.c.l.b16 %v10541
        %v10950 = vunpack.c.h.b16 %v10541
        %v10951 = vunpack.c.l.b16 %v10542
        %v10952 = vunpack.c.h.b16 %v10542
        %v10953 = vunpack.c.l.b16 %v10543
        %v10954 = vunpack.c.h.b16 %v10543
        %v10955 = vunpack.c.l.b16 %v10544
        %v10956 = vunpack.c.h.b16 %v10544
        %v10957 = vunpack.c.l.b16 %v10545
        %v10958 = vunpack.c.h.b16 %v10545
        %v10959 = vunpack.c.l.b16 %v10546
        %v10960 = vunpack.c.h.b16 %v10546
        %v10961 = vunpack.c.l.b16 %v10547
        %v10962 = vunpack.c.h.b16 %v10547
        %v10963 = vunpack.c.l.b16 %v10548
        %v10964 = vunpack.c.h.b16 %v10548
        %v10965 = vpack.c.b16 %v10841, %v10837
        %v10966 = vpack.c.b16 %v10842, %v10838
        %v10967 = vpack.c.b16 %v10843, %v10839
        %v10968 = vpack.c.b16 %v10844, %v10840
        %v10969 = vpack.c.b16 %v10849, %v10845
        %v10970 = vpack.c.b16 %v10850, %v10846
        %v10971 = vpack.c.b16 %v10851, %v10847
        %v10972 = vpack.c.b16 %v10852, %v10848
        %v10973 = vpack.c.b16 %v10857, %v10853
        %v10974 = vpack.c.b16 %v10858, %v10854
        %v10975 = vpack.c.b16 %v10859, %v10855
        %v10976 = vpack.c.b16 %v10860, %v10856
        %v10977 = vpack.c.b16 %v10865, %v10861
        %v10978 = vpack.c.b16 %v10866, %v10862
        %v10979 = vpack.c.b16 %v10867, %v10863
        %v10980 = vpack.c.b16 %v10868, %v10864
        %v10981 = vpack.c.b16 %v10873, %v10869
        %v10982 = vpack.c.b16 %v10874, %v10870
        %v10983 = vpack.c.b16 %v10875, %v10871
        %v10984 = vpack.c.b16 %v10876, %v10872
        %v10985 = vpack.c.b16 %v10881, %v10877
        %v10986 = vpack.c.b16 %v10882, %v10878
        %v10987 = vpack.c.b16 %v10883, %v10879
        %v10988 = vpack.c.b16 %v10884, %v10880
        %v10989 = vpack.c.b16 %v10889, %v10885
        %v10990 = vpack.c.b16 %v10890, %v10886
        %v10991 = vpack.c.b16 %v10891, %v10887
        %v10992 = vpack.c.b16 %v10892, %v10888
        %v10993 = vpack.c.b16 %v10897, %v10893
        %v10994 = vpack.c.b16 %v10898, %v10894
        %v10995 = vpack.c.b16 %v10899, %v10895
        %v10996 = vpack.c.b16 %v10900, %v10896
        %v10997 = vpack.c.b16 %v10905, %v10901
        %v10998 = vpack.c.b16 %v10906, %v10902
        %v10999 = vpack.c.b16 %v10907, %v10903
        %v11000 = vpack.c.b16 %v10908, %v10904
        %v11001 = vpack.c.b16 %v10913, %v10909
        %v11002 = vpack.c.b16 %v10914, %v10910
        %v11003 = vpack.c.b16 %v10915, %v10911
        %v11004 = vpack.c.b16 %v10916, %v10912
        %v11005 = vpack.c.b16 %v10921, %v10917
        %v11006 = vpack.c.b16 %v10922, %v10918
        %v11007 = vpack.c.b16 %v10923, %v10919
        %v11008 = vpack.c.b16 %v10924, %v10920
        %v11009 = vpack.c.b16 %v10929, %v10925
        %v11010 = vpack.c.b16 %v10930, %v10926
        %v11011 = vpack.c.b16 %v10931, %v10927
        %v11012 = vpack.c.b16 %v10932, %v10928
        %v11013 = vpack.c.b16 %v10937, %v10933
        %v11014 = vpack.c.b16 %v10938, %v10934
        %v11015 = vpack.c.b16 %v10939, %v10935
        %v11016 = vpack.c.b16 %v10940, %v10936
        %v11017 = vpack.c.b16 %v10945, %v10941
        %v11018 = vpack.c.b16 %v10946, %v10942
        %v11019 = vpack.c.b16 %v10947, %v10943
        %v11020 = vpack.c.b16 %v10948, %v10944
        %v11021 = vpack.c.b16 %v10953, %v10949
        %v11022 = vpack.c.b16 %v10954, %v10950
        %v11023 = vpack.c.b16 %v10955, %v10951
        %v11024 = vpack.c.b16 %v10956, %v10952
        %v11025 = vpack.c.b16 %v10961, %v10957
        %v11026 = vpack.c.b16 %v10962, %v10958
        %v11027 = vpack.c.b16 %v10963, %v10959
        %v11028 = vpack.c.b16 %v10964, %v10960
        %11093 = vmatprep.subr.bf16.mxu0 0
        %11094 = vmatpush1.bf16.msra.mxu0 %v10556
        %11095 = vmatprep.subr.bf16.mxu0 0
        %11096 = vmatpush1.bf16.msra.mxu0 %v10555
        %11097 = vmatprep.subr.bf16.mxu0 0
        %11098 = vmatpush1.bf16.msra.mxu0 %v10554
        %11099 = vmatprep.subr.bf16.mxu0 0
        %11100 = vmatpush1.bf16.msra.mxu0 %v10553
        %11101 = vmatprep.subr.bf16.mxu0 0
        %11102 = vmatpush1.bf16.msra.mxu0 %v10552
        %11103 = vmatprep.subr.bf16.mxu0 0
        %11104 = vmatpush1.bf16.msra.mxu0 %v10551
        %11105 = vmatprep.subr.bf16.mxu0 0
        %11106 = vmatpush1.bf16.msra.mxu0 %v10550
        %11107 = vmatprep.subr.bf16.mxu0 0
        %11108 = vmatpush1.bf16.msra.mxu0 %v10549
        %11109 = vmatprep.subr.bf16.mxu0 0
        %11110 = vmatpush2.bf16.msra.mxu0 %v10564
        %11111 = vmatprep.subr.bf16.mxu0 0
        %11112 = vmatpush2.bf16.msra.mxu0 %v10563
        %11113 = vmatprep.subr.bf16.mxu0 0
        %11114 = vmatpush2.bf16.msra.mxu0 %v10562
        %11115 = vmatprep.subr.bf16.mxu0 0
        %11116 = vmatpush2.bf16.msra.mxu0 %v10561
        %11117 = vmatprep.subr.bf16.mxu0 0
        %11118 = vmatpush2.bf16.msra.mxu0 %v10560
        %11119 = vmatprep.subr.bf16.mxu0 0
        %11120 = vmatpush2.bf16.msra.mxu0 %v10559
        %11121 = vmatprep.subr.bf16.mxu0 0
        %11122 = vmatpush2.bf16.msra.mxu0 %v10558
        %11123 = vmatprep.subr.bf16.mxu0 0
        %11124 = vmatpush2.bf16.msra.mxu0 %v10557
        %11125 = vmatprep.mubr.bf16.mxu0 %v10966
        %11126 = vmatmul.mubr.bf16.gmra.mxu0 %v10965
        %v11127 = vpop.f32.mrf.mxu0
        %v11128 = vadd.f32 %v10616, %v11127
        %v11129 = vpop.f32.mrf.mxu0
        %v11130 = vpop.f32.mrf.mxu0
        %v11131 = vadd.f32 %v10621, %v11130
        %v11132 = vpop.f32.mrf.mxu0
        %11133 = vmatprep.mubr.bf16.mxu0 %v10970
        %11134 = vmatmul.mubr.bf16.gmra.mxu0 %v10969
        %v11135 = vpop.f32.mrf.mxu0
        %v11136 = vadd.f32 %v10626, %v11135
        %v11137 = vpop.f32.mrf.mxu0
        %v11138 = vpop.f32.mrf.mxu0
        %v11139 = vadd.f32 %v10631, %v11138
        %v11140 = vpop.f32.mrf.mxu0
        %11141 = vmatprep.mubr.bf16.mxu0 %v10974
        %11142 = vmatmul.mubr.bf16.gmra.mxu0 %v10973
        %v11143 = vpop.f32.mrf.mxu0
        %v11144 = vadd.f32 %v10636, %v11143
        %v11145 = vpop.f32.mrf.mxu0
        %v11146 = vpop.f32.mrf.mxu0
        %v11147 = vadd.f32 %v10641, %v11146
        %v11148 = vpop.f32.mrf.mxu0
        %11149 = vmatprep.mubr.bf16.mxu0 %v10978
        %11150 = vmatmul.mubr.bf16.gmra.mxu0 %v10977
        %v11151 = vpop.f32.mrf.mxu0
        %v11152 = vadd.f32 %v10646, %v11151
        %v11153 = vpop.f32.mrf.mxu0
        %v11154 = vpop.f32.mrf.mxu0
        %v11155 = vadd.f32 %v10651, %v11154
        %v11156 = vpop.f32.mrf.mxu0
        %11157 = vmatprep.mubr.bf16.mxu0 %v10982
        %11158 = vmatmul.mubr.bf16.gmra.mxu0 %v10981
        %v11159 = vpop.f32.mrf.mxu0
        %v11160 = vadd.f32 %v10656, %v11159
        %v11161 = vpop.f32.mrf.mxu0
        %v11162 = vpop.f32.mrf.mxu0
        %v11163 = vadd.f32 %v10661, %v11162
        %v11164 = vpop.f32.mrf.mxu0
        %11165 = vmatprep.mubr.bf16.mxu0 %v10986
        %11166 = vmatmul.mubr.bf16.gmra.mxu0 %v10985
        %v11167 = vpop.f32.mrf.mxu0
        %v11168 = vadd.f32 %v10666, %v11167
        %v11169 = vpop.f32.mrf.mxu0
        %v11170 = vpop.f32.mrf.mxu0
        %v11171 = vadd.f32 %v10671, %v11170
        %v11172 = vpop.f32.mrf.mxu0
        %11173 = vmatprep.mubr.bf16.mxu0 %v10990
        %11174 = vmatmul.mubr.bf16.gmra.mxu0 %v10989
        %v11175 = vpop.f32.mrf.mxu0
        %v11176 = vadd.f32 %v10676, %v11175
        %v11177 = vpop.f32.mrf.mxu0
        %v11178 = vpop.f32.mrf.mxu0
        %v11179 = vadd.f32 %v10681, %v11178
        %v11180 = vpop.f32.mrf.mxu0
        %11181 = vmatprep.mubr.bf16.mxu0 %v10994
        %11182 = vmatmul.mubr.bf16.gmra.mxu0 %v10993
        %v11183 = vpop.f32.mrf.mxu0
        %v11184 = vadd.f32 %v10686, %v11183
        %v11185 = vpop.f32.mrf.mxu0
        %v11186 = vpop.f32.mrf.mxu0
        %v11187 = vadd.f32 %v10691, %v11186
        %v11188 = vpop.f32.mrf.mxu0
        %11189 = vmatprep.mubr.bf16.mxu0 %v10998
        %11190 = vmatmul.mubr.bf16.gmra.mxu0 %v10997
        %v11191 = vpop.f32.mrf.mxu0
        %v11192 = vadd.f32 %v10696, %v11191
        %v11193 = vpop.f32.mrf.mxu0
        %v11194 = vpop.f32.mrf.mxu0
        %v11195 = vadd.f32 %v10701, %v11194
        %v11196 = vpop.f32.mrf.mxu0
        %11197 = vmatprep.mubr.bf16.mxu0 %v11002
        %11198 = vmatmul.mubr.bf16.gmra.mxu0 %v11001
        %v11199 = vpop.f32.mrf.mxu0
        %v11200 = vadd.f32 %v10706, %v11199
        %v11201 = vpop.f32.mrf.mxu0
        %v11202 = vpop.f32.mrf.mxu0
        %v11203 = vadd.f32 %v10711, %v11202
        %v11204 = vpop.f32.mrf.mxu0
        %11205 = vmatprep.mubr.bf16.mxu0 %v11006
        %11206 = vmatmul.mubr.bf16.gmra.mxu0 %v11005
        %v11207 = vpop.f32.mrf.mxu0
        %v11208 = vadd.f32 %v10716, %v11207
        %v11209 = vpop.f32.mrf.mxu0
        %v11210 = vpop.f32.mrf.mxu0
        %v11211 = vadd.f32 %v10721, %v11210
        %v11212 = vpop.f32.mrf.mxu0
        %11213 = vmatprep.mubr.bf16.mxu0 %v11010
        %11214 = vmatmul.mubr.bf16.gmra.mxu0 %v11009
        %v11215 = vpop.f32.mrf.mxu0
        %v11216 = vadd.f32 %v10726, %v11215
        %v11217 = vpop.f32.mrf.mxu0
        %v11218 = vpop.f32.mrf.mxu0
        %v11219 = vadd.f32 %v10731, %v11218
        %v11220 = vpop.f32.mrf.mxu0
        %11221 = vmatprep.mubr.bf16.mxu0 %v11014
        %11222 = vmatmul.mubr.bf16.gmra.mxu0 %v11013
        %v11223 = vpop.f32.mrf.mxu0
        %v11224 = vadd.f32 %v10736, %v11223
        %v11225 = vpop.f32.mrf.mxu0
        %v11226 = vpop.f32.mrf.mxu0
        %v11227 = vadd.f32 %v10741, %v11226
        %v11228 = vpop.f32.mrf.mxu0
        %11229 = vmatprep.mubr.bf16.mxu0 %v11018
        %11230 = vmatmul.mubr.bf16.gmra.mxu0 %v11017
        %v11231 = vpop.f32.mrf.mxu0
        %v11232 = vadd.f32 %v10746, %v11231
        %v11233 = vpop.f32.mrf.mxu0
        %v11234 = vpop.f32.mrf.mxu0
        %v11235 = vadd.f32 %v10751, %v11234
        %v11236 = vpop.f32.mrf.mxu0
        %11237 = vmatprep.mubr.bf16.mxu0 %v11022
        %11238 = vmatmul.mubr.bf16.gmra.mxu0 %v11021
        %v11239 = vpop.f32.mrf.mxu0
        %v11240 = vadd.f32 %v10756, %v11239
        %v11241 = vpop.f32.mrf.mxu0
        %v11242 = vpop.f32.mrf.mxu0
        %v11243 = vadd.f32 %v10761, %v11242
        %v11244 = vpop.f32.mrf.mxu0
        %11245 = vmatprep.mubr.bf16.mxu0 %v11026
        %11246 = vmatmul.mubr.bf16.gmra.mxu0 %v11025
        %v11247 = vpop.f32.mrf.mxu0
        %v11248 = vadd.f32 %v10766, %v11247
        %v11249 = vpop.f32.mrf.mxu0
        %v11250 = vpop.f32.mrf.mxu0
        %v11251 = vadd.f32 %v10771, %v11250
        %v11252 = vpop.f32.mrf.mxu0
        %11253 = vdwg.mxu0
        %11254 = vmatprep.subr.bf16.mxu0 0
        %11255 = vmatpush1.bf16.msra.mxu0 %v10572
        %11256 = vmatprep.subr.bf16.mxu0 0
        %11257 = vmatpush1.bf16.msra.mxu0 %v10571
        %11258 = vmatprep.subr.bf16.mxu0 0
        %11259 = vmatpush1.bf16.msra.mxu0 %v10570
        %11260 = vmatprep.subr.bf16.mxu0 0
        %11261 = vmatpush1.bf16.msra.mxu0 %v10569
        %11262 = vmatprep.subr.bf16.mxu0 0
        %11263 = vmatpush1.bf16.msra.mxu0 %v10568
        %11264 = vmatprep.subr.bf16.mxu0 0
        %11265 = vmatpush1.bf16.msra.mxu0 %v10567
        %11266 = vmatprep.subr.bf16.mxu0 0
        %11267 = vmatpush1.bf16.msra.mxu0 %v10566
        %11268 = vmatprep.subr.bf16.mxu0 0
        %11269 = vmatpush1.bf16.msra.mxu0 %v10565
        %11270 = vmatprep.subr.bf16.mxu0 0
        %11271 = vmatpush2.bf16.msra.mxu0 %v10580
        %11272 = vmatprep.subr.bf16.mxu0 0
        %11273 = vmatpush2.bf16.msra.mxu0 %v10579
        %11274 = vmatprep.subr.bf16.mxu0 0
        %11275 = vmatpush2.bf16.msra.mxu0 %v10578
        %11276 = vmatprep.subr.bf16.mxu0 0
        %11277 = vmatpush2.bf16.msra.mxu0 %v10577
        %11278 = vmatprep.subr.bf16.mxu0 0
        %11279 = vmatpush2.bf16.msra.mxu0 %v10576
        %11280 = vmatprep.subr.bf16.mxu0 0
        %11281 = vmatpush2.bf16.msra.mxu0 %v10575
        %11282 = vmatprep.subr.bf16.mxu0 0
        %11283 = vmatpush2.bf16.msra.mxu0 %v10574
        %11284 = vmatprep.subr.bf16.mxu0 0
        %11285 = vmatpush2.bf16.msra.mxu0 %v10573
        %11286 = vmatprep.mubr.bf16.mxu0 %v10968
        %11287 = vmatmul.mubr.bf16.gmra.mxu0 %v10967
        %v11288 = vpop.f32.mrf.mxu0
        %v11289 = vadd.f32 %v11128, %v11288
        %v11290 = vpop.f32.mrf.mxu0
        %v11291 = vpop.f32.mrf.mxu0
        %v11292 = vadd.f32 %v11131, %v11291
        %v11293 = vpop.f32.mrf.mxu0
        %11294 = vmatprep.mubr.bf16.mxu0 %v10972
        %11295 = vmatmul.mubr.bf16.gmra.mxu0 %v10971
        %v11296 = vpop.f32.mrf.mxu0
        %v11297 = vadd.f32 %v11136, %v11296
        %v11298 = vpop.f32.mrf.mxu0
        %v11299 = vpop.f32.mrf.mxu0
        %v11300 = vadd.f32 %v11139, %v11299
        %v11301 = vpop.f32.mrf.mxu0
        %11302 = vmatprep.mubr.bf16.mxu0 %v10976
        %11303 = vmatmul.mubr.bf16.gmra.mxu0 %v10975
        %v11304 = vpop.f32.mrf.mxu0
        %v11305 = vadd.f32 %v11144, %v11304
        %v11306 = vpop.f32.mrf.mxu0
        %v11307 = vpop.f32.mrf.mxu0
        %v11308 = vadd.f32 %v11147, %v11307
        %v11309 = vpop.f32.mrf.mxu0
        %11310 = vmatprep.mubr.bf16.mxu0 %v10980
        %11311 = vmatmul.mubr.bf16.gmra.mxu0 %v10979
        %v11312 = vpop.f32.mrf.mxu0
        %v11313 = vadd.f32 %v11152, %v11312
        %v11314 = vpop.f32.mrf.mxu0
        %v11315 = vpop.f32.mrf.mxu0
        %v11316 = vadd.f32 %v11155, %v11315
        %v11317 = vpop.f32.mrf.mxu0
        %11318 = vmatprep.mubr.bf16.mxu0 %v10984
        %11319 = vmatmul.mubr.bf16.gmra.mxu0 %v10983
        %v11320 = vpop.f32.mrf.mxu0
        %v11321 = vadd.f32 %v11160, %v11320
        %v11322 = vpop.f32.mrf.mxu0
        %v11323 = vpop.f32.mrf.mxu0
        %v11324 = vadd.f32 %v11163, %v11323
        %v11325 = vpop.f32.mrf.mxu0
        %11326 = vmatprep.mubr.bf16.mxu0 %v10988
        %11327 = vmatmul.mubr.bf16.gmra.mxu0 %v10987
        %v11328 = vpop.f32.mrf.mxu0
        %v11329 = vadd.f32 %v11168, %v11328
        %v11330 = vpop.f32.mrf.mxu0
        %v11331 = vpop.f32.mrf.mxu0
        %v11332 = vadd.f32 %v11171, %v11331
        %v11333 = vpop.f32.mrf.mxu0
        %11334 = vmatprep.mubr.bf16.mxu0 %v10992
        %11335 = vmatmul.mubr.bf16.gmra.mxu0 %v10991
        %v11336 = vpop.f32.mrf.mxu0
        %v11337 = vadd.f32 %v11176, %v11336
        %v11338 = vpop.f32.mrf.mxu0
        %v11339 = vpop.f32.mrf.mxu0
        %v11340 = vadd.f32 %v11179, %v11339
        %v11341 = vpop.f32.mrf.mxu0
        %11342 = vmatprep.mubr.bf16.mxu0 %v10996
        %11343 = vmatmul.mubr.bf16.gmra.mxu0 %v10995
        %v11344 = vpop.f32.mrf.mxu0
        %v11345 = vadd.f32 %v11184, %v11344
        %v11346 = vpop.f32.mrf.mxu0
        %v11347 = vpop.f32.mrf.mxu0
        %v11348 = vadd.f32 %v11187, %v11347
        %v11349 = vpop.f32.mrf.mxu0
        %11350 = vmatprep.mubr.bf16.mxu0 %v11000
        %11351 = vmatmul.mubr.bf16.gmra.mxu0 %v10999
        %v11352 = vpop.f32.mrf.mxu0
        %v11353 = vadd.f32 %v11192, %v11352
        %v11354 = vpop.f32.mrf.mxu0
        %v11355 = vpop.f32.mrf.mxu0
        %v11356 = vadd.f32 %v11195, %v11355
        %v11357 = vpop.f32.mrf.mxu0
        %11358 = vmatprep.mubr.bf16.mxu0 %v11004
        %11359 = vmatmul.mubr.bf16.gmra.mxu0 %v11003
        %v11360 = vpop.f32.mrf.mxu0
        %v11361 = vadd.f32 %v11200, %v11360
        %v11362 = vpop.f32.mrf.mxu0
        %v11363 = vpop.f32.mrf.mxu0
        %v11364 = vadd.f32 %v11203, %v11363
        %v11365 = vpop.f32.mrf.mxu0
        %11366 = vmatprep.mubr.bf16.mxu0 %v11008
        %11367 = vmatmul.mubr.bf16.gmra.mxu0 %v11007
        %v11368 = vpop.f32.mrf.mxu0
        %v11369 = vadd.f32 %v11208, %v11368
        %v11370 = vpop.f32.mrf.mxu0
        %v11371 = vpop.f32.mrf.mxu0
        %v11372 = vadd.f32 %v11211, %v11371
        %v11373 = vpop.f32.mrf.mxu0
        %11374 = vmatprep.mubr.bf16.mxu0 %v11012
        %11375 = vmatmul.mubr.bf16.gmra.mxu0 %v11011
        %v11376 = vpop.f32.mrf.mxu0
        %v11377 = vadd.f32 %v11216, %v11376
        %v11378 = vpop.f32.mrf.mxu0
        %v11379 = vpop.f32.mrf.mxu0
        %v11380 = vadd.f32 %v11219, %v11379
        %v11381 = vpop.f32.mrf.mxu0
        %11382 = vmatprep.mubr.bf16.mxu0 %v11016
        %11383 = vmatmul.mubr.bf16.gmra.mxu0 %v11015
        %v11384 = vpop.f32.mrf.mxu0
        %v11385 = vadd.f32 %v11224, %v11384
        %v11386 = vpop.f32.mrf.mxu0
        %v11387 = vpop.f32.mrf.mxu0
        %v11388 = vadd.f32 %v11227, %v11387
        %v11389 = vpop.f32.mrf.mxu0
        %11390 = vmatprep.mubr.bf16.mxu0 %v11020
        %11391 = vmatmul.mubr.bf16.gmra.mxu0 %v11019
        %v11392 = vpop.f32.mrf.mxu0
        %v11393 = vadd.f32 %v11232, %v11392
        %v11394 = vpop.f32.mrf.mxu0
        %v11395 = vpop.f32.mrf.mxu0
        %v11396 = vadd.f32 %v11235, %v11395
        %v11397 = vpop.f32.mrf.mxu0
        %11398 = vmatprep.mubr.bf16.mxu0 %v11024
        %11399 = vmatmul.mubr.bf16.gmra.mxu0 %v11023
        %v11400 = vpop.f32.mrf.mxu0
        %v11401 = vadd.f32 %v11240, %v11400
        %v11402 = vpop.f32.mrf.mxu0
        %v11403 = vpop.f32.mrf.mxu0
        %v11404 = vadd.f32 %v11243, %v11403
        %v11405 = vpop.f32.mrf.mxu0
        %11406 = vmatprep.mubr.bf16.mxu0 %v11028
        %11407 = vmatmul.mubr.bf16.gmra.mxu0 %v11027
        %v11408 = vpop.f32.mrf.mxu0
        %v11409 = vadd.f32 %v11248, %v11408
        %v11410 = vpop.f32.mrf.mxu0
        %v11411 = vpop.f32.mrf.mxu0
        %v11412 = vadd.f32 %v11251, %v11411
        %v11413 = vpop.f32.mrf.mxu0
        %11414 = vdwg.mxu0
        %v11415 = vmax.f32 %v11289, 0.0
        %v11416 = vmax.f32 %v11292, 0.0
        %v11417 = vmax.f32 %v11297, 0.0
        %v11418 = vmax.f32 %v11300, 0.0
        %v11419 = vmax.f32 %v11305, 0.0
        %v11420 = vmax.f32 %v11308, 0.0
        %v11421 = vmax.f32 %v11313, 0.0
        %v11422 = vmax.f32 %v11316, 0.0
        %v11423 = vmax.f32 %v11321, 0.0
        %v11424 = vmax.f32 %v11324, 0.0
        %v11425 = vmax.f32 %v11329, 0.0
        %v11426 = vmax.f32 %v11332, 0.0
        %v11427 = vmax.f32 %v11337, 0.0
        %v11428 = vmax.f32 %v11340, 0.0
        %v11429 = vmax.f32 %v11345, 0.0
        %v11430 = vmax.f32 %v11348, 0.0
        %v11431 = vmax.f32 %v11353, 0.0
        %v11432 = vmax.f32 %v11356, 0.0
        %v11433 = vmax.f32 %v11361, 0.0
        %v11434 = vmax.f32 %v11364, 0.0
        %v11435 = vmax.f32 %v11369, 0.0
        %v11436 = vmax.f32 %v11372, 0.0
        %v11437 = vmax.f32 %v11377, 0.0
        %v11438 = vmax.f32 %v11380, 0.0
        %v11439 = vmax.f32 %v11385, 0.0
        %v11440 = vmax.f32 %v11388, 0.0
        %v11441 = vmax.f32 %v11393, 0.0
        %v11442 = vmax.f32 %v11396, 0.0
        %v11443 = vmax.f32 %v11401, 0.0
        %v11444 = vmax.f32 %v11404, 0.0
        %v11445 = vmax.f32 %v11409, 0.0
        %v11446 = vmax.f32 %v11412, 0.0
        %v11447 = vld [vmem:[%s11] sm:$0xff]
        %v11448 = vld [vmem:[%s11 + $0x8] sm:$0x11]
        %v11449 = vpack.c.bf16 %v11416, %v11415
        %v11450 = vpack.c.bf16 %v11418, %v11417
        %v11451 = vpack.c.bf16 %v11420, %v11419
        %v11452 = vpack.c.bf16 %v11422, %v11421
        %v11453 = vpack.c.bf16 %v11424, %v11423
        %v11454 = vpack.c.bf16 %v11426, %v11425
        %v11455 = vpack.c.bf16 %v11428, %v11427
        %v11456 = vpack.c.bf16 %v11430, %v11429
        %v11457 = vpack.c.bf16 %v11432, %v11431
        %v11458 = vpack.c.bf16 %v11434, %v11433
        %v11459 = vpack.c.bf16 %v11436, %v11435
        %v11460 = vpack.c.bf16 %v11438, %v11437
        %v11461 = vpack.c.bf16 %v11440, %v11439
        %v11462 = vpack.c.bf16 %v11442, %v11441
        %v11463 = vpack.c.bf16 %v11444, %v11443
        %v11464 = vpack.c.bf16 %v11446, %v11445
        %v11465 = vld [vmem:[%s12] sm:$0xff]
        %v11466 = vld [vmem:[%s12 + $0x8] sm:$0x1]
        %11468 = vset.pattern.permute.xlu0 0
        %11469 = vperm.xlu0 %11468, %v11465
        %v11470 = vpop.permute.xlu0 %11469
        %11473 = vset.pattern.permute.xlu0 0
        %11474 = vperm.xlu0 %11473, %v11466
        %v11475 = vpop.permute.xlu0 %11474
        %v11479 = vunpack.c.l.b16 %v11447
        %v11480 = vunpack.c.h.b16 %v11447
        %v11481 = vunpack.c.l.b16 %v11448
        %v11482 = vunpack.c.h.b16 %v11448
        %v11483 = vpack.c.b16 %v11481, %v11479
        %v11484 = vpack.c.b16 %v11482, %v11480
        %11487 = vmatprep.subr.bf16.mxu0 0
        %11488 = vmatpush1.bf16.msra.mxu0 %v11456
        %11489 = vmatprep.subr.bf16.mxu0 0
        %11490 = vmatpush1.bf16.msra.mxu0 %v11455
        %11491 = vmatprep.subr.bf16.mxu0 0
        %11492 = vmatpush1.bf16.msra.mxu0 %v11454
        %11493 = vmatprep.subr.bf16.mxu0 0
        %11494 = vmatpush1.bf16.msra.mxu0 %v11453
        %11495 = vmatprep.subr.bf16.mxu0 0
        %11496 = vmatpush1.bf16.msra.mxu0 %v11452
        %11497 = vmatprep.subr.bf16.mxu0 0
        %11498 = vmatpush1.bf16.msra.mxu0 %v11451
        %11499 = vmatprep.subr.bf16.mxu0 0
        %11500 = vmatpush1.bf16.msra.mxu0 %v11450
        %11501 = vmatprep.subr.bf16.mxu0 0
        %11502 = vmatpush1.bf16.msra.mxu0 %v11449
        %11503 = vmatprep.subr.bf16.mxu0 0
        %11504 = vmatpush2.bf16.msra.mxu0 %v11464
        %11505 = vmatprep.subr.bf16.mxu0 0
        %11506 = vmatpush2.bf16.msra.mxu0 %v11463
        %11507 = vmatprep.subr.bf16.mxu0 0
        %11508 = vmatpush2.bf16.msra.mxu0 %v11462
        %11509 = vmatprep.subr.bf16.mxu0 0
        %11510 = vmatpush2.bf16.msra.mxu0 %v11461
        %11511 = vmatprep.subr.bf16.mxu0 0
        %11512 = vmatpush2.bf16.msra.mxu0 %v11460
        %11513 = vmatprep.subr.bf16.mxu0 0
        %11514 = vmatpush2.bf16.msra.mxu0 %v11459
        %11515 = vmatprep.subr.bf16.mxu0 0
        %11516 = vmatpush2.bf16.msra.mxu0 %v11458
        %11517 = vmatprep.subr.bf16.mxu0 0
        %11518 = vmatpush2.bf16.msra.mxu0 %v11457
        %11519 = vmatprep.mubr.bf16.mxu0 %v11484
        %11520 = vmatmul.mubr.bf16.gmra.mxu0 %v11483
        %v11521 = vpop.f32.mrf.mxu0
        %v11522 = vadd.f32 %v11470, %v11521
        %v11523 = vpop.f32.mrf.mxu0
        %v11524 = vpop.f32.mrf.mxu0
        %v11525 = vadd.f32 %v11475, %v11524
        %v11526 = vpop.f32.mrf.mxu0
        %11527 = vdwg.mxu0
        %v11528 = vld [vmem:[%s505] sm:$0x77]
        %11530 = vset.pattern.permute.xlu0 0
        %11531 = vperm.xlu0 %11530, %v11522
        %v11532 = vpop.permute.xlu0 %11531
        %v11535 = vlaneseq
        %v11536 = vshrl.u32 %v11535, 7
        %v11537 = vsub.s32 0, %v11536
        %v11538 = vrot.slane %v11528, %v11537
        %v11539 = vlaneseq
        %v11540 = vshrl.u32 %v11539, 7
        %v11541 = vsub.s32 4, %v11540
        %v11542 = vrot.slane %v11528, %v11541
        %v11545 = vlaneseq
        %v11546 = vshrl.u32 %v11545, 7
        %v11547 = vsub.s32 0, %v11546
        %v11548 = vrot.slane %v11538, %v11547
        %v11549 = vlaneseq
        %v11550 = vshrl.u32 %v11549, 7
        %v11551 = vsub.s32 0, %v11550
        %v11552 = vrot.slane %v11542, %v11551
        %v11553 = vmul.f32 %v11532, %v11548
        %v11554 = vmul.f32 %v11532, %v11552
        %v11555 = vlaneseq
        %v11556 = vshrl.u32 %v11555, 7
        %v11557 = vsub.s32 1, %v11556
        %v11558 = vrot.slane %v11528, %v11557
        %v11559 = vlaneseq
        %v11560 = vshrl.u32 %v11559, 7
        %v11561 = vsub.s32 5, %v11560
        %v11562 = vrot.slane %v11528, %v11561
        %v11565 = vlaneseq
        %v11566 = vshrl.u32 %v11565, 7
        %v11567 = vsub.s32 1, %v11566
        %v11568 = vrot.slane %v11558, %v11567
        %v11569 = vlaneseq
        %v11570 = vshrl.u32 %v11569, 7
        %v11571 = vsub.s32 1, %v11570
        %v11572 = vrot.slane %v11562, %v11571
        %v11573 = vmul.f32 %v11532, %v11568
        %v11574 = vmul.f32 %v11532, %v11572
        %v11577 = vrot.slane %v11573, 3
        %v11578 = vrot.slane %v11574, 3
        %v11581 = vadd.f32 %v11553, %v11577
        %v11582 = vadd.f32 %v11554, %v11578
        %11584 = vset.pattern.permute.xlu0 0
        %11585 = vperm.xlu0 %11584, %v11525
        %v11586 = vpop.permute.xlu0 %11585
        %v11588 = vlaneseq
        %v11589 = vshrl.u32 %v11588, 7
        %v11590 = vsub.s32 2, %v11589
        %v11591 = vrot.slane %v11528, %v11590
        %v11592 = vlaneseq
        %v11593 = vshrl.u32 %v11592, 7
        %v11594 = vsub.s32 6, %v11593
        %v11595 = vrot.slane %v11528, %v11594
        %v11598 = vlaneseq
        %v11599 = vshrl.u32 %v11598, 7
        %v11600 = vsub.s32 2, %v11599
        %v11601 = vrot.slane %v11591, %v11600
        %v11602 = vlaneseq
        %v11603 = vshrl.u32 %v11602, 7
        %v11604 = vsub.s32 2, %v11603
        %v11605 = vrot.slane %v11595, %v11604
        %v11606 = vmul.f32 %v11532, %v11601
        %v11607 = vmul.f32 %v11532, %v11605
        %v11608 = vmul.f32 %v11586, %v11601
        %v11609 = vmul.f32 %v11586, %v11605
        %vm11614 = vcmask 1041408
        %v11615 = vrot.slane %v11606, 6
        %v11616 = vrot.slane %v11608, 6
        %v11617 = vsel %vm11614, %v11615, %v11616
        %v11618 = vrot.slane %v11607, 6
        %v11619 = vrot.slane %v11609, 6
        %v11620 = vsel %vm11614, %v11618, %v11619
        %v11623 = vadd.f32 %v11581, %v11617
        %v11624 = vadd.f32 %v11582, %v11620
        %v11627 = vcombine.low %v11623, %v11624
        %11629 = vst [vmem:[%s512] sm:$0x77] %v11627
        %vm11630 = vcmask 2048
        %11631 = vst.msk [vmem:[%s518] sm:$0x7] %vm11630, %v11522
        %11632 = vrot.lane.b32.xlu0 %v11522, 1
        %v11633 = vpop.permute.xlu0 %11632
        %vm11635 = vcmask 13323
        %11636 = vst.msk [vmem:[%s518 - $0x3] sm:$0x38] %vm11635, %v11633
        %11637 = vrot.lane.b32.xlu0 %v11522, 2
        %v11638 = vpop.permute.xlu0 %11637
        %11639 = vrot.lane.b32.xlu0 %v11525, 2
        %v11640 = vpop.permute.xlu0 %11639
        %vm11643 = vcmask 23574
        %11644 = vst.msk [vmem:[%s518 - $0x6] sm:$0xc0] %vm11643, %v11638
        %vm11645 = vcmask 16400
        %11646 = vst.msk [vmem:[%s518 + $0x2] sm:$0x1] %vm11645, %v11640
        %v11647 = vld [vmem:[%s3917] sm:$0x77]
        %11648 = vset.pattern.permute.xlu0 1
        %11649 = vperm.xlu0 %11648, %v11522
        %v11650 = vpop.permute.xlu0 %11649
        %v11653 = vlaneseq
        %v11654 = vshrl.u32 %v11653, 7
        %v11655 = vsub.s32 0, %v11654
        %v11656 = vrot.slane %v11647, %v11655
        %v11657 = vlaneseq
        %v11658 = vshrl.u32 %v11657, 7
        %v11659 = vsub.s32 4, %v11658
        %v11660 = vrot.slane %v11647, %v11659
        %v11663 = vlaneseq
        %v11664 = vshrl.u32 %v11663, 7
        %v11665 = vsub.s32 0, %v11664
        %v11666 = vrot.slane %v11656, %v11665
        %v11667 = vlaneseq
        %v11668 = vshrl.u32 %v11667, 7
        %v11669 = vsub.s32 0, %v11668
        %v11670 = vrot.slane %v11660, %v11669
        %v11671 = vmul.f32 %v11650, %v11666
        %v11672 = vmul.f32 %v11650, %v11670
        %v11673 = vlaneseq
        %v11674 = vshrl.u32 %v11673, 7
        %v11675 = vsub.s32 1, %v11674
        %v11676 = vrot.slane %v11647, %v11675
        %v11677 = vlaneseq
        %v11678 = vshrl.u32 %v11677, 7
        %v11679 = vsub.s32 5, %v11678
        %v11680 = vrot.slane %v11647, %v11679
        %v11683 = vlaneseq
        %v11684 = vshrl.u32 %v11683, 7
        %v11685 = vsub.s32 1, %v11684
        %v11686 = vrot.slane %v11676, %v11685
        %v11687 = vlaneseq
        %v11688 = vshrl.u32 %v11687, 7
        %v11689 = vsub.s32 1, %v11688
        %v11690 = vrot.slane %v11680, %v11689
        %v11691 = vmul.f32 %v11650, %v11686
        %v11692 = vmul.f32 %v11650, %v11690
        %v11695 = vrot.slane %v11691, 3
        %v11696 = vrot.slane %v11692, 3
        %v11699 = vadd.f32 %v11671, %v11695
        %v11700 = vadd.f32 %v11672, %v11696
        %11701 = vset.pattern.permute.xlu0 1
        %11702 = vperm.xlu0 %11701, %v11525
        %v11703 = vpop.permute.xlu0 %11702
        %v11705 = vlaneseq
        %v11706 = vshrl.u32 %v11705, 7
        %v11707 = vsub.s32 2, %v11706
        %v11708 = vrot.slane %v11647, %v11707
        %v11709 = vlaneseq
        %v11710 = vshrl.u32 %v11709, 7
        %v11711 = vsub.s32 6, %v11710
        %v11712 = vrot.slane %v11647, %v11711
        %v11715 = vlaneseq
        %v11716 = vshrl.u32 %v11715, 7
        %v11717 = vsub.s32 2, %v11716
        %v11718 = vrot.slane %v11708, %v11717
        %v11719 = vlaneseq
        %v11720 = vshrl.u32 %v11719, 7
        %v11721 = vsub.s32 2, %v11720
        %v11722 = vrot.slane %v11712, %v11721
        %v11723 = vmul.f32 %v11650, %v11718
        %v11724 = vmul.f32 %v11650, %v11722
        %v11725 = vmul.f32 %v11703, %v11718
        %v11726 = vmul.f32 %v11703, %v11722
        %v11731 = vrot.slane %v11723, 6
        %v11732 = vrot.slane %v11725, 6
        %v11733 = vsel %vm11614, %v11731, %v11732
        %v11734 = vrot.slane %v11724, 6
        %v11735 = vrot.slane %v11726, 6
        %v11736 = vsel %vm11614, %v11734, %v11735
        %v11739 = vadd.f32 %v11699, %v11733
        %v11740 = vadd.f32 %v11700, %v11736
        %v11743 = vcombine.low %v11739, %v11740
        %s11745 = scalar_lea.vmem %s512, 8
        %11746 = vst [vmem:[%s11745] sm:$0x77] %v11743
        %11747 = vrot.lane.b32.xlu0 %v11522, 127
        %v11748 = vpop.permute.xlu0 %11747
        %s11750 = scalar_lea.vmem %s518, 4
        %11751 = vst.msk [vmem:[%s11750] sm:$0x7] %vm11630, %v11748
        %11752 = vst.msk [vmem:[%s11750 - $0x3] sm:$0x38] %vm11635, %v11522
        %11753 = vrot.lane.b32.xlu0 %v11525, 1
        %v11754 = vpop.permute.xlu0 %11753
        %11756 = vst.msk [vmem:[%s11750 - $0x6] sm:$0xc0] %vm11643, %v11633
        %11757 = vst.msk [vmem:[%s11750 + $0x2] sm:$0x1] %vm11645, %v11754
        %s11758 = smul.u32 2, %s28
        %p11759 = scmp.lt.s32.totalorder %s11758, 3
        %s11760 = scalar_select %p11759, %s11758, 3
        %s11761 = smul.addr %s11760, 2
        %s11762 = smul.addr %s11761, 4
        %s11763 = scalar_lea.vmem %s13, %s11762
        %s11764 = smul.u32 2, %s28
        %p11765 = scmp.lt.s32.totalorder %s11764, 3
        %s11766 = scalar_select %p11765, %s11764, 3
        %s11767 = smul.addr %s11766, 4
        %s11768 = scalar_lea.vmem %s14, %s11767
        // Predicated region
        $region81: #{tpu_custom_call.1} parent=71 // pred_check
          %p11769 = pneg %p324
        $region82: #{tpu_custom_call.1} parent=71 // pred_check_branch
          %11771 = sbr.rel (%p11769) target = $region84
        $region83: #{tpu_custom_call.1} parent=71 // pred_region
          %s11772 = smul.u32 2, %s28
        $region84: #{tpu_custom_call.1} parent=71 // pred_fallthru
          _
        // Predicated region
        $region85: #{tpu_custom_call.1} parent=71 // pred_check
          %p11773 = pneg %p350
        $region86: #{tpu_custom_call.1} parent=71 // pred_check_branch
          %11775 = sbr.rel (%p11773) target = $region88
        $region87: #{tpu_custom_call.1} parent=71 // pred_region
          %s11776 = smul.u32 2, %s28
        $region88: #{tpu_custom_call.1} parent=71 // pred_fallthru
          _
      $region72: #{tpu_custom_call.1} parent=5 // pred_fallthru
        _
      %p11777 = scmp.le.s32.totalorder 2, %s23
      // Predicated region
      $region89: #{tpu_custom_call.1} parent=5 // pred_check
        %p11778 = pneg %p11777
      $region90: #{tpu_custom_call.1} parent=5 // pred_check_branch
        %11780 = sbr.rel (%p11778) target = $region92
      $region91: #{tpu_custom_call.1} parent=5 // pred_region
        %s11781 = ssub.s32 %s23, 2
        // Predicated region
        $region93: #{tpu_custom_call.1} parent=91 // pred_check
          %p11782 = pneg %p330
        $region94: #{tpu_custom_call.1} parent=91 // pred_check_branch
          %11784 = sbr.rel (%p11782) target = $region96
        $region95: #{tpu_custom_call.1} parent=91 // pred_region
          %s11785 = smul.u32 2, %s29
          %p11786 = scmp.lt.s32.totalorder %s11785, 3
          %s11787 = scalar_select %p11786, %s11785, 3
          %s11788 = smul.addr %s11787, 2
          %s11789 = smul.addr %s11788, 4
          %s11790 = scalar_lea.vmem %s13, %s11789
        $region96: #{tpu_custom_call.1} parent=91 // pred_fallthru
          _
        // Predicated region
        $region97: #{tpu_custom_call.1} parent=91 // pred_check
          %p11791 = pneg %p356
        $region98: #{tpu_custom_call.1} parent=91 // pred_check_branch
          %11793 = sbr.rel (%p11791) target = $region100
        $region99: #{tpu_custom_call.1} parent=91 // pred_region
          %s11794 = smul.u32 2, %s29
          %p11795 = scmp.lt.s32.totalorder %s11794, 3
          %s11796 = scalar_select %p11795, %s11794, 3
          %s11797 = smul.addr %s11796, 4
          %s11798 = scalar_lea.vmem %s14, %s11797
        $region100: #{tpu_custom_call.1} parent=91 // pred_fallthru
          _
      $region92: #{tpu_custom_call.1} parent=5 // pred_fallthru
        _
    $region6: #{tpu_custom_call.1} parent=1 // loop_footer
      %s27 = sadd.s32 1, %s23
    $region7: #{tpu_custom_call.1} parent=1 // loop_footer_branch
      %22 = sbr.rel target = $region3
    $region8: #{tpu_custom_call.1} parent=1 // loop_exit
      _
    %11799 = vsyncpa [#allocation4], 1
    %s11800 = scalar_lea.sflag [#allocation4], 1
    %11801 = vsyncpa %s11800, 1
    %11802 = vsyncpa [#allocation6], 1

</llo_original>
